<compile_context>
chip_gen: v6e
topology: v6e:2x2x1
jax: 0.10.0
libtpu: 0.0.40
codegen_flags: <defaults>
</compile_context>

<pallas_src>
import functools

import jax
import jax.numpy as jnp
from jax.experimental import pallas as pl
from jax.experimental.pallas import tpu as pltpu

EPS = 1e-5
LANE = 128
VMEM_LIMIT = 64 * 1024 * 1024


def _round_up(x, m):
    return (x + m - 1) // m * m


# ---------------------- kernel 1: per-column batch statistics ---------------------- #

def _colstats_kernel(x_ref, sum_ref, sq_ref, acc_s, acc_q, *, m_total, tm):
    i = pl.program_id(0)

    @pl.when(i == 0)
    def _init():
        acc_s[...] = jnp.zeros_like(acc_s)
        acc_q[...] = jnp.zeros_like(acc_q)

    x = x_ref[...].astype(jnp.float32)
    if m_total % tm:                                      # mask the padded final tile
        row = jax.lax.broadcasted_iota(jnp.int32, x.shape, 0) + i * tm
        x = jnp.where(row < m_total, x, 0.0)
    acc_s[...] += jnp.sum(x, axis=0, keepdims=True)
    acc_q[...] += jnp.sum(x * x, axis=0, keepdims=True)

    @pl.when(i == pl.num_programs(0) - 1)
    def _fin():
        sum_ref[...] = acc_s[...]
        sq_ref[...] = acc_q[...]


def _column_sums(x2):
    """Per-channel (sum, sum^2).  Folds spatial positions into lanes when the channel
    count is narrow so this mem-bound pass streams lane-dense (multiple-of-128) rows."""
    M, C = x2.shape
    f = 1
    if C < LANE and LANE % C == 0 and M % (LANE // C) == 0:
        f = LANE // C
    xl = x2.reshape(M // f, f * C)
    Mr, Cl = xl.shape
    tm = Mr if Mr <= 4096 else 4096
    kern = functools.partial(_colstats_kernel, m_total=Mr, tm=tm)
    sums, sqs = pl.pallas_call(
        kern,
        out_shape=(jax.ShapeDtypeStruct((1, Cl), jnp.float32),
                   jax.ShapeDtypeStruct((1, Cl), jnp.float32)),
        grid=(pl.cdiv(Mr, tm),),
        in_specs=[pl.BlockSpec((tm, Cl), lambda i: (i, 0))],
        out_specs=(pl.BlockSpec((1, Cl), lambda i: (0, 0)),
                   pl.BlockSpec((1, Cl), lambda i: (0, 0))),
        scratch_shapes=[pltpu.VMEM((1, Cl), jnp.float32),
                        pltpu.VMEM((1, Cl), jnp.float32)],
        compiler_params=pltpu.CompilerParams(dimension_semantics=("arbitrary",),
                                             vmem_limit_bytes=VMEM_LIMIT),
    )(xl)
    if f > 1:
        sums = sums.reshape(f, C).sum(axis=0)
        sqs = sqs.reshape(f, C).sum(axis=0)
    else:
        sums = sums.reshape(C)
        sqs = sqs.reshape(C)
    return sums, sqs


def _bn_affine(sums, sqs, count, gamma, beta):
    """Fold training-mode BatchNorm into a per-channel affine (scale, shift)."""
    mean = sums / count
    var = jnp.maximum(sqs / count - mean * mean, 0.0)     # clamp single-pass variance
    scale = gamma.astype(jnp.float32) * jax.lax.rsqrt(var + EPS)
    shift = beta.astype(jnp.float32) - mean * scale
    return scale.reshape(1, -1), shift.reshape(1, -1)


# ------------------ kernel 2: fused BN + ReLU + conv3x3 (+ extras) ------------------ #

def _conv_kernel(*refs, stride, B_tile, Ho, Wo, Cin, Cpad, tpg, chunk_rows,
                 has_sc, has_res, has_emb, emit_stats):
    n_phase = stride * stride
    idx = 0
    scale_ref = refs[idx]; idx += 1
    shift_ref = refs[idx]; idx += 1
    w_ref = refs[idx]; idx += 1
    wsc_ref = None
    if has_sc:
        wsc_ref = refs[idx]; idx += 1
    res_ref = emb_ref = None
    if has_res:
        res_ref = refs[idx]; idx += 1
    if has_emb:
        emb_ref = refs[idx]; idx += 1
    phase_refs = refs[idx:idx + n_phase]; idx += n_phase
    o_ref = refs[idx]; idx += 1
    osc_ref = None
    if has_sc:
        osc_ref = refs[idx]; idx += 1
    ssum_ref = ssq_ref = None
    if emit_stats:
        ssum_ref, ssq_ref = refs[idx], refs[idx + 1]; idx += 2
    pad_refs = refs[idx:idx + n_phase]; idx += n_phase
    col_ref = refs[idx]                                   # (Mc, 9*Cin) bf16 im2col tile

    f32 = jnp.float32
    scale = scale_ref[...].reshape(1, 1, 1, Cin)
    shift = shift_ref[...].reshape(1, 1, 1, Cin)

    # BN + ReLU into the padded VMEM tile.  Only the 1-px border is cleared (cheap,
    # every step -> correct even when the parallel grid axis is split across cores);
    # the interior is fully overwritten.
    for p in range(n_phase):
        pr = pad_refs[p]
        pr[:, pl.ds(0, 1), :, :] = jnp.zeros((B_tile, 1, Wo + 2, Cin), f32)
        pr[:, pl.ds(Ho + 1, 1), :, :] = jnp.zeros((B_tile, 1, Wo + 2, Cin), f32)
        pr[:, :, pl.ds(0, 1), :] = jnp.zeros((B_tile, Ho + 2, 1, Cin), f32)
        pr[:, :, pl.ds(Wo + 1, 1), :] = jnp.zeros((B_tile, Ho + 2, 1, Cin), f32)
        y = jnp.maximum(phase_refs[p][...].astype(f32) * scale + shift, 0.0)
        pr[:, pl.ds(1, Ho), pl.ds(1, Wo), :] = y

    if emit_stats:                                        # fused norm_2 stat partials
        ssum_ref[...] = jnp.zeros_like(ssum_ref)
        ssq_ref[...] = jnp.zeros_like(ssq_ref)

    # Tap d in {0,1,2} (pad=1): input coord = stride*o + d - 1.  Polyphase component
    # r = (d-1) % stride, window offset q = (d-1-r)//stride -> contiguous window.
    taps = []
    for d in range(3):
        v = d - 1
        r = v % stride
        taps.append((r, (v - r) // stride))

    n_groups = 9 // tpg
    kg = tpg * Cin
    Mc = chunk_rows * Wo

    for b in range(B_tile):
        for c in range(Ho // chunk_rows):
            r0 = c * chunk_rows
            # pack the 9 taps into the contraction (K) dim of the VMEM im2col tile
            for t in range(9):
                dy, dx = t // 3, t % 3
                py, qy = taps[dy]
                px, qx = taps[dx]
                win = pad_refs[py * stride + px][
                    b, pl.ds(1 + qy + r0, chunk_rows), pl.ds(1 + qx, Wo), :]
                col_ref[:, pl.ds(t * Cin, Cin)] = (
                    win.reshape(Mc, Cin).astype(col_ref.dtype))

            acc = jnp.zeros((Mc, Cpad), jnp.float32)
            for g in range(n_groups):                     # 1-3 wide-K MXU matmuls
                acc = acc + jnp.dot(col_ref[:, pl.ds(g * kg, kg)],
                                    w_ref[pl.ds(g * kg, kg), :],
                                    preferred_element_type=jnp.float32)

            if emit_stats:                                # partial (sum, sum^2) of h
                ssum_ref[...] += jnp.sum(acc, axis=0, keepdims=True)
                ssq_ref[...] += jnp.sum(acc * acc, axis=0, keepdims=True)

            if has_sc:
                # 1x1 stride-s shortcut = the normalized center tap already in col_ref
                osc_ref[b, pl.ds(c * Mc, Mc), :] = jnp.dot(
                    col_ref[:, pl.ds(4 * Cin, Cin)], wsc_ref[...],
                    preferred_element_type=jnp.float32).astype(osc_ref.dtype)

            if has_res:
                r_blk = res_ref[b, pl.ds(c * Mc, Mc), :].astype(jnp.float32)
                if has_emb:
                    # exact zero-extension of the narrow residual into Cpad lanes via
                    # an identity-embedding matmul (avoids HBM channel padding)
                    acc = acc + jnp.dot(r_blk, emb_ref[...],
                                        preferred_element_type=jnp.float32)
                else:
                    acc = acc + r_blk

            o_ref[b, pl.ds(c * Mc, Mc), :] = acc.astype(o_ref.dtype)


def _fused_conv(phases, scale, shift, w3, *, stride, wsc=None, residual=None,
                alias_residual=False, emit_stats=False, out_dtype=jnp.float32):
    n_phase = stride * stride
    assert len(phases) == n_phase
    N, Ho, Wo, Cin = phases[0].shape
    Mo = Ho * Wo
    Cpad = w3.shape[-1]
    has_sc = wsc is not None
    has_res = residual is not None
    res_c = residual.shape[-1] if has_res else 0
    has_emb = has_res and res_c != Cpad

    # batch-tile the grid so the matmul M dimension is well filled
    B_tile = 1
    for b in range(1, min(N, 8) + 1):
        if N % b == 0 and b * Mo <= 512:
            B_tile = b
    n_steps = N // B_tile

    # how many taps share one dot (K = tpg*Cin), bounded so operands stay small
    if 9 * Cin <= 288:
        tpg = 9
    elif 3 * Cin <= 384:
        tpg = 3
    else:
        tpg = 1
    chunk_rows = max(1, min(Ho, 128 // max(1, Wo)))       # bound accumulator vregs
    while Ho % chunk_rows:
        chunk_rows -= 1
    Mc = chunk_rows * Wo

    kernel = functools.partial(
        _conv_kernel, stride=stride, B_tile=B_tile, Ho=Ho, Wo=Wo, Cin=Cin, Cpad=Cpad,
        tpg=tpg, chunk_rows=chunk_rows, has_sc=has_sc, has_res=has_res,
        has_emb=has_emb, emit_stats=emit_stats)

    in_specs = [pl.BlockSpec((1, Cin), lambda n: (0, 0)),
                pl.BlockSpec((1, Cin), lambda n: (0, 0)),
                pl.BlockSpec(w3.shape, lambda n: (0, 0))]
    args = [scale, shift, w3]
    io_aliases = {}
    if has_sc:
        in_specs.append(pl.BlockSpec(wsc.shape, lambda n: (0, 0)))
        args.append(wsc)
    if has_res:
        in_specs.append(pl.BlockSpec((B_tile, Mo, res_c), lambda n: (n, 0, 0)))
        if alias_residual:
            io_aliases[len(args)] = 0     # residual HBM buffer reused as conv output
        args.append(residual)
    if has_emb:
        emb = jnp.eye(res_c, Cpad, dtype=jnp.float32)
        in_specs.append(pl.BlockSpec(emb.shape, lambda n: (0, 0)))
        args.append(emb)
    for ph in phases:
        in_specs.append(pl.BlockSpec((B_tile, Ho, Wo, Cin), lambda n: (n, 0, 0, 0)))
        args.append(ph)

    out_shapes = [jax.ShapeDtypeStruct((N, Mo, Cpad), out_dtype)]
    out_specs = [pl.BlockSpec((B_tile, Mo, Cpad), lambda n: (n, 0, 0))]
    if has_sc:
        out_shapes.append(jax.ShapeDtypeStruct((N, Mo, Cpad), jnp.float32))
        out_specs.append(pl.BlockSpec((B_tile, Mo, Cpad), lambda n: (n, 0, 0)))
    if emit_stats:
        for _ in range(2):
            out_shapes.append(jax.ShapeDtypeStruct((n_steps, Cpad), jnp.float32))
            out_specs.append(pl.BlockSpec((1, Cpad), lambda n: (n, 0)))

    scratch = [pltpu.VMEM((B_tile, Ho + 2, Wo + 2, Cin), jnp.float32)
               for _ in range(n_phase)]
    scratch.append(pltpu.VMEM((Mc, 9 * Cin), jnp.bfloat16))

    return pl.pallas_call(
        kernel,
        out_shape=tuple(out_shapes),
        grid=(n_steps,),
        in_specs=in_specs,
        out_specs=tuple(out_specs),
        scratch_shapes=scratch,
        input_output_aliases=io_aliases,
        compiler_params=pltpu.CompilerParams(dimension_semantics=("parallel",),
                                             vmem_limit_bytes=VMEM_LIMIT),
    )(*args)


# ----------------------------------- wrappers ----------------------------------- #

def _conv_weight_matrix(w_oihw, cin_pad, cout_pad):
    """(Cout, Cin, kh, kw) -> (kh*kw*cin_pad, cout_pad) bf16 matmul operand with the K
    dimension ordered tap-major / channel-minor (matches the in-kernel im2col pack)."""
    Cout, Cin, kh, kw = w_oihw.shape
    w = jnp.transpose(w_oihw, (2, 3, 1, 0))
    w = jnp.pad(w, ((0, 0), (0, 0), (0, cin_pad - Cin), (0, cout_pad - Cout)))
    return w.reshape(kh * kw * cin_pad, cout_pad).astype(jnp.bfloat16)


def _phase_decompose(x, s):
    """Polyphase split of NHWC x for stride s (1x traffic; identity for s == 1)."""
    if s == 1:
        return [x]
    return [x[:, py::s, px::s, :] for py in range(s) for px in range(s)]


@functools.partial(jax.jit, static_argnames=("stride",))
def basic_block_forward(x_nchw, params, stride):
    """BasicBlock.forward; input/output NCHW (PyTorch convention)."""
    x = jnp.transpose(x_nchw, (0, 2, 3, 1)).astype(jnp.float32)   # NCHW -> NHWC once
    N, H, W, Cin = x.shape
    assert H % stride == 0 and W % stride == 0
    equal_in_and_out = params["W_sc"] is None
    Cout = params["W1"].shape[0]
    Cpad = _round_up(Cout, LANE)          # lane-dense / MXU-friendly output channels
    Ho, Wo = H // stride, W // stride
    Mo = Ho * Wo

    w1 = _conv_weight_matrix(params["W1"], Cin, Cpad)      # (9*Cin, Cpad)
    w2 = _conv_weight_matrix(params["W2"], Cpad, Cpad)     # (9*Cpad, Cpad)

    # norm_1: one lane-dense stats pass over x, affine fold finished in XLA (tiny).
    sums1, sqs1 = _column_sums(x.reshape(N * H * W, Cin))
    scale1, shift1 = _bn_affine(sums1, sqs1, N * H * W,
                                params["gamma1"], params["beta1"])
    phases = _phase_decompose(x, stride)

    if not equal_in_and_out:
        wsc = _conv_weight_matrix(params["W_sc"], Cin, Cpad)       # (Cin, Cpad)
        h, sc, psum, psq = _fused_conv(phases, scale1, shift1, w1, stride=stride,
                                       wsc=wsc, emit_stats=True,
                                       out_dtype=jnp.bfloat16)
        residual, alias = sc, True
    else:
        h, psum, psq = _fused_conv(phases, scale1, shift1, w1, stride=stride,
                                   emit_stats=True, out_dtype=jnp.bfloat16)
        residual, alias = x.reshape(N, H * W, Cin), False  # raw x, no Cpad inflation

    # norm_2: statistics were accumulated inside the conv_1 kernel (no extra pass).
    gamma2 = jnp.pad(params["gamma2"], (0, Cpad - Cout))
    beta2 = jnp.pad(params["beta2"], (0, Cpad - Cout))
    scale2, shift2 = _bn_affine(psum.sum(axis=0), psq.sum(axis=0), N * Mo,
                                gamma2, beta2)

    outs = _fused_conv([h.reshape(N, Ho, Wo, Cpad)], scale2, shift2, w2, stride=1,
                       residual=residual, alias_residual=alias,
                       out_dtype=jnp.float32)
    out = outs[0].reshape(N, Ho, Wo, Cpad)[..., :Cout]
    return jnp.transpose(out, (0, 3, 1, 2))                # NHWC -> NCHW


# -------------------------------- pure-JAX reference -------------------------------- #

def _reference(x, params, stride):
    def bn_relu_ref(v, g, b):
        mean = v.mean(axis=(0, 2, 3), keepdims=True)
        var = ((v - mean) ** 2).mean(axis=(0, 2, 3), keepdims=True)
        y = (v - mean) / jnp.sqrt(var + EPS) * g.reshape(1, -1, 1, 1) + b.reshape(1, -1, 1, 1)
        return jnp.maximum(y, 0.0)

    def conv_ref(v, w, s, p):
        return jax.lax.conv_general_dilated(
            v, w, (s, s), [(p, p), (p, p)],
            dimension_numbers=("NCHW", "OIHW", "NCHW"))

    if params["W_sc"] is not None:
        xb = bn_relu_ref(x, params["gamma1"], params["beta1"])
        out = conv_ref(xb, params["W1"], stride, 1)
        out = bn_relu_ref(out, params["gamma2"], params["beta2"])
        out = conv_ref(out, params["W2"], 1, 1)
        return conv_ref(xb, params["W_sc"], stride, 0) + out
    else:
        h = bn_relu_ref(x, params["gamma1"], params["beta1"])
        out = conv_ref(h, params["W1"], stride, 1)
        out = bn_relu_ref(out, params["gamma2"], params["beta2"])
        out = conv_ref(out, params["W2"], 1, 1)
        return x + out


# -------------------------------------- main -------------------------------------- #

if __name__ == "__main__":
    key = jax.random.PRNGKey(0)

    # --- projection path (channel change + downsampling): 16 -> 32, stride 2 ---
    N, Cin, H, W = 2, 16, 16, 16
    Cout, stride = 32, 2
    k0, k1, k2, k3, k4, k5, k6 = jax.random.split(key, 7)
    x = jax.random.normal(k0, (N, Cin, H, W), jnp.float32)
    params = dict(
        gamma1=jnp.linspace(0.5, 1.5, Cin, dtype=jnp.float32),
        beta1=jnp.linspace(-0.1, 0.1, Cin, dtype=jnp.float32),
        W1=0.1 * jax.random.normal(k1, (Cout, Cin, 3, 3), jnp.float32),
        gamma2=jnp.linspace(0.8, 1.2, Cout, dtype=jnp.float32),
        beta2=jnp.linspace(-0.05, 0.05, Cout, dtype=jnp.float32),
        W2=0.1 * jax.random.normal(k2, (Cout, Cout, 3, 3), jnp.float32),
        W_sc=0.1 * jax.random.normal(k3, (Cout, Cin, 1, 1), jnp.float32),
    )
    out = jax.block_until_ready(basic_block_forward(x, params, stride=stride))
    ref = _reference(x, params, stride)
    assert out.shape == ref.shape == (N, Cout, H // stride, W // stride), out.shape
    err = float(jnp.max(jnp.abs(out - ref)))
    assert err < 1e-1, f"projection-path mismatch vs reference: {err}"

    # --- identity path (equal channels, stride 1): 32 -> 32 ---
    C2 = 32
    x2 = jax.random.normal(k4, (N, C2, H, W), jnp.float32)
    params2 = dict(
        gamma1=jnp.linspace(0.7, 1.3, C2, dtype=jnp.float32),
        beta1=jnp.linspace(-0.1, 0.1, C2, dtype=jnp.float32),
        W1=0.1 * jax.random.normal(k5, (C2, C2, 3, 3), jnp.float32),
        gamma2=jnp.linspace(0.9, 1.1, C2, dtype=jnp.float32),
        beta2=jnp.linspace(-0.05, 0.05, C2, dtype=jnp.float32),
        W2=0.1 * jax.random.normal(k6, (C2, C2, 3, 3), jnp.float32),
        W_sc=None,
    )
    out2 = jax.block_until_ready(basic_block_forward(x2, params2, stride=1))
    ref2 = _reference(x2, params2, 1)
    assert out2.shape == ref2.shape == (N, C2, H, W), out2.shape
    err2 = float(jnp.max(jnp.abs(out2 - ref2)))
    assert err2 < 1e-1, f"identity-path mismatch vs reference: {err2}"

    print("KERNEL_OK")
</pallas_src>

<mosaic_0001>
module attributes {stable_mosaic.version = 11 : i64} {
  func.func @_colstats_kernel(%arg0: i32, %arg1: memref<64x128xf32, #tpu.memory_space<vmem>>, %arg2: memref<1x128xf32, #tpu.memory_space<vmem>>, %arg3: memref<1x128xf32, #tpu.memory_space<vmem>>, %arg4: memref<1x128xf32, #tpu.memory_space<vmem>>, %arg5: memref<1x128xf32, #tpu.memory_space<vmem>>) attributes {dimension_semantics = [#tpu.dimension_semantics<arbitrary>], iteration_bounds = array<i64: 1>, scalar_prefetch = 0 : i64, scratch_operands = 2 : i64, tpu.core_type = #tpu.core_type<tc>, window_params = [{transform_indices = @transform_0, window_bounds = array<i64: 64, 128>}, {pipeline_mode = #tpu.pipeline_mode<synchronous>, transform_indices = @transform_1, window_bounds = array<i64: 1, 128>}, {pipeline_mode = #tpu.pipeline_mode<synchronous>, transform_indices = @transform_2, window_bounds = array<i64: 1, 128>}]} {
    %c0_i32 = arith.constant 0 : i32
    %0 = arith.cmpi eq, %arg0, %c0_i32 : i32
    %1 = arith.extui %0 : i1 to i32
    %c0_i32_0 = arith.constant 0 : i32
    %2 = arith.cmpi ne, %1, %c0_i32_0 : i32
    scf.if %2 {
      %cst_13 = arith.constant 0.000000e+00 : f32
      %18 = vector.broadcast %cst_13 : f32 to vector<1x128xf32>
      %c0_14 = arith.constant 0 : index
      %c0_15 = arith.constant 0 : index
      %19 = vector.load %arg4[%c0_14, %c0_15] : memref<1x128xf32, #tpu.memory_space<vmem>>, vector<1x128xf32>
      tpu.vector_store %arg4[%c0_14, %c0_15], %18 {strides = array<i32>} : memref<1x128xf32, #tpu.memory_space<vmem>>, vector<1x128xf32>,
      %cst_16 = arith.constant 0.000000e+00 : f32
      %20 = vector.broadcast %cst_16 : f32 to vector<1x128xf32>
      %c0_17 = arith.constant 0 : index
      %c0_18 = arith.constant 0 : index
      %21 = vector.load %arg5[%c0_17, %c0_18] : memref<1x128xf32, #tpu.memory_space<vmem>>, vector<1x128xf32>
      tpu.vector_store %arg5[%c0_17, %c0_18], %20 {strides = array<i32>} : memref<1x128xf32, #tpu.memory_space<vmem>>, vector<1x128xf32>,
    } else {
    }
    %c0 = arith.constant 0 : index
    %c0_1 = arith.constant 0 : index
    %3 = vector.load %arg1[%c0, %c0_1] : memref<64x128xf32, #tpu.memory_space<vmem>>, vector<64x128xf32>
    %c0_2 = arith.constant 0 : index
    %c0_3 = arith.constant 0 : index
    %4 = vector.load %arg4[%c0_2, %c0_3] : memref<1x128xf32, #tpu.memory_space<vmem>>, vector<1x128xf32>
    %cst = arith.constant dense<0.000000e+00> : vector<128xf32>
    %5 = vector.multi_reduction <add>, %3, %cst [0] : vector<64x128xf32> to vector<128xf32>
    %6 = vector.shape_cast %5 : vector<128xf32> to vector<1x128xf32>
    %7 = arith.addf %4, %6 : vector<1x128xf32>
    %c0_4 = arith.constant 0 : index
    %c0_5 = arith.constant 0 : index
    %8 = vector.load %arg4[%c0_4, %c0_5] : memref<1x128xf32, #tpu.memory_space<vmem>>, vector<1x128xf32>
    tpu.vector_store %arg4[%c0_4, %c0_5], %7 {strides = array<i32>} : memref<1x128xf32, #tpu.memory_space<vmem>>, vector<1x128xf32>,
    %c0_6 = arith.constant 0 : index
    %c0_7 = arith.constant 0 : index
    %9 = vector.load %arg5[%c0_6, %c0_7] : memref<1x128xf32, #tpu.memory_space<vmem>>, vector<1x128xf32>
    %10 = arith.mulf %3, %3 : vector<64x128xf32>
    %cst_8 = arith.constant dense<0.000000e+00> : vector<128xf32>
    %11 = vector.multi_reduction <add>, %10, %cst_8 [0] : vector<64x128xf32> to vector<128xf32>
    %12 = vector.shape_cast %11 : vector<128xf32> to vector<1x128xf32>
    %13 = arith.addf %9, %12 : vector<1x128xf32>
    %c0_9 = arith.constant 0 : index
    %c0_10 = arith.constant 0 : index
    %14 = vector.load %arg5[%c0_9, %c0_10] : memref<1x128xf32, #tpu.memory_space<vmem>>, vector<1x128xf32>
    tpu.vector_store %arg5[%c0_9, %c0_10], %13 {strides = array<i32>} : memref<1x128xf32, #tpu.memory_space<vmem>>, vector<1x128xf32>,
    %c0_i32_11 = arith.constant 0 : i32
    %15 = arith.cmpi eq, %arg0, %c0_i32_11 : i32
    %16 = arith.extui %15 : i1 to i32
    %c0_i32_12 = arith.constant 0 : i32
    %17 = arith.cmpi ne, %16, %c0_i32_12 : i32
    scf.if %17 {
      %c0_13 = arith.constant 0 : index
      %c0_14 = arith.constant 0 : index
      %18 = vector.load %arg4[%c0_13, %c0_14] : memref<1x128xf32, #tpu.memory_space<vmem>>, vector<1x128xf32>
      %c0_15 = arith.constant 0 : index
      %c0_16 = arith.constant 0 : index
      %19 = vector.load %arg2[%c0_15, %c0_16] : memref<1x128xf32, #tpu.memory_space<vmem>>, vector<1x128xf32>
      tpu.vector_store %arg2[%c0_15, %c0_16], %18 {strides = array<i32>} : memref<1x128xf32, #tpu.memory_space<vmem>>, vector<1x128xf32>,
      %c0_17 = arith.constant 0 : index
      %c0_18 = arith.constant 0 : index
      %20 = vector.load %arg5[%c0_17, %c0_18] : memref<1x128xf32, #tpu.memory_space<vmem>>, vector<1x128xf32>
      %c0_19 = arith.constant 0 : index
      %c0_20 = arith.constant 0 : index
      %21 = vector.load %arg3[%c0_19, %c0_20] : memref<1x128xf32, #tpu.memory_space<vmem>>, vector<1x128xf32>
      tpu.vector_store %arg3[%c0_19, %c0_20], %20 {strides = array<i32>} : memref<1x128xf32, #tpu.memory_space<vmem>>, vector<1x128xf32>,
    } else {
    }
    return
  }
  func.func @transform_0(%arg0: i32) -> (i32, i32) {
    %c0_i32 = arith.constant 0 : i32
    %c0_i32_0 = arith.constant 0 : i32
    return %arg0, %c0_i32 : i32, i32
  }
  func.func @transform_1(%arg0: i32) -> (i32, i32) {
    %c0_i32 = arith.constant 0 : i32
    %c0_i32_0 = arith.constant 0 : i32
    %c0_i32_1 = arith.constant 0 : i32
    return %c0_i32, %c0_i32_0 : i32, i32
  }
  func.func @transform_2(%arg0: i32) -> (i32, i32) {
    %c0_i32 = arith.constant 0 : i32
    %c0_i32_0 = arith.constant 0 : i32
    %c0_i32_1 = arith.constant 0 : i32
    return %c0_i32, %c0_i32_0 : i32, i32
  }
}

module attributes {stable_mosaic.version = 11 : i64} {
  func.func @_conv_kernel(%arg0: i32, %arg1: memref<1x16xf32, #tpu.memory_space<vmem>>, %arg2: memref<1x16xf32, #tpu.memory_space<vmem>>, %arg3: memref<144x128xbf16, #tpu.memory_space<vmem>>, %arg4: memref<16x128xbf16, #tpu.memory_space<vmem>>, %arg5: memref<2x8x8x16xf32, #tpu.memory_space<vmem>>, %arg6: memref<2x8x8x16xf32, #tpu.memory_space<vmem>>, %arg7: memref<2x8x8x16xf32, #tpu.memory_space<vmem>>, %arg8: memref<2x8x8x16xf32, #tpu.memory_space<vmem>>, %arg9: memref<2x64x128xbf16, #tpu.memory_space<vmem>>, %arg10: memref<2x64x128xf32, #tpu.memory_space<vmem>>, %arg11: memref<1x128xf32, #tpu.memory_space<vmem>>, %arg12: memref<1x128xf32, #tpu.memory_space<vmem>>, %arg13: memref<2x10x10x16xf32, #tpu.memory_space<vmem>>, %arg14: memref<2x10x10x16xf32, #tpu.memory_space<vmem>>, %arg15: memref<2x10x10x16xf32, #tpu.memory_space<vmem>>, %arg16: memref<2x10x10x16xf32, #tpu.memory_space<vmem>>, %arg17: memref<64x144xbf16, #tpu.memory_space<vmem>>) attributes {dimension_semantics = [#tpu.dimension_semantics<parallel>], iteration_bounds = array<i64: 1>, scalar_prefetch = 0 : i64, scratch_operands = 5 : i64, tpu.core_type = #tpu.core_type<tc>, window_params = [{pipeline_mode = #tpu.pipeline_mode<synchronous>, transform_indices = @transform_0, window_bounds = array<i64: 1, 16>}, {pipeline_mode = #tpu.pipeline_mode<synchronous>, transform_indices = @transform_1, window_bounds = array<i64: 1, 16>}, {pipeline_mode = #tpu.pipeline_mode<synchronous>, transform_indices = @transform_2, window_bounds = array<i64: 144, 128>}, {pipeline_mode = #tpu.pipeline_mode<synchronous>, transform_indices = @transform_3, window_bounds = array<i64: 16, 128>}, {transform_indices = @transform_4, window_bounds = array<i64: 2, 8, 8, 16>}, {transform_indices = @transform_5, window_bounds = array<i64: 2, 8, 8, 16>}, {transform_indices = @transform_6, window_bounds = array<i64: 2, 8, 8, 16>}, {transform_indices = @transform_7, window_bounds = array<i64: 2, 8, 8, 16>}, {transform_indices = @transform_8, window_bounds = array<i64: 2, 64, 128>}, {transform_indices = @transform_9, window_bounds = array<i64: 2, 64, 128>}, {transform_indices = @transform_10, window_bounds = array<i64: 1, 128>}, {transform_indices = @transform_11, window_bounds = array<i64: 1, 128>}]} {
    %c0 = arith.constant 0 : index
    %c0_0 = arith.constant 0 : index
    %0 = vector.load %arg1[%c0, %c0_0] : memref<1x16xf32, #tpu.memory_space<vmem>>, vector<1x16xf32>
    %1 = vector.shape_cast %0 : vector<1x16xf32> to vector<1x1x1x16xf32>
    %c0_1 = arith.constant 0 : index
    %c0_2 = arith.constant 0 : index
    %2 = vector.load %arg2[%c0_1, %c0_2] : memref<1x16xf32, #tpu.memory_space<vmem>>, vector<1x16xf32>
    %3 = vector.shape_cast %2 : vector<1x16xf32> to vector<1x1x1x16xf32>
    %cst = arith.constant 0.000000e+00 : f32
    %4 = vector.broadcast %cst : f32 to vector<2x1x10x16xf32>
    %c0_3 = arith.constant 0 : index
    %c0_4 = arith.constant 0 : index
    %c0_5 = arith.constant 0 : index
    %c0_6 = arith.constant 0 : index
    %5 = vector.load %arg13[%c0_3, %c0_4, %c0_5, %c0_6] : memref<2x10x10x16xf32, #tpu.memory_space<vmem>>, vector<2x1x10x16xf32>
    tpu.vector_store %arg13[%c0_3, %c0_4, %c0_5, %c0_6], %4 {strides = array<i32>} : memref<2x10x10x16xf32, #tpu.memory_space<vmem>>, vector<2x1x10x16xf32>,
    %cst_7 = arith.constant 0.000000e+00 : f32
    %6 = vector.broadcast %cst_7 : f32 to vector<2x1x10x16xf32>
    %c0_8 = arith.constant 0 : index
    %c9 = arith.constant 9 : index
    %c0_9 = arith.constant 0 : index
    %c0_10 = arith.constant 0 : index
    %7 = vector.load %arg13[%c0_8, %c9, %c0_9, %c0_10] : memref<2x10x10x16xf32, #tpu.memory_space<vmem>>, vector<2x1x10x16xf32>
    tpu.vector_store %arg13[%c0_8, %c9, %c0_9, %c0_10], %6 {strides = array<i32>} : memref<2x10x10x16xf32, #tpu.memory_space<vmem>>, vector<2x1x10x16xf32>,
    %cst_11 = arith.constant 0.000000e+00 : f32
    %8 = vector.broadcast %cst_11 : f32 to vector<2x10x1x16xf32>
    %c0_12 = arith.constant 0 : index
    %c0_13 = arith.constant 0 : index
    %c0_14 = arith.constant 0 : index
    %c0_15 = arith.constant 0 : index
    %9 = vector.load %arg13[%c0_12, %c0_13, %c0_14, %c0_15] : memref<2x10x10x16xf32, #tpu.memory_space<vmem>>, vector<2x10x1x16xf32>
    tpu.vector_store %arg13[%c0_12, %c0_13, %c0_14, %c0_15], %8 {strides = array<i32>} : memref<2x10x10x16xf32, #tpu.memory_space<vmem>>, vector<2x10x1x16xf32>,
    %cst_16 = arith.constant 0.000000e+00 : f32
    %10 = vector.broadcast %cst_16 : f32 to vector<2x10x1x16xf32>
    %c0_17 = arith.constant 0 : index
    %c0_18 = arith.constant 0 : index
    %c9_19 = arith.constant 9 : index
    %c0_20 = arith.constant 0 : index
    %11 = vector.load %arg13[%c0_17, %c0_18, %c9_19, %c0_20] : memref<2x10x10x16xf32, #tpu.memory_space<vmem>>, vector<2x10x1x16xf32>
    tpu.vector_store %arg13[%c0_17, %c0_18, %c9_19, %c0_20], %10 {strides = array<i32>} : memref<2x10x10x16xf32, #tpu.memory_space<vmem>>, vector<2x10x1x16xf32>,
    %c0_21 = arith.constant 0 : index
    %c0_22 = arith.constant 0 : index
    %c0_23 = arith.constant 0 : index
    %c0_24 = arith.constant 0 : index
    %12 = vector.load %arg5[%c0_21, %c0_22, %c0_23, %c0_24] : memref<2x8x8x16xf32, #tpu.memory_space<vmem>>, vector<2x8x8x16xf32>
    %13 = vector.broadcast %1 : vector<1x1x1x16xf32> to vector<2x8x8x16xf32>
    %14 = arith.mulf %12, %13 : vector<2x8x8x16xf32>
    %15 = vector.broadcast %3 : vector<1x1x1x16xf32> to vector<2x8x8x16xf32>
    %16 = arith.addf %14, %15 : vector<2x8x8x16xf32>
    %cst_25 = arith.constant 0.000000e+00 : f32
    %17 = vector.broadcast %cst_25 : f32 to vector<2x8x8x16xf32>
    %18 = arith.maximumf %16, %17 : vector<2x8x8x16xf32>
    %c0_26 = arith.constant 0 : index
    %c1 = arith.constant 1 : index
    %c1_27 = arith.constant 1 : index
    %c0_28 = arith.constant 0 : index
    %19 = vector.load %arg13[%c0_26, %c1, %c1_27, %c0_28] : memref<2x10x10x16xf32, #tpu.memory_space<vmem>>, vector<2x8x8x16xf32>
    tpu.vector_store %arg13[%c0_26, %c1, %c1_27, %c0_28], %18 {strides = array<i32>} : memref<2x10x10x16xf32, #tpu.memory_space<vmem>>, vector<2x8x8x16xf32>,
    %cst_29 = arith.constant 0.000000e+00 : f32
    %20 = vector.broadcast %cst_29 : f32 to vector<2x1x10x16xf32>
    %c0_30 = arith.constant 0 : index
    %c0_31 = arith.constant 0 : index
    %c0_32 = arith.constant 0 : index
    %c0_33 = arith.constant 0 : index
    %21 = vector.load %arg14[%c0_30, %c0_31, %c0_32, %c0_33] : memref<2x10x10x16xf32, #tpu.memory_space<vmem>>, vector<2x1x10x16xf32>
    tpu.vector_store %arg14[%c0_30, %c0_31, %c0_32, %c0_33], %20 {strides = array<i32>} : memref<2x10x10x16xf32, #tpu.memory_space<vmem>>, vector<2x1x10x16xf32>,
    %cst_34 = arith.constant 0.000000e+00 : f32
    %22 = vector.broadcast %cst_34 : f32 to vector<2x1x10x16xf32>
    %c0_35 = arith.constant 0 : index
    %c9_36 = arith.constant 9 : index
    %c0_37 = arith.constant 0 : index
    %c0_38 = arith.constant 0 : index
    %23 = vector.load %arg14[%c0_35, %c9_36, %c0_37, %c0_38] : memref<2x10x10x16xf32, #tpu.memory_space<vmem>>, vector<2x1x10x16xf32>
    tpu.vector_store %arg14[%c0_35, %c9_36, %c0_37, %c0_38], %22 {strides = array<i32>} : memref<2x10x10x16xf32, #tpu.memory_space<vmem>>, vector<2x1x10x16xf32>,
    %cst_39 = arith.constant 0.000000e+00 : f32
    %24 = vector.broadcast %cst_39 : f32 to vector<2x10x1x16xf32>
    %c0_40 = arith.constant 0 : index
    %c0_41 = arith.constant 0 : index
    %c0_42 = arith.constant 0 : index
    %c0_43 = arith.constant 0 : index
    %25 = vector.load %arg14[%c0_40, %c0_41, %c0_42, %c0_43] : memref<2x10x10x16xf32, #tpu.memory_space<vmem>>, vector<2x10x1x16xf32>
    tpu.vector_store %arg14[%c0_40, %c0_41, %c0_42, %c0_43], %24 {strides = array<i32>} : memref<2x10x10x16xf32, #tpu.memory_space<vmem>>, vector<2x10x1x16xf32>,
    %cst_44 = arith.constant 0.000000e+00 : f32
    %26 = vector.broadcast %cst_44 : f32 to vector<2x10x1x16xf32>
    %c0_45 = arith.constant 0 : index
    %c0_46 = arith.constant 0 : index
    %c9_47 = arith.constant 9 : index
    %c0_48 = arith.constant 0 : index
    %27 = vector.load %arg14[%c0_45, %c0_46, %c9_47, %c0_48] : memref<2x10x10x16xf32, #tpu.memory_space<vmem>>, vector<2x10x1x16xf32>
    tpu.vector_store %arg14[%c0_45, %c0_46, %c9_47, %c0_48], %26 {strides = array<i32>} : memref<2x10x10x16xf32, #tpu.memory_space<vmem>>, vector<2x10x1x16xf32>,
    %c0_49 = arith.constant 0 : index
    %c0_50 = arith.constant 0 : index
    %c0_51 = arith.constant 0 : index
    %c0_52 = arith.constant 0 : index
    %28 = vector.load %arg6[%c0_49, %c0_50, %c0_51, %c0_52] : memref<2x8x8x16xf32, #tpu.memory_space<vmem>>, vector<2x8x8x16xf32>
    %29 = vector.broadcast %1 : vector<1x1x1x16xf32> to vector<2x8x8x16xf32>
    %30 = arith.mulf %28, %29 : vector<2x8x8x16xf32>
    %31 = vector.broadcast %3 : vector<1x1x1x16xf32> to vector<2x8x8x16xf32>
    %32 = arith.addf %30, %31 : vector<2x8x8x16xf32>
    %cst_53 = arith.constant 0.000000e+00 : f32
    %33 = vector.broadcast %cst_53 : f32 to vector<2x8x8x16xf32>
    %34 = arith.maximumf %32, %33 : vector<2x8x8x16xf32>
    %c0_54 = arith.constant 0 : index
    %c1_55 = arith.constant 1 : index
    %c1_56 = arith.constant 1 : index
    %c0_57 = arith.constant 0 : index
    %35 = vector.load %arg14[%c0_54, %c1_55, %c1_56, %c0_57] : memref<2x10x10x16xf32, #tpu.memory_space<vmem>>, vector<2x8x8x16xf32>
    tpu.vector_store %arg14[%c0_54, %c1_55, %c1_56, %c0_57], %34 {strides = array<i32>} : memref<2x10x10x16xf32, #tpu.memory_space<vmem>>, vector<2x8x8x16xf32>,
    %cst_58 = arith.constant 0.000000e+00 : f32
    %36 = vector.broadcast %cst_58 : f32 to vector<2x1x10x16xf32>
    %c0_59 = arith.constant 0 : index
    %c0_60 = arith.constant 0 : index
    %c0_61 = arith.constant 0 : index
    %c0_62 = arith.constant 0 : index
    %37 = vector.load %arg15[%c0_59, %c0_60, %c0_61, %c0_62] : memref<2x10x10x16xf32, #tpu.memory_space<vmem>>, vector<2x1x10x16xf32>
    tpu.vector_store %arg15[%c0_59, %c0_60, %c0_61, %c0_62], %36 {strides = array<i32>} : memref<2x10x10x16xf32, #tpu.memory_space<vmem>>, vector<2x1x10x16xf32>,
    %cst_63 = arith.constant 0.000000e+00 : f32
    %38 = vector.broadcast %cst_63 : f32 to vector<2x1x10x16xf32>
    %c0_64 = arith.constant 0 : index
    %c9_65 = arith.constant 9 : index
    %c0_66 = arith.constant 0 : index
    %c0_67 = arith.constant 0 : index
    %39 = vector.load %arg15[%c0_64, %c9_65, %c0_66, %c0_67] : memref<2x10x10x16xf32, #tpu.memory_space<vmem>>, vector<2x1x10x16xf32>
    tpu.vector_store %arg15[%c0_64, %c9_65, %c0_66, %c0_67], %38 {strides = array<i32>} : memref<2x10x10x16xf32, #tpu.memory_space<vmem>>, vector<2x1x10x16xf32>,
    %cst_68 = arith.constant 0.000000e+00 : f32
    %40 = vector.broadcast %cst_68 : f32 to vector<2x10x1x16xf32>
    %c0_69 = arith.constant 0 : index
    %c0_70 = arith.constant 0 : index
    %c0_71 = arith.constant 0 : index
    %c0_72 = arith.constant 0 : index
    %41 = vector.load %arg15[%c0_69, %c0_70, %c0_71, %c0_72] : memref<2x10x10x16xf32, #tpu.memory_space<vmem>>, vector<2x10x1x16xf32>
    tpu.vector_store %arg15[%c0_69, %c0_70, %c0_71, %c0_72], %40 {strides = array<i32>} : memref<2x10x10x16xf32, #tpu.memory_space<vmem>>, vector<2x10x1x16xf32>,
    %cst_73 = arith.constant 0.000000e+00 : f32
    %42 = vector.broadcast %cst_73 : f32 to vector<2x10x1x16xf32>
    %c0_74 = arith.constant 0 : index
    %c0_75 = arith.constant 0 : index
    %c9_76 = arith.constant 9 : index
    %c0_77 = arith.constant 0 : index
    %43 = vector.load %arg15[%c0_74, %c0_75, %c9_76, %c0_77] : memref<2x10x10x16xf32, #tpu.memory_space<vmem>>, vector<2x10x1x16xf32>
    tpu.vector_store %arg15[%c0_74, %c0_75, %c9_76, %c0_77], %42 {strides = array<i32>} : memref<2x10x10x16xf32, #tpu.memory_space<vmem>>, vector<2x10x1x16xf32>,
    %c0_78 = arith.constant 0 : index
    %c0_79 = arith.constant 0 : index
    %c0_80 = arith.constant 0 : index
    %c0_81 = arith.constant 0 : index
    %44 = vector.load %arg7[%c0_78, %c0_79, %c0_80, %c0_81] : memref<2x8x8x16xf32, #tpu.memory_space<vmem>>, vector<2x8x8x16xf32>
    %45 = vector.broadcast %1 : vector<1x1x1x16xf32> to vector<2x8x8x16xf32>
    %46 = arith.mulf %44, %45 : vector<2x8x8x16xf32>
    %47 = vector.broadcast %3 : vector<1x1x1x16xf32> to vector<2x8x8x16xf32>
    %48 = arith.addf %46, %47 : vector<2x8x8x16xf32>
    %cst_82 = arith.constant 0.000000e+00 : f32
    %49 = vector.broadcast %cst_82 : f32 to vector<2x8x8x16xf32>
    %50 = arith.maximumf %48, %49 : vector<2x8x8x16xf32>
    %c0_83 = arith.constant 0 : index
    %c1_84 = arith.constant 1 : index
    %c1_85 = arith.constant 1 : index
    %c0_86 = arith.constant 0 : index
    %51 = vector.load %arg15[%c0_83, %c1_84, %c1_85, %c0_86] : memref<2x10x10x16xf32, #tpu.memory_space<vmem>>, vector<2x8x8x16xf32>
    tpu.vector_store %arg15[%c0_83, %c1_84, %c1_85, %c0_86], %50 {strides = array<i32>} : memref<2x10x10x16xf32, #tpu.memory_space<vmem>>, vector<2x8x8x16xf32>,
    %cst_87 = arith.constant 0.000000e+00 : f32
    %52 = vector.broadcast %cst_87 : f32 to vector<2x1x10x16xf32>
    %c0_88 = arith.constant 0 : index
    %c0_89 = arith.constant 0 : index
    %c0_90 = arith.constant 0 : index
    %c0_91 = arith.constant 0 : index
    %53 = vector.load %arg16[%c0_88, %c0_89, %c0_90, %c0_91] : memref<2x10x10x16xf32, #tpu.memory_space<vmem>>, vector<2x1x10x16xf32>
    tpu.vector_store %arg16[%c0_88, %c0_89, %c0_90, %c0_91], %52 {strides = array<i32>} : memref<2x10x10x16xf32, #tpu.memory_space<vmem>>, vector<2x1x10x16xf32>,
    %cst_92 = arith.constant 0.000000e+00 : f32
    %54 = vector.broadcast %cst_92 : f32 to vector<2x1x10x16xf32>
    %c0_93 = arith.constant 0 : index
    %c9_94 = arith.constant 9 : index
    %c0_95 = arith.constant 0 : index
    %c0_96 = arith.constant 0 : index
    %55 = vector.load %arg16[%c0_93, %c9_94, %c0_95, %c0_96] : memref<2x10x10x16xf32, #tpu.memory_space<vmem>>, vector<2x1x10x16xf32>
    tpu.vector_store %arg16[%c0_93, %c9_94, %c0_95, %c0_96], %54 {strides = array<i32>} : memref<2x10x10x16xf32, #tpu.memory_space<vmem>>, vector<2x1x10x16xf32>,
    %cst_97 = arith.constant 0.000000e+00 : f32
    %56 = vector.broadcast %cst_97 : f32 to vector<2x10x1x16xf32>
    %c0_98 = arith.constant 0 : index
    %c0_99 = arith.constant 0 : index
    %c0_100 = arith.constant 0 : index
    %c0_101 = arith.constant 0 : index
    %57 = vector.load %arg16[%c0_98, %c0_99, %c0_100, %c0_101] : memref<2x10x10x16xf32, #tpu.memory_space<vmem>>, vector<2x10x1x16xf32>
    tpu.vector_store %arg16[%c0_98, %c0_99, %c0_100, %c0_101], %56 {strides = array<i32>} : memref<2x10x10x16xf32, #tpu.memory_space<vmem>>, vector<2x10x1x16xf32>,
    %cst_102 = arith.constant 0.000000e+00 : f32
    %58 = vector.broadcast %cst_102 : f32 to vector<2x10x1x16xf32>
    %c0_103 = arith.constant 0 : index
    %c0_104 = arith.constant 0 : index
    %c9_105 = arith.constant 9 : index
    %c0_106 = arith.constant 0 : index
    %59 = vector.load %arg16[%c0_103, %c0_104, %c9_105, %c0_106] : memref<2x10x10x16xf32, #tpu.memory_space<vmem>>, vector<2x10x1x16xf32>
    tpu.vector_store %arg16[%c0_103, %c0_104, %c9_105, %c0_106], %58 {strides = array<i32>} : memref<2x10x10x16xf32, #tpu.memory_space<vmem>>, vector<2x10x1x16xf32>,
    %c0_107 = arith.constant 0 : index
    %c0_108 = arith.constant 0 : index
    %c0_109 = arith.constant 0 : index
    %c0_110 = arith.constant 0 : index
    %60 = vector.load %arg8[%c0_107, %c0_108, %c0_109, %c0_110] : memref<2x8x8x16xf32, #tpu.memory_space<vmem>>, vector<2x8x8x16xf32>
    %61 = vector.broadcast %1 : vector<1x1x1x16xf32> to vector<2x8x8x16xf32>
    %62 = arith.mulf %60, %61 : vector<2x8x8x16xf32>
    %63 = vector.broadcast %3 : vector<1x1x1x16xf32> to vector<2x8x8x16xf32>
    %64 = arith.addf %62, %63 : vector<2x8x8x16xf32>
    %cst_111 = arith.constant 0.000000e+00 : f32
    %65 = vector.broadcast %cst_111 : f32 to vector<2x8x8x16xf32>
    %66 = arith.maximumf %64, %65 : vector<2x8x8x16xf32>
    %c0_112 = arith.constant 0 : index
    %c1_113 = arith.constant 1 : index
    %c1_114 = arith.constant 1 : index
    %c0_115 = arith.constant 0 : index
    %67 = vector.load %arg16[%c0_112, %c1_113, %c1_114, %c0_115] : memref<2x10x10x16xf32, #tpu.memory_space<vmem>>, vector<2x8x8x16xf32>
    tpu.vector_store %arg16[%c0_112, %c1_113, %c1_114, %c0_115], %66 {strides = array<i32>} : memref<2x10x10x16xf32, #tpu.memory_space<vmem>>, vector<2x8x8x16xf32>,
    %cst_116 = arith.constant 0.000000e+00 : f32
    %68 = vector.broadcast %cst_116 : f32 to vector<1x128xf32>
    %c0_117 = arith.constant 0 : index
    %c0_118 = arith.constant 0 : index
    %69 = vector.load %arg11[%c0_117, %c0_118] : memref<1x128xf32, #tpu.memory_space<vmem>>, vector<1x128xf32>
    tpu.vector_store %arg11[%c0_117, %c0_118], %68 {strides = array<i32>} : memref<1x128xf32, #tpu.memory_space<vmem>>, vector<1x128xf32>,
    %cst_119 = arith.constant 0.000000e+00 : f32
    %70 = vector.broadcast %cst_119 : f32 to vector<1x128xf32>
    %c0_120 = arith.constant 0 : index
    %c0_121 = arith.constant 0 : index
    %71 = vector.load %arg12[%c0_120, %c0_121] : memref<1x128xf32, #tpu.memory_space<vmem>>, vector<1x128xf32>
    tpu.vector_store %arg12[%c0_120, %c0_121], %70 {strides = array<i32>} : memref<1x128xf32, #tpu.memory_space<vmem>>, vector<1x128xf32>,
    %c0_122 = arith.constant 0 : index
    %c0_123 = arith.constant 0 : index
    %c0_124 = arith.constant 0 : index
    %c0_125 = arith.constant 0 : index
    %72 = vector.load %arg16[%c0_122, %c0_123, %c0_124, %c0_125] : memref<2x10x10x16xf32, #tpu.memory_space<vmem>>, vector<1x8x8x16xf32>
    %73 = vector.shape_cast %72 : vector<1x8x8x16xf32> to vector<8x8x16xf32>
    %74 = vector.shape_cast %73 : vector<8x8x16xf32> to vector<64x16xf32>
    %75 = arith.truncf %74 : vector<64x16xf32> to vector<64x16xbf16>
    %c0_126 = arith.constant 0 : index
    %c0_127 = arith.constant 0 : index
    %76 = vector.load %arg17[%c0_126, %c0_127] : memref<64x144xbf16, #tpu.memory_space<vmem>>, vector<64x16xbf16>
    tpu.vector_store %arg17[%c0_126, %c0_127], %75 {strides = array<i32>} : memref<64x144xbf16, #tpu.memory_space<vmem>>, vector<64x16xbf16>,
    %c0_128 = arith.constant 0 : index
    %c0_129 = arith.constant 0 : index
    %c1_130 = arith.constant 1 : index
    %c0_131 = arith.constant 0 : index
    %77 = vector.load %arg15[%c0_128, %c0_129, %c1_130, %c0_131] : memref<2x10x10x16xf32, #tpu.memory_space<vmem>>, vector<1x8x8x16xf32>
    %78 = vector.shape_cast %77 : vector<1x8x8x16xf32> to vector<8x8x16xf32>
    %79 = vector.shape_cast %78 : vector<8x8x16xf32> to vector<64x16xf32>
    %80 = arith.truncf %79 : vector<64x16xf32> to vector<64x16xbf16>
    %c0_132 = arith.constant 0 : index
    %c16 = arith.constant 16 : index
    %81 = vector.load %arg17[%c0_132, %c16] : memref<64x144xbf16, #tpu.memory_space<vmem>>, vector<64x16xbf16>
    tpu.vector_store %arg17[%c0_132, %c16], %80 {strides = array<i32>} : memref<64x144xbf16, #tpu.memory_space<vmem>>, vector<64x16xbf16>,
    %c0_133 = arith.constant 0 : index
    %c0_134 = arith.constant 0 : index
    %c1_135 = arith.constant 1 : index
    %c0_136 = arith.constant 0 : index
    %82 = vector.load %arg16[%c0_133, %c0_134, %c1_135, %c0_136] : memref<2x10x10x16xf32, #tpu.memory_space<vmem>>, vector<1x8x8x16xf32>
    %83 = vector.shape_cast %82 : vector<1x8x8x16xf32> to vector<8x8x16xf32>
    %84 = vector.shape_cast %83 : vector<8x8x16xf32> to vector<64x16xf32>
    %85 = arith.truncf %84 : vector<64x16xf32> to vector<64x16xbf16>
    %c0_137 = arith.constant 0 : index
    %c32 = arith.constant 32 : index
    %86 = vector.load %arg17[%c0_137, %c32] : memref<64x144xbf16, #tpu.memory_space<vmem>>, vector<64x16xbf16>
    tpu.vector_store %arg17[%c0_137, %c32], %85 {strides = array<i32>} : memref<64x144xbf16, #tpu.memory_space<vmem>>, vector<64x16xbf16>,
    %c0_138 = arith.constant 0 : index
    %c1_139 = arith.constant 1 : index
    %c0_140 = arith.constant 0 : index
    %c0_141 = arith.constant 0 : index
    %87 = vector.load %arg14[%c0_138, %c1_139, %c0_140, %c0_141] : memref<2x10x10x16xf32, #tpu.memory_space<vmem>>, vector<1x8x8x16xf32>
    %88 = vector.shape_cast %87 : vector<1x8x8x16xf32> to vector<8x8x16xf32>
    %89 = vector.shape_cast %88 : vector<8x8x16xf32> to vector<64x16xf32>
    %90 = arith.truncf %89 : vector<64x16xf32> to vector<64x16xbf16>
    %c0_142 = arith.constant 0 : index
    %c48 = arith.constant 48 : index
    %91 = vector.load %arg17[%c0_142, %c48] : memref<64x144xbf16, #tpu.memory_space<vmem>>, vector<64x16xbf16>
    tpu.vector_store %arg17[%c0_142, %c48], %90 {strides = array<i32>} : memref<64x144xbf16, #tpu.memory_space<vmem>>, vector<64x16xbf16>,
    %c0_143 = arith.constant 0 : index
    %c1_144 = arith.constant 1 : index
    %c1_145 = arith.constant 1 : index
    %c0_146 = arith.constant 0 : index
    %92 = vector.load %arg13[%c0_143, %c1_144, %c1_145, %c0_146] : memref<2x10x10x16xf32, #tpu.memory_space<vmem>>, vector<1x8x8x16xf32>
    %93 = vector.shape_cast %92 : vector<1x8x8x16xf32> to vector<8x8x16xf32>
    %94 = vector.shape_cast %93 : vector<8x8x16xf32> to vector<64x16xf32>
    %95 = arith.truncf %94 : vector<64x16xf32> to vector<64x16xbf16>
    %c0_147 = arith.constant 0 : index
    %c64 = arith.constant 64 : index
    %96 = vector.load %arg17[%c0_147, %c64] : memref<64x144xbf16, #tpu.memory_space<vmem>>, vector<64x16xbf16>
    tpu.vector_store %arg17[%c0_147, %c64], %95 {strides = array<i32>} : memref<64x144xbf16, #tpu.memory_space<vmem>>, vector<64x16xbf16>,
    %c0_148 = arith.constant 0 : index
    %c1_149 = arith.constant 1 : index
    %c1_150 = arith.constant 1 : index
    %c0_151 = arith.constant 0 : index
    %97 = vector.load %arg14[%c0_148, %c1_149, %c1_150, %c0_151] : memref<2x10x10x16xf32, #tpu.memory_space<vmem>>, vector<1x8x8x16xf32>
    %98 = vector.shape_cast %97 : vector<1x8x8x16xf32> to vector<8x8x16xf32>
    %99 = vector.shape_cast %98 : vector<8x8x16xf32> to vector<64x16xf32>
    %100 = arith.truncf %99 : vector<64x16xf32> to vector<64x16xbf16>
    %c0_152 = arith.constant 0 : index
    %c80 = arith.constant 80 : index
    %101 = vector.load %arg17[%c0_152, %c80] : memref<64x144xbf16, #tpu.memory_space<vmem>>, vector<64x16xbf16>
    tpu.vector_store %arg17[%c0_152, %c80], %100 {strides = array<i32>} : memref<64x144xbf16, #tpu.memory_space<vmem>>, vector<64x16xbf16>,
    %c0_153 = arith.constant 0 : index
    %c1_154 = arith.constant 1 : index
    %c0_155 = arith.constant 0 : index
    %c0_156 = arith.constant 0 : index
    %102 = vector.load %arg16[%c0_153, %c1_154, %c0_155, %c0_156] : memref<2x10x10x16xf32, #tpu.memory_space<vmem>>, vector<1x8x8x16xf32>
    %103 = vector.shape_cast %102 : vector<1x8x8x16xf32> to vector<8x8x16xf32>
    %104 = vector.shape_cast %103 : vector<8x8x16xf32> to vector<64x16xf32>
    %105 = arith.truncf %104 : vector<64x16xf32> to vector<64x16xbf16>
    %c0_157 = arith.constant 0 : index
    %c96 = arith.constant 96 : index
    %106 = vector.load %arg17[%c0_157, %c96] : memref<64x144xbf16, #tpu.memory_space<vmem>>, vector<64x16xbf16>
    tpu.vector_store %arg17[%c0_157, %c96], %105 {strides = array<i32>} : memref<64x144xbf16, #tpu.memory_space<vmem>>, vector<64x16xbf16>,
    %c0_158 = arith.constant 0 : index
    %c1_159 = arith.constant 1 : index
    %c1_160 = arith.constant 1 : index
    %c0_161 = arith.constant 0 : index
    %107 = vector.load %arg15[%c0_158, %c1_159, %c1_160, %c0_161] : memref<2x10x10x16xf32, #tpu.memory_space<vmem>>, vector<1x8x8x16xf32>
    %108 = vector.shape_cast %107 : vector<1x8x8x16xf32> to vector<8x8x16xf32>
    %109 = vector.shape_cast %108 : vector<8x8x16xf32> to vector<64x16xf32>
    %110 = arith.truncf %109 : vector<64x16xf32> to vector<64x16xbf16>
    %c0_162 = arith.constant 0 : index
    %c112 = arith.constant 112 : index
    %111 = vector.load %arg17[%c0_162, %c112] : memref<64x144xbf16, #tpu.memory_space<vmem>>, vector<64x16xbf16>
    tpu.vector_store %arg17[%c0_162, %c112], %110 {strides = array<i32>} : memref<64x144xbf16, #tpu.memory_space<vmem>>, vector<64x16xbf16>,
    %c0_163 = arith.constant 0 : index
    %c1_164 = arith.constant 1 : index
    %c1_165 = arith.constant 1 : index
    %c0_166 = arith.constant 0 : index
    %112 = vector.load %arg16[%c0_163, %c1_164, %c1_165, %c0_166] : memref<2x10x10x16xf32, #tpu.memory_space<vmem>>, vector<1x8x8x16xf32>
    %113 = vector.shape_cast %112 : vector<1x8x8x16xf32> to vector<8x8x16xf32>
    %114 = vector.shape_cast %113 : vector<8x8x16xf32> to vector<64x16xf32>
    %115 = arith.truncf %114 : vector<64x16xf32> to vector<64x16xbf16>
    %c0_167 = arith.constant 0 : index
    %c128 = arith.constant 128 : index
    %116 = vector.load %arg17[%c0_167, %c128] : memref<64x144xbf16, #tpu.memory_space<vmem>>, vector<64x16xbf16>
    tpu.vector_store %arg17[%c0_167, %c128], %115 {strides = array<i32>} : memref<64x144xbf16, #tpu.memory_space<vmem>>, vector<64x16xbf16>,
    %cst_168 = arith.constant 0.000000e+00 : f32
    %117 = vector.broadcast %cst_168 : f32 to vector<64x128xf32>
    %c0_169 = arith.constant 0 : index
    %c0_170 = arith.constant 0 : index
    %118 = vector.load %arg17[%c0_169, %c0_170] : memref<64x144xbf16, #tpu.memory_space<vmem>>, vector<64x144xbf16>
    %c0_171 = arith.constant 0 : index
    %c0_172 = arith.constant 0 : index
    %119 = vector.load %arg3[%c0_171, %c0_172] : memref<144x128xbf16, #tpu.memory_space<vmem>>, vector<144x128xbf16>
    %cst_173 = arith.constant dense<0.000000e+00> : vector<64x128xf32>
    %120 = tpu.matmul %118, %119, %cst_173 {dimension_numbers = #tpu.dot_dimension_numbers<[1], [0], [0], [1], [0, 0, 1, 1], [], []>} : vector<64x144xbf16>, vector<144x128xbf16>, vector<64x128xf32> -> vector<64x128xf32>
    %121 = arith.addf %117, %120 : vector<64x128xf32>
    %c0_174 = arith.constant 0 : index
    %c0_175 = arith.constant 0 : index
    %122 = vector.load %arg11[%c0_174, %c0_175] : memref<1x128xf32, #tpu.memory_space<vmem>>, vector<1x128xf32>
    %cst_176 = arith.constant dense<0.000000e+00> : vector<128xf32>
    %123 = vector.multi_reduction <add>, %121, %cst_176 [0] : vector<64x128xf32> to vector<128xf32>
    %124 = vector.shape_cast %123 : vector<128xf32> to vector<1x128xf32>
    %125 = arith.addf %122, %124 : vector<1x128xf32>
    %c0_177 = arith.constant 0 : index
    %c0_178 = arith.constant 0 : index
    %126 = vector.load %arg11[%c0_177, %c0_178] : memref<1x128xf32, #tpu.memory_space<vmem>>, vector<1x128xf32>
    tpu.vector_store %arg11[%c0_177, %c0_178], %125 {strides = array<i32>} : memref<1x128xf32, #tpu.memory_space<vmem>>, vector<1x128xf32>,
    %c0_179 = arith.constant 0 : index
    %c0_180 = arith.constant 0 : index
    %127 = vector.load %arg12[%c0_179, %c0_180] : memref<1x128xf32, #tpu.memory_space<vmem>>, vector<1x128xf32>
    %128 = arith.mulf %121, %121 : vector<64x128xf32>
    %cst_181 = arith.constant dense<0.000000e+00> : vector<128xf32>
    %129 = vector.multi_reduction <add>, %128, %cst_181 [0] : vector<64x128xf32> to vector<128xf32>
    %130 = vector.shape_cast %129 : vector<128xf32> to vector<1x128xf32>
    %131 = arith.addf %127, %130 : vector<1x128xf32>
    %c0_182 = arith.constant 0 : index
    %c0_183 = arith.constant 0 : index
    %132 = vector.load %arg12[%c0_182, %c0_183] : memref<1x128xf32, #tpu.memory_space<vmem>>, vector<1x128xf32>
    tpu.vector_store %arg12[%c0_182, %c0_183], %131 {strides = array<i32>} : memref<1x128xf32, #tpu.memory_space<vmem>>, vector<1x128xf32>,
    %c0_184 = arith.constant 0 : index
    %c64_185 = arith.constant 64 : index
    %133 = vector.load %arg17[%c0_184, %c64_185] : memref<64x144xbf16, #tpu.memory_space<vmem>>, vector<64x16xbf16>
    %c0_186 = arith.constant 0 : index
    %c0_187 = arith.constant 0 : index
    %134 = vector.load %arg4[%c0_186, %c0_187] : memref<16x128xbf16, #tpu.memory_space<vmem>>, vector<16x128xbf16>
    %cst_188 = arith.constant dense<0.000000e+00> : vector<64x128xf32>
    %135 = tpu.matmul %133, %134, %cst_188 {dimension_numbers = #tpu.dot_dimension_numbers<[1], [0], [0], [1], [0, 0, 1, 1], [], []>} : vector<64x16xbf16>, vector<16x128xbf16>, vector<64x128xf32> -> vector<64x128xf32>
    %c0_189 = arith.constant 0 : index
    %c0_190 = arith.constant 0 : index
    %c0_191 = arith.constant 0 : index
    %136 = vector.load %arg10[%c0_189, %c0_190, %c0_191] : memref<2x64x128xf32, #tpu.memory_space<vmem>>, vector<1x64x128xf32>
    %137 = vector.shape_cast %136 : vector<1x64x128xf32> to vector<64x128xf32>
    %138 = vector.shape_cast %135 : vector<64x128xf32> to vector<1x64x128xf32>
    tpu.vector_store %arg10[%c0_189, %c0_190, %c0_191], %138 {strides = array<i32>} : memref<2x64x128xf32, #tpu.memory_space<vmem>>, vector<1x64x128xf32>,
    %139 = arith.truncf %121 : vector<64x128xf32> to vector<64x128xbf16>
    %c0_192 = arith.constant 0 : index
    %c0_193 = arith.constant 0 : index
    %c0_194 = arith.constant 0 : index
    %140 = vector.load %arg9[%c0_192, %c0_193, %c0_194] : memref<2x64x128xbf16, #tpu.memory_space<vmem>>, vector<1x64x128xbf16>
    %141 = vector.shape_cast %140 : vector<1x64x128xbf16> to vector<64x128xbf16>
    %142 = vector.shape_cast %139 : vector<64x128xbf16> to vector<1x64x128xbf16>
    tpu.vector_store %arg9[%c0_192, %c0_193, %c0_194], %142 {strides = array<i32>} : memref<2x64x128xbf16, #tpu.memory_space<vmem>>, vector<1x64x128xbf16>,
    %c1_195 = arith.constant 1 : index
    %c0_196 = arith.constant 0 : index
    %c0_197 = arith.constant 0 : index
    %c0_198 = arith.constant 0 : index
    %143 = vector.load %arg16[%c1_195, %c0_196, %c0_197, %c0_198] : memref<2x10x10x16xf32, #tpu.memory_space<vmem>>, vector<1x8x8x16xf32>
    %144 = vector.shape_cast %143 : vector<1x8x8x16xf32> to vector<8x8x16xf32>
    %145 = vector.shape_cast %144 : vector<8x8x16xf32> to vector<64x16xf32>
    %146 = arith.truncf %145 : vector<64x16xf32> to vector<64x16xbf16>
    %c0_199 = arith.constant 0 : index
    %c0_200 = arith.constant 0 : index
    %147 = vector.load %arg17[%c0_199, %c0_200] : memref<64x144xbf16, #tpu.memory_space<vmem>>, vector<64x16xbf16>
    tpu.vector_store %arg17[%c0_199, %c0_200], %146 {strides = array<i32>} : memref<64x144xbf16, #tpu.memory_space<vmem>>, vector<64x16xbf16>,
    %c1_201 = arith.constant 1 : index
    %c0_202 = arith.constant 0 : index
    %c1_203 = arith.constant 1 : index
    %c0_204 = arith.constant 0 : index
    %148 = vector.load %arg15[%c1_201, %c0_202, %c1_203, %c0_204] : memref<2x10x10x16xf32, #tpu.memory_space<vmem>>, vector<1x8x8x16xf32>
    %149 = vector.shape_cast %148 : vector<1x8x8x16xf32> to vector<8x8x16xf32>
    %150 = vector.shape_cast %149 : vector<8x8x16xf32> to vector<64x16xf32>
    %151 = arith.truncf %150 : vector<64x16xf32> to vector<64x16xbf16>
    %c0_205 = arith.constant 0 : index
    %c16_206 = arith.constant 16 : index
    %152 = vector.load %arg17[%c0_205, %c16_206] : memref<64x144xbf16, #tpu.memory_space<vmem>>, vector<64x16xbf16>
    tpu.vector_store %arg17[%c0_205, %c16_206], %151 {strides = array<i32>} : memref<64x144xbf16, #tpu.memory_space<vmem>>, vector<64x16xbf16>,
    %c1_207 = arith.constant 1 : index
    %c0_208 = arith.constant 0 : index
    %c1_209 = arith.constant 1 : index
    %c0_210 = arith.constant 0 : index
    %153 = vector.load %arg16[%c1_207, %c0_208, %c1_209, %c0_210] : memref<2x10x10x16xf32, #tpu.memory_space<vmem>>, vector<1x8x8x16xf32>
    %154 = vector.shape_cast %153 : vector<1x8x8x16xf32> to vector<8x8x16xf32>
    %155 = vector.shape_cast %154 : vector<8x8x16xf32> to vector<64x16xf32>
    %156 = arith.truncf %155 : vector<64x16xf32> to vector<64x16xbf16>
    %c0_211 = arith.constant 0 : index
    %c32_212 = arith.constant 32 : index
    %157 = vector.load %arg17[%c0_211, %c32_212] : memref<64x144xbf16, #tpu.memory_space<vmem>>, vector<64x16xbf16>
    tpu.vector_store %arg17[%c0_211, %c32_212], %156 {strides = array<i32>} : memref<64x144xbf16, #tpu.memory_space<vmem>>, vector<64x16xbf16>,
    %c1_213 = arith.constant 1 : index
    %c1_214 = arith.constant 1 : index
    %c0_215 = arith.constant 0 : index
    %c0_216 = arith.constant 0 : index
    %158 = vector.load %arg14[%c1_213, %c1_214, %c0_215, %c0_216] : memref<2x10x10x16xf32, #tpu.memory_space<vmem>>, vector<1x8x8x16xf32>
    %159 = vector.shape_cast %158 : vector<1x8x8x16xf32> to vector<8x8x16xf32>
    %160 = vector.shape_cast %159 : vector<8x8x16xf32> to vector<64x16xf32>
    %161 = arith.truncf %160 : vector<64x16xf32> to vector<64x16xbf16>
    %c0_217 = arith.constant 0 : index
    %c48_218 = arith.constant 48 : index
    %162 = vector.load %arg17[%c0_217, %c48_218] : memref<64x144xbf16, #tpu.memory_space<vmem>>, vector<64x16xbf16>
    tpu.vector_store %arg17[%c0_217, %c48_218], %161 {strides = array<i32>} : memref<64x144xbf16, #tpu.memory_space<vmem>>, vector<64x16xbf16>,
    %c1_219 = arith.constant 1 : index
    %c1_220 = arith.constant 1 : index
    %c1_221 = arith.constant 1 : index
    %c0_222 = arith.constant 0 : index
    %163 = vector.load %arg13[%c1_219, %c1_220, %c1_221, %c0_222] : memref<2x10x10x16xf32, #tpu.memory_space<vmem>>, vector<1x8x8x16xf32>
    %164 = vector.shape_cast %163 : vector<1x8x8x16xf32> to vector<8x8x16xf32>
    %165 = vector.shape_cast %164 : vector<8x8x16xf32> to vector<64x16xf32>
    %166 = arith.truncf %165 : vector<64x16xf32> to vector<64x16xbf16>
    %c0_223 = arith.constant 0 : index
    %c64_224 = arith.constant 64 : index
    %167 = vector.load %arg17[%c0_223, %c64_224] : memref<64x144xbf16, #tpu.memory_space<vmem>>, vector<64x16xbf16>
    tpu.vector_store %arg17[%c0_223, %c64_224], %166 {strides = array<i32>} : memref<64x144xbf16, #tpu.memory_space<vmem>>, vector<64x16xbf16>,
    %c1_225 = arith.constant 1 : index
    %c1_226 = arith.constant 1 : index
    %c1_227 = arith.constant 1 : index
    %c0_228 = arith.constant 0 : index
    %168 = vector.load %arg14[%c1_225, %c1_226, %c1_227, %c0_228] : memref<2x10x10x16xf32, #tpu.memory_space<vmem>>, vector<1x8x8x16xf32>
    %169 = vector.shape_cast %168 : vector<1x8x8x16xf32> to vector<8x8x16xf32>
    %170 = vector.shape_cast %169 : vector<8x8x16xf32> to vector<64x16xf32>
    %171 = arith.truncf %170 : vector<64x16xf32> to vector<64x16xbf16>
    %c0_229 = arith.constant 0 : index
    %c80_230 = arith.constant 80 : index
    %172 = vector.load %arg17[%c0_229, %c80_230] : memref<64x144xbf16, #tpu.memory_space<vmem>>, vector<64x16xbf16>
    tpu.vector_store %arg17[%c0_229, %c80_230], %171 {strides = array<i32>} : memref<64x144xbf16, #tpu.memory_space<vmem>>, vector<64x16xbf16>,
    %c1_231 = arith.constant 1 : index
    %c1_232 = arith.constant 1 : index
    %c0_233 = arith.constant 0 : index
    %c0_234 = arith.constant 0 : index
    %173 = vector.load %arg16[%c1_231, %c1_232, %c0_233, %c0_234] : memref<2x10x10x16xf32, #tpu.memory_space<vmem>>, vector<1x8x8x16xf32>
    %174 = vector.shape_cast %173 : vector<1x8x8x16xf32> to vector<8x8x16xf32>
    %175 = vector.shape_cast %174 : vector<8x8x16xf32> to vector<64x16xf32>
    %176 = arith.truncf %175 : vector<64x16xf32> to vector<64x16xbf16>
    %c0_235 = arith.constant 0 : index
    %c96_236 = arith.constant 96 : index
    %177 = vector.load %arg17[%c0_235, %c96_236] : memref<64x144xbf16, #tpu.memory_space<vmem>>, vector<64x16xbf16>
    tpu.vector_store %arg17[%c0_235, %c96_236], %176 {strides = array<i32>} : memref<64x144xbf16, #tpu.memory_space<vmem>>, vector<64x16xbf16>,
    %c1_237 = arith.constant 1 : index
    %c1_238 = arith.constant 1 : index
    %c1_239 = arith.constant 1 : index
    %c0_240 = arith.constant 0 : index
    %178 = vector.load %arg15[%c1_237, %c1_238, %c1_239, %c0_240] : memref<2x10x10x16xf32, #tpu.memory_space<vmem>>, vector<1x8x8x16xf32>
    %179 = vector.shape_cast %178 : vector<1x8x8x16xf32> to vector<8x8x16xf32>
    %180 = vector.shape_cast %179 : vector<8x8x16xf32> to vector<64x16xf32>
    %181 = arith.truncf %180 : vector<64x16xf32> to vector<64x16xbf16>
    %c0_241 = arith.constant 0 : index
    %c112_242 = arith.constant 112 : index
    %182 = vector.load %arg17[%c0_241, %c112_242] : memref<64x144xbf16, #tpu.memory_space<vmem>>, vector<64x16xbf16>
    tpu.vector_store %arg17[%c0_241, %c112_242], %181 {strides = array<i32>} : memref<64x144xbf16, #tpu.memory_space<vmem>>, vector<64x16xbf16>,
    %c1_243 = arith.constant 1 : index
    %c1_244 = arith.constant 1 : index
    %c1_245 = arith.constant 1 : index
    %c0_246 = arith.constant 0 : index
    %183 = vector.load %arg16[%c1_243, %c1_244, %c1_245, %c0_246] : memref<2x10x10x16xf32, #tpu.memory_space<vmem>>, vector<1x8x8x16xf32>
    %184 = vector.shape_cast %183 : vector<1x8x8x16xf32> to vector<8x8x16xf32>
    %185 = vector.shape_cast %184 : vector<8x8x16xf32> to vector<64x16xf32>
    %186 = arith.truncf %185 : vector<64x16xf32> to vector<64x16xbf16>
    %c0_247 = arith.constant 0 : index
    %c128_248 = arith.constant 128 : index
    %187 = vector.load %arg17[%c0_247, %c128_248] : memref<64x144xbf16, #tpu.memory_space<vmem>>, vector<64x16xbf16>
    tpu.vector_store %arg17[%c0_247, %c128_248], %186 {strides = array<i32>} : memref<64x144xbf16, #tpu.memory_space<vmem>>, vector<64x16xbf16>,
    %cst_249 = arith.constant 0.000000e+00 : f32
    %188 = vector.broadcast %cst_249 : f32 to vector<64x128xf32>
    %c0_250 = arith.constant 0 : index
    %c0_251 = arith.constant 0 : index
    %189 = vector.load %arg17[%c0_250, %c0_251] : memref<64x144xbf16, #tpu.memory_space<vmem>>, vector<64x144xbf16>
    %c0_252 = arith.constant 0 : index
    %c0_253 = arith.constant 0 : index
    %190 = vector.load %arg3[%c0_252, %c0_253] : memref<144x128xbf16, #tpu.memory_space<vmem>>, vector<144x128xbf16>
    %cst_254 = arith.constant dense<0.000000e+00> : vector<64x128xf32>
    %191 = tpu.matmul %189, %190, %cst_254 {dimension_numbers = #tpu.dot_dimension_numbers<[1], [0], [0], [1], [0, 0, 1, 1], [], []>} : vector<64x144xbf16>, vector<144x128xbf16>, vector<64x128xf32> -> vector<64x128xf32>
    %192 = arith.addf %188, %191 : vector<64x128xf32>
    %c0_255 = arith.constant 0 : index
    %c0_256 = arith.constant 0 : index
    %193 = vector.load %arg11[%c0_255, %c0_256] : memref<1x128xf32, #tpu.memory_space<vmem>>, vector<1x128xf32>
    %cst_257 = arith.constant dense<0.000000e+00> : vector<128xf32>
    %194 = vector.multi_reduction <add>, %192, %cst_257 [0] : vector<64x128xf32> to vector<128xf32>
    %195 = vector.shape_cast %194 : vector<128xf32> to vector<1x128xf32>
    %196 = arith.addf %193, %195 : vector<1x128xf32>
    %c0_258 = arith.constant 0 : index
    %c0_259 = arith.constant 0 : index
    %197 = vector.load %arg11[%c0_258, %c0_259] : memref<1x128xf32, #tpu.memory_space<vmem>>, vector<1x128xf32>
    tpu.vector_store %arg11[%c0_258, %c0_259], %196 {strides = array<i32>} : memref<1x128xf32, #tpu.memory_space<vmem>>, vector<1x128xf32>,
    %c0_260 = arith.constant 0 : index
    %c0_261 = arith.constant 0 : index
    %198 = vector.load %arg12[%c0_260, %c0_261] : memref<1x128xf32, #tpu.memory_space<vmem>>, vector<1x128xf32>
    %199 = arith.mulf %192, %192 : vector<64x128xf32>
    %cst_262 = arith.constant dense<0.000000e+00> : vector<128xf32>
    %200 = vector.multi_reduction <add>, %199, %cst_262 [0] : vector<64x128xf32> to vector<128xf32>
    %201 = vector.shape_cast %200 : vector<128xf32> to vector<1x128xf32>
    %202 = arith.addf %198, %201 : vector<1x128xf32>
    %c0_263 = arith.constant 0 : index
    %c0_264 = arith.constant 0 : index
    %203 = vector.load %arg12[%c0_263, %c0_264] : memref<1x128xf32, #tpu.memory_space<vmem>>, vector<1x128xf32>
    tpu.vector_store %arg12[%c0_263, %c0_264], %202 {strides = array<i32>} : memref<1x128xf32, #tpu.memory_space<vmem>>, vector<1x128xf32>,
    %c0_265 = arith.constant 0 : index
    %c64_266 = arith.constant 64 : index
    %204 = vector.load %arg17[%c0_265, %c64_266] : memref<64x144xbf16, #tpu.memory_space<vmem>>, vector<64x16xbf16>
    %c0_267 = arith.constant 0 : index
    %c0_268 = arith.constant 0 : index
    %205 = vector.load %arg4[%c0_267, %c0_268] : memref<16x128xbf16, #tpu.memory_space<vmem>>, vector<16x128xbf16>
    %cst_269 = arith.constant dense<0.000000e+00> : vector<64x128xf32>
    %206 = tpu.matmul %204, %205, %cst_269 {dimension_numbers = #tpu.dot_dimension_numbers<[1], [0], [0], [1], [0, 0, 1, 1], [], []>} : vector<64x16xbf16>, vector<16x128xbf16>, vector<64x128xf32> -> vector<64x128xf32>
    %c1_270 = arith.constant 1 : index
    %c0_271 = arith.constant 0 : index
    %c0_272 = arith.constant 0 : index
    %207 = vector.load %arg10[%c1_270, %c0_271, %c0_272] : memref<2x64x128xf32, #tpu.memory_space<vmem>>, vector<1x64x128xf32>
    %208 = vector.shape_cast %207 : vector<1x64x128xf32> to vector<64x128xf32>
    %209 = vector.shape_cast %206 : vector<64x128xf32> to vector<1x64x128xf32>
    tpu.vector_store %arg10[%c1_270, %c0_271, %c0_272], %209 {strides = array<i32>} : memref<2x64x128xf32, #tpu.memory_space<vmem>>, vector<1x64x128xf32>,
    %210 = arith.truncf %192 : vector<64x128xf32> to vector<64x128xbf16>
    %c1_273 = arith.constant 1 : index
    %c0_274 = arith.constant 0 : index
    %c0_275 = arith.constant 0 : index
    %211 = vector.load %arg9[%c1_273, %c0_274, %c0_275] : memref<2x64x128xbf16, #tpu.memory_space<vmem>>, vector<1x64x128xbf16>
    %212 = vector.shape_cast %211 : vector<1x64x128xbf16> to vector<64x128xbf16>
    %213 = vector.shape_cast %210 : vector<64x128xbf16> to vector<1x64x128xbf16>
    tpu.vector_store %arg9[%c1_273, %c0_274, %c0_275], %213 {strides = array<i32>} : memref<2x64x128xbf16, #tpu.memory_space<vmem>>, vector<1x64x128xbf16>,
    return
  }
  func.func @transform_0(%arg0: i32) -> (i32, i32) {
    %c0_i32 = arith.constant 0 : i32
    %c0_i32_0 = arith.constant 0 : i32
    %c0_i32_1 = arith.constant 0 : i32
    return %c0_i32, %c0_i32_0 : i32, i32
  }
  func.func @transform_1(%arg0: i32) -> (i32, i32) {
    %c0_i32 = arith.constant 0 : i32
    %c0_i32_0 = arith.constant 0 : i32
    %c0_i32_1 = arith.constant 0 : i32
    return %c0_i32, %c0_i32_0 : i32, i32
  }
  func.func @transform_2(%arg0: i32) -> (i32, i32) {
    %c0_i32 = arith.constant 0 : i32
    %c0_i32_0 = arith.constant 0 : i32
    %c0_i32_1 = arith.constant 0 : i32
    return %c0_i32, %c0_i32_0 : i32, i32
  }
  func.func @transform_3(%arg0: i32) -> (i32, i32) {
    %c0_i32 = arith.constant 0 : i32
    %c0_i32_0 = arith.constant 0 : i32
    %c0_i32_1 = arith.constant 0 : i32
    return %c0_i32, %c0_i32_0 : i32, i32
  }
  func.func @transform_4(%arg0: i32) -> (i32, i32, i32, i32) {
    %c0_i32 = arith.constant 0 : i32
    %c0_i32_0 = arith.constant 0 : i32
    %c0_i32_1 = arith.constant 0 : i32
    %c0_i32_2 = arith.constant 0 : i32
    return %arg0, %c0_i32, %c0_i32_0, %c0_i32_1 : i32, i32, i32, i32
  }
  func.func @transform_5(%arg0: i32) -> (i32, i32, i32, i32) {
    %c0_i32 = arith.constant 0 : i32
    %c0_i32_0 = arith.constant 0 : i32
    %c0_i32_1 = arith.constant 0 : i32
    %c0_i32_2 = arith.constant 0 : i32
    return %arg0, %c0_i32, %c0_i32_0, %c0_i32_1 : i32, i32, i32, i32
  }
  func.func @transform_6(%arg0: i32) -> (i32, i32, i32, i32) {
    %c0_i32 = arith.constant 0 : i32
    %c0_i32_0 = arith.constant 0 : i32
    %c0_i32_1 = arith.constant 0 : i32
    %c0_i32_2 = arith.constant 0 : i32
    return %arg0, %c0_i32, %c0_i32_0, %c0_i32_1 : i32, i32, i32, i32
  }
  func.func @transform_7(%arg0: i32) -> (i32, i32, i32, i32) {
    %c0_i32 = arith.constant 0 : i32
    %c0_i32_0 = arith.constant 0 : i32
    %c0_i32_1 = arith.constant 0 : i32
    %c0_i32_2 = arith.constant 0 : i32
    return %arg0, %c0_i32, %c0_i32_0, %c0_i32_1 : i32, i32, i32, i32
  }
  func.func @transform_8(%arg0: i32) -> (i32, i32, i32) {
    %c0_i32 = arith.constant 0 : i32
    %c0_i32_0 = arith.constant 0 : i32
    %c0_i32_1 = arith.constant 0 : i32
    return %arg0, %c0_i32, %c0_i32_0 : i32, i32, i32
  }
  func.func @transform_9(%arg0: i32) -> (i32, i32, i32) {
    %c0_i32 = arith.constant 0 : i32
    %c0_i32_0 = arith.constant 0 : i32
    %c0_i32_1 = arith.constant 0 : i32
    return %arg0, %c0_i32, %c0_i32_0 : i32, i32, i32
  }
  func.func @transform_10(%arg0: i32) -> (i32, i32) {
    %c0_i32 = arith.constant 0 : i32
    %c0_i32_0 = arith.constant 0 : i32
    return %arg0, %c0_i32 : i32, i32
  }
  func.func @transform_11(%arg0: i32) -> (i32, i32) {
    %c0_i32 = arith.constant 0 : i32
    %c0_i32_0 = arith.constant 0 : i32
    return %arg0, %c0_i32 : i32, i32
  }
}

module attributes {stable_mosaic.version = 11 : i64} {
  func.func @_conv_kernel(%arg0: i32, %arg1: memref<1x128xf32, #tpu.memory_space<vmem>>, %arg2: memref<1x128xf32, #tpu.memory_space<vmem>>, %arg3: memref<1152x128xbf16, #tpu.memory_space<vmem>>, %arg4: memref<2x64x128xf32, #tpu.memory_space<vmem>>, %arg5: memref<2x8x8x128xbf16, #tpu.memory_space<vmem>>, %arg6: memref<2x64x128xf32, #tpu.memory_space<vmem>>, %arg7: memref<2x10x10x128xf32, #tpu.memory_space<vmem>>, %arg8: memref<64x1152xbf16, #tpu.memory_space<vmem>>) attributes {dimension_semantics = [#tpu.dimension_semantics<parallel>], iteration_bounds = array<i64: 1>, scalar_prefetch = 0 : i64, scratch_operands = 2 : i64, tpu.core_type = #tpu.core_type<tc>, window_params = [{pipeline_mode = #tpu.pipeline_mode<synchronous>, transform_indices = @transform_0, window_bounds = array<i64: 1, 128>}, {pipeline_mode = #tpu.pipeline_mode<synchronous>, transform_indices = @transform_1, window_bounds = array<i64: 1, 128>}, {pipeline_mode = #tpu.pipeline_mode<synchronous>, transform_indices = @transform_2, window_bounds = array<i64: 1152, 128>}, {transform_indices = @transform_3, window_bounds = array<i64: 2, 64, 128>}, {transform_indices = @transform_4, window_bounds = array<i64: 2, 8, 8, 128>}, {transform_indices = @transform_5, window_bounds = array<i64: 2, 64, 128>}]} {
    %c0 = arith.constant 0 : index
    %c0_0 = arith.constant 0 : index
    %0 = vector.load %arg1[%c0, %c0_0] : memref<1x128xf32, #tpu.memory_space<vmem>>, vector<1x128xf32>
    %1 = vector.shape_cast %0 : vector<1x128xf32> to vector<1x1x1x128xf32>
    %c0_1 = arith.constant 0 : index
    %c0_2 = arith.constant 0 : index
    %2 = vector.load %arg2[%c0_1, %c0_2] : memref<1x128xf32, #tpu.memory_space<vmem>>, vector<1x128xf32>
    %3 = vector.shape_cast %2 : vector<1x128xf32> to vector<1x1x1x128xf32>
    %cst = arith.constant 0.000000e+00 : f32
    %4 = vector.broadcast %cst : f32 to vector<2x1x10x128xf32>
    %c0_3 = arith.constant 0 : index
    %c0_4 = arith.constant 0 : index
    %c0_5 = arith.constant 0 : index
    %c0_6 = arith.constant 0 : index
    %5 = vector.load %arg7[%c0_3, %c0_4, %c0_5, %c0_6] : memref<2x10x10x128xf32, #tpu.memory_space<vmem>>, vector<2x1x10x128xf32>
    tpu.vector_store %arg7[%c0_3, %c0_4, %c0_5, %c0_6], %4 {strides = array<i32>} : memref<2x10x10x128xf32, #tpu.memory_space<vmem>>, vector<2x1x10x128xf32>,
    %cst_7 = arith.constant 0.000000e+00 : f32
    %6 = vector.broadcast %cst_7 : f32 to vector<2x1x10x128xf32>
    %c0_8 = arith.constant 0 : index
    %c9 = arith.constant 9 : index
    %c0_9 = arith.constant 0 : index
    %c0_10 = arith.constant 0 : index
    %7 = vector.load %arg7[%c0_8, %c9, %c0_9, %c0_10] : memref<2x10x10x128xf32, #tpu.memory_space<vmem>>, vector<2x1x10x128xf32>
    tpu.vector_store %arg7[%c0_8, %c9, %c0_9, %c0_10], %6 {strides = array<i32>} : memref<2x10x10x128xf32, #tpu.memory_space<vmem>>, vector<2x1x10x128xf32>,
    %cst_11 = arith.constant 0.000000e+00 : f32
    %8 = vector.broadcast %cst_11 : f32 to vector<2x10x1x128xf32>
    %c0_12 = arith.constant 0 : index
    %c0_13 = arith.constant 0 : index
    %c0_14 = arith.constant 0 : index
    %c0_15 = arith.constant 0 : index
    %9 = vector.load %arg7[%c0_12, %c0_13, %c0_14, %c0_15] : memref<2x10x10x128xf32, #tpu.memory_space<vmem>>, vector<2x10x1x128xf32>
    tpu.vector_store %arg7[%c0_12, %c0_13, %c0_14, %c0_15], %8 {strides = array<i32>} : memref<2x10x10x128xf32, #tpu.memory_space<vmem>>, vector<2x10x1x128xf32>,
    %cst_16 = arith.constant 0.000000e+00 : f32
    %10 = vector.broadcast %cst_16 : f32 to vector<2x10x1x128xf32>
    %c0_17 = arith.constant 0 : index
    %c0_18 = arith.constant 0 : index
    %c9_19 = arith.constant 9 : index
    %c0_20 = arith.constant 0 : index
    %11 = vector.load %arg7[%c0_17, %c0_18, %c9_19, %c0_20] : memref<2x10x10x128xf32, #tpu.memory_space<vmem>>, vector<2x10x1x128xf32>
    tpu.vector_store %arg7[%c0_17, %c0_18, %c9_19, %c0_20], %10 {strides = array<i32>} : memref<2x10x10x128xf32, #tpu.memory_space<vmem>>, vector<2x10x1x128xf32>,
    %c0_21 = arith.constant 0 : index
    %c0_22 = arith.constant 0 : index
    %c0_23 = arith.constant 0 : index
    %c0_24 = arith.constant 0 : index
    %12 = vector.load %arg5[%c0_21, %c0_22, %c0_23, %c0_24] : memref<2x8x8x128xbf16, #tpu.memory_space<vmem>>, vector<2x8x8x128xbf16>
    %13 = arith.extf %12 : vector<2x8x8x128xbf16> to vector<2x8x8x128xf32>
    %14 = vector.broadcast %1 : vector<1x1x1x128xf32> to vector<2x8x8x128xf32>
    %15 = arith.mulf %13, %14 : vector<2x8x8x128xf32>
    %16 = vector.broadcast %3 : vector<1x1x1x128xf32> to vector<2x8x8x128xf32>
    %17 = arith.addf %15, %16 : vector<2x8x8x128xf32>
    %cst_25 = arith.constant 0.000000e+00 : f32
    %18 = vector.broadcast %cst_25 : f32 to vector<2x8x8x128xf32>
    %19 = arith.maximumf %17, %18 : vector<2x8x8x128xf32>
    %c0_26 = arith.constant 0 : index
    %c1 = arith.constant 1 : index
    %c1_27 = arith.constant 1 : index
    %c0_28 = arith.constant 0 : index
    %20 = vector.load %arg7[%c0_26, %c1, %c1_27, %c0_28] : memref<2x10x10x128xf32, #tpu.memory_space<vmem>>, vector<2x8x8x128xf32>
    tpu.vector_store %arg7[%c0_26, %c1, %c1_27, %c0_28], %19 {strides = array<i32>} : memref<2x10x10x128xf32, #tpu.memory_space<vmem>>, vector<2x8x8x128xf32>,
    %c0_29 = arith.constant 0 : index
    %c0_30 = arith.constant 0 : index
    %c0_31 = arith.constant 0 : index
    %c0_32 = arith.constant 0 : index
    %21 = vector.load %arg7[%c0_29, %c0_30, %c0_31, %c0_32] : memref<2x10x10x128xf32, #tpu.memory_space<vmem>>, vector<1x8x8x128xf32>
    %22 = vector.shape_cast %21 : vector<1x8x8x128xf32> to vector<8x8x128xf32>
    %23 = vector.shape_cast %22 : vector<8x8x128xf32> to vector<64x128xf32>
    %24 = arith.truncf %23 : vector<64x128xf32> to vector<64x128xbf16>
    %c0_33 = arith.constant 0 : index
    %c0_34 = arith.constant 0 : index
    %25 = vector.load %arg8[%c0_33, %c0_34] : memref<64x1152xbf16, #tpu.memory_space<vmem>>, vector<64x128xbf16>
    tpu.vector_store %arg8[%c0_33, %c0_34], %24 {strides = array<i32>} : memref<64x1152xbf16, #tpu.memory_space<vmem>>, vector<64x128xbf16>,
    %c0_35 = arith.constant 0 : index
    %c0_36 = arith.constant 0 : index
    %c1_37 = arith.constant 1 : index
    %c0_38 = arith.constant 0 : index
    %26 = vector.load %arg7[%c0_35, %c0_36, %c1_37, %c0_38] : memref<2x10x10x128xf32, #tpu.memory_space<vmem>>, vector<1x8x8x128xf32>
    %27 = vector.shape_cast %26 : vector<1x8x8x128xf32> to vector<8x8x128xf32>
    %28 = vector.shape_cast %27 : vector<8x8x128xf32> to vector<64x128xf32>
    %29 = arith.truncf %28 : vector<64x128xf32> to vector<64x128xbf16>
    %c0_39 = arith.constant 0 : index
    %c128 = arith.constant 128 : index
    %30 = vector.load %arg8[%c0_39, %c128] : memref<64x1152xbf16, #tpu.memory_space<vmem>>, vector<64x128xbf16>
    tpu.vector_store %arg8[%c0_39, %c128], %29 {strides = array<i32>} : memref<64x1152xbf16, #tpu.memory_space<vmem>>, vector<64x128xbf16>,
    %c0_40 = arith.constant 0 : index
    %c0_41 = arith.constant 0 : index
    %c2 = arith.constant 2 : index
    %c0_42 = arith.constant 0 : index
    %31 = vector.load %arg7[%c0_40, %c0_41, %c2, %c0_42] : memref<2x10x10x128xf32, #tpu.memory_space<vmem>>, vector<1x8x8x128xf32>
    %32 = vector.shape_cast %31 : vector<1x8x8x128xf32> to vector<8x8x128xf32>
    %33 = vector.shape_cast %32 : vector<8x8x128xf32> to vector<64x128xf32>
    %34 = arith.truncf %33 : vector<64x128xf32> to vector<64x128xbf16>
    %c0_43 = arith.constant 0 : index
    %c256 = arith.constant 256 : index
    %35 = vector.load %arg8[%c0_43, %c256] : memref<64x1152xbf16, #tpu.memory_space<vmem>>, vector<64x128xbf16>
    tpu.vector_store %arg8[%c0_43, %c256], %34 {strides = array<i32>} : memref<64x1152xbf16, #tpu.memory_space<vmem>>, vector<64x128xbf16>,
    %c0_44 = arith.constant 0 : index
    %c1_45 = arith.constant 1 : index
    %c0_46 = arith.constant 0 : index
    %c0_47 = arith.constant 0 : index
    %36 = vector.load %arg7[%c0_44, %c1_45, %c0_46, %c0_47] : memref<2x10x10x128xf32, #tpu.memory_space<vmem>>, vector<1x8x8x128xf32>
    %37 = vector.shape_cast %36 : vector<1x8x8x128xf32> to vector<8x8x128xf32>
    %38 = vector.shape_cast %37 : vector<8x8x128xf32> to vector<64x128xf32>
    %39 = arith.truncf %38 : vector<64x128xf32> to vector<64x128xbf16>
    %c0_48 = arith.constant 0 : index
    %c384 = arith.constant 384 : index
    %40 = vector.load %arg8[%c0_48, %c384] : memref<64x1152xbf16, #tpu.memory_space<vmem>>, vector<64x128xbf16>
    tpu.vector_store %arg8[%c0_48, %c384], %39 {strides = array<i32>} : memref<64x1152xbf16, #tpu.memory_space<vmem>>, vector<64x128xbf16>,
    %c0_49 = arith.constant 0 : index
    %c1_50 = arith.constant 1 : index
    %c1_51 = arith.constant 1 : index
    %c0_52 = arith.constant 0 : index
    %41 = vector.load %arg7[%c0_49, %c1_50, %c1_51, %c0_52] : memref<2x10x10x128xf32, #tpu.memory_space<vmem>>, vector<1x8x8x128xf32>
    %42 = vector.shape_cast %41 : vector<1x8x8x128xf32> to vector<8x8x128xf32>
    %43 = vector.shape_cast %42 : vector<8x8x128xf32> to vector<64x128xf32>
    %44 = arith.truncf %43 : vector<64x128xf32> to vector<64x128xbf16>
    %c0_53 = arith.constant 0 : index
    %c512 = arith.constant 512 : index
    %45 = vector.load %arg8[%c0_53, %c512] : memref<64x1152xbf16, #tpu.memory_space<vmem>>, vector<64x128xbf16>
    tpu.vector_store %arg8[%c0_53, %c512], %44 {strides = array<i32>} : memref<64x1152xbf16, #tpu.memory_space<vmem>>, vector<64x128xbf16>,
    %c0_54 = arith.constant 0 : index
    %c1_55 = arith.constant 1 : index
    %c2_56 = arith.constant 2 : index
    %c0_57 = arith.constant 0 : index
    %46 = vector.load %arg7[%c0_54, %c1_55, %c2_56, %c0_57] : memref<2x10x10x128xf32, #tpu.memory_space<vmem>>, vector<1x8x8x128xf32>
    %47 = vector.shape_cast %46 : vector<1x8x8x128xf32> to vector<8x8x128xf32>
    %48 = vector.shape_cast %47 : vector<8x8x128xf32> to vector<64x128xf32>
    %49 = arith.truncf %48 : vector<64x128xf32> to vector<64x128xbf16>
    %c0_58 = arith.constant 0 : index
    %c640 = arith.constant 640 : index
    %50 = vector.load %arg8[%c0_58, %c640] : memref<64x1152xbf16, #tpu.memory_space<vmem>>, vector<64x128xbf16>
    tpu.vector_store %arg8[%c0_58, %c640], %49 {strides = array<i32>} : memref<64x1152xbf16, #tpu.memory_space<vmem>>, vector<64x128xbf16>,
    %c0_59 = arith.constant 0 : index
    %c2_60 = arith.constant 2 : index
    %c0_61 = arith.constant 0 : index
    %c0_62 = arith.constant 0 : index
    %51 = vector.load %arg7[%c0_59, %c2_60, %c0_61, %c0_62] : memref<2x10x10x128xf32, #tpu.memory_space<vmem>>, vector<1x8x8x128xf32>
    %52 = vector.shape_cast %51 : vector<1x8x8x128xf32> to vector<8x8x128xf32>
    %53 = vector.shape_cast %52 : vector<8x8x128xf32> to vector<64x128xf32>
    %54 = arith.truncf %53 : vector<64x128xf32> to vector<64x128xbf16>
    %c0_63 = arith.constant 0 : index
    %c768 = arith.constant 768 : index
    %55 = vector.load %arg8[%c0_63, %c768] : memref<64x1152xbf16, #tpu.memory_space<vmem>>, vector<64x128xbf16>
    tpu.vector_store %arg8[%c0_63, %c768], %54 {strides = array<i32>} : memref<64x1152xbf16, #tpu.memory_space<vmem>>, vector<64x128xbf16>,
    %c0_64 = arith.constant 0 : index
    %c2_65 = arith.constant 2 : index
    %c1_66 = arith.constant 1 : index
    %c0_67 = arith.constant 0 : index
    %56 = vector.load %arg7[%c0_64, %c2_65, %c1_66, %c0_67] : memref<2x10x10x128xf32, #tpu.memory_space<vmem>>, vector<1x8x8x128xf32>
    %57 = vector.shape_cast %56 : vector<1x8x8x128xf32> to vector<8x8x128xf32>
    %58 = vector.shape_cast %57 : vector<8x8x128xf32> to vector<64x128xf32>
    %59 = arith.truncf %58 : vector<64x128xf32> to vector<64x128xbf16>
    %c0_68 = arith.constant 0 : index
    %c896 = arith.constant 896 : index
    %60 = vector.load %arg8[%c0_68, %c896] : memref<64x1152xbf16, #tpu.memory_space<vmem>>, vector<64x128xbf16>
    tpu.vector_store %arg8[%c0_68, %c896], %59 {strides = array<i32>} : memref<64x1152xbf16, #tpu.memory_space<vmem>>, vector<64x128xbf16>,
    %c0_69 = arith.constant 0 : index
    %c2_70 = arith.constant 2 : index
    %c2_71 = arith.constant 2 : index
    %c0_72 = arith.constant 0 : index
    %61 = vector.load %arg7[%c0_69, %c2_70, %c2_71, %c0_72] : memref<2x10x10x128xf32, #tpu.memory_space<vmem>>, vector<1x8x8x128xf32>
    %62 = vector.shape_cast %61 : vector<1x8x8x128xf32> to vector<8x8x128xf32>
    %63 = vector.shape_cast %62 : vector<8x8x128xf32> to vector<64x128xf32>
    %64 = arith.truncf %63 : vector<64x128xf32> to vector<64x128xbf16>
    %c0_73 = arith.constant 0 : index
    %c1024 = arith.constant 1024 : index
    %65 = vector.load %arg8[%c0_73, %c1024] : memref<64x1152xbf16, #tpu.memory_space<vmem>>, vector<64x128xbf16>
    tpu.vector_store %arg8[%c0_73, %c1024], %64 {strides = array<i32>} : memref<64x1152xbf16, #tpu.memory_space<vmem>>, vector<64x128xbf16>,
    %cst_74 = arith.constant 0.000000e+00 : f32
    %66 = vector.broadcast %cst_74 : f32 to vector<64x128xf32>
    %c0_75 = arith.constant 0 : index
    %c0_76 = arith.constant 0 : index
    %67 = vector.load %arg8[%c0_75, %c0_76] : memref<64x1152xbf16, #tpu.memory_space<vmem>>, vector<64x384xbf16>
    %c0_77 = arith.constant 0 : index
    %c0_78 = arith.constant 0 : index
    %68 = vector.load %arg3[%c0_77, %c0_78] : memref<1152x128xbf16, #tpu.memory_space<vmem>>, vector<384x128xbf16>
    %cst_79 = arith.constant dense<0.000000e+00> : vector<64x128xf32>
    %69 = tpu.matmul %67, %68, %cst_79 {dimension_numbers = #tpu.dot_dimension_numbers<[1], [0], [0], [1], [0, 0, 1, 1], [], []>} : vector<64x384xbf16>, vector<384x128xbf16>, vector<64x128xf32> -> vector<64x128xf32>
    %70 = arith.addf %66, %69 : vector<64x128xf32>
    %c0_80 = arith.constant 0 : index
    %c384_81 = arith.constant 384 : index
    %71 = vector.load %arg8[%c0_80, %c384_81] : memref<64x1152xbf16, #tpu.memory_space<vmem>>, vector<64x384xbf16>
    %c384_82 = arith.constant 384 : index
    %c0_83 = arith.constant 0 : index
    %72 = vector.load %arg3[%c384_82, %c0_83] : memref<1152x128xbf16, #tpu.memory_space<vmem>>, vector<384x128xbf16>
    %cst_84 = arith.constant dense<0.000000e+00> : vector<64x128xf32>
    %73 = tpu.matmul %71, %72, %cst_84 {dimension_numbers = #tpu.dot_dimension_numbers<[1], [0], [0], [1], [0, 0, 1, 1], [], []>} : vector<64x384xbf16>, vector<384x128xbf16>, vector<64x128xf32> -> vector<64x128xf32>
    %74 = arith.addf %70, %73 : vector<64x128xf32>
    %c0_85 = arith.constant 0 : index
    %c768_86 = arith.constant 768 : index
    %75 = vector.load %arg8[%c0_85, %c768_86] : memref<64x1152xbf16, #tpu.memory_space<vmem>>, vector<64x384xbf16>
    %c768_87 = arith.constant 768 : index
    %c0_88 = arith.constant 0 : index
    %76 = vector.load %arg3[%c768_87, %c0_88] : memref<1152x128xbf16, #tpu.memory_space<vmem>>, vector<384x128xbf16>
    %cst_89 = arith.constant dense<0.000000e+00> : vector<64x128xf32>
    %77 = tpu.matmul %75, %76, %cst_89 {dimension_numbers = #tpu.dot_dimension_numbers<[1], [0], [0], [1], [0, 0, 1, 1], [], []>} : vector<64x384xbf16>, vector<384x128xbf16>, vector<64x128xf32> -> vector<64x128xf32>
    %78 = arith.addf %74, %77 : vector<64x128xf32>
    %c0_90 = arith.constant 0 : index
    %c0_91 = arith.constant 0 : index
    %c0_92 = arith.constant 0 : index
    %79 = vector.load %arg4[%c0_90, %c0_91, %c0_92] : memref<2x64x128xf32, #tpu.memory_space<vmem>>, vector<1x64x128xf32>
    %80 = vector.shape_cast %79 : vector<1x64x128xf32> to vector<64x128xf32>
    %81 = arith.addf %78, %80 : vector<64x128xf32>
    %c0_93 = arith.constant 0 : index
    %c0_94 = arith.constant 0 : index
    %c0_95 = arith.constant 0 : index
    %82 = vector.load %arg6[%c0_93, %c0_94, %c0_95] : memref<2x64x128xf32, #tpu.memory_space<vmem>>, vector<1x64x128xf32>
    %83 = vector.shape_cast %82 : vector<1x64x128xf32> to vector<64x128xf32>
    %84 = vector.shape_cast %81 : vector<64x128xf32> to vector<1x64x128xf32>
    tpu.vector_store %arg6[%c0_93, %c0_94, %c0_95], %84 {strides = array<i32>} : memref<2x64x128xf32, #tpu.memory_space<vmem>>, vector<1x64x128xf32>,
    %c1_96 = arith.constant 1 : index
    %c0_97 = arith.constant 0 : index
    %c0_98 = arith.constant 0 : index
    %c0_99 = arith.constant 0 : index
    %85 = vector.load %arg7[%c1_96, %c0_97, %c0_98, %c0_99] : memref<2x10x10x128xf32, #tpu.memory_space<vmem>>, vector<1x8x8x128xf32>
    %86 = vector.shape_cast %85 : vector<1x8x8x128xf32> to vector<8x8x128xf32>
    %87 = vector.shape_cast %86 : vector<8x8x128xf32> to vector<64x128xf32>
    %88 = arith.truncf %87 : vector<64x128xf32> to vector<64x128xbf16>
    %c0_100 = arith.constant 0 : index
    %c0_101 = arith.constant 0 : index
    %89 = vector.load %arg8[%c0_100, %c0_101] : memref<64x1152xbf16, #tpu.memory_space<vmem>>, vector<64x128xbf16>
    tpu.vector_store %arg8[%c0_100, %c0_101], %88 {strides = array<i32>} : memref<64x1152xbf16, #tpu.memory_space<vmem>>, vector<64x128xbf16>,
    %c1_102 = arith.constant 1 : index
    %c0_103 = arith.constant 0 : index
    %c1_104 = arith.constant 1 : index
    %c0_105 = arith.constant 0 : index
    %90 = vector.load %arg7[%c1_102, %c0_103, %c1_104, %c0_105] : memref<2x10x10x128xf32, #tpu.memory_space<vmem>>, vector<1x8x8x128xf32>
    %91 = vector.shape_cast %90 : vector<1x8x8x128xf32> to vector<8x8x128xf32>
    %92 = vector.shape_cast %91 : vector<8x8x128xf32> to vector<64x128xf32>
    %93 = arith.truncf %92 : vector<64x128xf32> to vector<64x128xbf16>
    %c0_106 = arith.constant 0 : index
    %c128_107 = arith.constant 128 : index
    %94 = vector.load %arg8[%c0_106, %c128_107] : memref<64x1152xbf16, #tpu.memory_space<vmem>>, vector<64x128xbf16>
    tpu.vector_store %arg8[%c0_106, %c128_107], %93 {strides = array<i32>} : memref<64x1152xbf16, #tpu.memory_space<vmem>>, vector<64x128xbf16>,
    %c1_108 = arith.constant 1 : index
    %c0_109 = arith.constant 0 : index
    %c2_110 = arith.constant 2 : index
    %c0_111 = arith.constant 0 : index
    %95 = vector.load %arg7[%c1_108, %c0_109, %c2_110, %c0_111] : memref<2x10x10x128xf32, #tpu.memory_space<vmem>>, vector<1x8x8x128xf32>
    %96 = vector.shape_cast %95 : vector<1x8x8x128xf32> to vector<8x8x128xf32>
    %97 = vector.shape_cast %96 : vector<8x8x128xf32> to vector<64x128xf32>
    %98 = arith.truncf %97 : vector<64x128xf32> to vector<64x128xbf16>
    %c0_112 = arith.constant 0 : index
    %c256_113 = arith.constant 256 : index
    %99 = vector.load %arg8[%c0_112, %c256_113] : memref<64x1152xbf16, #tpu.memory_space<vmem>>, vector<64x128xbf16>
    tpu.vector_store %arg8[%c0_112, %c256_113], %98 {strides = array<i32>} : memref<64x1152xbf16, #tpu.memory_space<vmem>>, vector<64x128xbf16>,
    %c1_114 = arith.constant 1 : index
    %c1_115 = arith.constant 1 : index
    %c0_116 = arith.constant 0 : index
    %c0_117 = arith.constant 0 : index
    %100 = vector.load %arg7[%c1_114, %c1_115, %c0_116, %c0_117] : memref<2x10x10x128xf32, #tpu.memory_space<vmem>>, vector<1x8x8x128xf32>
    %101 = vector.shape_cast %100 : vector<1x8x8x128xf32> to vector<8x8x128xf32>
    %102 = vector.shape_cast %101 : vector<8x8x128xf32> to vector<64x128xf32>
    %103 = arith.truncf %102 : vector<64x128xf32> to vector<64x128xbf16>
    %c0_118 = arith.constant 0 : index
    %c384_119 = arith.constant 384 : index
    %104 = vector.load %arg8[%c0_118, %c384_119] : memref<64x1152xbf16, #tpu.memory_space<vmem>>, vector<64x128xbf16>
    tpu.vector_store %arg8[%c0_118, %c384_119], %103 {strides = array<i32>} : memref<64x1152xbf16, #tpu.memory_space<vmem>>, vector<64x128xbf16>,
    %c1_120 = arith.constant 1 : index
    %c1_121 = arith.constant 1 : index
    %c1_122 = arith.constant 1 : index
    %c0_123 = arith.constant 0 : index
    %105 = vector.load %arg7[%c1_120, %c1_121, %c1_122, %c0_123] : memref<2x10x10x128xf32, #tpu.memory_space<vmem>>, vector<1x8x8x128xf32>
    %106 = vector.shape_cast %105 : vector<1x8x8x128xf32> to vector<8x8x128xf32>
    %107 = vector.shape_cast %106 : vector<8x8x128xf32> to vector<64x128xf32>
    %108 = arith.truncf %107 : vector<64x128xf32> to vector<64x128xbf16>
    %c0_124 = arith.constant 0 : index
    %c512_125 = arith.constant 512 : index
    %109 = vector.load %arg8[%c0_124, %c512_125] : memref<64x1152xbf16, #tpu.memory_space<vmem>>, vector<64x128xbf16>
    tpu.vector_store %arg8[%c0_124, %c512_125], %108 {strides = array<i32>} : memref<64x1152xbf16, #tpu.memory_space<vmem>>, vector<64x128xbf16>,
    %c1_126 = arith.constant 1 : index
    %c1_127 = arith.constant 1 : index
    %c2_128 = arith.constant 2 : index
    %c0_129 = arith.constant 0 : index
    %110 = vector.load %arg7[%c1_126, %c1_127, %c2_128, %c0_129] : memref<2x10x10x128xf32, #tpu.memory_space<vmem>>, vector<1x8x8x128xf32>
    %111 = vector.shape_cast %110 : vector<1x8x8x128xf32> to vector<8x8x128xf32>
    %112 = vector.shape_cast %111 : vector<8x8x128xf32> to vector<64x128xf32>
    %113 = arith.truncf %112 : vector<64x128xf32> to vector<64x128xbf16>
    %c0_130 = arith.constant 0 : index
    %c640_131 = arith.constant 640 : index
    %114 = vector.load %arg8[%c0_130, %c640_131] : memref<64x1152xbf16, #tpu.memory_space<vmem>>, vector<64x128xbf16>
    tpu.vector_store %arg8[%c0_130, %c640_131], %113 {strides = array<i32>} : memref<64x1152xbf16, #tpu.memory_space<vmem>>, vector<64x128xbf16>,
    %c1_132 = arith.constant 1 : index
    %c2_133 = arith.constant 2 : index
    %c0_134 = arith.constant 0 : index
    %c0_135 = arith.constant 0 : index
    %115 = vector.load %arg7[%c1_132, %c2_133, %c0_134, %c0_135] : memref<2x10x10x128xf32, #tpu.memory_space<vmem>>, vector<1x8x8x128xf32>
    %116 = vector.shape_cast %115 : vector<1x8x8x128xf32> to vector<8x8x128xf32>
    %117 = vector.shape_cast %116 : vector<8x8x128xf32> to vector<64x128xf32>
    %118 = arith.truncf %117 : vector<64x128xf32> to vector<64x128xbf16>
    %c0_136 = arith.constant 0 : index
    %c768_137 = arith.constant 768 : index
    %119 = vector.load %arg8[%c0_136, %c768_137] : memref<64x1152xbf16, #tpu.memory_space<vmem>>, vector<64x128xbf16>
    tpu.vector_store %arg8[%c0_136, %c768_137], %118 {strides = array<i32>} : memref<64x1152xbf16, #tpu.memory_space<vmem>>, vector<64x128xbf16>,
    %c1_138 = arith.constant 1 : index
    %c2_139 = arith.constant 2 : index
    %c1_140 = arith.constant 1 : index
    %c0_141 = arith.constant 0 : index
    %120 = vector.load %arg7[%c1_138, %c2_139, %c1_140, %c0_141] : memref<2x10x10x128xf32, #tpu.memory_space<vmem>>, vector<1x8x8x128xf32>
    %121 = vector.shape_cast %120 : vector<1x8x8x128xf32> to vector<8x8x128xf32>
    %122 = vector.shape_cast %121 : vector<8x8x128xf32> to vector<64x128xf32>
    %123 = arith.truncf %122 : vector<64x128xf32> to vector<64x128xbf16>
    %c0_142 = arith.constant 0 : index
    %c896_143 = arith.constant 896 : index
    %124 = vector.load %arg8[%c0_142, %c896_143] : memref<64x1152xbf16, #tpu.memory_space<vmem>>, vector<64x128xbf16>
    tpu.vector_store %arg8[%c0_142, %c896_143], %123 {strides = array<i32>} : memref<64x1152xbf16, #tpu.memory_space<vmem>>, vector<64x128xbf16>,
    %c1_144 = arith.constant 1 : index
    %c2_145 = arith.constant 2 : index
    %c2_146 = arith.constant 2 : index
    %c0_147 = arith.constant 0 : index
    %125 = vector.load %arg7[%c1_144, %c2_145, %c2_146, %c0_147] : memref<2x10x10x128xf32, #tpu.memory_space<vmem>>, vector<1x8x8x128xf32>
    %126 = vector.shape_cast %125 : vector<1x8x8x128xf32> to vector<8x8x128xf32>
    %127 = vector.shape_cast %126 : vector<8x8x128xf32> to vector<64x128xf32>
    %128 = arith.truncf %127 : vector<64x128xf32> to vector<64x128xbf16>
    %c0_148 = arith.constant 0 : index
    %c1024_149 = arith.constant 1024 : index
    %129 = vector.load %arg8[%c0_148, %c1024_149] : memref<64x1152xbf16, #tpu.memory_space<vmem>>, vector<64x128xbf16>
    tpu.vector_store %arg8[%c0_148, %c1024_149], %128 {strides = array<i32>} : memref<64x1152xbf16, #tpu.memory_space<vmem>>, vector<64x128xbf16>,
    %cst_150 = arith.constant 0.000000e+00 : f32
    %130 = vector.broadcast %cst_150 : f32 to vector<64x128xf32>
    %c0_151 = arith.constant 0 : index
    %c0_152 = arith.constant 0 : index
    %131 = vector.load %arg8[%c0_151, %c0_152] : memref<64x1152xbf16, #tpu.memory_space<vmem>>, vector<64x384xbf16>
    %c0_153 = arith.constant 0 : index
    %c0_154 = arith.constant 0 : index
    %132 = vector.load %arg3[%c0_153, %c0_154] : memref<1152x128xbf16, #tpu.memory_space<vmem>>, vector<384x128xbf16>
    %cst_155 = arith.constant dense<0.000000e+00> : vector<64x128xf32>
    %133 = tpu.matmul %131, %132, %cst_155 {dimension_numbers = #tpu.dot_dimension_numbers<[1], [0], [0], [1], [0, 0, 1, 1], [], []>} : vector<64x384xbf16>, vector<384x128xbf16>, vector<64x128xf32> -> vector<64x128xf32>
    %134 = arith.addf %130, %133 : vector<64x128xf32>
    %c0_156 = arith.constant 0 : index
    %c384_157 = arith.constant 384 : index
    %135 = vector.load %arg8[%c0_156, %c384_157] : memref<64x1152xbf16, #tpu.memory_space<vmem>>, vector<64x384xbf16>
    %c384_158 = arith.constant 384 : index
    %c0_159 = arith.constant 0 : index
    %136 = vector.load %arg3[%c384_158, %c0_159] : memref<1152x128xbf16, #tpu.memory_space<vmem>>, vector<384x128xbf16>
    %cst_160 = arith.constant dense<0.000000e+00> : vector<64x128xf32>
    %137 = tpu.matmul %135, %136, %cst_160 {dimension_numbers = #tpu.dot_dimension_numbers<[1], [0], [0], [1], [0, 0, 1, 1], [], []>} : vector<64x384xbf16>, vector<384x128xbf16>, vector<64x128xf32> -> vector<64x128xf32>
    %138 = arith.addf %134, %137 : vector<64x128xf32>
    %c0_161 = arith.constant 0 : index
    %c768_162 = arith.constant 768 : index
    %139 = vector.load %arg8[%c0_161, %c768_162] : memref<64x1152xbf16, #tpu.memory_space<vmem>>, vector<64x384xbf16>
    %c768_163 = arith.constant 768 : index
    %c0_164 = arith.constant 0 : index
    %140 = vector.load %arg3[%c768_163, %c0_164] : memref<1152x128xbf16, #tpu.memory_space<vmem>>, vector<384x128xbf16>
    %cst_165 = arith.constant dense<0.000000e+00> : vector<64x128xf32>
    %141 = tpu.matmul %139, %140, %cst_165 {dimension_numbers = #tpu.dot_dimension_numbers<[1], [0], [0], [1], [0, 0, 1, 1], [], []>} : vector<64x384xbf16>, vector<384x128xbf16>, vector<64x128xf32> -> vector<64x128xf32>
    %142 = arith.addf %138, %141 : vector<64x128xf32>
    %c1_166 = arith.constant 1 : index
    %c0_167 = arith.constant 0 : index
    %c0_168 = arith.constant 0 : index
    %143 = vector.load %arg4[%c1_166, %c0_167, %c0_168] : memref<2x64x128xf32, #tpu.memory_space<vmem>>, vector<1x64x128xf32>
    %144 = vector.shape_cast %143 : vector<1x64x128xf32> to vector<64x128xf32>
    %145 = arith.addf %142, %144 : vector<64x128xf32>
    %c1_169 = arith.constant 1 : index
    %c0_170 = arith.constant 0 : index
    %c0_171 = arith.constant 0 : index
    %146 = vector.load %arg6[%c1_169, %c0_170, %c0_171] : memref<2x64x128xf32, #tpu.memory_space<vmem>>, vector<1x64x128xf32>
    %147 = vector.shape_cast %146 : vector<1x64x128xf32> to vector<64x128xf32>
    %148 = vector.shape_cast %145 : vector<64x128xf32> to vector<1x64x128xf32>
    tpu.vector_store %arg6[%c1_169, %c0_170, %c0_171], %148 {strides = array<i32>} : memref<2x64x128xf32, #tpu.memory_space<vmem>>, vector<1x64x128xf32>,
    return
  }
  func.func @transform_0(%arg0: i32) -> (i32, i32) {
    %c0_i32 = arith.constant 0 : i32
    %c0_i32_0 = arith.constant 0 : i32
    %c0_i32_1 = arith.constant 0 : i32
    return %c0_i32, %c0_i32_0 : i32, i32
  }
  func.func @transform_1(%arg0: i32) -> (i32, i32) {
    %c0_i32 = arith.constant 0 : i32
    %c0_i32_0 = arith.constant 0 : i32
    %c0_i32_1 = arith.constant 0 : i32
    return %c0_i32, %c0_i32_0 : i32, i32
  }
  func.func @transform_2(%arg0: i32) -> (i32, i32) {
    %c0_i32 = arith.constant 0 : i32
    %c0_i32_0 = arith.constant 0 : i32
    %c0_i32_1 = arith.constant 0 : i32
    return %c0_i32, %c0_i32_0 : i32, i32
  }
  func.func @transform_3(%arg0: i32) -> (i32, i32, i32) {
    %c0_i32 = arith.constant 0 : i32
    %c0_i32_0 = arith.constant 0 : i32
    %c0_i32_1 = arith.constant 0 : i32
    return %arg0, %c0_i32, %c0_i32_0 : i32, i32, i32
  }
  func.func @transform_4(%arg0: i32) -> (i32, i32, i32, i32) {
    %c0_i32 = arith.constant 0 : i32
    %c0_i32_0 = arith.constant 0 : i32
    %c0_i32_1 = arith.constant 0 : i32
    %c0_i32_2 = arith.constant 0 : i32
    return %arg0, %c0_i32, %c0_i32_0, %c0_i32_1 : i32, i32, i32, i32
  }
  func.func @transform_5(%arg0: i32) -> (i32, i32, i32) {
    %c0_i32 = arith.constant 0 : i32
    %c0_i32_0 = arith.constant 0 : i32
    %c0_i32_1 = arith.constant 0 : i32
    return %arg0, %c0_i32, %c0_i32_0 : i32, i32, i32
  }
}

</mosaic_0001>

<llo_original>
// kernel: basic_block_forward.3
$region0: #{basic_block_forward.3}
  #allocation0 [shape = 'u32[]', space=smem, size = 0x4, offset = 0x4, fixed_abs, tag = 'smem constant byte address 0x4 - core index']
  #allocation1 [shape = 'u32[144,128]{1,0:T(1,128)}', space=vmem, size = 0x12000, scoped, tag = 'internal scratch']
  #allocation2 [shape = 'f32[1,128]{1,0:T(1,128)}', space=vmem, size = 0x200, scoped, tag = 'scratch operand']
  #allocation3 [shape = 'f32[1,128]{1,0:T(1,128)}', space=vmem, size = 0x200, scoped, tag = 'scratch operand']
  %s0 = inlined_call_operand.vmem [shape: f32[64,128], index: 0, kind: input, shape index: {}]
  %s1 = inlined_call_operand.vmem [shape: f32[1,128], index: 1, kind: output, shape index: {0}]
  %s2 = inlined_call_operand.vmem [shape: f32[1,128], index: 2, kind: output, shape index: {1}]
  %3 = xla_tuple %s1, %s2
  %s4 = sld [smem:[#allocation0]]
  $region30: #{basic_block_forward.3} parent=0
    _
  %s6 = ssub.s32 1, %s4
  %s7 = scalar_select 0, %s6, %s4
  // Predicated region
  $region2: #{basic_block_forward.3} parent=0 // pred_check
    _
  $region3: #{basic_block_forward.3} parent=0 // pred_check_branch
    %9 = sbr.rel (0) target = $region5
  $region4: #{basic_block_forward.3} parent=0 // pred_region
    _
  $region5: #{basic_block_forward.3} parent=0 // pred_fallthru
    _
  %p10 = scmp.eq.s32.totalorder 0, 0
  // Predicated region
  $region6: #{basic_block_forward.3} parent=0 // pred_check
    %p11 = pneg %p10
  $region7: #{basic_block_forward.3} parent=0 // pred_check_branch
    %13 = sbr.rel (%p11) target = $region9
  $region8: #{basic_block_forward.3} parent=0 // pred_region
    %14 = vst [vmem:[#allocation2] sm:$0x1] 0.0
    %15 = vst [vmem:[#allocation3] sm:$0x1] 0.0
  $region9: #{basic_block_forward.3} parent=0 // pred_fallthru
    _
  %v16 = vld [vmem:[%s0] sm:$0xff]
  %v17 = vld [vmem:[%s0 + $0x8] sm:$0xff]
  %v18 = vld [vmem:[%s0 + $0x10] sm:$0xff]
  %v19 = vld [vmem:[%s0 + $0x18] sm:$0xff]
  %v20 = vld [vmem:[%s0 + $0x20] sm:$0xff]
  %v21 = vld [vmem:[%s0 + $0x28] sm:$0xff]
  %v22 = vld [vmem:[%s0 + $0x30] sm:$0xff]
  %v23 = vld [vmem:[%s0 + $0x38] sm:$0xff]
  %v24 = vld [vmem:[#allocation2] sm:$0x1]
  %v25 = vadd.f32 %v16, %v17
  %v26 = vadd.f32 %v25, %v18
  %v27 = vadd.f32 %v26, %v19
  %v28 = vadd.f32 %v27, %v20
  %v29 = vadd.f32 %v28, %v21
  %v30 = vadd.f32 %v29, %v22
  %v31 = vadd.f32 %v30, %v23
  %v32 = vrot.slane %v31, 4
  %v33 = vadd.f32 %v31, %v32
  %v34 = vrot.slane %v33, 2
  %v35 = vadd.f32 %v33, %v34
  %v36 = vrot.slane %v35, 1
  %v37 = vadd.f32 %v35, %v36
  %v38 = vadd.f32 %v24, %v37
  %39 = vst [vmem:[#allocation2] sm:$0x1] %v38
  %v40 = vld [vmem:[#allocation3] sm:$0x1]
  %v41 = vmul.f32 %v16, %v16
  %v42 = vmul.f32 %v17, %v17
  %v43 = vmul.f32 %v18, %v18
  %v44 = vmul.f32 %v19, %v19
  %v45 = vmul.f32 %v20, %v20
  %v46 = vmul.f32 %v21, %v21
  %v47 = vmul.f32 %v22, %v22
  %v48 = vmul.f32 %v23, %v23
  %v49 = vadd.f32 %v41, %v42
  %v50 = vadd.f32 %v49, %v43
  %v51 = vadd.f32 %v50, %v44
  %v52 = vadd.f32 %v51, %v45
  %v53 = vadd.f32 %v52, %v46
  %v54 = vadd.f32 %v53, %v47
  %v55 = vadd.f32 %v54, %v48
  %v56 = vrot.slane %v55, 4
  %v57 = vadd.f32 %v55, %v56
  %v58 = vrot.slane %v57, 2
  %v59 = vadd.f32 %v57, %v58
  %v60 = vrot.slane %v59, 1
  %v61 = vadd.f32 %v59, %v60
  %v62 = vadd.f32 %v40, %v61
  %63 = vst [vmem:[#allocation3] sm:$0x1] %v62
  // Predicated region
  $region10: #{basic_block_forward.3} parent=0 // pred_check
    %p64 = pneg %p10
  $region11: #{basic_block_forward.3} parent=0 // pred_check_branch
    %66 = sbr.rel (%p64) target = $region13
  $region12: #{basic_block_forward.3} parent=0 // pred_region
    %v67 = vld [vmem:[#allocation2] sm:$0x1]
    %68 = vst [vmem:[%s1] sm:$0x1] %v67
    %v69 = vld [vmem:[#allocation3] sm:$0x1]
    %70 = vst [vmem:[%s2] sm:$0x1] %v69
  $region13: #{basic_block_forward.3} parent=0 // pred_fallthru
    _
  // Predicated region
  $region14: #{basic_block_forward.3} parent=0 // pred_check
    _
  $region15: #{basic_block_forward.3} parent=0 // pred_check_branch
    %72 = sbr.rel (0) target = $region17
  $region16: #{basic_block_forward.3} parent=0 // pred_region
    _
  $region17: #{basic_block_forward.3} parent=0 // pred_fallthru
    _
  // Predicated region
  $region18: #{basic_block_forward.3} parent=0 // pred_check
    _
  $region19: #{basic_block_forward.3} parent=0 // pred_check_branch
    %74 = sbr.rel (0) target = $region21
  $region20: #{basic_block_forward.3} parent=0 // pred_region
    _
  $region21: #{basic_block_forward.3} parent=0 // pred_fallthru
    _
  // Predicated region
  $region22: #{basic_block_forward.3} parent=0 // pred_check
    _
  $region23: #{basic_block_forward.3} parent=0 // pred_check_branch
    %76 = sbr.rel (0) target = $region25
  $region24: #{basic_block_forward.3} parent=0 // pred_region
    _
  $region25: #{basic_block_forward.3} parent=0 // pred_fallthru
    _
  // Predicated region
  $region26: #{basic_block_forward.3} parent=0 // pred_check
    _
  $region27: #{basic_block_forward.3} parent=0 // pred_check_branch
    %78 = sbr.rel (0) target = $region29
  $region28: #{basic_block_forward.3} parent=0 // pred_region
    _
  $region29: #{basic_block_forward.3} parent=0 // pred_fallthru
    _

// kernel: basic_block_forward.4
$region0: #{basic_block_forward.4}
  #allocation0 [shape = 'u32[]', space=smem, size = 0x4, offset = 0x4, fixed_abs, tag = 'smem constant byte address 0x4 - core index']
  #allocation1 [shape = 'u32[144,128]{1,0:T(1,128)}', space=vmem, size = 0x12000, scoped, tag = 'internal scratch']
  #allocation2 [shape = 'f32[2,10,10,16]{3,2,1,0:T(8,128)}', space=vmem, size = 0x28000, scoped, tag = 'scratch operand']
  #allocation3 [shape = 'f32[2,10,10,16]{3,2,1,0:T(8,128)}', space=vmem, size = 0x28000, scoped, tag = 'scratch operand']
  #allocation4 [shape = 'f32[2,10,10,16]{3,2,1,0:T(8,128)}', space=vmem, size = 0x28000, scoped, tag = 'scratch operand']
  #allocation5 [shape = 'f32[2,10,10,16]{3,2,1,0:T(8,128)}', space=vmem, size = 0x28000, scoped, tag = 'scratch operand']
  #allocation6 [shape = 'bf16[64,144]{1,0:T(8,128)(2,1)}', space=vmem, size = 0x8000, scoped, tag = 'scratch operand']
  %s0 = inlined_call_operand.vmem [shape: f32[1,16], index: 0, kind: input, shape index: {}]
  %s1 = inlined_call_operand.vmem [shape: f32[1,16], index: 1, kind: input, shape index: {}]
  %s2 = inlined_call_operand.vmem [shape: bf16[144,128], index: 2, kind: input, shape index: {}]
  %s3 = inlined_call_operand.vmem [shape: bf16[16,128], index: 3, kind: input, shape index: {}]
  %s4 = inlined_call_operand.vmem [shape: f32[2,8,8,16], index: 4, kind: input, shape index: {}]
  %s5 = inlined_call_operand.vmem [shape: f32[2,8,8,16], index: 5, kind: input, shape index: {}]
  %s6 = inlined_call_operand.vmem [shape: f32[2,8,8,16], index: 6, kind: input, shape index: {}]
  %s7 = inlined_call_operand.vmem [shape: f32[2,8,8,16], index: 7, kind: input, shape index: {}]
  %s8 = inlined_call_operand.vmem [shape: bf16[2,64,128], index: 8, kind: output, shape index: {0}]
  %s9 = inlined_call_operand.vmem [shape: f32[2,64,128], index: 9, kind: output, shape index: {1}]
  %s10 = inlined_call_operand.vmem [shape: f32[1,128], index: 10, kind: output, shape index: {2}]
  %s11 = inlined_call_operand.vmem [shape: f32[1,128], index: 11, kind: output, shape index: {3}]
  %12 = xla_tuple %s8, %s9, %s10, %s11
  %s13 = sld [smem:[#allocation0]]
  $region66: #{basic_block_forward.4} parent=0
    _
  %s15 = ssub.s32 1, %s13
  %s16 = scalar_select 0, %s15, %s13
  // Predicated region
  $region2: #{basic_block_forward.4} parent=0 // pred_check
    _
  $region3: #{basic_block_forward.4} parent=0 // pred_check_branch
    %18 = sbr.rel (0) target = $region5
  $region4: #{basic_block_forward.4} parent=0 // pred_region
    _
  $region5: #{basic_block_forward.4} parent=0 // pred_fallthru
    _
  // Predicated region
  $region6: #{basic_block_forward.4} parent=0 // pred_check
    _
  $region7: #{basic_block_forward.4} parent=0 // pred_check_branch
    %20 = sbr.rel (0) target = $region9
  $region8: #{basic_block_forward.4} parent=0 // pred_region
    _
  $region9: #{basic_block_forward.4} parent=0 // pred_fallthru
    _
  // Predicated region
  $region10: #{basic_block_forward.4} parent=0 // pred_check
    _
  $region11: #{basic_block_forward.4} parent=0 // pred_check_branch
    %22 = sbr.rel (0) target = $region13
  $region12: #{basic_block_forward.4} parent=0 // pred_region
    _
  $region13: #{basic_block_forward.4} parent=0 // pred_fallthru
    _
  // Predicated region
  $region14: #{basic_block_forward.4} parent=0 // pred_check
    _
  $region15: #{basic_block_forward.4} parent=0 // pred_check_branch
    %24 = sbr.rel (0) target = $region17
  $region16: #{basic_block_forward.4} parent=0 // pred_region
    _
  $region17: #{basic_block_forward.4} parent=0 // pred_fallthru
    _
  // Predicated region
  $region18: #{basic_block_forward.4} parent=0 // pred_check
    _
  $region19: #{basic_block_forward.4} parent=0 // pred_check_branch
    %26 = sbr.rel (0) target = $region21
  $region20: #{basic_block_forward.4} parent=0 // pred_region
    _
  $region21: #{basic_block_forward.4} parent=0 // pred_fallthru
    _
  // Predicated region
  $region22: #{basic_block_forward.4} parent=0 // pred_check
    _
  $region23: #{basic_block_forward.4} parent=0 // pred_check_branch
    %28 = sbr.rel (0) target = $region25
  $region24: #{basic_block_forward.4} parent=0 // pred_region
    _
  $region25: #{basic_block_forward.4} parent=0 // pred_fallthru
    _
  // Predicated region
  $region26: #{basic_block_forward.4} parent=0 // pred_check
    _
  $region27: #{basic_block_forward.4} parent=0 // pred_check_branch
    %30 = sbr.rel (0) target = $region29
  $region28: #{basic_block_forward.4} parent=0 // pred_region
    _
  $region29: #{basic_block_forward.4} parent=0 // pred_fallthru
    _
  // Predicated region
  $region30: #{basic_block_forward.4} parent=0 // pred_check
    _
  $region31: #{basic_block_forward.4} parent=0 // pred_check_branch
    %32 = sbr.rel (0) target = $region33
  $region32: #{basic_block_forward.4} parent=0 // pred_region
    _
  $region33: #{basic_block_forward.4} parent=0 // pred_fallthru
    _
  %v34 = vld [vmem:[%s0] sm:$0x1]
  %v35 = vld [vmem:[%s1] sm:$0x1]
  %vm36 = vcmask 130048
  %37 = vst.msk [vmem:[#allocation2] sm:$0xff] %vm36, 0.0
  %vm38 = vcmask 123904
  %39 = vst.msk [vmem:[#allocation2 + $0x8] sm:$0x3] %vm38, 0.0
  %40 = vst.msk [vmem:[#allocation2 + $0xa0] sm:$0xff] %vm36, 0.0
  %41 = vst.msk [vmem:[#allocation2 + $0xa8] sm:$0x3] %vm38, 0.0
  %s42 = scalar_lea.vmem [#allocation2], 144
  %43 = vst.msk [vmem:[%s42] sm:$0xff] %vm36, 0.0
  %44 = vst.msk [vmem:[%s42 + $0x8] sm:$0x3] %vm38, 0.0
  %45 = vst.msk [vmem:[%s42 + $0xa0] sm:$0xff] %vm36, 0.0
  %46 = vst.msk [vmem:[%s42 + $0xa8] sm:$0x3] %vm38, 0.0
  %vm47 = vcmask 122880
  %48 = vst.msk [vmem:[#allocation2] sm:$0x1] %vm47, 0.0
  %49 = vst.msk [vmem:[#allocation2 + $0x10] sm:$0x1] %vm47, 0.0
  %50 = vst.msk [vmem:[#allocation2 + $0x20] sm:$0x1] %vm47, 0.0
  %51 = vst.msk [vmem:[#allocation2 + $0x30] sm:$0x1] %vm47, 0.0
  %52 = vst.msk [vmem:[#allocation2 + $0x40] sm:$0x1] %vm47, 0.0
  %53 = vst.msk [vmem:[#allocation2 + $0x50] sm:$0x1] %vm47, 0.0
  %54 = vst.msk [vmem:[#allocation2 + $0x60] sm:$0x1] %vm47, 0.0
  %55 = vst.msk [vmem:[#allocation2 + $0x70] sm:$0x1] %vm47, 0.0
  %56 = vst.msk [vmem:[#allocation2 + $0x80] sm:$0x1] %vm47, 0.0
  %57 = vst.msk [vmem:[#allocation2 + $0x90] sm:$0x1] %vm47, 0.0
  %58 = vst.msk [vmem:[#allocation2 + $0xa0] sm:$0x1] %vm47, 0.0
  %59 = vst.msk [vmem:[#allocation2 + $0xb0] sm:$0x1] %vm47, 0.0
  %60 = vst.msk [vmem:[#allocation2 + $0xc0] sm:$0x1] %vm47, 0.0
  %61 = vst.msk [vmem:[#allocation2 + $0xd0] sm:$0x1] %vm47, 0.0
  %62 = vst.msk [vmem:[#allocation2 + $0xe0] sm:$0x1] %vm47, 0.0
  %63 = vst.msk [vmem:[#allocation2 + $0xf0] sm:$0x1] %vm47, 0.0
  %64 = vst.msk [vmem:[#allocation2 + $0x100] sm:$0x1] %vm47, 0.0
  %65 = vst.msk [vmem:[#allocation2 + $0x110] sm:$0x1] %vm47, 0.0
  %66 = vst.msk [vmem:[#allocation2 + $0x120] sm:$0x1] %vm47, 0.0
  %67 = vst.msk [vmem:[#allocation2 + $0x130] sm:$0x1] %vm47, 0.0
  %68 = vst.msk [vmem:[#allocation2 + $0x9] sm:$0x1] %vm47, 0.0
  %69 = vst.msk [vmem:[#allocation2 + $0x19] sm:$0x1] %vm47, 0.0
  %70 = vst.msk [vmem:[#allocation2 + $0x29] sm:$0x1] %vm47, 0.0
  %71 = vst.msk [vmem:[#allocation2 + $0x39] sm:$0x1] %vm47, 0.0
  %72 = vst.msk [vmem:[#allocation2 + $0x49] sm:$0x1] %vm47, 0.0
  %73 = vst.msk [vmem:[#allocation2 + $0x59] sm:$0x1] %vm47, 0.0
  %74 = vst.msk [vmem:[#allocation2 + $0x69] sm:$0x1] %vm47, 0.0
  %75 = vst.msk [vmem:[#allocation2 + $0x79] sm:$0x1] %vm47, 0.0
  %76 = vst.msk [vmem:[#allocation2 + $0x89] sm:$0x1] %vm47, 0.0
  %77 = vst.msk [vmem:[#allocation2 + $0x99] sm:$0x1] %vm47, 0.0
  %78 = vst.msk [vmem:[#allocation2 + $0xa9] sm:$0x1] %vm47, 0.0
  %79 = vst.msk [vmem:[#allocation2 + $0xb9] sm:$0x1] %vm47, 0.0
  %80 = vst.msk [vmem:[#allocation2 + $0xc9] sm:$0x1] %vm47, 0.0
  %81 = vst.msk [vmem:[#allocation2 + $0xd9] sm:$0x1] %vm47, 0.0
  %82 = vst.msk [vmem:[#allocation2 + $0xe9] sm:$0x1] %vm47, 0.0
  %83 = vst.msk [vmem:[#allocation2 + $0xf9] sm:$0x1] %vm47, 0.0
  %84 = vst.msk [vmem:[#allocation2 + $0x109] sm:$0x1] %vm47, 0.0
  %85 = vst.msk [vmem:[#allocation2 + $0x119] sm:$0x1] %vm47, 0.0
  %86 = vst.msk [vmem:[#allocation2 + $0x129] sm:$0x1] %vm47, 0.0
  %87 = vst.msk [vmem:[#allocation2 + $0x139] sm:$0x1] %vm47, 0.0
  %v88 = vld [vmem:[%s4] sm:$0xff]
  %v89 = vld [vmem:[%s4 + $0x8] sm:$0xff]
  %v90 = vld [vmem:[%s4 + $0x10] sm:$0xff]
  %v91 = vld [vmem:[%s4 + $0x18] sm:$0xff]
  %v92 = vld [vmem:[%s4 + $0x20] sm:$0xff]
  %v93 = vld [vmem:[%s4 + $0x28] sm:$0xff]
  %v94 = vld [vmem:[%s4 + $0x30] sm:$0xff]
  %v95 = vld [vmem:[%s4 + $0x38] sm:$0xff]
  %v96 = vld [vmem:[%s4 + $0x40] sm:$0xff]
  %v97 = vld [vmem:[%s4 + $0x48] sm:$0xff]
  %v98 = vld [vmem:[%s4 + $0x50] sm:$0xff]
  %v99 = vld [vmem:[%s4 + $0x58] sm:$0xff]
  %v100 = vld [vmem:[%s4 + $0x60] sm:$0xff]
  %v101 = vld [vmem:[%s4 + $0x68] sm:$0xff]
  %v102 = vld [vmem:[%s4 + $0x70] sm:$0xff]
  %v103 = vld [vmem:[%s4 + $0x78] sm:$0xff]
  %v105 = vlaneseq
  %v106 = vshrl.u32 %v105, 7
  %v107 = vsub.s32 0, %v106
  %v108 = vrot.slane %v34, %v107
  %v110 = vmul.f32 %v88, %v108
  %v111 = vmul.f32 %v89, %v108
  %v112 = vmul.f32 %v90, %v108
  %v113 = vmul.f32 %v91, %v108
  %v114 = vmul.f32 %v92, %v108
  %v115 = vmul.f32 %v93, %v108
  %v116 = vmul.f32 %v94, %v108
  %v117 = vmul.f32 %v95, %v108
  %v118 = vmul.f32 %v96, %v108
  %v119 = vmul.f32 %v97, %v108
  %v120 = vmul.f32 %v98, %v108
  %v121 = vmul.f32 %v99, %v108
  %v122 = vmul.f32 %v100, %v108
  %v123 = vmul.f32 %v101, %v108
  %v124 = vmul.f32 %v102, %v108
  %v125 = vmul.f32 %v103, %v108
  %v127 = vlaneseq
  %v128 = vshrl.u32 %v127, 7
  %v129 = vsub.s32 0, %v128
  %v130 = vrot.slane %v35, %v129
  %v132 = vadd.f32 %v110, %v130
  %v133 = vadd.f32 %v111, %v130
  %v134 = vadd.f32 %v112, %v130
  %v135 = vadd.f32 %v113, %v130
  %v136 = vadd.f32 %v114, %v130
  %v137 = vadd.f32 %v115, %v130
  %v138 = vadd.f32 %v116, %v130
  %v139 = vadd.f32 %v117, %v130
  %v140 = vadd.f32 %v118, %v130
  %v141 = vadd.f32 %v119, %v130
  %v142 = vadd.f32 %v120, %v130
  %v143 = vadd.f32 %v121, %v130
  %v144 = vadd.f32 %v122, %v130
  %v145 = vadd.f32 %v123, %v130
  %v146 = vadd.f32 %v124, %v130
  %v147 = vadd.f32 %v125, %v130
  %v148 = vmax.f32 %v132, 0.0
  %v149 = vmax.f32 %v133, 0.0
  %v150 = vmax.f32 %v134, 0.0
  %v151 = vmax.f32 %v135, 0.0
  %v152 = vmax.f32 %v136, 0.0
  %v153 = vmax.f32 %v137, 0.0
  %v154 = vmax.f32 %v138, 0.0
  %v155 = vmax.f32 %v139, 0.0
  %v156 = vmax.f32 %v140, 0.0
  %v157 = vmax.f32 %v141, 0.0
  %v158 = vmax.f32 %v142, 0.0
  %v159 = vmax.f32 %v143, 0.0
  %v160 = vmax.f32 %v144, 0.0
  %v161 = vmax.f32 %v145, 0.0
  %v162 = vmax.f32 %v146, 0.0
  %v163 = vmax.f32 %v147, 0.0
  %s164 = scalar_lea.vmem [#allocation2], 16
  %165 = vst.msk [vmem:[%s164 + $0x1] sm:$0xff] %vm36, %v148
  %166 = vst.msk [vmem:[%s164 + $0x11] sm:$0xff] %vm36, %v149
  %167 = vst.msk [vmem:[%s164 + $0x21] sm:$0xff] %vm36, %v150
  %168 = vst.msk [vmem:[%s164 + $0x31] sm:$0xff] %vm36, %v151
  %169 = vst.msk [vmem:[%s164 + $0x41] sm:$0xff] %vm36, %v152
  %170 = vst.msk [vmem:[%s164 + $0x51] sm:$0xff] %vm36, %v153
  %171 = vst.msk [vmem:[%s164 + $0x61] sm:$0xff] %vm36, %v154
  %172 = vst.msk [vmem:[%s164 + $0x71] sm:$0xff] %vm36, %v155
  %173 = vst.msk [vmem:[%s164 + $0xa1] sm:$0xff] %vm36, %v156
  %174 = vst.msk [vmem:[%s164 + $0xb1] sm:$0xff] %vm36, %v157
  %175 = vst.msk [vmem:[%s164 + $0xc1] sm:$0xff] %vm36, %v158
  %176 = vst.msk [vmem:[%s164 + $0xd1] sm:$0xff] %vm36, %v159
  %177 = vst.msk [vmem:[%s164 + $0xe1] sm:$0xff] %vm36, %v160
  %178 = vst.msk [vmem:[%s164 + $0xf1] sm:$0xff] %vm36, %v161
  %179 = vst.msk [vmem:[%s164 + $0x101] sm:$0xff] %vm36, %v162
  %180 = vst.msk [vmem:[%s164 + $0x111] sm:$0xff] %vm36, %v163
  %181 = vst.msk [vmem:[#allocation3] sm:$0xff] %vm36, 0.0
  %182 = vst.msk [vmem:[#allocation3 + $0x8] sm:$0x3] %vm38, 0.0
  %183 = vst.msk [vmem:[#allocation3 + $0xa0] sm:$0xff] %vm36, 0.0
  %184 = vst.msk [vmem:[#allocation3 + $0xa8] sm:$0x3] %vm38, 0.0
  %s185 = scalar_lea.vmem [#allocation3], 144
  %186 = vst.msk [vmem:[%s185] sm:$0xff] %vm36, 0.0
  %187 = vst.msk [vmem:[%s185 + $0x8] sm:$0x3] %vm38, 0.0
  %188 = vst.msk [vmem:[%s185 + $0xa0] sm:$0xff] %vm36, 0.0
  %189 = vst.msk [vmem:[%s185 + $0xa8] sm:$0x3] %vm38, 0.0
  %190 = vst.msk [vmem:[#allocation3] sm:$0x1] %vm47, 0.0
  %191 = vst.msk [vmem:[#allocation3 + $0x10] sm:$0x1] %vm47, 0.0
  %192 = vst.msk [vmem:[#allocation3 + $0x20] sm:$0x1] %vm47, 0.0
  %193 = vst.msk [vmem:[#allocation3 + $0x30] sm:$0x1] %vm47, 0.0
  %194 = vst.msk [vmem:[#allocation3 + $0x40] sm:$0x1] %vm47, 0.0
  %195 = vst.msk [vmem:[#allocation3 + $0x50] sm:$0x1] %vm47, 0.0
  %196 = vst.msk [vmem:[#allocation3 + $0x60] sm:$0x1] %vm47, 0.0
  %197 = vst.msk [vmem:[#allocation3 + $0x70] sm:$0x1] %vm47, 0.0
  %198 = vst.msk [vmem:[#allocation3 + $0x80] sm:$0x1] %vm47, 0.0
  %199 = vst.msk [vmem:[#allocation3 + $0x90] sm:$0x1] %vm47, 0.0
  %200 = vst.msk [vmem:[#allocation3 + $0xa0] sm:$0x1] %vm47, 0.0
  %201 = vst.msk [vmem:[#allocation3 + $0xb0] sm:$0x1] %vm47, 0.0
  %202 = vst.msk [vmem:[#allocation3 + $0xc0] sm:$0x1] %vm47, 0.0
  %203 = vst.msk [vmem:[#allocation3 + $0xd0] sm:$0x1] %vm47, 0.0
  %204 = vst.msk [vmem:[#allocation3 + $0xe0] sm:$0x1] %vm47, 0.0
  %205 = vst.msk [vmem:[#allocation3 + $0xf0] sm:$0x1] %vm47, 0.0
  %206 = vst.msk [vmem:[#allocation3 + $0x100] sm:$0x1] %vm47, 0.0
  %207 = vst.msk [vmem:[#allocation3 + $0x110] sm:$0x1] %vm47, 0.0
  %208 = vst.msk [vmem:[#allocation3 + $0x120] sm:$0x1] %vm47, 0.0
  %209 = vst.msk [vmem:[#allocation3 + $0x130] sm:$0x1] %vm47, 0.0
  %210 = vst.msk [vmem:[#allocation3 + $0x9] sm:$0x1] %vm47, 0.0
  %211 = vst.msk [vmem:[#allocation3 + $0x19] sm:$0x1] %vm47, 0.0
  %212 = vst.msk [vmem:[#allocation3 + $0x29] sm:$0x1] %vm47, 0.0
  %213 = vst.msk [vmem:[#allocation3 + $0x39] sm:$0x1] %vm47, 0.0
  %214 = vst.msk [vmem:[#allocation3 + $0x49] sm:$0x1] %vm47, 0.0
  %215 = vst.msk [vmem:[#allocation3 + $0x59] sm:$0x1] %vm47, 0.0
  %216 = vst.msk [vmem:[#allocation3 + $0x69] sm:$0x1] %vm47, 0.0
  %217 = vst.msk [vmem:[#allocation3 + $0x79] sm:$0x1] %vm47, 0.0
  %218 = vst.msk [vmem:[#allocation3 + $0x89] sm:$0x1] %vm47, 0.0
  %219 = vst.msk [vmem:[#allocation3 + $0x99] sm:$0x1] %vm47, 0.0
  %220 = vst.msk [vmem:[#allocation3 + $0xa9] sm:$0x1] %vm47, 0.0
  %221 = vst.msk [vmem:[#allocation3 + $0xb9] sm:$0x1] %vm47, 0.0
  %222 = vst.msk [vmem:[#allocation3 + $0xc9] sm:$0x1] %vm47, 0.0
  %223 = vst.msk [vmem:[#allocation3 + $0xd9] sm:$0x1] %vm47, 0.0
  %224 = vst.msk [vmem:[#allocation3 + $0xe9] sm:$0x1] %vm47, 0.0
  %225 = vst.msk [vmem:[#allocation3 + $0xf9] sm:$0x1] %vm47, 0.0
  %226 = vst.msk [vmem:[#allocation3 + $0x109] sm:$0x1] %vm47, 0.0
  %227 = vst.msk [vmem:[#allocation3 + $0x119] sm:$0x1] %vm47, 0.0
  %228 = vst.msk [vmem:[#allocation3 + $0x129] sm:$0x1] %vm47, 0.0
  %229 = vst.msk [vmem:[#allocation3 + $0x139] sm:$0x1] %vm47, 0.0
  %v230 = vld [vmem:[%s5] sm:$0xff]
  %v231 = vld [vmem:[%s5 + $0x8] sm:$0xff]
  %v232 = vld [vmem:[%s5 + $0x10] sm:$0xff]
  %v233 = vld [vmem:[%s5 + $0x18] sm:$0xff]
  %v234 = vld [vmem:[%s5 + $0x20] sm:$0xff]
  %v235 = vld [vmem:[%s5 + $0x28] sm:$0xff]
  %v236 = vld [vmem:[%s5 + $0x30] sm:$0xff]
  %v237 = vld [vmem:[%s5 + $0x38] sm:$0xff]
  %v238 = vld [vmem:[%s5 + $0x40] sm:$0xff]
  %v239 = vld [vmem:[%s5 + $0x48] sm:$0xff]
  %v240 = vld [vmem:[%s5 + $0x50] sm:$0xff]
  %v241 = vld [vmem:[%s5 + $0x58] sm:$0xff]
  %v242 = vld [vmem:[%s5 + $0x60] sm:$0xff]
  %v243 = vld [vmem:[%s5 + $0x68] sm:$0xff]
  %v244 = vld [vmem:[%s5 + $0x70] sm:$0xff]
  %v245 = vld [vmem:[%s5 + $0x78] sm:$0xff]
  %v246 = vmul.f32 %v230, %v108
  %v247 = vmul.f32 %v231, %v108
  %v248 = vmul.f32 %v232, %v108
  %v249 = vmul.f32 %v233, %v108
  %v250 = vmul.f32 %v234, %v108
  %v251 = vmul.f32 %v235, %v108
  %v252 = vmul.f32 %v236, %v108
  %v253 = vmul.f32 %v237, %v108
  %v254 = vmul.f32 %v238, %v108
  %v255 = vmul.f32 %v239, %v108
  %v256 = vmul.f32 %v240, %v108
  %v257 = vmul.f32 %v241, %v108
  %v258 = vmul.f32 %v242, %v108
  %v259 = vmul.f32 %v243, %v108
  %v260 = vmul.f32 %v244, %v108
  %v261 = vmul.f32 %v245, %v108
  %v262 = vadd.f32 %v246, %v130
  %v263 = vadd.f32 %v247, %v130
  %v264 = vadd.f32 %v248, %v130
  %v265 = vadd.f32 %v249, %v130
  %v266 = vadd.f32 %v250, %v130
  %v267 = vadd.f32 %v251, %v130
  %v268 = vadd.f32 %v252, %v130
  %v269 = vadd.f32 %v253, %v130
  %v270 = vadd.f32 %v254, %v130
  %v271 = vadd.f32 %v255, %v130
  %v272 = vadd.f32 %v256, %v130
  %v273 = vadd.f32 %v257, %v130
  %v274 = vadd.f32 %v258, %v130
  %v275 = vadd.f32 %v259, %v130
  %v276 = vadd.f32 %v260, %v130
  %v277 = vadd.f32 %v261, %v130
  %v278 = vmax.f32 %v262, 0.0
  %v279 = vmax.f32 %v263, 0.0
  %v280 = vmax.f32 %v264, 0.0
  %v281 = vmax.f32 %v265, 0.0
  %v282 = vmax.f32 %v266, 0.0
  %v283 = vmax.f32 %v267, 0.0
  %v284 = vmax.f32 %v268, 0.0
  %v285 = vmax.f32 %v269, 0.0
  %v286 = vmax.f32 %v270, 0.0
  %v287 = vmax.f32 %v271, 0.0
  %v288 = vmax.f32 %v272, 0.0
  %v289 = vmax.f32 %v273, 0.0
  %v290 = vmax.f32 %v274, 0.0
  %v291 = vmax.f32 %v275, 0.0
  %v292 = vmax.f32 %v276, 0.0
  %v293 = vmax.f32 %v277, 0.0
  %s294 = scalar_lea.vmem [#allocation3], 16
  %295 = vst.msk [vmem:[%s294 + $0x1] sm:$0xff] %vm36, %v278
  %296 = vst.msk [vmem:[%s294 + $0x11] sm:$0xff] %vm36, %v279
  %297 = vst.msk [vmem:[%s294 + $0x21] sm:$0xff] %vm36, %v280
  %298 = vst.msk [vmem:[%s294 + $0x31] sm:$0xff] %vm36, %v281
  %299 = vst.msk [vmem:[%s294 + $0x41] sm:$0xff] %vm36, %v282
  %300 = vst.msk [vmem:[%s294 + $0x51] sm:$0xff] %vm36, %v283
  %301 = vst.msk [vmem:[%s294 + $0x61] sm:$0xff] %vm36, %v284
  %302 = vst.msk [vmem:[%s294 + $0x71] sm:$0xff] %vm36, %v285
  %303 = vst.msk [vmem:[%s294 + $0xa1] sm:$0xff] %vm36, %v286
  %304 = vst.msk [vmem:[%s294 + $0xb1] sm:$0xff] %vm36, %v287
  %305 = vst.msk [vmem:[%s294 + $0xc1] sm:$0xff] %vm36, %v288
  %306 = vst.msk [vmem:[%s294 + $0xd1] sm:$0xff] %vm36, %v289
  %307 = vst.msk [vmem:[%s294 + $0xe1] sm:$0xff] %vm36, %v290
  %308 = vst.msk [vmem:[%s294 + $0xf1] sm:$0xff] %vm36, %v291
  %309 = vst.msk [vmem:[%s294 + $0x101] sm:$0xff] %vm36, %v292
  %310 = vst.msk [vmem:[%s294 + $0x111] sm:$0xff] %vm36, %v293
  %311 = vst.msk [vmem:[#allocation4] sm:$0xff] %vm36, 0.0
  %312 = vst.msk [vmem:[#allocation4 + $0x8] sm:$0x3] %vm38, 0.0
  %313 = vst.msk [vmem:[#allocation4 + $0xa0] sm:$0xff] %vm36, 0.0
  %314 = vst.msk [vmem:[#allocation4 + $0xa8] sm:$0x3] %vm38, 0.0
  %s315 = scalar_lea.vmem [#allocation4], 144
  %316 = vst.msk [vmem:[%s315] sm:$0xff] %vm36, 0.0
  %317 = vst.msk [vmem:[%s315 + $0x8] sm:$0x3] %vm38, 0.0
  %318 = vst.msk [vmem:[%s315 + $0xa0] sm:$0xff] %vm36, 0.0
  %319 = vst.msk [vmem:[%s315 + $0xa8] sm:$0x3] %vm38, 0.0
  %320 = vst.msk [vmem:[#allocation4] sm:$0x1] %vm47, 0.0
  %321 = vst.msk [vmem:[#allocation4 + $0x10] sm:$0x1] %vm47, 0.0
  %322 = vst.msk [vmem:[#allocation4 + $0x20] sm:$0x1] %vm47, 0.0
  %323 = vst.msk [vmem:[#allocation4 + $0x30] sm:$0x1] %vm47, 0.0
  %324 = vst.msk [vmem:[#allocation4 + $0x40] sm:$0x1] %vm47, 0.0
  %325 = vst.msk [vmem:[#allocation4 + $0x50] sm:$0x1] %vm47, 0.0
  %326 = vst.msk [vmem:[#allocation4 + $0x60] sm:$0x1] %vm47, 0.0
  %327 = vst.msk [vmem:[#allocation4 + $0x70] sm:$0x1] %vm47, 0.0
  %328 = vst.msk [vmem:[#allocation4 + $0x80] sm:$0x1] %vm47, 0.0
  %329 = vst.msk [vmem:[#allocation4 + $0x90] sm:$0x1] %vm47, 0.0
  %330 = vst.msk [vmem:[#allocation4 + $0xa0] sm:$0x1] %vm47, 0.0
  %331 = vst.msk [vmem:[#allocation4 + $0xb0] sm:$0x1] %vm47, 0.0
  %332 = vst.msk [vmem:[#allocation4 + $0xc0] sm:$0x1] %vm47, 0.0
  %333 = vst.msk [vmem:[#allocation4 + $0xd0] sm:$0x1] %vm47, 0.0
  %334 = vst.msk [vmem:[#allocation4 + $0xe0] sm:$0x1] %vm47, 0.0
  %335 = vst.msk [vmem:[#allocation4 + $0xf0] sm:$0x1] %vm47, 0.0
  %336 = vst.msk [vmem:[#allocation4 + $0x100] sm:$0x1] %vm47, 0.0
  %337 = vst.msk [vmem:[#allocation4 + $0x110] sm:$0x1] %vm47, 0.0
  %338 = vst.msk [vmem:[#allocation4 + $0x120] sm:$0x1] %vm47, 0.0
  %339 = vst.msk [vmem:[#allocation4 + $0x130] sm:$0x1] %vm47, 0.0
  %340 = vst.msk [vmem:[#allocation4 + $0x9] sm:$0x1] %vm47, 0.0
  %341 = vst.msk [vmem:[#allocation4 + $0x19] sm:$0x1] %vm47, 0.0
  %342 = vst.msk [vmem:[#allocation4 + $0x29] sm:$0x1] %vm47, 0.0
  %343 = vst.msk [vmem:[#allocation4 + $0x39] sm:$0x1] %vm47, 0.0
  %344 = vst.msk [vmem:[#allocation4 + $0x49] sm:$0x1] %vm47, 0.0
  %345 = vst.msk [vmem:[#allocation4 + $0x59] sm:$0x1] %vm47, 0.0
  %346 = vst.msk [vmem:[#allocation4 + $0x69] sm:$0x1] %vm47, 0.0
  %347 = vst.msk [vmem:[#allocation4 + $0x79] sm:$0x1] %vm47, 0.0
  %348 = vst.msk [vmem:[#allocation4 + $0x89] sm:$0x1] %vm47, 0.0
  %349 = vst.msk [vmem:[#allocation4 + $0x99] sm:$0x1] %vm47, 0.0
  %350 = vst.msk [vmem:[#allocation4 + $0xa9] sm:$0x1] %vm47, 0.0
  %351 = vst.msk [vmem:[#allocation4 + $0xb9] sm:$0x1] %vm47, 0.0
  %352 = vst.msk [vmem:[#allocation4 + $0xc9] sm:$0x1] %vm47, 0.0
  %353 = vst.msk [vmem:[#allocation4 + $0xd9] sm:$0x1] %vm47, 0.0
  %354 = vst.msk [vmem:[#allocation4 + $0xe9] sm:$0x1] %vm47, 0.0
  %355 = vst.msk [vmem:[#allocation4 + $0xf9] sm:$0x1] %vm47, 0.0
  %356 = vst.msk [vmem:[#allocation4 + $0x109] sm:$0x1] %vm47, 0.0
  %357 = vst.msk [vmem:[#allocation4 + $0x119] sm:$0x1] %vm47, 0.0
  %358 = vst.msk [vmem:[#allocation4 + $0x129] sm:$0x1] %vm47, 0.0
  %359 = vst.msk [vmem:[#allocation4 + $0x139] sm:$0x1] %vm47, 0.0
  %v360 = vld [vmem:[%s6] sm:$0xff]
  %v361 = vld [vmem:[%s6 + $0x8] sm:$0xff]
  %v362 = vld [vmem:[%s6 + $0x10] sm:$0xff]
  %v363 = vld [vmem:[%s6 + $0x18] sm:$0xff]
  %v364 = vld [vmem:[%s6 + $0x20] sm:$0xff]
  %v365 = vld [vmem:[%s6 + $0x28] sm:$0xff]
  %v366 = vld [vmem:[%s6 + $0x30] sm:$0xff]
  %v367 = vld [vmem:[%s6 + $0x38] sm:$0xff]
  %v368 = vld [vmem:[%s6 + $0x40] sm:$0xff]
  %v369 = vld [vmem:[%s6 + $0x48] sm:$0xff]
  %v370 = vld [vmem:[%s6 + $0x50] sm:$0xff]
  %v371 = vld [vmem:[%s6 + $0x58] sm:$0xff]
  %v372 = vld [vmem:[%s6 + $0x60] sm:$0xff]
  %v373 = vld [vmem:[%s6 + $0x68] sm:$0xff]
  %v374 = vld [vmem:[%s6 + $0x70] sm:$0xff]
  %v375 = vld [vmem:[%s6 + $0x78] sm:$0xff]
  %v376 = vmul.f32 %v360, %v108
  %v377 = vmul.f32 %v361, %v108
  %v378 = vmul.f32 %v362, %v108
  %v379 = vmul.f32 %v363, %v108
  %v380 = vmul.f32 %v364, %v108
  %v381 = vmul.f32 %v365, %v108
  %v382 = vmul.f32 %v366, %v108
  %v383 = vmul.f32 %v367, %v108
  %v384 = vmul.f32 %v368, %v108
  %v385 = vmul.f32 %v369, %v108
  %v386 = vmul.f32 %v370, %v108
  %v387 = vmul.f32 %v371, %v108
  %v388 = vmul.f32 %v372, %v108
  %v389 = vmul.f32 %v373, %v108
  %v390 = vmul.f32 %v374, %v108
  %v391 = vmul.f32 %v375, %v108
  %v392 = vadd.f32 %v376, %v130
  %v393 = vadd.f32 %v377, %v130
  %v394 = vadd.f32 %v378, %v130
  %v395 = vadd.f32 %v379, %v130
  %v396 = vadd.f32 %v380, %v130
  %v397 = vadd.f32 %v381, %v130
  %v398 = vadd.f32 %v382, %v130
  %v399 = vadd.f32 %v383, %v130
  %v400 = vadd.f32 %v384, %v130
  %v401 = vadd.f32 %v385, %v130
  %v402 = vadd.f32 %v386, %v130
  %v403 = vadd.f32 %v387, %v130
  %v404 = vadd.f32 %v388, %v130
  %v405 = vadd.f32 %v389, %v130
  %v406 = vadd.f32 %v390, %v130
  %v407 = vadd.f32 %v391, %v130
  %v408 = vmax.f32 %v392, 0.0
  %v409 = vmax.f32 %v393, 0.0
  %v410 = vmax.f32 %v394, 0.0
  %v411 = vmax.f32 %v395, 0.0
  %v412 = vmax.f32 %v396, 0.0
  %v413 = vmax.f32 %v397, 0.0
  %v414 = vmax.f32 %v398, 0.0
  %v415 = vmax.f32 %v399, 0.0
  %v416 = vmax.f32 %v400, 0.0
  %v417 = vmax.f32 %v401, 0.0
  %v418 = vmax.f32 %v402, 0.0
  %v419 = vmax.f32 %v403, 0.0
  %v420 = vmax.f32 %v404, 0.0
  %v421 = vmax.f32 %v405, 0.0
  %v422 = vmax.f32 %v406, 0.0
  %v423 = vmax.f32 %v407, 0.0
  %s424 = scalar_lea.vmem [#allocation4], 16
  %425 = vst.msk [vmem:[%s424 + $0x1] sm:$0xff] %vm36, %v408
  %426 = vst.msk [vmem:[%s424 + $0x11] sm:$0xff] %vm36, %v409
  %427 = vst.msk [vmem:[%s424 + $0x21] sm:$0xff] %vm36, %v410
  %428 = vst.msk [vmem:[%s424 + $0x31] sm:$0xff] %vm36, %v411
  %429 = vst.msk [vmem:[%s424 + $0x41] sm:$0xff] %vm36, %v412
  %430 = vst.msk [vmem:[%s424 + $0x51] sm:$0xff] %vm36, %v413
  %431 = vst.msk [vmem:[%s424 + $0x61] sm:$0xff] %vm36, %v414
  %432 = vst.msk [vmem:[%s424 + $0x71] sm:$0xff] %vm36, %v415
  %433 = vst.msk [vmem:[%s424 + $0xa1] sm:$0xff] %vm36, %v416
  %434 = vst.msk [vmem:[%s424 + $0xb1] sm:$0xff] %vm36, %v417
  %435 = vst.msk [vmem:[%s424 + $0xc1] sm:$0xff] %vm36, %v418
  %436 = vst.msk [vmem:[%s424 + $0xd1] sm:$0xff] %vm36, %v419
  %437 = vst.msk [vmem:[%s424 + $0xe1] sm:$0xff] %vm36, %v420
  %438 = vst.msk [vmem:[%s424 + $0xf1] sm:$0xff] %vm36, %v421
  %439 = vst.msk [vmem:[%s424 + $0x101] sm:$0xff] %vm36, %v422
  %440 = vst.msk [vmem:[%s424 + $0x111] sm:$0xff] %vm36, %v423
  %441 = vst.msk [vmem:[#allocation5] sm:$0xff] %vm36, 0.0
  %442 = vst.msk [vmem:[#allocation5 + $0x8] sm:$0x3] %vm38, 0.0
  %443 = vst.msk [vmem:[#allocation5 + $0xa0] sm:$0xff] %vm36, 0.0
  %444 = vst.msk [vmem:[#allocation5 + $0xa8] sm:$0x3] %vm38, 0.0
  %s445 = scalar_lea.vmem [#allocation5], 144
  %446 = vst.msk [vmem:[%s445] sm:$0xff] %vm36, 0.0
  %447 = vst.msk [vmem:[%s445 + $0x8] sm:$0x3] %vm38, 0.0
  %448 = vst.msk [vmem:[%s445 + $0xa0] sm:$0xff] %vm36, 0.0
  %449 = vst.msk [vmem:[%s445 + $0xa8] sm:$0x3] %vm38, 0.0
  %450 = vst.msk [vmem:[#allocation5] sm:$0x1] %vm47, 0.0
  %451 = vst.msk [vmem:[#allocation5 + $0x10] sm:$0x1] %vm47, 0.0
  %452 = vst.msk [vmem:[#allocation5 + $0x20] sm:$0x1] %vm47, 0.0
  %453 = vst.msk [vmem:[#allocation5 + $0x30] sm:$0x1] %vm47, 0.0
  %454 = vst.msk [vmem:[#allocation5 + $0x40] sm:$0x1] %vm47, 0.0
  %455 = vst.msk [vmem:[#allocation5 + $0x50] sm:$0x1] %vm47, 0.0
  %456 = vst.msk [vmem:[#allocation5 + $0x60] sm:$0x1] %vm47, 0.0
  %457 = vst.msk [vmem:[#allocation5 + $0x70] sm:$0x1] %vm47, 0.0
  %458 = vst.msk [vmem:[#allocation5 + $0x80] sm:$0x1] %vm47, 0.0
  %459 = vst.msk [vmem:[#allocation5 + $0x90] sm:$0x1] %vm47, 0.0
  %460 = vst.msk [vmem:[#allocation5 + $0xa0] sm:$0x1] %vm47, 0.0
  %461 = vst.msk [vmem:[#allocation5 + $0xb0] sm:$0x1] %vm47, 0.0
  %462 = vst.msk [vmem:[#allocation5 + $0xc0] sm:$0x1] %vm47, 0.0
  %463 = vst.msk [vmem:[#allocation5 + $0xd0] sm:$0x1] %vm47, 0.0
  %464 = vst.msk [vmem:[#allocation5 + $0xe0] sm:$0x1] %vm47, 0.0
  %465 = vst.msk [vmem:[#allocation5 + $0xf0] sm:$0x1] %vm47, 0.0
  %466 = vst.msk [vmem:[#allocation5 + $0x100] sm:$0x1] %vm47, 0.0
  %467 = vst.msk [vmem:[#allocation5 + $0x110] sm:$0x1] %vm47, 0.0
  %468 = vst.msk [vmem:[#allocation5 + $0x120] sm:$0x1] %vm47, 0.0
  %469 = vst.msk [vmem:[#allocation5 + $0x130] sm:$0x1] %vm47, 0.0
  %470 = vst.msk [vmem:[#allocation5 + $0x9] sm:$0x1] %vm47, 0.0
  %471 = vst.msk [vmem:[#allocation5 + $0x19] sm:$0x1] %vm47, 0.0
  %472 = vst.msk [vmem:[#allocation5 + $0x29] sm:$0x1] %vm47, 0.0
  %473 = vst.msk [vmem:[#allocation5 + $0x39] sm:$0x1] %vm47, 0.0
  %474 = vst.msk [vmem:[#allocation5 + $0x49] sm:$0x1] %vm47, 0.0
  %475 = vst.msk [vmem:[#allocation5 + $0x59] sm:$0x1] %vm47, 0.0
  %476 = vst.msk [vmem:[#allocation5 + $0x69] sm:$0x1] %vm47, 0.0
  %477 = vst.msk [vmem:[#allocation5 + $0x79] sm:$0x1] %vm47, 0.0
  %478 = vst.msk [vmem:[#allocation5 + $0x89] sm:$0x1] %vm47, 0.0
  %479 = vst.msk [vmem:[#allocation5 + $0x99] sm:$0x1] %vm47, 0.0
  %480 = vst.msk [vmem:[#allocation5 + $0xa9] sm:$0x1] %vm47, 0.0
  %481 = vst.msk [vmem:[#allocation5 + $0xb9] sm:$0x1] %vm47, 0.0
  %482 = vst.msk [vmem:[#allocation5 + $0xc9] sm:$0x1] %vm47, 0.0
  %483 = vst.msk [vmem:[#allocation5 + $0xd9] sm:$0x1] %vm47, 0.0
  %484 = vst.msk [vmem:[#allocation5 + $0xe9] sm:$0x1] %vm47, 0.0
  %485 = vst.msk [vmem:[#allocation5 + $0xf9] sm:$0x1] %vm47, 0.0
  %486 = vst.msk [vmem:[#allocation5 + $0x109] sm:$0x1] %vm47, 0.0
  %487 = vst.msk [vmem:[#allocation5 + $0x119] sm:$0x1] %vm47, 0.0
  %488 = vst.msk [vmem:[#allocation5 + $0x129] sm:$0x1] %vm47, 0.0
  %489 = vst.msk [vmem:[#allocation5 + $0x139] sm:$0x1] %vm47, 0.0
  %v490 = vld [vmem:[%s7] sm:$0xff]
  %v491 = vld [vmem:[%s7 + $0x8] sm:$0xff]
  %v492 = vld [vmem:[%s7 + $0x10] sm:$0xff]
  %v493 = vld [vmem:[%s7 + $0x18] sm:$0xff]
  %v494 = vld [vmem:[%s7 + $0x20] sm:$0xff]
  %v495 = vld [vmem:[%s7 + $0x28] sm:$0xff]
  %v496 = vld [vmem:[%s7 + $0x30] sm:$0xff]
  %v497 = vld [vmem:[%s7 + $0x38] sm:$0xff]
  %v498 = vld [vmem:[%s7 + $0x40] sm:$0xff]
  %v499 = vld [vmem:[%s7 + $0x48] sm:$0xff]
  %v500 = vld [vmem:[%s7 + $0x50] sm:$0xff]
  %v501 = vld [vmem:[%s7 + $0x58] sm:$0xff]
  %v502 = vld [vmem:[%s7 + $0x60] sm:$0xff]
  %v503 = vld [vmem:[%s7 + $0x68] sm:$0xff]
  %v504 = vld [vmem:[%s7 + $0x70] sm:$0xff]
  %v505 = vld [vmem:[%s7 + $0x78] sm:$0xff]
  %v506 = vmul.f32 %v490, %v108
  %v507 = vmul.f32 %v491, %v108
  %v508 = vmul.f32 %v492, %v108
  %v509 = vmul.f32 %v493, %v108
  %v510 = vmul.f32 %v494, %v108
  %v511 = vmul.f32 %v495, %v108
  %v512 = vmul.f32 %v496, %v108
  %v513 = vmul.f32 %v497, %v108
  %v514 = vmul.f32 %v498, %v108
  %v515 = vmul.f32 %v499, %v108
  %v516 = vmul.f32 %v500, %v108
  %v517 = vmul.f32 %v501, %v108
  %v518 = vmul.f32 %v502, %v108
  %v519 = vmul.f32 %v503, %v108
  %v520 = vmul.f32 %v504, %v108
  %v521 = vmul.f32 %v505, %v108
  %v522 = vadd.f32 %v506, %v130
  %v523 = vadd.f32 %v507, %v130
  %v524 = vadd.f32 %v508, %v130
  %v525 = vadd.f32 %v509, %v130
  %v526 = vadd.f32 %v510, %v130
  %v527 = vadd.f32 %v511, %v130
  %v528 = vadd.f32 %v512, %v130
  %v529 = vadd.f32 %v513, %v130
  %v530 = vadd.f32 %v514, %v130
  %v531 = vadd.f32 %v515, %v130
  %v532 = vadd.f32 %v516, %v130
  %v533 = vadd.f32 %v517, %v130
  %v534 = vadd.f32 %v518, %v130
  %v535 = vadd.f32 %v519, %v130
  %v536 = vadd.f32 %v520, %v130
  %v537 = vadd.f32 %v521, %v130
  %v538 = vmax.f32 %v522, 0.0
  %v539 = vmax.f32 %v523, 0.0
  %v540 = vmax.f32 %v524, 0.0
  %v541 = vmax.f32 %v525, 0.0
  %v542 = vmax.f32 %v526, 0.0
  %v543 = vmax.f32 %v527, 0.0
  %v544 = vmax.f32 %v528, 0.0
  %v545 = vmax.f32 %v529, 0.0
  %v546 = vmax.f32 %v530, 0.0
  %v547 = vmax.f32 %v531, 0.0
  %v548 = vmax.f32 %v532, 0.0
  %v549 = vmax.f32 %v533, 0.0
  %v550 = vmax.f32 %v534, 0.0
  %v551 = vmax.f32 %v535, 0.0
  %v552 = vmax.f32 %v536, 0.0
  %v553 = vmax.f32 %v537, 0.0
  %s554 = scalar_lea.vmem [#allocation5], 16
  %555 = vst.msk [vmem:[%s554 + $0x1] sm:$0xff] %vm36, %v538
  %556 = vst.msk [vmem:[%s554 + $0x11] sm:$0xff] %vm36, %v539
  %557 = vst.msk [vmem:[%s554 + $0x21] sm:$0xff] %vm36, %v540
  %558 = vst.msk [vmem:[%s554 + $0x31] sm:$0xff] %vm36, %v541
  %559 = vst.msk [vmem:[%s554 + $0x41] sm:$0xff] %vm36, %v542
  %560 = vst.msk [vmem:[%s554 + $0x51] sm:$0xff] %vm36, %v543
  %561 = vst.msk [vmem:[%s554 + $0x61] sm:$0xff] %vm36, %v544
  %562 = vst.msk [vmem:[%s554 + $0x71] sm:$0xff] %vm36, %v545
  %563 = vst.msk [vmem:[%s554 + $0xa1] sm:$0xff] %vm36, %v546
  %564 = vst.msk [vmem:[%s554 + $0xb1] sm:$0xff] %vm36, %v547
  %565 = vst.msk [vmem:[%s554 + $0xc1] sm:$0xff] %vm36, %v548
  %566 = vst.msk [vmem:[%s554 + $0xd1] sm:$0xff] %vm36, %v549
  %567 = vst.msk [vmem:[%s554 + $0xe1] sm:$0xff] %vm36, %v550
  %568 = vst.msk [vmem:[%s554 + $0xf1] sm:$0xff] %vm36, %v551
  %569 = vst.msk [vmem:[%s554 + $0x101] sm:$0xff] %vm36, %v552
  %570 = vst.msk [vmem:[%s554 + $0x111] sm:$0xff] %vm36, %v553
  %571 = vst [vmem:[%s10] sm:$0x1] 0.0
  %572 = vst [vmem:[%s11] sm:$0x1] 0.0
  %v573 = vld [vmem:[#allocation5] sm:$0xff]
  %v574 = vld [vmem:[#allocation5 + $0x10] sm:$0xff]
  %v575 = vld [vmem:[#allocation5 + $0x20] sm:$0xff]
  %v576 = vld [vmem:[#allocation5 + $0x30] sm:$0xff]
  %v577 = vld [vmem:[#allocation5 + $0x40] sm:$0xff]
  %v578 = vld [vmem:[#allocation5 + $0x50] sm:$0xff]
  %v579 = vld [vmem:[#allocation5 + $0x60] sm:$0xff]
  %v580 = vld [vmem:[#allocation5 + $0x70] sm:$0xff]
  %v581 = vpack.c.bf16 %v574, %v573
  %v582 = vpack.c.bf16 %v576, %v575
  %v583 = vpack.c.bf16 %v578, %v577
  %v584 = vpack.c.bf16 %v580, %v579
  %v589 = vunpack.c.l.b16 %v581
  %v590 = vunpack.c.h.b16 %v581
  %v591 = vunpack.c.l.b16 %v582
  %v592 = vunpack.c.h.b16 %v582
  %v593 = vunpack.c.l.b16 %v583
  %v594 = vunpack.c.h.b16 %v583
  %v595 = vunpack.c.l.b16 %v584
  %v596 = vunpack.c.h.b16 %v584
  %v597 = vpack.c.b16 %v589, %v589
  %v598 = vpack.c.b16 %v590, %v590
  %v599 = vpack.c.b16 %v591, %v591
  %v600 = vpack.c.b16 %v592, %v592
  %v601 = vpack.c.b16 %v593, %v593
  %v602 = vpack.c.b16 %v594, %v594
  %v603 = vpack.c.b16 %v595, %v595
  %v604 = vpack.c.b16 %v596, %v596
  %vm613 = vcmask 125952
  %614 = vst.msk [vmem:[#allocation6] sm:$0xf] %vm613, %v597
  %615 = vst.msk [vmem:[#allocation6 + $0x8] sm:$0xf] %vm613, %v598
  %616 = vst.msk [vmem:[#allocation6 + $0x10] sm:$0xf] %vm613, %v599
  %617 = vst.msk [vmem:[#allocation6 + $0x18] sm:$0xf] %vm613, %v600
  %618 = vst.msk [vmem:[#allocation6 + $0x20] sm:$0xf] %vm613, %v601
  %619 = vst.msk [vmem:[#allocation6 + $0x28] sm:$0xf] %vm613, %v602
  %620 = vst.msk [vmem:[#allocation6 + $0x30] sm:$0xf] %vm613, %v603
  %621 = vst.msk [vmem:[#allocation6 + $0x38] sm:$0xf] %vm613, %v604
  %v622 = vld [vmem:[#allocation4 + $0x1] sm:$0xff]
  %v623 = vld [vmem:[#allocation4 + $0x11] sm:$0xff]
  %v624 = vld [vmem:[#allocation4 + $0x21] sm:$0xff]
  %v625 = vld [vmem:[#allocation4 + $0x31] sm:$0xff]
  %v626 = vld [vmem:[#allocation4 + $0x41] sm:$0xff]
  %v627 = vld [vmem:[#allocation4 + $0x51] sm:$0xff]
  %v628 = vld [vmem:[#allocation4 + $0x61] sm:$0xff]
  %v629 = vld [vmem:[#allocation4 + $0x71] sm:$0xff]
  %v630 = vpack.c.bf16 %v623, %v622
  %v631 = vpack.c.bf16 %v625, %v624
  %v632 = vpack.c.bf16 %v627, %v626
  %v633 = vpack.c.bf16 %v629, %v628
  %v638 = vunpack.c.l.b16 %v630
  %v639 = vunpack.c.h.b16 %v630
  %v640 = vunpack.c.l.b16 %v631
  %v641 = vunpack.c.h.b16 %v631
  %v642 = vunpack.c.l.b16 %v632
  %v643 = vunpack.c.h.b16 %v632
  %v644 = vunpack.c.l.b16 %v633
  %v645 = vunpack.c.h.b16 %v633
  %v646 = vpack.c.b16 %v638, %v638
  %v647 = vpack.c.b16 %v639, %v639
  %v648 = vpack.c.b16 %v640, %v640
  %v649 = vpack.c.b16 %v641, %v641
  %v650 = vpack.c.b16 %v642, %v642
  %v651 = vpack.c.b16 %v643, %v643
  %v652 = vpack.c.b16 %v644, %v644
  %v653 = vpack.c.b16 %v645, %v645
  %654 = vrot.lane.b32.xlu0 %v646, 16
  %v655 = vpop.permute.xlu0 %654
  %656 = vrot.lane.b32.xlu0 %v647, 16
  %v657 = vpop.permute.xlu0 %656
  %658 = vrot.lane.b32.xlu0 %v648, 16
  %v659 = vpop.permute.xlu0 %658
  %660 = vrot.lane.b32.xlu0 %v649, 16
  %v661 = vpop.permute.xlu0 %660
  %662 = vrot.lane.b32.xlu0 %v650, 16
  %v663 = vpop.permute.xlu0 %662
  %664 = vrot.lane.b32.xlu0 %v651, 16
  %v665 = vpop.permute.xlu0 %664
  %666 = vrot.lane.b32.xlu0 %v652, 16
  %v667 = vpop.permute.xlu0 %666
  %668 = vrot.lane.b32.xlu0 %v653, 16
  %v669 = vpop.permute.xlu0 %668
  %vm678 = vcmask 257152
  %679 = vst.msk [vmem:[#allocation6] sm:$0xf] %vm678, %v655
  %680 = vst.msk [vmem:[#allocation6 + $0x8] sm:$0xf] %vm678, %v657
  %681 = vst.msk [vmem:[#allocation6 + $0x10] sm:$0xf] %vm678, %v659
  %682 = vst.msk [vmem:[#allocation6 + $0x18] sm:$0xf] %vm678, %v661
  %683 = vst.msk [vmem:[#allocation6 + $0x20] sm:$0xf] %vm678, %v663
  %684 = vst.msk [vmem:[#allocation6 + $0x28] sm:$0xf] %vm678, %v665
  %685 = vst.msk [vmem:[#allocation6 + $0x30] sm:$0xf] %vm678, %v667
  %686 = vst.msk [vmem:[#allocation6 + $0x38] sm:$0xf] %vm678, %v669
  %v687 = vld [vmem:[#allocation5 + $0x1] sm:$0xff]
  %v688 = vld [vmem:[#allocation5 + $0x11] sm:$0xff]
  %v689 = vld [vmem:[#allocation5 + $0x21] sm:$0xff]
  %v690 = vld [vmem:[#allocation5 + $0x31] sm:$0xff]
  %v691 = vld [vmem:[#allocation5 + $0x41] sm:$0xff]
  %v692 = vld [vmem:[#allocation5 + $0x51] sm:$0xff]
  %v693 = vld [vmem:[#allocation5 + $0x61] sm:$0xff]
  %v694 = vld [vmem:[#allocation5 + $0x71] sm:$0xff]
  %v695 = vpack.c.bf16 %v688, %v687
  %v696 = vpack.c.bf16 %v690, %v689
  %v697 = vpack.c.bf16 %v692, %v691
  %v698 = vpack.c.bf16 %v694, %v693
  %v703 = vunpack.c.l.b16 %v695
  %v704 = vunpack.c.h.b16 %v695
  %v705 = vunpack.c.l.b16 %v696
  %v706 = vunpack.c.h.b16 %v696
  %v707 = vunpack.c.l.b16 %v697
  %v708 = vunpack.c.h.b16 %v697
  %v709 = vunpack.c.l.b16 %v698
  %v710 = vunpack.c.h.b16 %v698
  %v711 = vpack.c.b16 %v703, %v703
  %v712 = vpack.c.b16 %v704, %v704
  %v713 = vpack.c.b16 %v705, %v705
  %v714 = vpack.c.b16 %v706, %v706
  %v715 = vpack.c.b16 %v707, %v707
  %v716 = vpack.c.b16 %v708, %v708
  %v717 = vpack.c.b16 %v709, %v709
  %v718 = vpack.c.b16 %v710, %v710
  %719 = vrot.lane.b32.xlu0 %v711, 32
  %v720 = vpop.permute.xlu0 %719
  %721 = vrot.lane.b32.xlu0 %v712, 32
  %v722 = vpop.permute.xlu0 %721
  %723 = vrot.lane.b32.xlu0 %v713, 32
  %v724 = vpop.permute.xlu0 %723
  %725 = vrot.lane.b32.xlu0 %v714, 32
  %v726 = vpop.permute.xlu0 %725
  %727 = vrot.lane.b32.xlu0 %v715, 32
  %v728 = vpop.permute.xlu0 %727
  %729 = vrot.lane.b32.xlu0 %v716, 32
  %v730 = vpop.permute.xlu0 %729
  %731 = vrot.lane.b32.xlu0 %v717, 32
  %v732 = vpop.permute.xlu0 %731
  %733 = vrot.lane.b32.xlu0 %v718, 32
  %v734 = vpop.permute.xlu0 %733
  %vm743 = vcmask 388352
  %744 = vst.msk [vmem:[#allocation6] sm:$0xf] %vm743, %v720
  %745 = vst.msk [vmem:[#allocation6 + $0x8] sm:$0xf] %vm743, %v722
  %746 = vst.msk [vmem:[#allocation6 + $0x10] sm:$0xf] %vm743, %v724
  %747 = vst.msk [vmem:[#allocation6 + $0x18] sm:$0xf] %vm743, %v726
  %748 = vst.msk [vmem:[#allocation6 + $0x20] sm:$0xf] %vm743, %v728
  %749 = vst.msk [vmem:[#allocation6 + $0x28] sm:$0xf] %vm743, %v730
  %750 = vst.msk [vmem:[#allocation6 + $0x30] sm:$0xf] %vm743, %v732
  %751 = vst.msk [vmem:[#allocation6 + $0x38] sm:$0xf] %vm743, %v734
  %v752 = vld [vmem:[%s294] sm:$0xff]
  %v753 = vld [vmem:[%s294 + $0x10] sm:$0xff]
  %v754 = vld [vmem:[%s294 + $0x20] sm:$0xff]
  %v755 = vld [vmem:[%s294 + $0x30] sm:$0xff]
  %v756 = vld [vmem:[%s294 + $0x40] sm:$0xff]
  %v757 = vld [vmem:[%s294 + $0x50] sm:$0xff]
  %v758 = vld [vmem:[%s294 + $0x60] sm:$0xff]
  %v759 = vld [vmem:[%s294 + $0x70] sm:$0xff]
  %v760 = vpack.c.bf16 %v753, %v752
  %v761 = vpack.c.bf16 %v755, %v754
  %v762 = vpack.c.bf16 %v757, %v756
  %v763 = vpack.c.bf16 %v759, %v758
  %v768 = vunpack.c.l.b16 %v760
  %v769 = vunpack.c.h.b16 %v760
  %v770 = vunpack.c.l.b16 %v761
  %v771 = vunpack.c.h.b16 %v761
  %v772 = vunpack.c.l.b16 %v762
  %v773 = vunpack.c.h.b16 %v762
  %v774 = vunpack.c.l.b16 %v763
  %v775 = vunpack.c.h.b16 %v763
  %v776 = vpack.c.b16 %v768, %v768
  %v777 = vpack.c.b16 %v769, %v769
  %v778 = vpack.c.b16 %v770, %v770
  %v779 = vpack.c.b16 %v771, %v771
  %v780 = vpack.c.b16 %v772, %v772
  %v781 = vpack.c.b16 %v773, %v773
  %v782 = vpack.c.b16 %v774, %v774
  %v783 = vpack.c.b16 %v775, %v775
  %784 = vrot.lane.b32.xlu0 %v776, 48
  %v785 = vpop.permute.xlu0 %784
  %786 = vrot.lane.b32.xlu0 %v777, 48
  %v787 = vpop.permute.xlu0 %786
  %788 = vrot.lane.b32.xlu0 %v778, 48
  %v789 = vpop.permute.xlu0 %788
  %790 = vrot.lane.b32.xlu0 %v779, 48
  %v791 = vpop.permute.xlu0 %790
  %792 = vrot.lane.b32.xlu0 %v780, 48
  %v793 = vpop.permute.xlu0 %792
  %794 = vrot.lane.b32.xlu0 %v781, 48
  %v795 = vpop.permute.xlu0 %794
  %796 = vrot.lane.b32.xlu0 %v782, 48
  %v797 = vpop.permute.xlu0 %796
  %798 = vrot.lane.b32.xlu0 %v783, 48
  %v799 = vpop.permute.xlu0 %798
  %vm808 = vcmask 519552
  %809 = vst.msk [vmem:[#allocation6] sm:$0xf] %vm808, %v785
  %810 = vst.msk [vmem:[#allocation6 + $0x8] sm:$0xf] %vm808, %v787
  %811 = vst.msk [vmem:[#allocation6 + $0x10] sm:$0xf] %vm808, %v789
  %812 = vst.msk [vmem:[#allocation6 + $0x18] sm:$0xf] %vm808, %v791
  %813 = vst.msk [vmem:[#allocation6 + $0x20] sm:$0xf] %vm808, %v793
  %814 = vst.msk [vmem:[#allocation6 + $0x28] sm:$0xf] %vm808, %v795
  %815 = vst.msk [vmem:[#allocation6 + $0x30] sm:$0xf] %vm808, %v797
  %816 = vst.msk [vmem:[#allocation6 + $0x38] sm:$0xf] %vm808, %v799
  %v817 = vld [vmem:[%s164 + $0x1] sm:$0xff]
  %v818 = vld [vmem:[%s164 + $0x11] sm:$0xff]
  %v819 = vld [vmem:[%s164 + $0x21] sm:$0xff]
  %v820 = vld [vmem:[%s164 + $0x31] sm:$0xff]
  %v821 = vld [vmem:[%s164 + $0x41] sm:$0xff]
  %v822 = vld [vmem:[%s164 + $0x51] sm:$0xff]
  %v823 = vld [vmem:[%s164 + $0x61] sm:$0xff]
  %v824 = vld [vmem:[%s164 + $0x71] sm:$0xff]
  %v825 = vpack.c.bf16 %v818, %v817
  %v826 = vpack.c.bf16 %v820, %v819
  %v827 = vpack.c.bf16 %v822, %v821
  %v828 = vpack.c.bf16 %v824, %v823
  %v833 = vunpack.c.l.b16 %v825
  %v834 = vunpack.c.h.b16 %v825
  %v835 = vunpack.c.l.b16 %v826
  %v836 = vunpack.c.h.b16 %v826
  %v837 = vunpack.c.l.b16 %v827
  %v838 = vunpack.c.h.b16 %v827
  %v839 = vunpack.c.l.b16 %v828
  %v840 = vunpack.c.h.b16 %v828
  %v841 = vpack.c.b16 %v833, %v833
  %v842 = vpack.c.b16 %v834, %v834
  %v843 = vpack.c.b16 %v835, %v835
  %v844 = vpack.c.b16 %v836, %v836
  %v845 = vpack.c.b16 %v837, %v837
  %v846 = vpack.c.b16 %v838, %v838
  %v847 = vpack.c.b16 %v839, %v839
  %v848 = vpack.c.b16 %v840, %v840
  %849 = vrot.lane.b32.xlu0 %v841, 64
  %v850 = vpop.permute.xlu0 %849
  %851 = vrot.lane.b32.xlu0 %v842, 64
  %v852 = vpop.permute.xlu0 %851
  %853 = vrot.lane.b32.xlu0 %v843, 64
  %v854 = vpop.permute.xlu0 %853
  %855 = vrot.lane.b32.xlu0 %v844, 64
  %v856 = vpop.permute.xlu0 %855
  %857 = vrot.lane.b32.xlu0 %v845, 64
  %v858 = vpop.permute.xlu0 %857
  %859 = vrot.lane.b32.xlu0 %v846, 64
  %v860 = vpop.permute.xlu0 %859
  %861 = vrot.lane.b32.xlu0 %v847, 64
  %v862 = vpop.permute.xlu0 %861
  %863 = vrot.lane.b32.xlu0 %v848, 64
  %v864 = vpop.permute.xlu0 %863
  %vm873 = vcmask 650752
  %874 = vst.msk [vmem:[#allocation6] sm:$0xf] %vm873, %v850
  %875 = vst.msk [vmem:[#allocation6 + $0x8] sm:$0xf] %vm873, %v852
  %876 = vst.msk [vmem:[#allocation6 + $0x10] sm:$0xf] %vm873, %v854
  %877 = vst.msk [vmem:[#allocation6 + $0x18] sm:$0xf] %vm873, %v856
  %878 = vst.msk [vmem:[#allocation6 + $0x20] sm:$0xf] %vm873, %v858
  %879 = vst.msk [vmem:[#allocation6 + $0x28] sm:$0xf] %vm873, %v860
  %880 = vst.msk [vmem:[#allocation6 + $0x30] sm:$0xf] %vm873, %v862
  %881 = vst.msk [vmem:[#allocation6 + $0x38] sm:$0xf] %vm873, %v864
  %v882 = vld [vmem:[%s294 + $0x1] sm:$0xff]
  %v883 = vld [vmem:[%s294 + $0x11] sm:$0xff]
  %v884 = vld [vmem:[%s294 + $0x21] sm:$0xff]
  %v885 = vld [vmem:[%s294 + $0x31] sm:$0xff]
  %v886 = vld [vmem:[%s294 + $0x41] sm:$0xff]
  %v887 = vld [vmem:[%s294 + $0x51] sm:$0xff]
  %v888 = vld [vmem:[%s294 + $0x61] sm:$0xff]
  %v889 = vld [vmem:[%s294 + $0x71] sm:$0xff]
  %v890 = vpack.c.bf16 %v883, %v882
  %v891 = vpack.c.bf16 %v885, %v884
  %v892 = vpack.c.bf16 %v887, %v886
  %v893 = vpack.c.bf16 %v889, %v888
  %v898 = vunpack.c.l.b16 %v890
  %v899 = vunpack.c.h.b16 %v890
  %v900 = vunpack.c.l.b16 %v891
  %v901 = vunpack.c.h.b16 %v891
  %v902 = vunpack.c.l.b16 %v892
  %v903 = vunpack.c.h.b16 %v892
  %v904 = vunpack.c.l.b16 %v893
  %v905 = vunpack.c.h.b16 %v893
  %v906 = vpack.c.b16 %v898, %v898
  %v907 = vpack.c.b16 %v899, %v899
  %v908 = vpack.c.b16 %v900, %v900
  %v909 = vpack.c.b16 %v901, %v901
  %v910 = vpack.c.b16 %v902, %v902
  %v911 = vpack.c.b16 %v903, %v903
  %v912 = vpack.c.b16 %v904, %v904
  %v913 = vpack.c.b16 %v905, %v905
  %914 = vrot.lane.b32.xlu0 %v906, 80
  %v915 = vpop.permute.xlu0 %914
  %916 = vrot.lane.b32.xlu0 %v907, 80
  %v917 = vpop.permute.xlu0 %916
  %918 = vrot.lane.b32.xlu0 %v908, 80
  %v919 = vpop.permute.xlu0 %918
  %920 = vrot.lane.b32.xlu0 %v909, 80
  %v921 = vpop.permute.xlu0 %920
  %922 = vrot.lane.b32.xlu0 %v910, 80
  %v923 = vpop.permute.xlu0 %922
  %924 = vrot.lane.b32.xlu0 %v911, 80
  %v925 = vpop.permute.xlu0 %924
  %926 = vrot.lane.b32.xlu0 %v912, 80
  %v927 = vpop.permute.xlu0 %926
  %928 = vrot.lane.b32.xlu0 %v913, 80
  %v929 = vpop.permute.xlu0 %928
  %vm938 = vcmask 781952
  %939 = vst.msk [vmem:[#allocation6] sm:$0xf] %vm938, %v915
  %940 = vst.msk [vmem:[#allocation6 + $0x8] sm:$0xf] %vm938, %v917
  %941 = vst.msk [vmem:[#allocation6 + $0x10] sm:$0xf] %vm938, %v919
  %942 = vst.msk [vmem:[#allocation6 + $0x18] sm:$0xf] %vm938, %v921
  %943 = vst.msk [vmem:[#allocation6 + $0x20] sm:$0xf] %vm938, %v923
  %944 = vst.msk [vmem:[#allocation6 + $0x28] sm:$0xf] %vm938, %v925
  %945 = vst.msk [vmem:[#allocation6 + $0x30] sm:$0xf] %vm938, %v927
  %946 = vst.msk [vmem:[#allocation6 + $0x38] sm:$0xf] %vm938, %v929
  %v947 = vld [vmem:[%s554] sm:$0xff]
  %v948 = vld [vmem:[%s554 + $0x10] sm:$0xff]
  %v949 = vld [vmem:[%s554 + $0x20] sm:$0xff]
  %v950 = vld [vmem:[%s554 + $0x30] sm:$0xff]
  %v951 = vld [vmem:[%s554 + $0x40] sm:$0xff]
  %v952 = vld [vmem:[%s554 + $0x50] sm:$0xff]
  %v953 = vld [vmem:[%s554 + $0x60] sm:$0xff]
  %v954 = vld [vmem:[%s554 + $0x70] sm:$0xff]
  %v955 = vpack.c.bf16 %v948, %v947
  %v956 = vpack.c.bf16 %v950, %v949
  %v957 = vpack.c.bf16 %v952, %v951
  %v958 = vpack.c.bf16 %v954, %v953
  %v963 = vunpack.c.l.b16 %v955
  %v964 = vunpack.c.h.b16 %v955
  %v965 = vunpack.c.l.b16 %v956
  %v966 = vunpack.c.h.b16 %v956
  %v967 = vunpack.c.l.b16 %v957
  %v968 = vunpack.c.h.b16 %v957
  %v969 = vunpack.c.l.b16 %v958
  %v970 = vunpack.c.h.b16 %v958
  %v971 = vpack.c.b16 %v963, %v963
  %v972 = vpack.c.b16 %v964, %v964
  %v973 = vpack.c.b16 %v965, %v965
  %v974 = vpack.c.b16 %v966, %v966
  %v975 = vpack.c.b16 %v967, %v967
  %v976 = vpack.c.b16 %v968, %v968
  %v977 = vpack.c.b16 %v969, %v969
  %v978 = vpack.c.b16 %v970, %v970
  %979 = vrot.lane.b32.xlu0 %v971, 96
  %v980 = vpop.permute.xlu0 %979
  %981 = vrot.lane.b32.xlu0 %v972, 96
  %v982 = vpop.permute.xlu0 %981
  %983 = vrot.lane.b32.xlu0 %v973, 96
  %v984 = vpop.permute.xlu0 %983
  %985 = vrot.lane.b32.xlu0 %v974, 96
  %v986 = vpop.permute.xlu0 %985
  %987 = vrot.lane.b32.xlu0 %v975, 96
  %v988 = vpop.permute.xlu0 %987
  %989 = vrot.lane.b32.xlu0 %v976, 96
  %v990 = vpop.permute.xlu0 %989
  %991 = vrot.lane.b32.xlu0 %v977, 96
  %v992 = vpop.permute.xlu0 %991
  %993 = vrot.lane.b32.xlu0 %v978, 96
  %v994 = vpop.permute.xlu0 %993
  %vm1003 = vcmask 913152
  %1004 = vst.msk [vmem:[#allocation6] sm:$0xf] %vm1003, %v980
  %1005 = vst.msk [vmem:[#allocation6 + $0x8] sm:$0xf] %vm1003, %v982
  %1006 = vst.msk [vmem:[#allocation6 + $0x10] sm:$0xf] %vm1003, %v984
  %1007 = vst.msk [vmem:[#allocation6 + $0x18] sm:$0xf] %vm1003, %v986
  %1008 = vst.msk [vmem:[#allocation6 + $0x20] sm:$0xf] %vm1003, %v988
  %1009 = vst.msk [vmem:[#allocation6 + $0x28] sm:$0xf] %vm1003, %v990
  %1010 = vst.msk [vmem:[#allocation6 + $0x30] sm:$0xf] %vm1003, %v992
  %1011 = vst.msk [vmem:[#allocation6 + $0x38] sm:$0xf] %vm1003, %v994
  %v1012 = vld [vmem:[%s424 + $0x1] sm:$0xff]
  %v1013 = vld [vmem:[%s424 + $0x11] sm:$0xff]
  %v1014 = vld [vmem:[%s424 + $0x21] sm:$0xff]
  %v1015 = vld [vmem:[%s424 + $0x31] sm:$0xff]
  %v1016 = vld [vmem:[%s424 + $0x41] sm:$0xff]
  %v1017 = vld [vmem:[%s424 + $0x51] sm:$0xff]
  %v1018 = vld [vmem:[%s424 + $0x61] sm:$0xff]
  %v1019 = vld [vmem:[%s424 + $0x71] sm:$0xff]
  %v1020 = vpack.c.bf16 %v1013, %v1012
  %v1021 = vpack.c.bf16 %v1015, %v1014
  %v1022 = vpack.c.bf16 %v1017, %v1016
  %v1023 = vpack.c.bf16 %v1019, %v1018
  %v1028 = vunpack.c.l.b16 %v1020
  %v1029 = vunpack.c.h.b16 %v1020
  %v1030 = vunpack.c.l.b16 %v1021
  %v1031 = vunpack.c.h.b16 %v1021
  %v1032 = vunpack.c.l.b16 %v1022
  %v1033 = vunpack.c.h.b16 %v1022
  %v1034 = vunpack.c.l.b16 %v1023
  %v1035 = vunpack.c.h.b16 %v1023
  %v1036 = vpack.c.b16 %v1028, %v1028
  %v1037 = vpack.c.b16 %v1029, %v1029
  %v1038 = vpack.c.b16 %v1030, %v1030
  %v1039 = vpack.c.b16 %v1031, %v1031
  %v1040 = vpack.c.b16 %v1032, %v1032
  %v1041 = vpack.c.b16 %v1033, %v1033
  %v1042 = vpack.c.b16 %v1034, %v1034
  %v1043 = vpack.c.b16 %v1035, %v1035
  %1044 = vrot.lane.b32.xlu0 %v1036, 112
  %v1045 = vpop.permute.xlu0 %1044
  %1046 = vrot.lane.b32.xlu0 %v1037, 112
  %v1047 = vpop.permute.xlu0 %1046
  %1048 = vrot.lane.b32.xlu0 %v1038, 112
  %v1049 = vpop.permute.xlu0 %1048
  %1050 = vrot.lane.b32.xlu0 %v1039, 112
  %v1051 = vpop.permute.xlu0 %1050
  %1052 = vrot.lane.b32.xlu0 %v1040, 112
  %v1053 = vpop.permute.xlu0 %1052
  %1054 = vrot.lane.b32.xlu0 %v1041, 112
  %v1055 = vpop.permute.xlu0 %1054
  %1056 = vrot.lane.b32.xlu0 %v1042, 112
  %v1057 = vpop.permute.xlu0 %1056
  %1058 = vrot.lane.b32.xlu0 %v1043, 112
  %v1059 = vpop.permute.xlu0 %1058
  %vm1068 = vcmask 1044352
  %1069 = vst.msk [vmem:[#allocation6] sm:$0xf] %vm1068, %v1045
  %1070 = vst.msk [vmem:[#allocation6 + $0x8] sm:$0xf] %vm1068, %v1047
  %1071 = vst.msk [vmem:[#allocation6 + $0x10] sm:$0xf] %vm1068, %v1049
  %1072 = vst.msk [vmem:[#allocation6 + $0x18] sm:$0xf] %vm1068, %v1051
  %1073 = vst.msk [vmem:[#allocation6 + $0x20] sm:$0xf] %vm1068, %v1053
  %1074 = vst.msk [vmem:[#allocation6 + $0x28] sm:$0xf] %vm1068, %v1055
  %1075 = vst.msk [vmem:[#allocation6 + $0x30] sm:$0xf] %vm1068, %v1057
  %1076 = vst.msk [vmem:[#allocation6 + $0x38] sm:$0xf] %vm1068, %v1059
  %v1077 = vld [vmem:[%s554 + $0x1] sm:$0xff]
  %v1078 = vld [vmem:[%s554 + $0x11] sm:$0xff]
  %v1079 = vld [vmem:[%s554 + $0x21] sm:$0xff]
  %v1080 = vld [vmem:[%s554 + $0x31] sm:$0xff]
  %v1081 = vld [vmem:[%s554 + $0x41] sm:$0xff]
  %v1082 = vld [vmem:[%s554 + $0x51] sm:$0xff]
  %v1083 = vld [vmem:[%s554 + $0x61] sm:$0xff]
  %v1084 = vld [vmem:[%s554 + $0x71] sm:$0xff]
  %v1085 = vpack.c.bf16 %v1078, %v1077
  %v1086 = vpack.c.bf16 %v1080, %v1079
  %v1087 = vpack.c.bf16 %v1082, %v1081
  %v1088 = vpack.c.bf16 %v1084, %v1083
  %v1093 = vunpack.c.l.b16 %v1085
  %v1094 = vunpack.c.h.b16 %v1085
  %v1095 = vunpack.c.l.b16 %v1086
  %v1096 = vunpack.c.h.b16 %v1086
  %v1097 = vunpack.c.l.b16 %v1087
  %v1098 = vunpack.c.h.b16 %v1087
  %v1099 = vunpack.c.l.b16 %v1088
  %v1100 = vunpack.c.h.b16 %v1088
  %v1101 = vpack.c.b16 %v1093, %v1093
  %v1102 = vpack.c.b16 %v1094, %v1094
  %v1103 = vpack.c.b16 %v1095, %v1095
  %v1104 = vpack.c.b16 %v1096, %v1096
  %v1105 = vpack.c.b16 %v1097, %v1097
  %v1106 = vpack.c.b16 %v1098, %v1098
  %v1107 = vpack.c.b16 %v1099, %v1099
  %v1108 = vpack.c.b16 %v1100, %v1100
  %1117 = vst.msk [vmem:[#allocation6 + $0x4] sm:$0xf] %vm613, %v1101
  %1118 = vst.msk [vmem:[#allocation6 + $0xc] sm:$0xf] %vm613, %v1102
  %1119 = vst.msk [vmem:[#allocation6 + $0x14] sm:$0xf] %vm613, %v1103
  %1120 = vst.msk [vmem:[#allocation6 + $0x1c] sm:$0xf] %vm613, %v1104
  %1121 = vst.msk [vmem:[#allocation6 + $0x24] sm:$0xf] %vm613, %v1105
  %1122 = vst.msk [vmem:[#allocation6 + $0x2c] sm:$0xf] %vm613, %v1106
  %1123 = vst.msk [vmem:[#allocation6 + $0x34] sm:$0xf] %vm613, %v1107
  %1124 = vst.msk [vmem:[#allocation6 + $0x3c] sm:$0xf] %vm613, %v1108
  %v1125 = vld [vmem:[#allocation6] sm:$0xff]
  %v1126 = vld [vmem:[#allocation6 + $0x8] sm:$0xff]
  %v1127 = vld [vmem:[#allocation6 + $0x10] sm:$0xff]
  %v1128 = vld [vmem:[#allocation6 + $0x18] sm:$0xff]
  %v1129 = vld [vmem:[#allocation6 + $0x20] sm:$0xff]
  %v1130 = vld [vmem:[#allocation6 + $0x28] sm:$0xff]
  %v1131 = vld [vmem:[#allocation6 + $0x30] sm:$0xff]
  %v1132 = vld [vmem:[#allocation6 + $0x38] sm:$0xff]
  %v1133 = vld [vmem:[%s2] sm:$0xf]
  %v1134 = vld [vmem:[%s2 + $0x4] sm:$0xf]
  %v1135 = vld [vmem:[%s2 + $0x8] sm:$0xf]
  %v1136 = vld [vmem:[%s2 + $0xc] sm:$0xf]
  %v1137 = vld [vmem:[%s2 + $0x10] sm:$0xf]
  %v1138 = vld [vmem:[%s2 + $0x14] sm:$0xf]
  %v1139 = vld [vmem:[%s2 + $0x18] sm:$0xf]
  %v1140 = vld [vmem:[%s2 + $0x1c] sm:$0xf]
  %v1141 = vld [vmem:[%s2 + $0x20] sm:$0xf]
  %v1142 = vld [vmem:[%s2 + $0x24] sm:$0xf]
  %v1143 = vld [vmem:[%s2 + $0x28] sm:$0xf]
  %v1144 = vld [vmem:[%s2 + $0x2c] sm:$0xf]
  %v1145 = vld [vmem:[%s2 + $0x30] sm:$0xf]
  %v1146 = vld [vmem:[%s2 + $0x34] sm:$0xf]
  %v1147 = vld [vmem:[%s2 + $0x38] sm:$0xf]
  %v1148 = vld [vmem:[%s2 + $0x3c] sm:$0xf]
  %v1149 = vld [vmem:[%s2 + $0x40] sm:$0xf]
  %v1150 = vld [vmem:[%s2 + $0x44] sm:$0xf]
  %v1159 = vunpack.c.l.b16 %v1125
  %v1160 = vunpack.c.h.b16 %v1125
  %v1161 = vunpack.c.l.b16 %v1126
  %v1162 = vunpack.c.h.b16 %v1126
  %v1163 = vunpack.c.l.b16 %v1127
  %v1164 = vunpack.c.h.b16 %v1127
  %v1165 = vunpack.c.l.b16 %v1128
  %v1166 = vunpack.c.h.b16 %v1128
  %v1167 = vunpack.c.l.b16 %v1129
  %v1168 = vunpack.c.h.b16 %v1129
  %v1169 = vunpack.c.l.b16 %v1130
  %v1170 = vunpack.c.h.b16 %v1130
  %v1171 = vunpack.c.l.b16 %v1131
  %v1172 = vunpack.c.h.b16 %v1131
  %v1173 = vunpack.c.l.b16 %v1132
  %v1174 = vunpack.c.h.b16 %v1132
  %v1175 = vpack.c.b16 %v1161, %v1159
  %v1176 = vpack.c.b16 %v1162, %v1160
  %v1177 = vpack.c.b16 %v1165, %v1163
  %v1178 = vpack.c.b16 %v1166, %v1164
  %v1179 = vpack.c.b16 %v1169, %v1167
  %v1180 = vpack.c.b16 %v1170, %v1168
  %v1181 = vpack.c.b16 %v1173, %v1171
  %v1182 = vpack.c.b16 %v1174, %v1172
  %v1205 = vunpack.c.l.b16 %v1133
  %v1206 = vunpack.c.l.b16 %v1134
  %v1207 = vunpack.c.l.b16 %v1135
  %v1208 = vunpack.c.l.b16 %v1136
  %v1209 = vunpack.c.l.b16 %v1137
  %v1210 = vunpack.c.l.b16 %v1138
  %v1211 = vunpack.c.l.b16 %v1139
  %v1212 = vunpack.c.l.b16 %v1140
  %v1213 = vunpack.c.l.b16 %v1141
  %v1214 = vunpack.c.l.b16 %v1142
  %v1215 = vunpack.c.l.b16 %v1143
  %v1216 = vunpack.c.l.b16 %v1144
  %v1217 = vunpack.c.l.b16 %v1145
  %v1218 = vunpack.c.l.b16 %v1146
  %v1219 = vunpack.c.l.b16 %v1147
  %v1220 = vunpack.c.l.b16 %v1148
  %v1221 = vunpack.c.l.b16 %v1149
  %v1222 = vunpack.c.l.b16 %v1150
  %v1223 = vpack.c.b16 %v1206, %v1205
  %v1224 = vpack.c.b16 %v1208, %v1207
  %v1225 = vpack.c.b16 %v1210, %v1209
  %v1226 = vpack.c.b16 %v1212, %v1211
  %v1227 = vpack.c.b16 %v1214, %v1213
  %v1228 = vpack.c.b16 %v1216, %v1215
  %v1229 = vpack.c.b16 %v1218, %v1217
  %v1230 = vpack.c.b16 %v1220, %v1219
  %v1231 = vpack.c.b16 %v1222, %v1221
  %v1242 = vsel %vm36, %v1176, 0
  %v1245 = vsel %vm36, %v1178, 0
  %v1248 = vsel %vm36, %v1180, 0
  %v1251 = vsel %vm36, %v1182, 0
  %1253 = vmatprep.subr.bf16.mxu0 0
  %1254 = vmatpush1.bf16.msra.mxu0 %v1230
  %1255 = vmatprep.subr.bf16.mxu0 0
  %1256 = vmatpush1.bf16.msra.mxu0 %v1229
  %1257 = vmatprep.subr.bf16.mxu0 0
  %1258 = vmatpush1.bf16.msra.mxu0 %v1228
  %1259 = vmatprep.subr.bf16.mxu0 0
  %1260 = vmatpush1.bf16.msra.mxu0 %v1227
  %1261 = vmatprep.subr.bf16.mxu0 0
  %1262 = vmatpush1.bf16.msra.mxu0 %v1226
  %1263 = vmatprep.subr.bf16.mxu0 0
  %1264 = vmatpush1.bf16.msra.mxu0 %v1225
  %1265 = vmatprep.subr.bf16.mxu0 0
  %1266 = vmatpush1.bf16.msra.mxu0 %v1224
  %1267 = vmatprep.subr.bf16.mxu0 0
  %1268 = vmatpush1.bf16.msra.mxu0 %v1223
  %1269 = vmatprep.subr.bf16.mxu0 0
  %1270 = vmatpush2.bf16.msra.mxu0 0
  %1271 = vmatprep.subr.bf16.mxu0 0
  %1272 = vmatpush2.bf16.msra.mxu0 0
  %1273 = vmatprep.subr.bf16.mxu0 0
  %1274 = vmatpush2.bf16.msra.mxu0 0
  %1275 = vmatprep.subr.bf16.mxu0 0
  %1276 = vmatpush2.bf16.msra.mxu0 0
  %1277 = vmatprep.subr.bf16.mxu0 0
  %1278 = vmatpush2.bf16.msra.mxu0 0
  %1279 = vmatprep.subr.bf16.mxu0 0
  %1280 = vmatpush2.bf16.msra.mxu0 0
  %1281 = vmatprep.subr.bf16.mxu0 0
  %1282 = vmatpush2.bf16.msra.mxu0 0
  %1283 = vmatprep.subr.bf16.mxu0 0
  %1284 = vmatpush2.bf16.msra.mxu0 %v1231
  %1285 = vmatprep.mubr.bf16.mxu0 %v1242
  %1286 = vmatmul.mubr.bf16.gmra.mxu0 %v1175
  %v1287 = vpop.f32.mrf.mxu0
  %v1288 = vadd.f32 0.0, %v1287
  %v1289 = vpop.f32.mrf.mxu0
  %v1290 = vpop.f32.mrf.mxu0
  %v1291 = vadd.f32 0.0, %v1290
  %v1292 = vpop.f32.mrf.mxu0
  %1293 = vmatprep.mubr.bf16.mxu0 %v1245
  %1294 = vmatmul.mubr.bf16.gmra.mxu0 %v1177
  %v1295 = vpop.f32.mrf.mxu0
  %v1296 = vadd.f32 0.0, %v1295
  %v1297 = vpop.f32.mrf.mxu0
  %v1298 = vpop.f32.mrf.mxu0
  %v1299 = vadd.f32 0.0, %v1298
  %v1300 = vpop.f32.mrf.mxu0
  %1301 = vmatprep.mubr.bf16.mxu0 %v1248
  %1302 = vmatmul.mubr.bf16.gmra.mxu0 %v1179
  %v1303 = vpop.f32.mrf.mxu0
  %v1304 = vadd.f32 0.0, %v1303
  %v1305 = vpop.f32.mrf.mxu0
  %v1306 = vpop.f32.mrf.mxu0
  %v1307 = vadd.f32 0.0, %v1306
  %v1308 = vpop.f32.mrf.mxu0
  %1309 = vmatprep.mubr.bf16.mxu0 %v1251
  %1310 = vmatmul.mubr.bf16.gmra.mxu0 %v1181
  %v1311 = vpop.f32.mrf.mxu0
  %v1312 = vadd.f32 0.0, %v1311
  %v1313 = vpop.f32.mrf.mxu0
  %v1314 = vpop.f32.mrf.mxu0
  %v1315 = vadd.f32 0.0, %v1314
  %v1316 = vpop.f32.mrf.mxu0
  %1317 = vdwg.mxu0
  %v1318 = vld [vmem:[%s10] sm:$0x1]
  %v1319 = vadd.f32 %v1288, %v1291
  %v1320 = vadd.f32 %v1319, %v1296
  %v1321 = vadd.f32 %v1320, %v1299
  %v1322 = vadd.f32 %v1321, %v1304
  %v1323 = vadd.f32 %v1322, %v1307
  %v1324 = vadd.f32 %v1323, %v1312
  %v1325 = vadd.f32 %v1324, %v1315
  %v1326 = vrot.slane %v1325, 4
  %v1327 = vadd.f32 %v1325, %v1326
  %v1328 = vrot.slane %v1327, 2
  %v1329 = vadd.f32 %v1327, %v1328
  %v1330 = vrot.slane %v1329, 1
  %v1331 = vadd.f32 %v1329, %v1330
  %v1332 = vadd.f32 %v1318, %v1331
  %1333 = vst [vmem:[%s10] sm:$0x1] %v1332
  %v1334 = vld [vmem:[%s11] sm:$0x1]
  %v1335 = vmul.f32 %v1288, %v1288
  %v1336 = vmul.f32 %v1291, %v1291
  %v1337 = vmul.f32 %v1296, %v1296
  %v1338 = vmul.f32 %v1299, %v1299
  %v1339 = vmul.f32 %v1304, %v1304
  %v1340 = vmul.f32 %v1307, %v1307
  %v1341 = vmul.f32 %v1312, %v1312
  %v1342 = vmul.f32 %v1315, %v1315
  %v1343 = vadd.f32 %v1335, %v1336
  %v1344 = vadd.f32 %v1343, %v1337
  %v1345 = vadd.f32 %v1344, %v1338
  %v1346 = vadd.f32 %v1345, %v1339
  %v1347 = vadd.f32 %v1346, %v1340
  %v1348 = vadd.f32 %v1347, %v1341
  %v1349 = vadd.f32 %v1348, %v1342
  %v1350 = vrot.slane %v1349, 4
  %v1351 = vadd.f32 %v1349, %v1350
  %v1352 = vrot.slane %v1351, 2
  %v1353 = vadd.f32 %v1351, %v1352
  %v1354 = vrot.slane %v1353, 1
  %v1355 = vadd.f32 %v1353, %v1354
  %v1356 = vadd.f32 %v1334, %v1355
  %1357 = vst [vmem:[%s11] sm:$0x1] %v1356
  %v1358 = vld [vmem:[#allocation6] sm:$0xf]
  %v1359 = vld [vmem:[#allocation6 + $0x8] sm:$0xf]
  %v1360 = vld [vmem:[#allocation6 + $0x10] sm:$0xf]
  %v1361 = vld [vmem:[#allocation6 + $0x18] sm:$0xf]
  %v1362 = vld [vmem:[#allocation6 + $0x20] sm:$0xf]
  %v1363 = vld [vmem:[#allocation6 + $0x28] sm:$0xf]
  %v1364 = vld [vmem:[#allocation6 + $0x30] sm:$0xf]
  %v1365 = vld [vmem:[#allocation6 + $0x38] sm:$0xf]
  %v1366 = vld [vmem:[%s3] sm:$0xf]
  %v1367 = vld [vmem:[%s3 + $0x4] sm:$0xf]
  %v1376 = vunpack.c.l.b16 %v1358
  %v1377 = vunpack.c.l.b16 %v1359
  %v1378 = vunpack.c.l.b16 %v1360
  %v1379 = vunpack.c.l.b16 %v1361
  %v1380 = vunpack.c.l.b16 %v1362
  %v1381 = vunpack.c.l.b16 %v1363
  %v1382 = vunpack.c.l.b16 %v1364
  %v1383 = vunpack.c.l.b16 %v1365
  %v1384 = vpack.c.b16 %v1377, %v1376
  %v1385 = vpack.c.b16 %v1379, %v1378
  %v1386 = vpack.c.b16 %v1381, %v1380
  %v1387 = vpack.c.b16 %v1383, %v1382
  %1388 = vrot.lane.b32.xlu0 %v1384, 64
  %v1389 = vpop.permute.xlu0 %1388
  %1390 = vrot.lane.b32.xlu0 %v1385, 64
  %v1391 = vpop.permute.xlu0 %1390
  %1392 = vrot.lane.b32.xlu0 %v1386, 64
  %v1393 = vpop.permute.xlu0 %1392
  %1394 = vrot.lane.b32.xlu0 %v1387, 64
  %v1395 = vpop.permute.xlu0 %1394
  %v1398 = vunpack.c.l.b16 %v1366
  %v1399 = vunpack.c.l.b16 %v1367
  %v1400 = vpack.c.b16 %v1399, %v1398
  %v1403 = vsel %vm36, %v1389, 0
  %v1406 = vsel %vm36, %v1391, 0
  %v1409 = vsel %vm36, %v1393, 0
  %v1412 = vsel %vm36, %v1395, 0
  %1414 = vmatprep.subr.bf16.mxu0 0
  %1415 = vmatpush1.bf16.msra.mxu0 0
  %1416 = vmatprep.subr.bf16.mxu0 0
  %1417 = vmatpush1.bf16.msra.mxu0 0
  %1418 = vmatprep.subr.bf16.mxu0 0
  %1419 = vmatpush1.bf16.msra.mxu0 0
  %1420 = vmatprep.subr.bf16.mxu0 0
  %1421 = vmatpush1.bf16.msra.mxu0 0
  %1422 = vmatprep.subr.bf16.mxu0 0
  %1423 = vmatpush1.bf16.msra.mxu0 0
  %1424 = vmatprep.subr.bf16.mxu0 0
  %1425 = vmatpush1.bf16.msra.mxu0 0
  %1426 = vmatprep.subr.bf16.mxu0 0
  %1427 = vmatpush1.bf16.msra.mxu0 0
  %1428 = vmatprep.subr.bf16.mxu0 0
  %1429 = vmatpush1.bf16.msra.mxu0 %v1400
  %1430 = vmatprep.subr.bf16.mxu0 0
  %1431 = vmatpush2.bf16.msra.mxu0 0
  %1432 = vmatprep.subr.bf16.mxu0 0
  %1433 = vmatpush2.bf16.msra.mxu0 0
  %1434 = vmatprep.subr.bf16.mxu0 0
  %1435 = vmatpush2.bf16.msra.mxu0 0
  %1436 = vmatprep.subr.bf16.mxu0 0
  %1437 = vmatpush2.bf16.msra.mxu0 0
  %1438 = vmatprep.subr.bf16.mxu0 0
  %1439 = vmatpush2.bf16.msra.mxu0 0
  %1440 = vmatprep.subr.bf16.mxu0 0
  %1441 = vmatpush2.bf16.msra.mxu0 0
  %1442 = vmatprep.subr.bf16.mxu0 0
  %1443 = vmatpush2.bf16.msra.mxu0 0
  %1444 = vmatprep.subr.bf16.mxu0 0
  %1445 = vmatpush2.bf16.msra.mxu0 0
  %1446 = vmatprep.mubr.bf16.mxu0 0
  %1447 = vmatmul.mubr.bf16.gmra.mxu0 %v1403
  %v1448 = vpop.f32.mrf.mxu0
  %v1449 = vadd.f32 0.0, %v1448
  %v1450 = vpop.f32.mrf.mxu0
  %v1451 = vpop.f32.mrf.mxu0
  %v1452 = vadd.f32 0.0, %v1451
  %v1453 = vpop.f32.mrf.mxu0
  %1454 = vmatprep.mubr.bf16.mxu0 0
  %1455 = vmatmul.mubr.bf16.gmra.mxu0 %v1406
  %v1456 = vpop.f32.mrf.mxu0
  %v1457 = vadd.f32 0.0, %v1456
  %v1458 = vpop.f32.mrf.mxu0
  %v1459 = vpop.f32.mrf.mxu0
  %v1460 = vadd.f32 0.0, %v1459
  %v1461 = vpop.f32.mrf.mxu0
  %1462 = vmatprep.mubr.bf16.mxu0 0
  %1463 = vmatmul.mubr.bf16.gmra.mxu0 %v1409
  %v1464 = vpop.f32.mrf.mxu0
  %v1465 = vadd.f32 0.0, %v1464
  %v1466 = vpop.f32.mrf.mxu0
  %v1467 = vpop.f32.mrf.mxu0
  %v1468 = vadd.f32 0.0, %v1467
  %v1469 = vpop.f32.mrf.mxu0
  %1470 = vmatprep.mubr.bf16.mxu0 0
  %1471 = vmatmul.mubr.bf16.gmra.mxu0 %v1412
  %v1472 = vpop.f32.mrf.mxu0
  %v1473 = vadd.f32 0.0, %v1472
  %v1474 = vpop.f32.mrf.mxu0
  %v1475 = vpop.f32.mrf.mxu0
  %v1476 = vadd.f32 0.0, %v1475
  %v1477 = vpop.f32.mrf.mxu0
  %1478 = vdwg.mxu0
  %1479 = vst [vmem:[%s9] sm:$0xff] %v1449
  %1480 = vst [vmem:[%s9 + $0x8] sm:$0xff] %v1452
  %1481 = vst [vmem:[%s9 + $0x10] sm:$0xff] %v1457
  %1482 = vst [vmem:[%s9 + $0x18] sm:$0xff] %v1460
  %1483 = vst [vmem:[%s9 + $0x20] sm:$0xff] %v1465
  %1484 = vst [vmem:[%s9 + $0x28] sm:$0xff] %v1468
  %1485 = vst [vmem:[%s9 + $0x30] sm:$0xff] %v1473
  %1486 = vst [vmem:[%s9 + $0x38] sm:$0xff] %v1476
  %v1487 = vpack.c.bf16 %v1291, %v1288
  %v1488 = vpack.c.bf16 %v1299, %v1296
  %v1489 = vpack.c.bf16 %v1307, %v1304
  %v1490 = vpack.c.bf16 %v1315, %v1312
  %v1495 = vunpack.c.l.b16 %v1487
  %v1496 = vunpack.c.h.b16 %v1487
  %v1497 = vunpack.c.l.b16 %v1488
  %v1498 = vunpack.c.h.b16 %v1488
  %v1499 = vunpack.c.l.b16 %v1489
  %v1500 = vunpack.c.h.b16 %v1489
  %v1501 = vunpack.c.l.b16 %v1490
  %v1502 = vunpack.c.h.b16 %v1490
  %v1503 = vpack.c.b16 %v1495, %v1495
  %v1504 = vpack.c.b16 %v1496, %v1496
  %v1505 = vpack.c.b16 %v1497, %v1497
  %v1506 = vpack.c.b16 %v1498, %v1498
  %v1507 = vpack.c.b16 %v1499, %v1499
  %v1508 = vpack.c.b16 %v1500, %v1500
  %v1509 = vpack.c.b16 %v1501, %v1501
  %v1510 = vpack.c.b16 %v1502, %v1502
  %1519 = vst [vmem:[%s8] sm:$0xf] %v1503
  %1520 = vst [vmem:[%s8 + $0x4] sm:$0xf] %v1504
  %1521 = vst [vmem:[%s8 + $0x8] sm:$0xf] %v1505
  %1522 = vst [vmem:[%s8 + $0xc] sm:$0xf] %v1506
  %1523 = vst [vmem:[%s8 + $0x10] sm:$0xf] %v1507
  %1524 = vst [vmem:[%s8 + $0x14] sm:$0xf] %v1508
  %1525 = vst [vmem:[%s8 + $0x18] sm:$0xf] %v1509
  %1526 = vst [vmem:[%s8 + $0x1c] sm:$0xf] %v1510
  %s1527 = scalar_lea.vmem [#allocation5], 160
  %v1528 = vld [vmem:[%s1527] sm:$0xff]
  %v1529 = vld [vmem:[%s1527 + $0x10] sm:$0xff]
  %v1530 = vld [vmem:[%s1527 + $0x20] sm:$0xff]
  %v1531 = vld [vmem:[%s1527 + $0x30] sm:$0xff]
  %v1532 = vld [vmem:[%s1527 + $0x40] sm:$0xff]
  %v1533 = vld [vmem:[%s1527 + $0x50] sm:$0xff]
  %v1534 = vld [vmem:[%s1527 + $0x60] sm:$0xff]
  %v1535 = vld [vmem:[%s1527 + $0x70] sm:$0xff]
  %v1536 = vpack.c.bf16 %v1529, %v1528
  %v1537 = vpack.c.bf16 %v1531, %v1530
  %v1538 = vpack.c.bf16 %v1533, %v1532
  %v1539 = vpack.c.bf16 %v1535, %v1534
  %v1544 = vunpack.c.l.b16 %v1536
  %v1545 = vunpack.c.h.b16 %v1536
  %v1546 = vunpack.c.l.b16 %v1537
  %v1547 = vunpack.c.h.b16 %v1537
  %v1548 = vunpack.c.l.b16 %v1538
  %v1549 = vunpack.c.h.b16 %v1538
  %v1550 = vunpack.c.l.b16 %v1539
  %v1551 = vunpack.c.h.b16 %v1539
  %v1552 = vpack.c.b16 %v1544, %v1544
  %v1553 = vpack.c.b16 %v1545, %v1545
  %v1554 = vpack.c.b16 %v1546, %v1546
  %v1555 = vpack.c.b16 %v1547, %v1547
  %v1556 = vpack.c.b16 %v1548, %v1548
  %v1557 = vpack.c.b16 %v1549, %v1549
  %v1558 = vpack.c.b16 %v1550, %v1550
  %v1559 = vpack.c.b16 %v1551, %v1551
  %1568 = vst.msk [vmem:[#allocation6] sm:$0xf] %vm613, %v1552
  %1569 = vst.msk [vmem:[#allocation6 + $0x8] sm:$0xf] %vm613, %v1553
  %1570 = vst.msk [vmem:[#allocation6 + $0x10] sm:$0xf] %vm613, %v1554
  %1571 = vst.msk [vmem:[#allocation6 + $0x18] sm:$0xf] %vm613, %v1555
  %1572 = vst.msk [vmem:[#allocation6 + $0x20] sm:$0xf] %vm613, %v1556
  %1573 = vst.msk [vmem:[#allocation6 + $0x28] sm:$0xf] %vm613, %v1557
  %1574 = vst.msk [vmem:[#allocation6 + $0x30] sm:$0xf] %vm613, %v1558
  %1575 = vst.msk [vmem:[#allocation6 + $0x38] sm:$0xf] %vm613, %v1559
  %s1576 = scalar_lea.vmem [#allocation4], 160
  %v1577 = vld [vmem:[%s1576 + $0x1] sm:$0xff]
  %v1578 = vld [vmem:[%s1576 + $0x11] sm:$0xff]
  %v1579 = vld [vmem:[%s1576 + $0x21] sm:$0xff]
  %v1580 = vld [vmem:[%s1576 + $0x31] sm:$0xff]
  %v1581 = vld [vmem:[%s1576 + $0x41] sm:$0xff]
  %v1582 = vld [vmem:[%s1576 + $0x51] sm:$0xff]
  %v1583 = vld [vmem:[%s1576 + $0x61] sm:$0xff]
  %v1584 = vld [vmem:[%s1576 + $0x71] sm:$0xff]
  %v1585 = vpack.c.bf16 %v1578, %v1577
  %v1586 = vpack.c.bf16 %v1580, %v1579
  %v1587 = vpack.c.bf16 %v1582, %v1581
  %v1588 = vpack.c.bf16 %v1584, %v1583
  %v1593 = vunpack.c.l.b16 %v1585
  %v1594 = vunpack.c.h.b16 %v1585
  %v1595 = vunpack.c.l.b16 %v1586
  %v1596 = vunpack.c.h.b16 %v1586
  %v1597 = vunpack.c.l.b16 %v1587
  %v1598 = vunpack.c.h.b16 %v1587
  %v1599 = vunpack.c.l.b16 %v1588
  %v1600 = vunpack.c.h.b16 %v1588
  %v1601 = vpack.c.b16 %v1593, %v1593
  %v1602 = vpack.c.b16 %v1594, %v1594
  %v1603 = vpack.c.b16 %v1595, %v1595
  %v1604 = vpack.c.b16 %v1596, %v1596
  %v1605 = vpack.c.b16 %v1597, %v1597
  %v1606 = vpack.c.b16 %v1598, %v1598
  %v1607 = vpack.c.b16 %v1599, %v1599
  %v1608 = vpack.c.b16 %v1600, %v1600
  %1609 = vrot.lane.b32.xlu0 %v1601, 16
  %v1610 = vpop.permute.xlu0 %1609
  %1611 = vrot.lane.b32.xlu0 %v1602, 16
  %v1612 = vpop.permute.xlu0 %1611
  %1613 = vrot.lane.b32.xlu0 %v1603, 16
  %v1614 = vpop.permute.xlu0 %1613
  %1615 = vrot.lane.b32.xlu0 %v1604, 16
  %v1616 = vpop.permute.xlu0 %1615
  %1617 = vrot.lane.b32.xlu0 %v1605, 16
  %v1618 = vpop.permute.xlu0 %1617
  %1619 = vrot.lane.b32.xlu0 %v1606, 16
  %v1620 = vpop.permute.xlu0 %1619
  %1621 = vrot.lane.b32.xlu0 %v1607, 16
  %v1622 = vpop.permute.xlu0 %1621
  %1623 = vrot.lane.b32.xlu0 %v1608, 16
  %v1624 = vpop.permute.xlu0 %1623
  %1633 = vst.msk [vmem:[#allocation6] sm:$0xf] %vm678, %v1610
  %1634 = vst.msk [vmem:[#allocation6 + $0x8] sm:$0xf] %vm678, %v1612
  %1635 = vst.msk [vmem:[#allocation6 + $0x10] sm:$0xf] %vm678, %v1614
  %1636 = vst.msk [vmem:[#allocation6 + $0x18] sm:$0xf] %vm678, %v1616
  %1637 = vst.msk [vmem:[#allocation6 + $0x20] sm:$0xf] %vm678, %v1618
  %1638 = vst.msk [vmem:[#allocation6 + $0x28] sm:$0xf] %vm678, %v1620
  %1639 = vst.msk [vmem:[#allocation6 + $0x30] sm:$0xf] %vm678, %v1622
  %1640 = vst.msk [vmem:[#allocation6 + $0x38] sm:$0xf] %vm678, %v1624
  %v1641 = vld [vmem:[%s1527 + $0x1] sm:$0xff]
  %v1642 = vld [vmem:[%s1527 + $0x11] sm:$0xff]
  %v1643 = vld [vmem:[%s1527 + $0x21] sm:$0xff]
  %v1644 = vld [vmem:[%s1527 + $0x31] sm:$0xff]
  %v1645 = vld [vmem:[%s1527 + $0x41] sm:$0xff]
  %v1646 = vld [vmem:[%s1527 + $0x51] sm:$0xff]
  %v1647 = vld [vmem:[%s1527 + $0x61] sm:$0xff]
  %v1648 = vld [vmem:[%s1527 + $0x71] sm:$0xff]
  %v1649 = vpack.c.bf16 %v1642, %v1641
  %v1650 = vpack.c.bf16 %v1644, %v1643
  %v1651 = vpack.c.bf16 %v1646, %v1645
  %v1652 = vpack.c.bf16 %v1648, %v1647
  %v1657 = vunpack.c.l.b16 %v1649
  %v1658 = vunpack.c.h.b16 %v1649
  %v1659 = vunpack.c.l.b16 %v1650
  %v1660 = vunpack.c.h.b16 %v1650
  %v1661 = vunpack.c.l.b16 %v1651
  %v1662 = vunpack.c.h.b16 %v1651
  %v1663 = vunpack.c.l.b16 %v1652
  %v1664 = vunpack.c.h.b16 %v1652
  %v1665 = vpack.c.b16 %v1657, %v1657
  %v1666 = vpack.c.b16 %v1658, %v1658
  %v1667 = vpack.c.b16 %v1659, %v1659
  %v1668 = vpack.c.b16 %v1660, %v1660
  %v1669 = vpack.c.b16 %v1661, %v1661
  %v1670 = vpack.c.b16 %v1662, %v1662
  %v1671 = vpack.c.b16 %v1663, %v1663
  %v1672 = vpack.c.b16 %v1664, %v1664
  %1673 = vrot.lane.b32.xlu0 %v1665, 32
  %v1674 = vpop.permute.xlu0 %1673
  %1675 = vrot.lane.b32.xlu0 %v1666, 32
  %v1676 = vpop.permute.xlu0 %1675
  %1677 = vrot.lane.b32.xlu0 %v1667, 32
  %v1678 = vpop.permute.xlu0 %1677
  %1679 = vrot.lane.b32.xlu0 %v1668, 32
  %v1680 = vpop.permute.xlu0 %1679
  %1681 = vrot.lane.b32.xlu0 %v1669, 32
  %v1682 = vpop.permute.xlu0 %1681
  %1683 = vrot.lane.b32.xlu0 %v1670, 32
  %v1684 = vpop.permute.xlu0 %1683
  %1685 = vrot.lane.b32.xlu0 %v1671, 32
  %v1686 = vpop.permute.xlu0 %1685
  %1687 = vrot.lane.b32.xlu0 %v1672, 32
  %v1688 = vpop.permute.xlu0 %1687
  %1697 = vst.msk [vmem:[#allocation6] sm:$0xf] %vm743, %v1674
  %1698 = vst.msk [vmem:[#allocation6 + $0x8] sm:$0xf] %vm743, %v1676
  %1699 = vst.msk [vmem:[#allocation6 + $0x10] sm:$0xf] %vm743, %v1678
  %1700 = vst.msk [vmem:[#allocation6 + $0x18] sm:$0xf] %vm743, %v1680
  %1701 = vst.msk [vmem:[#allocation6 + $0x20] sm:$0xf] %vm743, %v1682
  %1702 = vst.msk [vmem:[#allocation6 + $0x28] sm:$0xf] %vm743, %v1684
  %1703 = vst.msk [vmem:[#allocation6 + $0x30] sm:$0xf] %vm743, %v1686
  %1704 = vst.msk [vmem:[#allocation6 + $0x38] sm:$0xf] %vm743, %v1688
  %s1705 = scalar_lea.vmem [#allocation3], 176
  %v1706 = vld [vmem:[%s1705] sm:$0xff]
  %v1707 = vld [vmem:[%s1705 + $0x10] sm:$0xff]
  %v1708 = vld [vmem:[%s1705 + $0x20] sm:$0xff]
  %v1709 = vld [vmem:[%s1705 + $0x30] sm:$0xff]
  %v1710 = vld [vmem:[%s1705 + $0x40] sm:$0xff]
  %v1711 = vld [vmem:[%s1705 + $0x50] sm:$0xff]
  %v1712 = vld [vmem:[%s1705 + $0x60] sm:$0xff]
  %v1713 = vld [vmem:[%s1705 + $0x70] sm:$0xff]
  %v1714 = vpack.c.bf16 %v1707, %v1706
  %v1715 = vpack.c.bf16 %v1709, %v1708
  %v1716 = vpack.c.bf16 %v1711, %v1710
  %v1717 = vpack.c.bf16 %v1713, %v1712
  %v1722 = vunpack.c.l.b16 %v1714
  %v1723 = vunpack.c.h.b16 %v1714
  %v1724 = vunpack.c.l.b16 %v1715
  %v1725 = vunpack.c.h.b16 %v1715
  %v1726 = vunpack.c.l.b16 %v1716
  %v1727 = vunpack.c.h.b16 %v1716
  %v1728 = vunpack.c.l.b16 %v1717
  %v1729 = vunpack.c.h.b16 %v1717
  %v1730 = vpack.c.b16 %v1722, %v1722
  %v1731 = vpack.c.b16 %v1723, %v1723
  %v1732 = vpack.c.b16 %v1724, %v1724
  %v1733 = vpack.c.b16 %v1725, %v1725
  %v1734 = vpack.c.b16 %v1726, %v1726
  %v1735 = vpack.c.b16 %v1727, %v1727
  %v1736 = vpack.c.b16 %v1728, %v1728
  %v1737 = vpack.c.b16 %v1729, %v1729
  %1738 = vrot.lane.b32.xlu0 %v1730, 48
  %v1739 = vpop.permute.xlu0 %1738
  %1740 = vrot.lane.b32.xlu0 %v1731, 48
  %v1741 = vpop.permute.xlu0 %1740
  %1742 = vrot.lane.b32.xlu0 %v1732, 48
  %v1743 = vpop.permute.xlu0 %1742
  %1744 = vrot.lane.b32.xlu0 %v1733, 48
  %v1745 = vpop.permute.xlu0 %1744
  %1746 = vrot.lane.b32.xlu0 %v1734, 48
  %v1747 = vpop.permute.xlu0 %1746
  %1748 = vrot.lane.b32.xlu0 %v1735, 48
  %v1749 = vpop.permute.xlu0 %1748
  %1750 = vrot.lane.b32.xlu0 %v1736, 48
  %v1751 = vpop.permute.xlu0 %1750
  %1752 = vrot.lane.b32.xlu0 %v1737, 48
  %v1753 = vpop.permute.xlu0 %1752
  %1762 = vst.msk [vmem:[#allocation6] sm:$0xf] %vm808, %v1739
  %1763 = vst.msk [vmem:[#allocation6 + $0x8] sm:$0xf] %vm808, %v1741
  %1764 = vst.msk [vmem:[#allocation6 + $0x10] sm:$0xf] %vm808, %v1743
  %1765 = vst.msk [vmem:[#allocation6 + $0x18] sm:$0xf] %vm808, %v1745
  %1766 = vst.msk [vmem:[#allocation6 + $0x20] sm:$0xf] %vm808, %v1747
  %1767 = vst.msk [vmem:[#allocation6 + $0x28] sm:$0xf] %vm808, %v1749
  %1768 = vst.msk [vmem:[#allocation6 + $0x30] sm:$0xf] %vm808, %v1751
  %1769 = vst.msk [vmem:[#allocation6 + $0x38] sm:$0xf] %vm808, %v1753
  %s1770 = scalar_lea.vmem [#allocation2], 176
  %v1771 = vld [vmem:[%s1770 + $0x1] sm:$0xff]
  %v1772 = vld [vmem:[%s1770 + $0x11] sm:$0xff]
  %v1773 = vld [vmem:[%s1770 + $0x21] sm:$0xff]
  %v1774 = vld [vmem:[%s1770 + $0x31] sm:$0xff]
  %v1775 = vld [vmem:[%s1770 + $0x41] sm:$0xff]
  %v1776 = vld [vmem:[%s1770 + $0x51] sm:$0xff]
  %v1777 = vld [vmem:[%s1770 + $0x61] sm:$0xff]
  %v1778 = vld [vmem:[%s1770 + $0x71] sm:$0xff]
  %v1779 = vpack.c.bf16 %v1772, %v1771
  %v1780 = vpack.c.bf16 %v1774, %v1773
  %v1781 = vpack.c.bf16 %v1776, %v1775
  %v1782 = vpack.c.bf16 %v1778, %v1777
  %v1787 = vunpack.c.l.b16 %v1779
  %v1788 = vunpack.c.h.b16 %v1779
  %v1789 = vunpack.c.l.b16 %v1780
  %v1790 = vunpack.c.h.b16 %v1780
  %v1791 = vunpack.c.l.b16 %v1781
  %v1792 = vunpack.c.h.b16 %v1781
  %v1793 = vunpack.c.l.b16 %v1782
  %v1794 = vunpack.c.h.b16 %v1782
  %v1795 = vpack.c.b16 %v1787, %v1787
  %v1796 = vpack.c.b16 %v1788, %v1788
  %v1797 = vpack.c.b16 %v1789, %v1789
  %v1798 = vpack.c.b16 %v1790, %v1790
  %v1799 = vpack.c.b16 %v1791, %v1791
  %v1800 = vpack.c.b16 %v1792, %v1792
  %v1801 = vpack.c.b16 %v1793, %v1793
  %v1802 = vpack.c.b16 %v1794, %v1794
  %1803 = vrot.lane.b32.xlu0 %v1795, 64
  %v1804 = vpop.permute.xlu0 %1803
  %1805 = vrot.lane.b32.xlu0 %v1796, 64
  %v1806 = vpop.permute.xlu0 %1805
  %1807 = vrot.lane.b32.xlu0 %v1797, 64
  %v1808 = vpop.permute.xlu0 %1807
  %1809 = vrot.lane.b32.xlu0 %v1798, 64
  %v1810 = vpop.permute.xlu0 %1809
  %1811 = vrot.lane.b32.xlu0 %v1799, 64
  %v1812 = vpop.permute.xlu0 %1811
  %1813 = vrot.lane.b32.xlu0 %v1800, 64
  %v1814 = vpop.permute.xlu0 %1813
  %1815 = vrot.lane.b32.xlu0 %v1801, 64
  %v1816 = vpop.permute.xlu0 %1815
  %1817 = vrot.lane.b32.xlu0 %v1802, 64
  %v1818 = vpop.permute.xlu0 %1817
  %1827 = vst.msk [vmem:[#allocation6] sm:$0xf] %vm873, %v1804
  %1828 = vst.msk [vmem:[#allocation6 + $0x8] sm:$0xf] %vm873, %v1806
  %1829 = vst.msk [vmem:[#allocation6 + $0x10] sm:$0xf] %vm873, %v1808
  %1830 = vst.msk [vmem:[#allocation6 + $0x18] sm:$0xf] %vm873, %v1810
  %1831 = vst.msk [vmem:[#allocation6 + $0x20] sm:$0xf] %vm873, %v1812
  %1832 = vst.msk [vmem:[#allocation6 + $0x28] sm:$0xf] %vm873, %v1814
  %1833 = vst.msk [vmem:[#allocation6 + $0x30] sm:$0xf] %vm873, %v1816
  %1834 = vst.msk [vmem:[#allocation6 + $0x38] sm:$0xf] %vm873, %v1818
  %v1835 = vld [vmem:[%s1705 + $0x1] sm:$0xff]
  %v1836 = vld [vmem:[%s1705 + $0x11] sm:$0xff]
  %v1837 = vld [vmem:[%s1705 + $0x21] sm:$0xff]
  %v1838 = vld [vmem:[%s1705 + $0x31] sm:$0xff]
  %v1839 = vld [vmem:[%s1705 + $0x41] sm:$0xff]
  %v1840 = vld [vmem:[%s1705 + $0x51] sm:$0xff]
  %v1841 = vld [vmem:[%s1705 + $0x61] sm:$0xff]
  %v1842 = vld [vmem:[%s1705 + $0x71] sm:$0xff]
  %v1843 = vpack.c.bf16 %v1836, %v1835
  %v1844 = vpack.c.bf16 %v1838, %v1837
  %v1845 = vpack.c.bf16 %v1840, %v1839
  %v1846 = vpack.c.bf16 %v1842, %v1841
  %v1851 = vunpack.c.l.b16 %v1843
  %v1852 = vunpack.c.h.b16 %v1843
  %v1853 = vunpack.c.l.b16 %v1844
  %v1854 = vunpack.c.h.b16 %v1844
  %v1855 = vunpack.c.l.b16 %v1845
  %v1856 = vunpack.c.h.b16 %v1845
  %v1857 = vunpack.c.l.b16 %v1846
  %v1858 = vunpack.c.h.b16 %v1846
  %v1859 = vpack.c.b16 %v1851, %v1851
  %v1860 = vpack.c.b16 %v1852, %v1852
  %v1861 = vpack.c.b16 %v1853, %v1853
  %v1862 = vpack.c.b16 %v1854, %v1854
  %v1863 = vpack.c.b16 %v1855, %v1855
  %v1864 = vpack.c.b16 %v1856, %v1856
  %v1865 = vpack.c.b16 %v1857, %v1857
  %v1866 = vpack.c.b16 %v1858, %v1858
  %1867 = vrot.lane.b32.xlu0 %v1859, 80
  %v1868 = vpop.permute.xlu0 %1867
  %1869 = vrot.lane.b32.xlu0 %v1860, 80
  %v1870 = vpop.permute.xlu0 %1869
  %1871 = vrot.lane.b32.xlu0 %v1861, 80
  %v1872 = vpop.permute.xlu0 %1871
  %1873 = vrot.lane.b32.xlu0 %v1862, 80
  %v1874 = vpop.permute.xlu0 %1873
  %1875 = vrot.lane.b32.xlu0 %v1863, 80
  %v1876 = vpop.permute.xlu0 %1875
  %1877 = vrot.lane.b32.xlu0 %v1864, 80
  %v1878 = vpop.permute.xlu0 %1877
  %1879 = vrot.lane.b32.xlu0 %v1865, 80
  %v1880 = vpop.permute.xlu0 %1879
  %1881 = vrot.lane.b32.xlu0 %v1866, 80
  %v1882 = vpop.permute.xlu0 %1881
  %1891 = vst.msk [vmem:[#allocation6] sm:$0xf] %vm938, %v1868
  %1892 = vst.msk [vmem:[#allocation6 + $0x8] sm:$0xf] %vm938, %v1870
  %1893 = vst.msk [vmem:[#allocation6 + $0x10] sm:$0xf] %vm938, %v1872
  %1894 = vst.msk [vmem:[#allocation6 + $0x18] sm:$0xf] %vm938, %v1874
  %1895 = vst.msk [vmem:[#allocation6 + $0x20] sm:$0xf] %vm938, %v1876
  %1896 = vst.msk [vmem:[#allocation6 + $0x28] sm:$0xf] %vm938, %v1878
  %1897 = vst.msk [vmem:[#allocation6 + $0x30] sm:$0xf] %vm938, %v1880
  %1898 = vst.msk [vmem:[#allocation6 + $0x38] sm:$0xf] %vm938, %v1882
  %s1899 = scalar_lea.vmem [#allocation5], 176
  %v1900 = vld [vmem:[%s1899] sm:$0xff]
  %v1901 = vld [vmem:[%s1899 + $0x10] sm:$0xff]
  %v1902 = vld [vmem:[%s1899 + $0x20] sm:$0xff]
  %v1903 = vld [vmem:[%s1899 + $0x30] sm:$0xff]
  %v1904 = vld [vmem:[%s1899 + $0x40] sm:$0xff]
  %v1905 = vld [vmem:[%s1899 + $0x50] sm:$0xff]
  %v1906 = vld [vmem:[%s1899 + $0x60] sm:$0xff]
  %v1907 = vld [vmem:[%s1899 + $0x70] sm:$0xff]
  %v1908 = vpack.c.bf16 %v1901, %v1900
  %v1909 = vpack.c.bf16 %v1903, %v1902
  %v1910 = vpack.c.bf16 %v1905, %v1904
  %v1911 = vpack.c.bf16 %v1907, %v1906
  %v1916 = vunpack.c.l.b16 %v1908
  %v1917 = vunpack.c.h.b16 %v1908
  %v1918 = vunpack.c.l.b16 %v1909
  %v1919 = vunpack.c.h.b16 %v1909
  %v1920 = vunpack.c.l.b16 %v1910
  %v1921 = vunpack.c.h.b16 %v1910
  %v1922 = vunpack.c.l.b16 %v1911
  %v1923 = vunpack.c.h.b16 %v1911
  %v1924 = vpack.c.b16 %v1916, %v1916
  %v1925 = vpack.c.b16 %v1917, %v1917
  %v1926 = vpack.c.b16 %v1918, %v1918
  %v1927 = vpack.c.b16 %v1919, %v1919
  %v1928 = vpack.c.b16 %v1920, %v1920
  %v1929 = vpack.c.b16 %v1921, %v1921
  %v1930 = vpack.c.b16 %v1922, %v1922
  %v1931 = vpack.c.b16 %v1923, %v1923
  %1932 = vrot.lane.b32.xlu0 %v1924, 96
  %v1933 = vpop.permute.xlu0 %1932
  %1934 = vrot.lane.b32.xlu0 %v1925, 96
  %v1935 = vpop.permute.xlu0 %1934
  %1936 = vrot.lane.b32.xlu0 %v1926, 96
  %v1937 = vpop.permute.xlu0 %1936
  %1938 = vrot.lane.b32.xlu0 %v1927, 96
  %v1939 = vpop.permute.xlu0 %1938
  %1940 = vrot.lane.b32.xlu0 %v1928, 96
  %v1941 = vpop.permute.xlu0 %1940
  %1942 = vrot.lane.b32.xlu0 %v1929, 96
  %v1943 = vpop.permute.xlu0 %1942
  %1944 = vrot.lane.b32.xlu0 %v1930, 96
  %v1945 = vpop.permute.xlu0 %1944
  %1946 = vrot.lane.b32.xlu0 %v1931, 96
  %v1947 = vpop.permute.xlu0 %1946
  %1956 = vst.msk [vmem:[#allocation6] sm:$0xf] %vm1003, %v1933
  %1957 = vst.msk [vmem:[#allocation6 + $0x8] sm:$0xf] %vm1003, %v1935
  %1958 = vst.msk [vmem:[#allocation6 + $0x10] sm:$0xf] %vm1003, %v1937
  %1959 = vst.msk [vmem:[#allocation6 + $0x18] sm:$0xf] %vm1003, %v1939
  %1960 = vst.msk [vmem:[#allocation6 + $0x20] sm:$0xf] %vm1003, %v1941
  %1961 = vst.msk [vmem:[#allocation6 + $0x28] sm:$0xf] %vm1003, %v1943
  %1962 = vst.msk [vmem:[#allocation6 + $0x30] sm:$0xf] %vm1003, %v1945
  %1963 = vst.msk [vmem:[#allocation6 + $0x38] sm:$0xf] %vm1003, %v1947
  %s1964 = scalar_lea.vmem [#allocation4], 176
  %v1965 = vld [vmem:[%s1964 + $0x1] sm:$0xff]
  %v1966 = vld [vmem:[%s1964 + $0x11] sm:$0xff]
  %v1967 = vld [vmem:[%s1964 + $0x21] sm:$0xff]
  %v1968 = vld [vmem:[%s1964 + $0x31] sm:$0xff]
  %v1969 = vld [vmem:[%s1964 + $0x41] sm:$0xff]
  %v1970 = vld [vmem:[%s1964 + $0x51] sm:$0xff]
  %v1971 = vld [vmem:[%s1964 + $0x61] sm:$0xff]
  %v1972 = vld [vmem:[%s1964 + $0x71] sm:$0xff]
  %v1973 = vpack.c.bf16 %v1966, %v1965
  %v1974 = vpack.c.bf16 %v1968, %v1967
  %v1975 = vpack.c.bf16 %v1970, %v1969
  %v1976 = vpack.c.bf16 %v1972, %v1971
  %v1981 = vunpack.c.l.b16 %v1973
  %v1982 = vunpack.c.h.b16 %v1973
  %v1983 = vunpack.c.l.b16 %v1974
  %v1984 = vunpack.c.h.b16 %v1974
  %v1985 = vunpack.c.l.b16 %v1975
  %v1986 = vunpack.c.h.b16 %v1975
  %v1987 = vunpack.c.l.b16 %v1976
  %v1988 = vunpack.c.h.b16 %v1976
  %v1989 = vpack.c.b16 %v1981, %v1981
  %v1990 = vpack.c.b16 %v1982, %v1982
  %v1991 = vpack.c.b16 %v1983, %v1983
  %v1992 = vpack.c.b16 %v1984, %v1984
  %v1993 = vpack.c.b16 %v1985, %v1985
  %v1994 = vpack.c.b16 %v1986, %v1986
  %v1995 = vpack.c.b16 %v1987, %v1987
  %v1996 = vpack.c.b16 %v1988, %v1988
  %1997 = vrot.lane.b32.xlu0 %v1989, 112
  %v1998 = vpop.permute.xlu0 %1997
  %1999 = vrot.lane.b32.xlu0 %v1990, 112
  %v2000 = vpop.permute.xlu0 %1999
  %2001 = vrot.lane.b32.xlu0 %v1991, 112
  %v2002 = vpop.permute.xlu0 %2001
  %2003 = vrot.lane.b32.xlu0 %v1992, 112
  %v2004 = vpop.permute.xlu0 %2003
  %2005 = vrot.lane.b32.xlu0 %v1993, 112
  %v2006 = vpop.permute.xlu0 %2005
  %2007 = vrot.lane.b32.xlu0 %v1994, 112
  %v2008 = vpop.permute.xlu0 %2007
  %2009 = vrot.lane.b32.xlu0 %v1995, 112
  %v2010 = vpop.permute.xlu0 %2009
  %2011 = vrot.lane.b32.xlu0 %v1996, 112
  %v2012 = vpop.permute.xlu0 %2011
  %2021 = vst.msk [vmem:[#allocation6] sm:$0xf] %vm1068, %v1998
  %2022 = vst.msk [vmem:[#allocation6 + $0x8] sm:$0xf] %vm1068, %v2000
  %2023 = vst.msk [vmem:[#allocation6 + $0x10] sm:$0xf] %vm1068, %v2002
  %2024 = vst.msk [vmem:[#allocation6 + $0x18] sm:$0xf] %vm1068, %v2004
  %2025 = vst.msk [vmem:[#allocation6 + $0x20] sm:$0xf] %vm1068, %v2006
  %2026 = vst.msk [vmem:[#allocation6 + $0x28] sm:$0xf] %vm1068, %v2008
  %2027 = vst.msk [vmem:[#allocation6 + $0x30] sm:$0xf] %vm1068, %v2010
  %2028 = vst.msk [vmem:[#allocation6 + $0x38] sm:$0xf] %vm1068, %v2012
  %v2029 = vld [vmem:[%s1899 + $0x1] sm:$0xff]
  %v2030 = vld [vmem:[%s1899 + $0x11] sm:$0xff]
  %v2031 = vld [vmem:[%s1899 + $0x21] sm:$0xff]
  %v2032 = vld [vmem:[%s1899 + $0x31] sm:$0xff]
  %v2033 = vld [vmem:[%s1899 + $0x41] sm:$0xff]
  %v2034 = vld [vmem:[%s1899 + $0x51] sm:$0xff]
  %v2035 = vld [vmem:[%s1899 + $0x61] sm:$0xff]
  %v2036 = vld [vmem:[%s1899 + $0x71] sm:$0xff]
  %v2037 = vpack.c.bf16 %v2030, %v2029
  %v2038 = vpack.c.bf16 %v2032, %v2031
  %v2039 = vpack.c.bf16 %v2034, %v2033
  %v2040 = vpack.c.bf16 %v2036, %v2035
  %v2045 = vunpack.c.l.b16 %v2037
  %v2046 = vunpack.c.h.b16 %v2037
  %v2047 = vunpack.c.l.b16 %v2038
  %v2048 = vunpack.c.h.b16 %v2038
  %v2049 = vunpack.c.l.b16 %v2039
  %v2050 = vunpack.c.h.b16 %v2039
  %v2051 = vunpack.c.l.b16 %v2040
  %v2052 = vunpack.c.h.b16 %v2040
  %v2053 = vpack.c.b16 %v2045, %v2045
  %v2054 = vpack.c.b16 %v2046, %v2046
  %v2055 = vpack.c.b16 %v2047, %v2047
  %v2056 = vpack.c.b16 %v2048, %v2048
  %v2057 = vpack.c.b16 %v2049, %v2049
  %v2058 = vpack.c.b16 %v2050, %v2050
  %v2059 = vpack.c.b16 %v2051, %v2051
  %v2060 = vpack.c.b16 %v2052, %v2052
  %2069 = vst.msk [vmem:[#allocation6 + $0x4] sm:$0xf] %vm613, %v2053
  %2070 = vst.msk [vmem:[#allocation6 + $0xc] sm:$0xf] %vm613, %v2054
  %2071 = vst.msk [vmem:[#allocation6 + $0x14] sm:$0xf] %vm613, %v2055
  %2072 = vst.msk [vmem:[#allocation6 + $0x1c] sm:$0xf] %vm613, %v2056
  %2073 = vst.msk [vmem:[#allocation6 + $0x24] sm:$0xf] %vm613, %v2057
  %2074 = vst.msk [vmem:[#allocation6 + $0x2c] sm:$0xf] %vm613, %v2058
  %2075 = vst.msk [vmem:[#allocation6 + $0x34] sm:$0xf] %vm613, %v2059
  %2076 = vst.msk [vmem:[#allocation6 + $0x3c] sm:$0xf] %vm613, %v2060
  %v2077 = vld [vmem:[#allocation6] sm:$0xff]
  %v2078 = vld [vmem:[#allocation6 + $0x8] sm:$0xff]
  %v2079 = vld [vmem:[#allocation6 + $0x10] sm:$0xff]
  %v2080 = vld [vmem:[#allocation6 + $0x18] sm:$0xff]
  %v2081 = vld [vmem:[#allocation6 + $0x20] sm:$0xff]
  %v2082 = vld [vmem:[#allocation6 + $0x28] sm:$0xff]
  %v2083 = vld [vmem:[#allocation6 + $0x30] sm:$0xff]
  %v2084 = vld [vmem:[#allocation6 + $0x38] sm:$0xff]
  %v2085 = vld [vmem:[%s2] sm:$0xf]
  %v2086 = vld [vmem:[%s2 + $0x4] sm:$0xf]
  %v2087 = vld [vmem:[%s2 + $0x8] sm:$0xf]
  %v2088 = vld [vmem:[%s2 + $0xc] sm:$0xf]
  %v2089 = vld [vmem:[%s2 + $0x10] sm:$0xf]
  %v2090 = vld [vmem:[%s2 + $0x14] sm:$0xf]
  %v2091 = vld [vmem:[%s2 + $0x18] sm:$0xf]
  %v2092 = vld [vmem:[%s2 + $0x1c] sm:$0xf]
  %v2093 = vld [vmem:[%s2 + $0x20] sm:$0xf]
  %v2094 = vld [vmem:[%s2 + $0x24] sm:$0xf]
  %v2095 = vld [vmem:[%s2 + $0x28] sm:$0xf]
  %v2096 = vld [vmem:[%s2 + $0x2c] sm:$0xf]
  %v2097 = vld [vmem:[%s2 + $0x30] sm:$0xf]
  %v2098 = vld [vmem:[%s2 + $0x34] sm:$0xf]
  %v2099 = vld [vmem:[%s2 + $0x38] sm:$0xf]
  %v2100 = vld [vmem:[%s2 + $0x3c] sm:$0xf]
  %v2101 = vld [vmem:[%s2 + $0x40] sm:$0xf]
  %v2102 = vld [vmem:[%s2 + $0x44] sm:$0xf]
  %v2111 = vunpack.c.l.b16 %v2077
  %v2112 = vunpack.c.h.b16 %v2077
  %v2113 = vunpack.c.l.b16 %v2078
  %v2114 = vunpack.c.h.b16 %v2078
  %v2115 = vunpack.c.l.b16 %v2079
  %v2116 = vunpack.c.h.b16 %v2079
  %v2117 = vunpack.c.l.b16 %v2080
  %v2118 = vunpack.c.h.b16 %v2080
  %v2119 = vunpack.c.l.b16 %v2081
  %v2120 = vunpack.c.h.b16 %v2081
  %v2121 = vunpack.c.l.b16 %v2082
  %v2122 = vunpack.c.h.b16 %v2082
  %v2123 = vunpack.c.l.b16 %v2083
  %v2124 = vunpack.c.h.b16 %v2083
  %v2125 = vunpack.c.l.b16 %v2084
  %v2126 = vunpack.c.h.b16 %v2084
  %v2127 = vpack.c.b16 %v2113, %v2111
  %v2128 = vpack.c.b16 %v2114, %v2112
  %v2129 = vpack.c.b16 %v2117, %v2115
  %v2130 = vpack.c.b16 %v2118, %v2116
  %v2131 = vpack.c.b16 %v2121, %v2119
  %v2132 = vpack.c.b16 %v2122, %v2120
  %v2133 = vpack.c.b16 %v2125, %v2123
  %v2134 = vpack.c.b16 %v2126, %v2124
  %v2157 = vunpack.c.l.b16 %v2085
  %v2158 = vunpack.c.l.b16 %v2086
  %v2159 = vunpack.c.l.b16 %v2087
  %v2160 = vunpack.c.l.b16 %v2088
  %v2161 = vunpack.c.l.b16 %v2089
  %v2162 = vunpack.c.l.b16 %v2090
  %v2163 = vunpack.c.l.b16 %v2091
  %v2164 = vunpack.c.l.b16 %v2092
  %v2165 = vunpack.c.l.b16 %v2093
  %v2166 = vunpack.c.l.b16 %v2094
  %v2167 = vunpack.c.l.b16 %v2095
  %v2168 = vunpack.c.l.b16 %v2096
  %v2169 = vunpack.c.l.b16 %v2097
  %v2170 = vunpack.c.l.b16 %v2098
  %v2171 = vunpack.c.l.b16 %v2099
  %v2172 = vunpack.c.l.b16 %v2100
  %v2173 = vunpack.c.l.b16 %v2101
  %v2174 = vunpack.c.l.b16 %v2102
  %v2175 = vpack.c.b16 %v2158, %v2157
  %v2176 = vpack.c.b16 %v2160, %v2159
  %v2177 = vpack.c.b16 %v2162, %v2161
  %v2178 = vpack.c.b16 %v2164, %v2163
  %v2179 = vpack.c.b16 %v2166, %v2165
  %v2180 = vpack.c.b16 %v2168, %v2167
  %v2181 = vpack.c.b16 %v2170, %v2169
  %v2182 = vpack.c.b16 %v2172, %v2171
  %v2183 = vpack.c.b16 %v2174, %v2173
  %v2194 = vsel %vm36, %v2128, 0
  %v2197 = vsel %vm36, %v2130, 0
  %v2200 = vsel %vm36, %v2132, 0
  %v2203 = vsel %vm36, %v2134, 0
  %2205 = vmatprep.subr.bf16.mxu0 0
  %2206 = vmatpush1.bf16.msra.mxu0 %v2182
  %2207 = vmatprep.subr.bf16.mxu0 0
  %2208 = vmatpush1.bf16.msra.mxu0 %v2181
  %2209 = vmatprep.subr.bf16.mxu0 0
  %2210 = vmatpush1.bf16.msra.mxu0 %v2180
  %2211 = vmatprep.subr.bf16.mxu0 0
  %2212 = vmatpush1.bf16.msra.mxu0 %v2179
  %2213 = vmatprep.subr.bf16.mxu0 0
  %2214 = vmatpush1.bf16.msra.mxu0 %v2178
  %2215 = vmatprep.subr.bf16.mxu0 0
  %2216 = vmatpush1.bf16.msra.mxu0 %v2177
  %2217 = vmatprep.subr.bf16.mxu0 0
  %2218 = vmatpush1.bf16.msra.mxu0 %v2176
  %2219 = vmatprep.subr.bf16.mxu0 0
  %2220 = vmatpush1.bf16.msra.mxu0 %v2175
  %2221 = vmatprep.subr.bf16.mxu0 0
  %2222 = vmatpush2.bf16.msra.mxu0 0
  %2223 = vmatprep.subr.bf16.mxu0 0
  %2224 = vmatpush2.bf16.msra.mxu0 0
  %2225 = vmatprep.subr.bf16.mxu0 0
  %2226 = vmatpush2.bf16.msra.mxu0 0
  %2227 = vmatprep.subr.bf16.mxu0 0
  %2228 = vmatpush2.bf16.msra.mxu0 0
  %2229 = vmatprep.subr.bf16.mxu0 0
  %2230 = vmatpush2.bf16.msra.mxu0 0
  %2231 = vmatprep.subr.bf16.mxu0 0
  %2232 = vmatpush2.bf16.msra.mxu0 0
  %2233 = vmatprep.subr.bf16.mxu0 0
  %2234 = vmatpush2.bf16.msra.mxu0 0
  %2235 = vmatprep.subr.bf16.mxu0 0
  %2236 = vmatpush2.bf16.msra.mxu0 %v2183
  %2237 = vmatprep.mubr.bf16.mxu0 %v2194
  %2238 = vmatmul.mubr.bf16.gmra.mxu0 %v2127
  %v2239 = vpop.f32.mrf.mxu0
  %v2240 = vadd.f32 0.0, %v2239
  %v2241 = vpop.f32.mrf.mxu0
  %v2242 = vpop.f32.mrf.mxu0
  %v2243 = vadd.f32 0.0, %v2242
  %v2244 = vpop.f32.mrf.mxu0
  %2245 = vmatprep.mubr.bf16.mxu0 %v2197
  %2246 = vmatmul.mubr.bf16.gmra.mxu0 %v2129
  %v2247 = vpop.f32.mrf.mxu0
  %v2248 = vadd.f32 0.0, %v2247
  %v2249 = vpop.f32.mrf.mxu0
  %v2250 = vpop.f32.mrf.mxu0
  %v2251 = vadd.f32 0.0, %v2250
  %v2252 = vpop.f32.mrf.mxu0
  %2253 = vmatprep.mubr.bf16.mxu0 %v2200
  %2254 = vmatmul.mubr.bf16.gmra.mxu0 %v2131
  %v2255 = vpop.f32.mrf.mxu0
  %v2256 = vadd.f32 0.0, %v2255
  %v2257 = vpop.f32.mrf.mxu0
  %v2258 = vpop.f32.mrf.mxu0
  %v2259 = vadd.f32 0.0, %v2258
  %v2260 = vpop.f32.mrf.mxu0
  %2261 = vmatprep.mubr.bf16.mxu0 %v2203
  %2262 = vmatmul.mubr.bf16.gmra.mxu0 %v2133
  %v2263 = vpop.f32.mrf.mxu0
  %v2264 = vadd.f32 0.0, %v2263
  %v2265 = vpop.f32.mrf.mxu0
  %v2266 = vpop.f32.mrf.mxu0
  %v2267 = vadd.f32 0.0, %v2266
  %v2268 = vpop.f32.mrf.mxu0
  %2269 = vdwg.mxu0
  %v2270 = vld [vmem:[%s10] sm:$0x1]
  %v2271 = vadd.f32 %v2240, %v2243
  %v2272 = vadd.f32 %v2271, %v2248
  %v2273 = vadd.f32 %v2272, %v2251
  %v2274 = vadd.f32 %v2273, %v2256
  %v2275 = vadd.f32 %v2274, %v2259
  %v2276 = vadd.f32 %v2275, %v2264
  %v2277 = vadd.f32 %v2276, %v2267
  %v2278 = vrot.slane %v2277, 4
  %v2279 = vadd.f32 %v2277, %v2278
  %v2280 = vrot.slane %v2279, 2
  %v2281 = vadd.f32 %v2279, %v2280
  %v2282 = vrot.slane %v2281, 1
  %v2283 = vadd.f32 %v2281, %v2282
  %v2284 = vadd.f32 %v2270, %v2283
  %2285 = vst [vmem:[%s10] sm:$0x1] %v2284
  %v2286 = vld [vmem:[%s11] sm:$0x1]
  %v2287 = vmul.f32 %v2240, %v2240
  %v2288 = vmul.f32 %v2243, %v2243
  %v2289 = vmul.f32 %v2248, %v2248
  %v2290 = vmul.f32 %v2251, %v2251
  %v2291 = vmul.f32 %v2256, %v2256
  %v2292 = vmul.f32 %v2259, %v2259
  %v2293 = vmul.f32 %v2264, %v2264
  %v2294 = vmul.f32 %v2267, %v2267
  %v2295 = vadd.f32 %v2287, %v2288
  %v2296 = vadd.f32 %v2295, %v2289
  %v2297 = vadd.f32 %v2296, %v2290
  %v2298 = vadd.f32 %v2297, %v2291
  %v2299 = vadd.f32 %v2298, %v2292
  %v2300 = vadd.f32 %v2299, %v2293
  %v2301 = vadd.f32 %v2300, %v2294
  %v2302 = vrot.slane %v2301, 4
  %v2303 = vadd.f32 %v2301, %v2302
  %v2304 = vrot.slane %v2303, 2
  %v2305 = vadd.f32 %v2303, %v2304
  %v2306 = vrot.slane %v2305, 1
  %v2307 = vadd.f32 %v2305, %v2306
  %v2308 = vadd.f32 %v2286, %v2307
  %2309 = vst [vmem:[%s11] sm:$0x1] %v2308
  %v2310 = vld [vmem:[#allocation6] sm:$0xf]
  %v2311 = vld [vmem:[#allocation6 + $0x8] sm:$0xf]
  %v2312 = vld [vmem:[#allocation6 + $0x10] sm:$0xf]
  %v2313 = vld [vmem:[#allocation6 + $0x18] sm:$0xf]
  %v2314 = vld [vmem:[#allocation6 + $0x20] sm:$0xf]
  %v2315 = vld [vmem:[#allocation6 + $0x28] sm:$0xf]
  %v2316 = vld [vmem:[#allocation6 + $0x30] sm:$0xf]
  %v2317 = vld [vmem:[#allocation6 + $0x38] sm:$0xf]
  %v2318 = vld [vmem:[%s3] sm:$0xf]
  %v2319 = vld [vmem:[%s3 + $0x4] sm:$0xf]
  %v2328 = vunpack.c.l.b16 %v2310
  %v2329 = vunpack.c.l.b16 %v2311
  %v2330 = vunpack.c.l.b16 %v2312
  %v2331 = vunpack.c.l.b16 %v2313
  %v2332 = vunpack.c.l.b16 %v2314
  %v2333 = vunpack.c.l.b16 %v2315
  %v2334 = vunpack.c.l.b16 %v2316
  %v2335 = vunpack.c.l.b16 %v2317
  %v2336 = vpack.c.b16 %v2329, %v2328
  %v2337 = vpack.c.b16 %v2331, %v2330
  %v2338 = vpack.c.b16 %v2333, %v2332
  %v2339 = vpack.c.b16 %v2335, %v2334
  %2340 = vrot.lane.b32.xlu0 %v2336, 64
  %v2341 = vpop.permute.xlu0 %2340
  %2342 = vrot.lane.b32.xlu0 %v2337, 64
  %v2343 = vpop.permute.xlu0 %2342
  %2344 = vrot.lane.b32.xlu0 %v2338, 64
  %v2345 = vpop.permute.xlu0 %2344
  %2346 = vrot.lane.b32.xlu0 %v2339, 64
  %v2347 = vpop.permute.xlu0 %2346
  %v2350 = vunpack.c.l.b16 %v2318
  %v2351 = vunpack.c.l.b16 %v2319
  %v2352 = vpack.c.b16 %v2351, %v2350
  %v2355 = vsel %vm36, %v2341, 0
  %v2358 = vsel %vm36, %v2343, 0
  %v2361 = vsel %vm36, %v2345, 0
  %v2364 = vsel %vm36, %v2347, 0
  %2366 = vmatprep.subr.bf16.mxu0 0
  %2367 = vmatpush1.bf16.msra.mxu0 0
  %2368 = vmatprep.subr.bf16.mxu0 0
  %2369 = vmatpush1.bf16.msra.mxu0 0
  %2370 = vmatprep.subr.bf16.mxu0 0
  %2371 = vmatpush1.bf16.msra.mxu0 0
  %2372 = vmatprep.subr.bf16.mxu0 0
  %2373 = vmatpush1.bf16.msra.mxu0 0
  %2374 = vmatprep.subr.bf16.mxu0 0
  %2375 = vmatpush1.bf16.msra.mxu0 0
  %2376 = vmatprep.subr.bf16.mxu0 0
  %2377 = vmatpush1.bf16.msra.mxu0 0
  %2378 = vmatprep.subr.bf16.mxu0 0
  %2379 = vmatpush1.bf16.msra.mxu0 0
  %2380 = vmatprep.subr.bf16.mxu0 0
  %2381 = vmatpush1.bf16.msra.mxu0 %v2352
  %2382 = vmatprep.subr.bf16.mxu0 0
  %2383 = vmatpush2.bf16.msra.mxu0 0
  %2384 = vmatprep.subr.bf16.mxu0 0
  %2385 = vmatpush2.bf16.msra.mxu0 0
  %2386 = vmatprep.subr.bf16.mxu0 0
  %2387 = vmatpush2.bf16.msra.mxu0 0
  %2388 = vmatprep.subr.bf16.mxu0 0
  %2389 = vmatpush2.bf16.msra.mxu0 0
  %2390 = vmatprep.subr.bf16.mxu0 0
  %2391 = vmatpush2.bf16.msra.mxu0 0
  %2392 = vmatprep.subr.bf16.mxu0 0
  %2393 = vmatpush2.bf16.msra.mxu0 0
  %2394 = vmatprep.subr.bf16.mxu0 0
  %2395 = vmatpush2.bf16.msra.mxu0 0
  %2396 = vmatprep.subr.bf16.mxu0 0
  %2397 = vmatpush2.bf16.msra.mxu0 0
  %2398 = vmatprep.mubr.bf16.mxu0 0
  %2399 = vmatmul.mubr.bf16.gmra.mxu0 %v2355
  %v2400 = vpop.f32.mrf.mxu0
  %v2401 = vadd.f32 0.0, %v2400
  %v2402 = vpop.f32.mrf.mxu0
  %v2403 = vpop.f32.mrf.mxu0
  %v2404 = vadd.f32 0.0, %v2403
  %v2405 = vpop.f32.mrf.mxu0
  %2406 = vmatprep.mubr.bf16.mxu0 0
  %2407 = vmatmul.mubr.bf16.gmra.mxu0 %v2358
  %v2408 = vpop.f32.mrf.mxu0
  %v2409 = vadd.f32 0.0, %v2408
  %v2410 = vpop.f32.mrf.mxu0
  %v2411 = vpop.f32.mrf.mxu0
  %v2412 = vadd.f32 0.0, %v2411
  %v2413 = vpop.f32.mrf.mxu0
  %2414 = vmatprep.mubr.bf16.mxu0 0
  %2415 = vmatmul.mubr.bf16.gmra.mxu0 %v2361
  %v2416 = vpop.f32.mrf.mxu0
  %v2417 = vadd.f32 0.0, %v2416
  %v2418 = vpop.f32.mrf.mxu0
  %v2419 = vpop.f32.mrf.mxu0
  %v2420 = vadd.f32 0.0, %v2419
  %v2421 = vpop.f32.mrf.mxu0
  %2422 = vmatprep.mubr.bf16.mxu0 0
  %2423 = vmatmul.mubr.bf16.gmra.mxu0 %v2364
  %v2424 = vpop.f32.mrf.mxu0
  %v2425 = vadd.f32 0.0, %v2424
  %v2426 = vpop.f32.mrf.mxu0
  %v2427 = vpop.f32.mrf.mxu0
  %v2428 = vadd.f32 0.0, %v2427
  %v2429 = vpop.f32.mrf.mxu0
  %2430 = vdwg.mxu0
  %s2431 = scalar_lea.vmem %s9, 64
  %2432 = vst [vmem:[%s2431] sm:$0xff] %v2401
  %2433 = vst [vmem:[%s2431 + $0x8] sm:$0xff] %v2404
  %2434 = vst [vmem:[%s2431 + $0x10] sm:$0xff] %v2409
  %2435 = vst [vmem:[%s2431 + $0x18] sm:$0xff] %v2412
  %2436 = vst [vmem:[%s2431 + $0x20] sm:$0xff] %v2417
  %2437 = vst [vmem:[%s2431 + $0x28] sm:$0xff] %v2420
  %2438 = vst [vmem:[%s2431 + $0x30] sm:$0xff] %v2425
  %2439 = vst [vmem:[%s2431 + $0x38] sm:$0xff] %v2428
  %v2440 = vpack.c.bf16 %v2243, %v2240
  %v2441 = vpack.c.bf16 %v2251, %v2248
  %v2442 = vpack.c.bf16 %v2259, %v2256
  %v2443 = vpack.c.bf16 %v2267, %v2264
  %v2448 = vunpack.c.l.b16 %v2440
  %v2449 = vunpack.c.h.b16 %v2440
  %v2450 = vunpack.c.l.b16 %v2441
  %v2451 = vunpack.c.h.b16 %v2441
  %v2452 = vunpack.c.l.b16 %v2442
  %v2453 = vunpack.c.h.b16 %v2442
  %v2454 = vunpack.c.l.b16 %v2443
  %v2455 = vunpack.c.h.b16 %v2443
  %v2456 = vpack.c.b16 %v2448, %v2448
  %v2457 = vpack.c.b16 %v2449, %v2449
  %v2458 = vpack.c.b16 %v2450, %v2450
  %v2459 = vpack.c.b16 %v2451, %v2451
  %v2460 = vpack.c.b16 %v2452, %v2452
  %v2461 = vpack.c.b16 %v2453, %v2453
  %v2462 = vpack.c.b16 %v2454, %v2454
  %v2463 = vpack.c.b16 %v2455, %v2455
  %s2472 = scalar_lea.vmem %s8, 32
  %2473 = vst [vmem:[%s2472] sm:$0xf] %v2456
  %2474 = vst [vmem:[%s2472 + $0x4] sm:$0xf] %v2457
  %2475 = vst [vmem:[%s2472 + $0x8] sm:$0xf] %v2458
  %2476 = vst [vmem:[%s2472 + $0xc] sm:$0xf] %v2459
  %2477 = vst [vmem:[%s2472 + $0x10] sm:$0xf] %v2460
  %2478 = vst [vmem:[%s2472 + $0x14] sm:$0xf] %v2461
  %2479 = vst [vmem:[%s2472 + $0x18] sm:$0xf] %v2462
  %2480 = vst [vmem:[%s2472 + $0x1c] sm:$0xf] %v2463
  // Predicated region
  $region34: #{basic_block_forward.4} parent=0 // pred_check
    _
  $region35: #{basic_block_forward.4} parent=0 // pred_check_branch
    %2482 = sbr.rel (0) target = $region37
  $region36: #{basic_block_forward.4} parent=0 // pred_region
    _
  $region37: #{basic_block_forward.4} parent=0 // pred_fallthru
    _
  // Predicated region
  $region38: #{basic_block_forward.4} parent=0 // pred_check
    _
  $region39: #{basic_block_forward.4} parent=0 // pred_check_branch
    %2484 = sbr.rel (0) target = $region41
  $region40: #{basic_block_forward.4} parent=0 // pred_region
    _
  $region41: #{basic_block_forward.4} parent=0 // pred_fallthru
    _
  // Predicated region
  $region42: #{basic_block_forward.4} parent=0 // pred_check
    _
  $region43: #{basic_block_forward.4} parent=0 // pred_check_branch
    %2486 = sbr.rel (0) target = $region45
  $region44: #{basic_block_forward.4} parent=0 // pred_region
    _
  $region45: #{basic_block_forward.4} parent=0 // pred_fallthru
    _
  // Predicated region
  $region46: #{basic_block_forward.4} parent=0 // pred_check
    _
  $region47: #{basic_block_forward.4} parent=0 // pred_check_branch
    %2488 = sbr.rel (0) target = $region49
  $region48: #{basic_block_forward.4} parent=0 // pred_region
    _
  $region49: #{basic_block_forward.4} parent=0 // pred_fallthru
    _
  // Predicated region
  $region50: #{basic_block_forward.4} parent=0 // pred_check
    _
  $region51: #{basic_block_forward.4} parent=0 // pred_check_branch
    %2490 = sbr.rel (0) target = $region53
  $region52: #{basic_block_forward.4} parent=0 // pred_region
    _
  $region53: #{basic_block_forward.4} parent=0 // pred_fallthru
    _
  // Predicated region
  $region54: #{basic_block_forward.4} parent=0 // pred_check
    _
  $region55: #{basic_block_forward.4} parent=0 // pred_check_branch
    %2492 = sbr.rel (0) target = $region57
  $region56: #{basic_block_forward.4} parent=0 // pred_region
    _
  $region57: #{basic_block_forward.4} parent=0 // pred_fallthru
    _
  // Predicated region
  $region58: #{basic_block_forward.4} parent=0 // pred_check
    _
  $region59: #{basic_block_forward.4} parent=0 // pred_check_branch
    %2494 = sbr.rel (0) target = $region61
  $region60: #{basic_block_forward.4} parent=0 // pred_region
    _
  $region61: #{basic_block_forward.4} parent=0 // pred_fallthru
    _
  // Predicated region
  $region62: #{basic_block_forward.4} parent=0 // pred_check
    _
  $region63: #{basic_block_forward.4} parent=0 // pred_check_branch
    %2496 = sbr.rel (0) target = $region65
  $region64: #{basic_block_forward.4} parent=0 // pred_region
    _
  $region65: #{basic_block_forward.4} parent=0 // pred_fallthru
    _

// kernel: basic_block_forward.5
$region0: #{basic_block_forward.5}
  #allocation0 [shape = 'u32[]', space=smem, size = 0x4, offset = 0x4, fixed_abs, tag = 'smem constant byte address 0x4 - core index']
  #allocation1 [shape = 'u32[144,128]{1,0:T(1,128)}', space=vmem, size = 0x12000, scoped, tag = 'internal scratch']
  #allocation2 [shape = 'f32[2,10,10,128]{3,2,1,0:T(8,128)}', space=vmem, size = 0x28000, scoped, tag = 'scratch operand']
  #allocation3 [shape = 'bf16[64,1152]{1,0:T(8,128)(2,1)}', space=vmem, size = 0x24000, scoped, tag = 'scratch operand']
  %s0 = inlined_call_operand.vmem [shape: f32[1,128], index: 0, kind: input, shape index: {}]
  %s1 = inlined_call_operand.vmem [shape: f32[1,128], index: 1, kind: input, shape index: {}]
  %s2 = inlined_call_operand.vmem [shape: bf16[1152,128], index: 2, kind: input, shape index: {}]
  %s3 = inlined_call_operand.vmem [shape: f32[2,64,128], index: 3, kind: input, shape index: {}, may-alias: {3,5}]
  %s4 = inlined_call_operand.vmem [shape: bf16[2,8,8,128], index: 4, kind: input, shape index: {}]
  %s5 = inlined_call_operand.vmem [shape: f32[2,64,128], index: 5, kind: output, shape index: {}, may-alias: {3,5}]
  %s6 = sld [smem:[#allocation0]]
  $region30: #{basic_block_forward.5} parent=0
    _
  %s8 = ssub.s32 1, %s6
  %s9 = scalar_select 0, %s8, %s6
  // Predicated region
  $region2: #{basic_block_forward.5} parent=0 // pred_check
    _
  $region3: #{basic_block_forward.5} parent=0 // pred_check_branch
    %11 = sbr.rel (0) target = $region5
  $region4: #{basic_block_forward.5} parent=0 // pred_region
    _
  $region5: #{basic_block_forward.5} parent=0 // pred_fallthru
    _
  // Predicated region
  $region6: #{basic_block_forward.5} parent=0 // pred_check
    _
  $region7: #{basic_block_forward.5} parent=0 // pred_check_branch
    %13 = sbr.rel (0) target = $region9
  $region8: #{basic_block_forward.5} parent=0 // pred_region
    _
  $region9: #{basic_block_forward.5} parent=0 // pred_fallthru
    _
  // Predicated region
  $region10: #{basic_block_forward.5} parent=0 // pred_check
    _
  $region11: #{basic_block_forward.5} parent=0 // pred_check_branch
    %15 = sbr.rel (0) target = $region13
  $region12: #{basic_block_forward.5} parent=0 // pred_region
    _
  $region13: #{basic_block_forward.5} parent=0 // pred_fallthru
    _
  // Predicated region
  $region14: #{basic_block_forward.5} parent=0 // pred_check
    _
  $region15: #{basic_block_forward.5} parent=0 // pred_check_branch
    %17 = sbr.rel (0) target = $region17
  $region16: #{basic_block_forward.5} parent=0 // pred_region
    _
  $region17: #{basic_block_forward.5} parent=0 // pred_fallthru
    _
  // Predicated region
  $region18: #{basic_block_forward.5} parent=0 // pred_check
    _
  $region19: #{basic_block_forward.5} parent=0 // pred_check_branch
    %19 = sbr.rel (0) target = $region21
  $region20: #{basic_block_forward.5} parent=0 // pred_region
    _
  $region21: #{basic_block_forward.5} parent=0 // pred_fallthru
    _
  %v21 = vld [vmem:[%s0] sm:$0x1]
  %v22 = vld [vmem:[%s1] sm:$0x1]
  %23 = vst [vmem:[#allocation2] sm:$0xff] 0.0
  %24 = vst [vmem:[#allocation2 + $0x8] sm:$0x3] 0.0
  %25 = vst [vmem:[#allocation2 + $0xa0] sm:$0xff] 0.0
  %26 = vst [vmem:[#allocation2 + $0xa8] sm:$0x3] 0.0
  %s27 = scalar_lea.vmem [#allocation2], 144
  %28 = vst [vmem:[%s27] sm:$0xff] 0.0
  %29 = vst [vmem:[%s27 + $0x8] sm:$0x3] 0.0
  %30 = vst [vmem:[%s27 + $0xa0] sm:$0xff] 0.0
  %31 = vst [vmem:[%s27 + $0xa8] sm:$0x3] 0.0
  %32 = vst [vmem:[#allocation2] sm:$0x1] 0.0
  %33 = vst [vmem:[#allocation2 + $0x10] sm:$0x1] 0.0
  %34 = vst [vmem:[#allocation2 + $0x20] sm:$0x1] 0.0
  %35 = vst [vmem:[#allocation2 + $0x30] sm:$0x1] 0.0
  %36 = vst [vmem:[#allocation2 + $0x40] sm:$0x1] 0.0
  %37 = vst [vmem:[#allocation2 + $0x50] sm:$0x1] 0.0
  %38 = vst [vmem:[#allocation2 + $0x60] sm:$0x1] 0.0
  %39 = vst [vmem:[#allocation2 + $0x70] sm:$0x1] 0.0
  %40 = vst [vmem:[#allocation2 + $0x80] sm:$0x1] 0.0
  %41 = vst [vmem:[#allocation2 + $0x90] sm:$0x1] 0.0
  %42 = vst [vmem:[#allocation2 + $0xa0] sm:$0x1] 0.0
  %43 = vst [vmem:[#allocation2 + $0xb0] sm:$0x1] 0.0
  %44 = vst [vmem:[#allocation2 + $0xc0] sm:$0x1] 0.0
  %45 = vst [vmem:[#allocation2 + $0xd0] sm:$0x1] 0.0
  %46 = vst [vmem:[#allocation2 + $0xe0] sm:$0x1] 0.0
  %47 = vst [vmem:[#allocation2 + $0xf0] sm:$0x1] 0.0
  %48 = vst [vmem:[#allocation2 + $0x100] sm:$0x1] 0.0
  %49 = vst [vmem:[#allocation2 + $0x110] sm:$0x1] 0.0
  %50 = vst [vmem:[#allocation2 + $0x120] sm:$0x1] 0.0
  %51 = vst [vmem:[#allocation2 + $0x130] sm:$0x1] 0.0
  %52 = vst [vmem:[#allocation2 + $0x9] sm:$0x1] 0.0
  %53 = vst [vmem:[#allocation2 + $0x19] sm:$0x1] 0.0
  %54 = vst [vmem:[#allocation2 + $0x29] sm:$0x1] 0.0
  %55 = vst [vmem:[#allocation2 + $0x39] sm:$0x1] 0.0
  %56 = vst [vmem:[#allocation2 + $0x49] sm:$0x1] 0.0
  %57 = vst [vmem:[#allocation2 + $0x59] sm:$0x1] 0.0
  %58 = vst [vmem:[#allocation2 + $0x69] sm:$0x1] 0.0
  %59 = vst [vmem:[#allocation2 + $0x79] sm:$0x1] 0.0
  %60 = vst [vmem:[#allocation2 + $0x89] sm:$0x1] 0.0
  %61 = vst [vmem:[#allocation2 + $0x99] sm:$0x1] 0.0
  %62 = vst [vmem:[#allocation2 + $0xa9] sm:$0x1] 0.0
  %63 = vst [vmem:[#allocation2 + $0xb9] sm:$0x1] 0.0
  %64 = vst [vmem:[#allocation2 + $0xc9] sm:$0x1] 0.0
  %65 = vst [vmem:[#allocation2 + $0xd9] sm:$0x1] 0.0
  %66 = vst [vmem:[#allocation2 + $0xe9] sm:$0x1] 0.0
  %67 = vst [vmem:[#allocation2 + $0xf9] sm:$0x1] 0.0
  %68 = vst [vmem:[#allocation2 + $0x109] sm:$0x1] 0.0
  %69 = vst [vmem:[#allocation2 + $0x119] sm:$0x1] 0.0
  %70 = vst [vmem:[#allocation2 + $0x129] sm:$0x1] 0.0
  %71 = vst [vmem:[#allocation2 + $0x139] sm:$0x1] 0.0
  %v72 = vld [vmem:[%s4] sm:$0xf]
  %v73 = vld [vmem:[%s4 + $0x4] sm:$0xf]
  %v74 = vld [vmem:[%s4 + $0x8] sm:$0xf]
  %v75 = vld [vmem:[%s4 + $0xc] sm:$0xf]
  %v76 = vld [vmem:[%s4 + $0x10] sm:$0xf]
  %v77 = vld [vmem:[%s4 + $0x14] sm:$0xf]
  %v78 = vld [vmem:[%s4 + $0x18] sm:$0xf]
  %v79 = vld [vmem:[%s4 + $0x1c] sm:$0xf]
  %v80 = vld [vmem:[%s4 + $0x20] sm:$0xf]
  %v81 = vld [vmem:[%s4 + $0x24] sm:$0xf]
  %v82 = vld [vmem:[%s4 + $0x28] sm:$0xf]
  %v83 = vld [vmem:[%s4 + $0x2c] sm:$0xf]
  %v84 = vld [vmem:[%s4 + $0x30] sm:$0xf]
  %v85 = vld [vmem:[%s4 + $0x34] sm:$0xf]
  %v86 = vld [vmem:[%s4 + $0x38] sm:$0xf]
  %v87 = vld [vmem:[%s4 + $0x3c] sm:$0xf]
  %v88 = vunpack.c.l.bf16 %v72
  %v89 = vunpack.c.l.bf16 %v73
  %v90 = vunpack.c.l.bf16 %v74
  %v91 = vunpack.c.l.bf16 %v75
  %v92 = vunpack.c.l.bf16 %v76
  %v93 = vunpack.c.l.bf16 %v77
  %v94 = vunpack.c.l.bf16 %v78
  %v95 = vunpack.c.l.bf16 %v79
  %v96 = vunpack.c.l.bf16 %v80
  %v97 = vunpack.c.l.bf16 %v81
  %v98 = vunpack.c.l.bf16 %v82
  %v99 = vunpack.c.l.bf16 %v83
  %v100 = vunpack.c.l.bf16 %v84
  %v101 = vunpack.c.l.bf16 %v85
  %v102 = vunpack.c.l.bf16 %v86
  %v103 = vunpack.c.l.bf16 %v87
  %v105 = vlaneseq
  %v106 = vshrl.u32 %v105, 7
  %v107 = vsub.s32 0, %v106
  %v108 = vrot.slane %v21, %v107
  %v110 = vmul.f32 %v88, %v108
  %v111 = vmul.f32 %v89, %v108
  %v112 = vmul.f32 %v90, %v108
  %v113 = vmul.f32 %v91, %v108
  %v114 = vmul.f32 %v92, %v108
  %v115 = vmul.f32 %v93, %v108
  %v116 = vmul.f32 %v94, %v108
  %v117 = vmul.f32 %v95, %v108
  %v118 = vmul.f32 %v96, %v108
  %v119 = vmul.f32 %v97, %v108
  %v120 = vmul.f32 %v98, %v108
  %v121 = vmul.f32 %v99, %v108
  %v122 = vmul.f32 %v100, %v108
  %v123 = vmul.f32 %v101, %v108
  %v124 = vmul.f32 %v102, %v108
  %v125 = vmul.f32 %v103, %v108
  %v127 = vlaneseq
  %v128 = vshrl.u32 %v127, 7
  %v129 = vsub.s32 0, %v128
  %v130 = vrot.slane %v22, %v129
  %v132 = vadd.f32 %v110, %v130
  %v133 = vadd.f32 %v111, %v130
  %v134 = vadd.f32 %v112, %v130
  %v135 = vadd.f32 %v113, %v130
  %v136 = vadd.f32 %v114, %v130
  %v137 = vadd.f32 %v115, %v130
  %v138 = vadd.f32 %v116, %v130
  %v139 = vadd.f32 %v117, %v130
  %v140 = vadd.f32 %v118, %v130
  %v141 = vadd.f32 %v119, %v130
  %v142 = vadd.f32 %v120, %v130
  %v143 = vadd.f32 %v121, %v130
  %v144 = vadd.f32 %v122, %v130
  %v145 = vadd.f32 %v123, %v130
  %v146 = vadd.f32 %v124, %v130
  %v147 = vadd.f32 %v125, %v130
  %v148 = vmax.f32 %v132, 0.0
  %v149 = vmax.f32 %v133, 0.0
  %v150 = vmax.f32 %v134, 0.0
  %v151 = vmax.f32 %v135, 0.0
  %v152 = vmax.f32 %v136, 0.0
  %v153 = vmax.f32 %v137, 0.0
  %v154 = vmax.f32 %v138, 0.0
  %v155 = vmax.f32 %v139, 0.0
  %v156 = vmax.f32 %v140, 0.0
  %v157 = vmax.f32 %v141, 0.0
  %v158 = vmax.f32 %v142, 0.0
  %v159 = vmax.f32 %v143, 0.0
  %v160 = vmax.f32 %v144, 0.0
  %v161 = vmax.f32 %v145, 0.0
  %v162 = vmax.f32 %v146, 0.0
  %v163 = vmax.f32 %v147, 0.0
  %s164 = scalar_lea.vmem [#allocation2], 16
  %165 = vst [vmem:[%s164 + $0x1] sm:$0xff] %v148
  %166 = vst [vmem:[%s164 + $0x11] sm:$0xff] %v149
  %167 = vst [vmem:[%s164 + $0x21] sm:$0xff] %v150
  %168 = vst [vmem:[%s164 + $0x31] sm:$0xff] %v151
  %169 = vst [vmem:[%s164 + $0x41] sm:$0xff] %v152
  %170 = vst [vmem:[%s164 + $0x51] sm:$0xff] %v153
  %171 = vst [vmem:[%s164 + $0x61] sm:$0xff] %v154
  %172 = vst [vmem:[%s164 + $0x71] sm:$0xff] %v155
  %173 = vst [vmem:[%s164 + $0xa1] sm:$0xff] %v156
  %174 = vst [vmem:[%s164 + $0xb1] sm:$0xff] %v157
  %175 = vst [vmem:[%s164 + $0xc1] sm:$0xff] %v158
  %176 = vst [vmem:[%s164 + $0xd1] sm:$0xff] %v159
  %177 = vst [vmem:[%s164 + $0xe1] sm:$0xff] %v160
  %178 = vst [vmem:[%s164 + $0xf1] sm:$0xff] %v161
  %179 = vst [vmem:[%s164 + $0x101] sm:$0xff] %v162
  %180 = vst [vmem:[%s164 + $0x111] sm:$0xff] %v163
  %v181 = vld [vmem:[#allocation2] sm:$0xff]
  %v182 = vld [vmem:[#allocation2 + $0x10] sm:$0xff]
  %v183 = vld [vmem:[#allocation2 + $0x20] sm:$0xff]
  %v184 = vld [vmem:[#allocation2 + $0x30] sm:$0xff]
  %v185 = vld [vmem:[#allocation2 + $0x40] sm:$0xff]
  %v186 = vld [vmem:[#allocation2 + $0x50] sm:$0xff]
  %v187 = vld [vmem:[#allocation2 + $0x60] sm:$0xff]
  %v188 = vld [vmem:[#allocation2 + $0x70] sm:$0xff]
  %v189 = vpack.c.bf16 %v182, %v181
  %v190 = vpack.c.bf16 %v184, %v183
  %v191 = vpack.c.bf16 %v186, %v185
  %v192 = vpack.c.bf16 %v188, %v187
  %v197 = vunpack.c.l.b16 %v189
  %v198 = vunpack.c.h.b16 %v189
  %v199 = vunpack.c.l.b16 %v190
  %v200 = vunpack.c.h.b16 %v190
  %v201 = vunpack.c.l.b16 %v191
  %v202 = vunpack.c.h.b16 %v191
  %v203 = vunpack.c.l.b16 %v192
  %v204 = vunpack.c.h.b16 %v192
  %v205 = vpack.c.b16 %v197, %v197
  %v206 = vpack.c.b16 %v198, %v198
  %v207 = vpack.c.b16 %v199, %v199
  %v208 = vpack.c.b16 %v200, %v200
  %v209 = vpack.c.b16 %v201, %v201
  %v210 = vpack.c.b16 %v202, %v202
  %v211 = vpack.c.b16 %v203, %v203
  %v212 = vpack.c.b16 %v204, %v204
  %221 = vst [vmem:[#allocation3] sm:$0xf] %v205
  %222 = vst [vmem:[#allocation3 + $0x24] sm:$0xf] %v206
  %223 = vst [vmem:[#allocation3 + $0x48] sm:$0xf] %v207
  %224 = vst [vmem:[#allocation3 + $0x6c] sm:$0xf] %v208
  %225 = vst [vmem:[#allocation3 + $0x90] sm:$0xf] %v209
  %226 = vst [vmem:[#allocation3 + $0xb4] sm:$0xf] %v210
  %227 = vst [vmem:[#allocation3 + $0xd8] sm:$0xf] %v211
  %228 = vst [vmem:[#allocation3 + $0xfc] sm:$0xf] %v212
  %v229 = vld [vmem:[#allocation2 + $0x1] sm:$0xff]
  %v230 = vld [vmem:[#allocation2 + $0x11] sm:$0xff]
  %v231 = vld [vmem:[#allocation2 + $0x21] sm:$0xff]
  %v232 = vld [vmem:[#allocation2 + $0x31] sm:$0xff]
  %v233 = vld [vmem:[#allocation2 + $0x41] sm:$0xff]
  %v234 = vld [vmem:[#allocation2 + $0x51] sm:$0xff]
  %v235 = vld [vmem:[#allocation2 + $0x61] sm:$0xff]
  %v236 = vld [vmem:[#allocation2 + $0x71] sm:$0xff]
  %v237 = vpack.c.bf16 %v230, %v229
  %v238 = vpack.c.bf16 %v232, %v231
  %v239 = vpack.c.bf16 %v234, %v233
  %v240 = vpack.c.bf16 %v236, %v235
  %v245 = vunpack.c.l.b16 %v237
  %v246 = vunpack.c.h.b16 %v237
  %v247 = vunpack.c.l.b16 %v238
  %v248 = vunpack.c.h.b16 %v238
  %v249 = vunpack.c.l.b16 %v239
  %v250 = vunpack.c.h.b16 %v239
  %v251 = vunpack.c.l.b16 %v240
  %v252 = vunpack.c.h.b16 %v240
  %v253 = vpack.c.b16 %v245, %v245
  %v254 = vpack.c.b16 %v246, %v246
  %v255 = vpack.c.b16 %v247, %v247
  %v256 = vpack.c.b16 %v248, %v248
  %v257 = vpack.c.b16 %v249, %v249
  %v258 = vpack.c.b16 %v250, %v250
  %v259 = vpack.c.b16 %v251, %v251
  %v260 = vpack.c.b16 %v252, %v252
  %269 = vst [vmem:[#allocation3 + $0x4] sm:$0xf] %v253
  %270 = vst [vmem:[#allocation3 + $0x28] sm:$0xf] %v254
  %271 = vst [vmem:[#allocation3 + $0x4c] sm:$0xf] %v255
  %272 = vst [vmem:[#allocation3 + $0x70] sm:$0xf] %v256
  %273 = vst [vmem:[#allocation3 + $0x94] sm:$0xf] %v257
  %274 = vst [vmem:[#allocation3 + $0xb8] sm:$0xf] %v258
  %275 = vst [vmem:[#allocation3 + $0xdc] sm:$0xf] %v259
  %276 = vst [vmem:[#allocation3 + $0x100] sm:$0xf] %v260
  %v277 = vld [vmem:[#allocation2 + $0x2] sm:$0xff]
  %v278 = vld [vmem:[#allocation2 + $0x12] sm:$0xff]
  %v279 = vld [vmem:[#allocation2 + $0x22] sm:$0xff]
  %v280 = vld [vmem:[#allocation2 + $0x32] sm:$0xff]
  %v281 = vld [vmem:[#allocation2 + $0x42] sm:$0xff]
  %v282 = vld [vmem:[#allocation2 + $0x52] sm:$0xff]
  %v283 = vld [vmem:[#allocation2 + $0x62] sm:$0xff]
  %v284 = vld [vmem:[#allocation2 + $0x72] sm:$0xff]
  %v285 = vpack.c.bf16 %v278, %v277
  %v286 = vpack.c.bf16 %v280, %v279
  %v287 = vpack.c.bf16 %v282, %v281
  %v288 = vpack.c.bf16 %v284, %v283
  %v293 = vunpack.c.l.b16 %v285
  %v294 = vunpack.c.h.b16 %v285
  %v295 = vunpack.c.l.b16 %v286
  %v296 = vunpack.c.h.b16 %v286
  %v297 = vunpack.c.l.b16 %v287
  %v298 = vunpack.c.h.b16 %v287
  %v299 = vunpack.c.l.b16 %v288
  %v300 = vunpack.c.h.b16 %v288
  %v301 = vpack.c.b16 %v293, %v293
  %v302 = vpack.c.b16 %v294, %v294
  %v303 = vpack.c.b16 %v295, %v295
  %v304 = vpack.c.b16 %v296, %v296
  %v305 = vpack.c.b16 %v297, %v297
  %v306 = vpack.c.b16 %v298, %v298
  %v307 = vpack.c.b16 %v299, %v299
  %v308 = vpack.c.b16 %v300, %v300
  %317 = vst [vmem:[#allocation3 + $0x8] sm:$0xf] %v301
  %318 = vst [vmem:[#allocation3 + $0x2c] sm:$0xf] %v302
  %319 = vst [vmem:[#allocation3 + $0x50] sm:$0xf] %v303
  %320 = vst [vmem:[#allocation3 + $0x74] sm:$0xf] %v304
  %321 = vst [vmem:[#allocation3 + $0x98] sm:$0xf] %v305
  %322 = vst [vmem:[#allocation3 + $0xbc] sm:$0xf] %v306
  %323 = vst [vmem:[#allocation3 + $0xe0] sm:$0xf] %v307
  %324 = vst [vmem:[#allocation3 + $0x104] sm:$0xf] %v308
  %v325 = vld [vmem:[%s164] sm:$0xff]
  %v326 = vld [vmem:[%s164 + $0x10] sm:$0xff]
  %v327 = vld [vmem:[%s164 + $0x20] sm:$0xff]
  %v328 = vld [vmem:[%s164 + $0x30] sm:$0xff]
  %v329 = vld [vmem:[%s164 + $0x40] sm:$0xff]
  %v330 = vld [vmem:[%s164 + $0x50] sm:$0xff]
  %v331 = vld [vmem:[%s164 + $0x60] sm:$0xff]
  %v332 = vld [vmem:[%s164 + $0x70] sm:$0xff]
  %v333 = vpack.c.bf16 %v326, %v325
  %v334 = vpack.c.bf16 %v328, %v327
  %v335 = vpack.c.bf16 %v330, %v329
  %v336 = vpack.c.bf16 %v332, %v331
  %v341 = vunpack.c.l.b16 %v333
  %v342 = vunpack.c.h.b16 %v333
  %v343 = vunpack.c.l.b16 %v334
  %v344 = vunpack.c.h.b16 %v334
  %v345 = vunpack.c.l.b16 %v335
  %v346 = vunpack.c.h.b16 %v335
  %v347 = vunpack.c.l.b16 %v336
  %v348 = vunpack.c.h.b16 %v336
  %v349 = vpack.c.b16 %v341, %v341
  %v350 = vpack.c.b16 %v342, %v342
  %v351 = vpack.c.b16 %v343, %v343
  %v352 = vpack.c.b16 %v344, %v344
  %v353 = vpack.c.b16 %v345, %v345
  %v354 = vpack.c.b16 %v346, %v346
  %v355 = vpack.c.b16 %v347, %v347
  %v356 = vpack.c.b16 %v348, %v348
  %365 = vst [vmem:[#allocation3 + $0xc] sm:$0xf] %v349
  %366 = vst [vmem:[#allocation3 + $0x30] sm:$0xf] %v350
  %367 = vst [vmem:[#allocation3 + $0x54] sm:$0xf] %v351
  %368 = vst [vmem:[#allocation3 + $0x78] sm:$0xf] %v352
  %369 = vst [vmem:[#allocation3 + $0x9c] sm:$0xf] %v353
  %370 = vst [vmem:[#allocation3 + $0xc0] sm:$0xf] %v354
  %371 = vst [vmem:[#allocation3 + $0xe4] sm:$0xf] %v355
  %372 = vst [vmem:[#allocation3 + $0x108] sm:$0xf] %v356
  %v373 = vld [vmem:[%s164 + $0x1] sm:$0xff]
  %v374 = vld [vmem:[%s164 + $0x11] sm:$0xff]
  %v375 = vld [vmem:[%s164 + $0x21] sm:$0xff]
  %v376 = vld [vmem:[%s164 + $0x31] sm:$0xff]
  %v377 = vld [vmem:[%s164 + $0x41] sm:$0xff]
  %v378 = vld [vmem:[%s164 + $0x51] sm:$0xff]
  %v379 = vld [vmem:[%s164 + $0x61] sm:$0xff]
  %v380 = vld [vmem:[%s164 + $0x71] sm:$0xff]
  %v381 = vpack.c.bf16 %v374, %v373
  %v382 = vpack.c.bf16 %v376, %v375
  %v383 = vpack.c.bf16 %v378, %v377
  %v384 = vpack.c.bf16 %v380, %v379
  %v389 = vunpack.c.l.b16 %v381
  %v390 = vunpack.c.h.b16 %v381
  %v391 = vunpack.c.l.b16 %v382
  %v392 = vunpack.c.h.b16 %v382
  %v393 = vunpack.c.l.b16 %v383
  %v394 = vunpack.c.h.b16 %v383
  %v395 = vunpack.c.l.b16 %v384
  %v396 = vunpack.c.h.b16 %v384
  %v397 = vpack.c.b16 %v389, %v389
  %v398 = vpack.c.b16 %v390, %v390
  %v399 = vpack.c.b16 %v391, %v391
  %v400 = vpack.c.b16 %v392, %v392
  %v401 = vpack.c.b16 %v393, %v393
  %v402 = vpack.c.b16 %v394, %v394
  %v403 = vpack.c.b16 %v395, %v395
  %v404 = vpack.c.b16 %v396, %v396
  %413 = vst [vmem:[#allocation3 + $0x10] sm:$0xf] %v397
  %414 = vst [vmem:[#allocation3 + $0x34] sm:$0xf] %v398
  %415 = vst [vmem:[#allocation3 + $0x58] sm:$0xf] %v399
  %416 = vst [vmem:[#allocation3 + $0x7c] sm:$0xf] %v400
  %417 = vst [vmem:[#allocation3 + $0xa0] sm:$0xf] %v401
  %418 = vst [vmem:[#allocation3 + $0xc4] sm:$0xf] %v402
  %419 = vst [vmem:[#allocation3 + $0xe8] sm:$0xf] %v403
  %420 = vst [vmem:[#allocation3 + $0x10c] sm:$0xf] %v404
  %v421 = vld [vmem:[%s164 + $0x2] sm:$0xff]
  %v422 = vld [vmem:[%s164 + $0x12] sm:$0xff]
  %v423 = vld [vmem:[%s164 + $0x22] sm:$0xff]
  %v424 = vld [vmem:[%s164 + $0x32] sm:$0xff]
  %v425 = vld [vmem:[%s164 + $0x42] sm:$0xff]
  %v426 = vld [vmem:[%s164 + $0x52] sm:$0xff]
  %v427 = vld [vmem:[%s164 + $0x62] sm:$0xff]
  %v428 = vld [vmem:[%s164 + $0x72] sm:$0xff]
  %v429 = vpack.c.bf16 %v422, %v421
  %v430 = vpack.c.bf16 %v424, %v423
  %v431 = vpack.c.bf16 %v426, %v425
  %v432 = vpack.c.bf16 %v428, %v427
  %v437 = vunpack.c.l.b16 %v429
  %v438 = vunpack.c.h.b16 %v429
  %v439 = vunpack.c.l.b16 %v430
  %v440 = vunpack.c.h.b16 %v430
  %v441 = vunpack.c.l.b16 %v431
  %v442 = vunpack.c.h.b16 %v431
  %v443 = vunpack.c.l.b16 %v432
  %v444 = vunpack.c.h.b16 %v432
  %v445 = vpack.c.b16 %v437, %v437
  %v446 = vpack.c.b16 %v438, %v438
  %v447 = vpack.c.b16 %v439, %v439
  %v448 = vpack.c.b16 %v440, %v440
  %v449 = vpack.c.b16 %v441, %v441
  %v450 = vpack.c.b16 %v442, %v442
  %v451 = vpack.c.b16 %v443, %v443
  %v452 = vpack.c.b16 %v444, %v444
  %461 = vst [vmem:[#allocation3 + $0x14] sm:$0xf] %v445
  %462 = vst [vmem:[#allocation3 + $0x38] sm:$0xf] %v446
  %463 = vst [vmem:[#allocation3 + $0x5c] sm:$0xf] %v447
  %464 = vst [vmem:[#allocation3 + $0x80] sm:$0xf] %v448
  %465 = vst [vmem:[#allocation3 + $0xa4] sm:$0xf] %v449
  %466 = vst [vmem:[#allocation3 + $0xc8] sm:$0xf] %v450
  %467 = vst [vmem:[#allocation3 + $0xec] sm:$0xf] %v451
  %468 = vst [vmem:[#allocation3 + $0x110] sm:$0xf] %v452
  %s469 = scalar_lea.vmem [#allocation2], 32
  %v470 = vld [vmem:[%s469] sm:$0xff]
  %v471 = vld [vmem:[%s469 + $0x10] sm:$0xff]
  %v472 = vld [vmem:[%s469 + $0x20] sm:$0xff]
  %v473 = vld [vmem:[%s469 + $0x30] sm:$0xff]
  %v474 = vld [vmem:[%s469 + $0x40] sm:$0xff]
  %v475 = vld [vmem:[%s469 + $0x50] sm:$0xff]
  %v476 = vld [vmem:[%s469 + $0x60] sm:$0xff]
  %v477 = vld [vmem:[%s469 + $0x70] sm:$0xff]
  %v478 = vpack.c.bf16 %v471, %v470
  %v479 = vpack.c.bf16 %v473, %v472
  %v480 = vpack.c.bf16 %v475, %v474
  %v481 = vpack.c.bf16 %v477, %v476
  %v486 = vunpack.c.l.b16 %v478
  %v487 = vunpack.c.h.b16 %v478
  %v488 = vunpack.c.l.b16 %v479
  %v489 = vunpack.c.h.b16 %v479
  %v490 = vunpack.c.l.b16 %v480
  %v491 = vunpack.c.h.b16 %v480
  %v492 = vunpack.c.l.b16 %v481
  %v493 = vunpack.c.h.b16 %v481
  %v494 = vpack.c.b16 %v486, %v486
  %v495 = vpack.c.b16 %v487, %v487
  %v496 = vpack.c.b16 %v488, %v488
  %v497 = vpack.c.b16 %v489, %v489
  %v498 = vpack.c.b16 %v490, %v490
  %v499 = vpack.c.b16 %v491, %v491
  %v500 = vpack.c.b16 %v492, %v492
  %v501 = vpack.c.b16 %v493, %v493
  %510 = vst [vmem:[#allocation3 + $0x18] sm:$0xf] %v494
  %511 = vst [vmem:[#allocation3 + $0x3c] sm:$0xf] %v495
  %512 = vst [vmem:[#allocation3 + $0x60] sm:$0xf] %v496
  %513 = vst [vmem:[#allocation3 + $0x84] sm:$0xf] %v497
  %514 = vst [vmem:[#allocation3 + $0xa8] sm:$0xf] %v498
  %515 = vst [vmem:[#allocation3 + $0xcc] sm:$0xf] %v499
  %516 = vst [vmem:[#allocation3 + $0xf0] sm:$0xf] %v500
  %517 = vst [vmem:[#allocation3 + $0x114] sm:$0xf] %v501
  %v518 = vld [vmem:[%s469 + $0x1] sm:$0xff]
  %v519 = vld [vmem:[%s469 + $0x11] sm:$0xff]
  %v520 = vld [vmem:[%s469 + $0x21] sm:$0xff]
  %v521 = vld [vmem:[%s469 + $0x31] sm:$0xff]
  %v522 = vld [vmem:[%s469 + $0x41] sm:$0xff]
  %v523 = vld [vmem:[%s469 + $0x51] sm:$0xff]
  %v524 = vld [vmem:[%s469 + $0x61] sm:$0xff]
  %v525 = vld [vmem:[%s469 + $0x71] sm:$0xff]
  %v526 = vpack.c.bf16 %v519, %v518
  %v527 = vpack.c.bf16 %v521, %v520
  %v528 = vpack.c.bf16 %v523, %v522
  %v529 = vpack.c.bf16 %v525, %v524
  %v534 = vunpack.c.l.b16 %v526
  %v535 = vunpack.c.h.b16 %v526
  %v536 = vunpack.c.l.b16 %v527
  %v537 = vunpack.c.h.b16 %v527
  %v538 = vunpack.c.l.b16 %v528
  %v539 = vunpack.c.h.b16 %v528
  %v540 = vunpack.c.l.b16 %v529
  %v541 = vunpack.c.h.b16 %v529
  %v542 = vpack.c.b16 %v534, %v534
  %v543 = vpack.c.b16 %v535, %v535
  %v544 = vpack.c.b16 %v536, %v536
  %v545 = vpack.c.b16 %v537, %v537
  %v546 = vpack.c.b16 %v538, %v538
  %v547 = vpack.c.b16 %v539, %v539
  %v548 = vpack.c.b16 %v540, %v540
  %v549 = vpack.c.b16 %v541, %v541
  %558 = vst [vmem:[#allocation3 + $0x1c] sm:$0xf] %v542
  %559 = vst [vmem:[#allocation3 + $0x40] sm:$0xf] %v543
  %560 = vst [vmem:[#allocation3 + $0x64] sm:$0xf] %v544
  %561 = vst [vmem:[#allocation3 + $0x88] sm:$0xf] %v545
  %562 = vst [vmem:[#allocation3 + $0xac] sm:$0xf] %v546
  %563 = vst [vmem:[#allocation3 + $0xd0] sm:$0xf] %v547
  %564 = vst [vmem:[#allocation3 + $0xf4] sm:$0xf] %v548
  %565 = vst [vmem:[#allocation3 + $0x118] sm:$0xf] %v549
  %v566 = vld [vmem:[%s469 + $0x2] sm:$0xff]
  %v567 = vld [vmem:[%s469 + $0x12] sm:$0xff]
  %v568 = vld [vmem:[%s469 + $0x22] sm:$0xff]
  %v569 = vld [vmem:[%s469 + $0x32] sm:$0xff]
  %v570 = vld [vmem:[%s469 + $0x42] sm:$0xff]
  %v571 = vld [vmem:[%s469 + $0x52] sm:$0xff]
  %v572 = vld [vmem:[%s469 + $0x62] sm:$0xff]
  %v573 = vld [vmem:[%s469 + $0x72] sm:$0xff]
  %v574 = vpack.c.bf16 %v567, %v566
  %v575 = vpack.c.bf16 %v569, %v568
  %v576 = vpack.c.bf16 %v571, %v570
  %v577 = vpack.c.bf16 %v573, %v572
  %v582 = vunpack.c.l.b16 %v574
  %v583 = vunpack.c.h.b16 %v574
  %v584 = vunpack.c.l.b16 %v575
  %v585 = vunpack.c.h.b16 %v575
  %v586 = vunpack.c.l.b16 %v576
  %v587 = vunpack.c.h.b16 %v576
  %v588 = vunpack.c.l.b16 %v577
  %v589 = vunpack.c.h.b16 %v577
  %v590 = vpack.c.b16 %v582, %v582
  %v591 = vpack.c.b16 %v583, %v583
  %v592 = vpack.c.b16 %v584, %v584
  %v593 = vpack.c.b16 %v585, %v585
  %v594 = vpack.c.b16 %v586, %v586
  %v595 = vpack.c.b16 %v587, %v587
  %v596 = vpack.c.b16 %v588, %v588
  %v597 = vpack.c.b16 %v589, %v589
  %606 = vst [vmem:[#allocation3 + $0x20] sm:$0xf] %v590
  %607 = vst [vmem:[#allocation3 + $0x44] sm:$0xf] %v591
  %608 = vst [vmem:[#allocation3 + $0x68] sm:$0xf] %v592
  %609 = vst [vmem:[#allocation3 + $0x8c] sm:$0xf] %v593
  %610 = vst [vmem:[#allocation3 + $0xb0] sm:$0xf] %v594
  %611 = vst [vmem:[#allocation3 + $0xd4] sm:$0xf] %v595
  %612 = vst [vmem:[#allocation3 + $0xf8] sm:$0xf] %v596
  %613 = vst [vmem:[#allocation3 + $0x11c] sm:$0xf] %v597
  %v614 = vld [vmem:[#allocation3] sm:$0xff]
  %v615 = vld [vmem:[#allocation3 + $0x8] sm:$0xf]
  %v616 = vld [vmem:[#allocation3 + $0x24] sm:$0xff]
  %v617 = vld [vmem:[#allocation3 + $0x2c] sm:$0xf]
  %v618 = vld [vmem:[#allocation3 + $0x48] sm:$0xff]
  %v619 = vld [vmem:[#allocation3 + $0x50] sm:$0xf]
  %v620 = vld [vmem:[#allocation3 + $0x6c] sm:$0xff]
  %v621 = vld [vmem:[#allocation3 + $0x74] sm:$0xf]
  %v622 = vld [vmem:[#allocation3 + $0x90] sm:$0xff]
  %v623 = vld [vmem:[#allocation3 + $0x98] sm:$0xf]
  %v624 = vld [vmem:[#allocation3 + $0xb4] sm:$0xff]
  %v625 = vld [vmem:[#allocation3 + $0xbc] sm:$0xf]
  %v626 = vld [vmem:[#allocation3 + $0xd8] sm:$0xff]
  %v627 = vld [vmem:[#allocation3 + $0xe0] sm:$0xf]
  %v628 = vld [vmem:[#allocation3 + $0xfc] sm:$0xff]
  %v629 = vld [vmem:[#allocation3 + $0x104] sm:$0xf]
  %v630 = vld [vmem:[%s2] sm:$0xf]
  %v631 = vld [vmem:[%s2 + $0x4] sm:$0xf]
  %v632 = vld [vmem:[%s2 + $0x8] sm:$0xf]
  %v633 = vld [vmem:[%s2 + $0xc] sm:$0xf]
  %v634 = vld [vmem:[%s2 + $0x10] sm:$0xf]
  %v635 = vld [vmem:[%s2 + $0x14] sm:$0xf]
  %v636 = vld [vmem:[%s2 + $0x18] sm:$0xf]
  %v637 = vld [vmem:[%s2 + $0x1c] sm:$0xf]
  %v638 = vld [vmem:[%s2 + $0x20] sm:$0xf]
  %v639 = vld [vmem:[%s2 + $0x24] sm:$0xf]
  %v640 = vld [vmem:[%s2 + $0x28] sm:$0xf]
  %v641 = vld [vmem:[%s2 + $0x2c] sm:$0xf]
  %v642 = vld [vmem:[%s2 + $0x30] sm:$0xf]
  %v643 = vld [vmem:[%s2 + $0x34] sm:$0xf]
  %v644 = vld [vmem:[%s2 + $0x38] sm:$0xf]
  %v645 = vld [vmem:[%s2 + $0x3c] sm:$0xf]
  %v646 = vld [vmem:[%s2 + $0x40] sm:$0xf]
  %v647 = vld [vmem:[%s2 + $0x44] sm:$0xf]
  %v648 = vld [vmem:[%s2 + $0x48] sm:$0xf]
  %v649 = vld [vmem:[%s2 + $0x4c] sm:$0xf]
  %v650 = vld [vmem:[%s2 + $0x50] sm:$0xf]
  %v651 = vld [vmem:[%s2 + $0x54] sm:$0xf]
  %v652 = vld [vmem:[%s2 + $0x58] sm:$0xf]
  %v653 = vld [vmem:[%s2 + $0x5c] sm:$0xf]
  %v654 = vld [vmem:[%s2 + $0x60] sm:$0xf]
  %v655 = vld [vmem:[%s2 + $0x64] sm:$0xf]
  %v656 = vld [vmem:[%s2 + $0x68] sm:$0xf]
  %v657 = vld [vmem:[%s2 + $0x6c] sm:$0xf]
  %v658 = vld [vmem:[%s2 + $0x70] sm:$0xf]
  %v659 = vld [vmem:[%s2 + $0x74] sm:$0xf]
  %v660 = vld [vmem:[%s2 + $0x78] sm:$0xf]
  %v661 = vld [vmem:[%s2 + $0x7c] sm:$0xf]
  %v662 = vld [vmem:[%s2 + $0x80] sm:$0xf]
  %v663 = vld [vmem:[%s2 + $0x84] sm:$0xf]
  %v664 = vld [vmem:[%s2 + $0x88] sm:$0xf]
  %v665 = vld [vmem:[%s2 + $0x8c] sm:$0xf]
  %v666 = vld [vmem:[%s2 + $0x90] sm:$0xf]
  %v667 = vld [vmem:[%s2 + $0x94] sm:$0xf]
  %v668 = vld [vmem:[%s2 + $0x98] sm:$0xf]
  %v669 = vld [vmem:[%s2 + $0x9c] sm:$0xf]
  %v670 = vld [vmem:[%s2 + $0xa0] sm:$0xf]
  %v671 = vld [vmem:[%s2 + $0xa4] sm:$0xf]
  %v672 = vld [vmem:[%s2 + $0xa8] sm:$0xf]
  %v673 = vld [vmem:[%s2 + $0xac] sm:$0xf]
  %v674 = vld [vmem:[%s2 + $0xb0] sm:$0xf]
  %v675 = vld [vmem:[%s2 + $0xb4] sm:$0xf]
  %v676 = vld [vmem:[%s2 + $0xb8] sm:$0xf]
  %v677 = vld [vmem:[%s2 + $0xbc] sm:$0xf]
  %v678 = vld [vmem:[#allocation3 + $0xc] sm:$0xff]
  %v679 = vld [vmem:[#allocation3 + $0x14] sm:$0xf]
  %v680 = vld [vmem:[#allocation3 + $0x30] sm:$0xff]
  %v681 = vld [vmem:[#allocation3 + $0x38] sm:$0xf]
  %v682 = vld [vmem:[#allocation3 + $0x54] sm:$0xff]
  %v683 = vld [vmem:[#allocation3 + $0x5c] sm:$0xf]
  %v684 = vld [vmem:[#allocation3 + $0x78] sm:$0xff]
  %v685 = vld [vmem:[#allocation3 + $0x80] sm:$0xf]
  %v686 = vld [vmem:[#allocation3 + $0x9c] sm:$0xff]
  %v687 = vld [vmem:[#allocation3 + $0xa4] sm:$0xf]
  %v688 = vld [vmem:[#allocation3 + $0xc0] sm:$0xff]
  %v689 = vld [vmem:[#allocation3 + $0xc8] sm:$0xf]
  %v690 = vld [vmem:[#allocation3 + $0xe4] sm:$0xff]
  %v691 = vld [vmem:[#allocation3 + $0xec] sm:$0xf]
  %v692 = vld [vmem:[#allocation3 + $0x108] sm:$0xff]
  %v693 = vld [vmem:[#allocation3 + $0x110] sm:$0xf]
  %v694 = vld [vmem:[%s2 + $0xc0] sm:$0xf]
  %v695 = vld [vmem:[%s2 + $0xc4] sm:$0xf]
  %v696 = vld [vmem:[%s2 + $0xc8] sm:$0xf]
  %v697 = vld [vmem:[%s2 + $0xcc] sm:$0xf]
  %v698 = vld [vmem:[%s2 + $0xd0] sm:$0xf]
  %v699 = vld [vmem:[%s2 + $0xd4] sm:$0xf]
  %v700 = vld [vmem:[%s2 + $0xd8] sm:$0xf]
  %v701 = vld [vmem:[%s2 + $0xdc] sm:$0xf]
  %v702 = vld [vmem:[%s2 + $0xe0] sm:$0xf]
  %v703 = vld [vmem:[%s2 + $0xe4] sm:$0xf]
  %v704 = vld [vmem:[%s2 + $0xe8] sm:$0xf]
  %v705 = vld [vmem:[%s2 + $0xec] sm:$0xf]
  %v706 = vld [vmem:[%s2 + $0xf0] sm:$0xf]
  %v707 = vld [vmem:[%s2 + $0xf4] sm:$0xf]
  %v708 = vld [vmem:[%s2 + $0xf8] sm:$0xf]
  %v709 = vld [vmem:[%s2 + $0xfc] sm:$0xf]
  %v710 = vld [vmem:[%s2 + $0x100] sm:$0xf]
  %v711 = vld [vmem:[%s2 + $0x104] sm:$0xf]
  %v712 = vld [vmem:[%s2 + $0x108] sm:$0xf]
  %v713 = vld [vmem:[%s2 + $0x10c] sm:$0xf]
  %v714 = vld [vmem:[%s2 + $0x110] sm:$0xf]
  %v715 = vld [vmem:[%s2 + $0x114] sm:$0xf]
  %v716 = vld [vmem:[%s2 + $0x118] sm:$0xf]
  %v717 = vld [vmem:[%s2 + $0x11c] sm:$0xf]
  %v718 = vld [vmem:[%s2 + $0x120] sm:$0xf]
  %v719 = vld [vmem:[%s2 + $0x124] sm:$0xf]
  %v720 = vld [vmem:[%s2 + $0x128] sm:$0xf]
  %v721 = vld [vmem:[%s2 + $0x12c] sm:$0xf]
  %v722 = vld [vmem:[%s2 + $0x130] sm:$0xf]
  %v723 = vld [vmem:[%s2 + $0x134] sm:$0xf]
  %v724 = vld [vmem:[%s2 + $0x138] sm:$0xf]
  %v725 = vld [vmem:[%s2 + $0x13c] sm:$0xf]
  %v726 = vld [vmem:[%s2 + $0x140] sm:$0xf]
  %v727 = vld [vmem:[%s2 + $0x144] sm:$0xf]
  %v728 = vld [vmem:[%s2 + $0x148] sm:$0xf]
  %v729 = vld [vmem:[%s2 + $0x14c] sm:$0xf]
  %v730 = vld [vmem:[%s2 + $0x150] sm:$0xf]
  %v731 = vld [vmem:[%s2 + $0x154] sm:$0xf]
  %v732 = vld [vmem:[%s2 + $0x158] sm:$0xf]
  %v733 = vld [vmem:[%s2 + $0x15c] sm:$0xf]
  %v734 = vld [vmem:[%s2 + $0x160] sm:$0xf]
  %v735 = vld [vmem:[%s2 + $0x164] sm:$0xf]
  %v736 = vld [vmem:[%s2 + $0x168] sm:$0xf]
  %v737 = vld [vmem:[%s2 + $0x16c] sm:$0xf]
  %v738 = vld [vmem:[%s2 + $0x170] sm:$0xf]
  %v739 = vld [vmem:[%s2 + $0x174] sm:$0xf]
  %v740 = vld [vmem:[%s2 + $0x178] sm:$0xf]
  %v741 = vld [vmem:[%s2 + $0x17c] sm:$0xf]
  %v758 = vunpack.c.l.b16 %v678
  %v759 = vunpack.c.h.b16 %v678
  %v760 = vunpack.c.l.b16 %v679
  %v761 = vunpack.c.l.b16 %v680
  %v762 = vunpack.c.h.b16 %v680
  %v763 = vunpack.c.l.b16 %v681
  %v764 = vunpack.c.l.b16 %v682
  %v765 = vunpack.c.h.b16 %v682
  %v766 = vunpack.c.l.b16 %v683
  %v767 = vunpack.c.l.b16 %v684
  %v768 = vunpack.c.h.b16 %v684
  %v769 = vunpack.c.l.b16 %v685
  %v770 = vunpack.c.l.b16 %v686
  %v771 = vunpack.c.h.b16 %v686
  %v772 = vunpack.c.l.b16 %v687
  %v773 = vunpack.c.l.b16 %v688
  %v774 = vunpack.c.h.b16 %v688
  %v775 = vunpack.c.l.b16 %v689
  %v776 = vunpack.c.l.b16 %v690
  %v777 = vunpack.c.h.b16 %v690
  %v778 = vunpack.c.l.b16 %v691
  %v779 = vunpack.c.l.b16 %v692
  %v780 = vunpack.c.h.b16 %v692
  %v781 = vunpack.c.l.b16 %v693
  %v782 = vpack.c.b16 %v761, %v758
  %v783 = vpack.c.b16 %v762, %v759
  %v784 = vpack.c.b16 %v763, %v760
  %v785 = vpack.c.b16 %v767, %v764
  %v786 = vpack.c.b16 %v768, %v765
  %v787 = vpack.c.b16 %v769, %v766
  %v788 = vpack.c.b16 %v773, %v770
  %v789 = vpack.c.b16 %v774, %v771
  %v790 = vpack.c.b16 %v775, %v772
  %v791 = vpack.c.b16 %v779, %v776
  %v792 = vpack.c.b16 %v780, %v777
  %v793 = vpack.c.b16 %v781, %v778
  %v854 = vunpack.c.l.b16 %v694
  %v855 = vunpack.c.l.b16 %v695
  %v856 = vunpack.c.l.b16 %v696
  %v857 = vunpack.c.l.b16 %v697
  %v858 = vunpack.c.l.b16 %v698
  %v859 = vunpack.c.l.b16 %v699
  %v860 = vunpack.c.l.b16 %v700
  %v861 = vunpack.c.l.b16 %v701
  %v862 = vunpack.c.l.b16 %v702
  %v863 = vunpack.c.l.b16 %v703
  %v864 = vunpack.c.l.b16 %v704
  %v865 = vunpack.c.l.b16 %v705
  %v866 = vunpack.c.l.b16 %v706
  %v867 = vunpack.c.l.b16 %v707
  %v868 = vunpack.c.l.b16 %v708
  %v869 = vunpack.c.l.b16 %v709
  %v870 = vunpack.c.l.b16 %v710
  %v871 = vunpack.c.l.b16 %v711
  %v872 = vunpack.c.l.b16 %v712
  %v873 = vunpack.c.l.b16 %v713
  %v874 = vunpack.c.l.b16 %v714
  %v875 = vunpack.c.l.b16 %v715
  %v876 = vunpack.c.l.b16 %v716
  %v877 = vunpack.c.l.b16 %v717
  %v878 = vunpack.c.l.b16 %v718
  %v879 = vunpack.c.l.b16 %v719
  %v880 = vunpack.c.l.b16 %v720
  %v881 = vunpack.c.l.b16 %v721
  %v882 = vunpack.c.l.b16 %v722
  %v883 = vunpack.c.l.b16 %v723
  %v884 = vunpack.c.l.b16 %v724
  %v885 = vunpack.c.l.b16 %v725
  %v886 = vunpack.c.l.b16 %v726
  %v887 = vunpack.c.l.b16 %v727
  %v888 = vunpack.c.l.b16 %v728
  %v889 = vunpack.c.l.b16 %v729
  %v890 = vunpack.c.l.b16 %v730
  %v891 = vunpack.c.l.b16 %v731
  %v892 = vunpack.c.l.b16 %v732
  %v893 = vunpack.c.l.b16 %v733
  %v894 = vunpack.c.l.b16 %v734
  %v895 = vunpack.c.l.b16 %v735
  %v896 = vunpack.c.l.b16 %v736
  %v897 = vunpack.c.l.b16 %v737
  %v898 = vunpack.c.l.b16 %v738
  %v899 = vunpack.c.l.b16 %v739
  %v900 = vunpack.c.l.b16 %v740
  %v901 = vunpack.c.l.b16 %v741
  %v902 = vpack.c.b16 %v855, %v854
  %v903 = vpack.c.b16 %v857, %v856
  %v904 = vpack.c.b16 %v859, %v858
  %v905 = vpack.c.b16 %v861, %v860
  %v906 = vpack.c.b16 %v863, %v862
  %v907 = vpack.c.b16 %v865, %v864
  %v908 = vpack.c.b16 %v867, %v866
  %v909 = vpack.c.b16 %v869, %v868
  %v910 = vpack.c.b16 %v871, %v870
  %v911 = vpack.c.b16 %v873, %v872
  %v912 = vpack.c.b16 %v875, %v874
  %v913 = vpack.c.b16 %v877, %v876
  %v914 = vpack.c.b16 %v879, %v878
  %v915 = vpack.c.b16 %v881, %v880
  %v916 = vpack.c.b16 %v883, %v882
  %v917 = vpack.c.b16 %v885, %v884
  %v918 = vpack.c.b16 %v887, %v886
  %v919 = vpack.c.b16 %v889, %v888
  %v920 = vpack.c.b16 %v891, %v890
  %v921 = vpack.c.b16 %v893, %v892
  %v922 = vpack.c.b16 %v895, %v894
  %v923 = vpack.c.b16 %v897, %v896
  %v924 = vpack.c.b16 %v899, %v898
  %v925 = vpack.c.b16 %v901, %v900
  %950 = vmatprep.subr.bf16.mxu0 0
  %951 = vmatpush1.bf16.msra.mxu0 %v909
  %952 = vmatprep.subr.bf16.mxu0 0
  %953 = vmatpush1.bf16.msra.mxu0 %v908
  %954 = vmatprep.subr.bf16.mxu0 0
  %955 = vmatpush1.bf16.msra.mxu0 %v907
  %956 = vmatprep.subr.bf16.mxu0 0
  %957 = vmatpush1.bf16.msra.mxu0 %v906
  %958 = vmatprep.subr.bf16.mxu0 0
  %959 = vmatpush1.bf16.msra.mxu0 %v905
  %960 = vmatprep.subr.bf16.mxu0 0
  %961 = vmatpush1.bf16.msra.mxu0 %v904
  %962 = vmatprep.subr.bf16.mxu0 0
  %963 = vmatpush1.bf16.msra.mxu0 %v903
  %964 = vmatprep.subr.bf16.mxu0 0
  %965 = vmatpush1.bf16.msra.mxu0 %v902
  %966 = vmatprep.subr.bf16.mxu0 0
  %967 = vmatpush2.bf16.msra.mxu0 %v917
  %968 = vmatprep.subr.bf16.mxu0 0
  %969 = vmatpush2.bf16.msra.mxu0 %v916
  %970 = vmatprep.subr.bf16.mxu0 0
  %971 = vmatpush2.bf16.msra.mxu0 %v915
  %972 = vmatprep.subr.bf16.mxu0 0
  %973 = vmatpush2.bf16.msra.mxu0 %v914
  %974 = vmatprep.subr.bf16.mxu0 0
  %975 = vmatpush2.bf16.msra.mxu0 %v913
  %976 = vmatprep.subr.bf16.mxu0 0
  %977 = vmatpush2.bf16.msra.mxu0 %v912
  %978 = vmatprep.subr.bf16.mxu0 0
  %979 = vmatpush2.bf16.msra.mxu0 %v911
  %980 = vmatprep.subr.bf16.mxu0 0
  %981 = vmatpush2.bf16.msra.mxu0 %v910
  %982 = vmatprep.mubr.bf16.mxu0 %v783
  %983 = vmatmul.mubr.bf16.gmra.mxu0 %v782
  %v984 = vpop.f32.mrf.mxu0
  %v985 = vadd.f32 0.0, %v984
  %v986 = vpop.f32.mrf.mxu0
  %v987 = vpop.f32.mrf.mxu0
  %v988 = vadd.f32 0.0, %v987
  %v989 = vpop.f32.mrf.mxu0
  %990 = vmatprep.mubr.bf16.mxu0 %v786
  %991 = vmatmul.mubr.bf16.gmra.mxu0 %v785
  %v992 = vpop.f32.mrf.mxu0
  %v993 = vadd.f32 0.0, %v992
  %v994 = vpop.f32.mrf.mxu0
  %v995 = vpop.f32.mrf.mxu0
  %v996 = vadd.f32 0.0, %v995
  %v997 = vpop.f32.mrf.mxu0
  %998 = vmatprep.mubr.bf16.mxu0 %v789
  %999 = vmatmul.mubr.bf16.gmra.mxu0 %v788
  %v1000 = vpop.f32.mrf.mxu0
  %v1001 = vadd.f32 0.0, %v1000
  %v1002 = vpop.f32.mrf.mxu0
  %v1003 = vpop.f32.mrf.mxu0
  %v1004 = vadd.f32 0.0, %v1003
  %v1005 = vpop.f32.mrf.mxu0
  %1006 = vmatprep.mubr.bf16.mxu0 %v792
  %1007 = vmatmul.mubr.bf16.gmra.mxu0 %v791
  %v1008 = vpop.f32.mrf.mxu0
  %v1009 = vadd.f32 0.0, %v1008
  %v1010 = vpop.f32.mrf.mxu0
  %v1011 = vpop.f32.mrf.mxu0
  %v1012 = vadd.f32 0.0, %v1011
  %v1013 = vpop.f32.mrf.mxu0
  %1014 = vdwg.mxu0
  %1015 = vmatprep.subr.bf16.mxu0 0
  %1016 = vmatpush1.bf16.msra.mxu0 %v925
  %1017 = vmatprep.subr.bf16.mxu0 0
  %1018 = vmatpush1.bf16.msra.mxu0 %v924
  %1019 = vmatprep.subr.bf16.mxu0 0
  %1020 = vmatpush1.bf16.msra.mxu0 %v923
  %1021 = vmatprep.subr.bf16.mxu0 0
  %1022 = vmatpush1.bf16.msra.mxu0 %v922
  %1023 = vmatprep.subr.bf16.mxu0 0
  %1024 = vmatpush1.bf16.msra.mxu0 %v921
  %1025 = vmatprep.subr.bf16.mxu0 0
  %1026 = vmatpush1.bf16.msra.mxu0 %v920
  %1027 = vmatprep.subr.bf16.mxu0 0
  %1028 = vmatpush1.bf16.msra.mxu0 %v919
  %1029 = vmatprep.subr.bf16.mxu0 0
  %1030 = vmatpush1.bf16.msra.mxu0 %v918
  %1031 = vmatprep.subr.bf16.mxu0 0
  %1032 = vmatpush2.bf16.msra.mxu0 0
  %1033 = vmatprep.subr.bf16.mxu0 0
  %1034 = vmatpush2.bf16.msra.mxu0 0
  %1035 = vmatprep.subr.bf16.mxu0 0
  %1036 = vmatpush2.bf16.msra.mxu0 0
  %1037 = vmatprep.subr.bf16.mxu0 0
  %1038 = vmatpush2.bf16.msra.mxu0 0
  %1039 = vmatprep.subr.bf16.mxu0 0
  %1040 = vmatpush2.bf16.msra.mxu0 0
  %1041 = vmatprep.subr.bf16.mxu0 0
  %1042 = vmatpush2.bf16.msra.mxu0 0
  %1043 = vmatprep.subr.bf16.mxu0 0
  %1044 = vmatpush2.bf16.msra.mxu0 0
  %1045 = vmatprep.subr.bf16.mxu0 0
  %1046 = vmatpush2.bf16.msra.mxu0 0
  %1047 = vmatprep.mubr.bf16.mxu0 0
  %1048 = vmatmul.mubr.bf16.gmra.mxu0 %v784
  %v1049 = vpop.f32.mrf.mxu0
  %v1050 = vadd.f32 %v985, %v1049
  %v1051 = vpop.f32.mrf.mxu0
  %v1052 = vpop.f32.mrf.mxu0
  %v1053 = vadd.f32 %v988, %v1052
  %v1054 = vpop.f32.mrf.mxu0
  %1055 = vmatprep.mubr.bf16.mxu0 0
  %1056 = vmatmul.mubr.bf16.gmra.mxu0 %v787
  %v1057 = vpop.f32.mrf.mxu0
  %v1058 = vadd.f32 %v993, %v1057
  %v1059 = vpop.f32.mrf.mxu0
  %v1060 = vpop.f32.mrf.mxu0
  %v1061 = vadd.f32 %v996, %v1060
  %v1062 = vpop.f32.mrf.mxu0
  %1063 = vmatprep.mubr.bf16.mxu0 0
  %1064 = vmatmul.mubr.bf16.gmra.mxu0 %v790
  %v1065 = vpop.f32.mrf.mxu0
  %v1066 = vadd.f32 %v1001, %v1065
  %v1067 = vpop.f32.mrf.mxu0
  %v1068 = vpop.f32.mrf.mxu0
  %v1069 = vadd.f32 %v1004, %v1068
  %v1070 = vpop.f32.mrf.mxu0
  %1071 = vmatprep.mubr.bf16.mxu0 0
  %1072 = vmatmul.mubr.bf16.gmra.mxu0 %v793
  %v1073 = vpop.f32.mrf.mxu0
  %v1074 = vadd.f32 %v1009, %v1073
  %v1075 = vpop.f32.mrf.mxu0
  %v1076 = vpop.f32.mrf.mxu0
  %v1077 = vadd.f32 %v1012, %v1076
  %v1078 = vpop.f32.mrf.mxu0
  %1079 = vdwg.mxu0
  %v1096 = vunpack.c.l.b16 %v614
  %v1097 = vunpack.c.h.b16 %v614
  %v1098 = vunpack.c.l.b16 %v615
  %v1099 = vunpack.c.l.b16 %v616
  %v1100 = vunpack.c.h.b16 %v616
  %v1101 = vunpack.c.l.b16 %v617
  %v1102 = vunpack.c.l.b16 %v618
  %v1103 = vunpack.c.h.b16 %v618
  %v1104 = vunpack.c.l.b16 %v619
  %v1105 = vunpack.c.l.b16 %v620
  %v1106 = vunpack.c.h.b16 %v620
  %v1107 = vunpack.c.l.b16 %v621
  %v1108 = vunpack.c.l.b16 %v622
  %v1109 = vunpack.c.h.b16 %v622
  %v1110 = vunpack.c.l.b16 %v623
  %v1111 = vunpack.c.l.b16 %v624
  %v1112 = vunpack.c.h.b16 %v624
  %v1113 = vunpack.c.l.b16 %v625
  %v1114 = vunpack.c.l.b16 %v626
  %v1115 = vunpack.c.h.b16 %v626
  %v1116 = vunpack.c.l.b16 %v627
  %v1117 = vunpack.c.l.b16 %v628
  %v1118 = vunpack.c.h.b16 %v628
  %v1119 = vunpack.c.l.b16 %v629
  %v1120 = vpack.c.b16 %v1099, %v1096
  %v1121 = vpack.c.b16 %v1100, %v1097
  %v1122 = vpack.c.b16 %v1101, %v1098
  %v1123 = vpack.c.b16 %v1105, %v1102
  %v1124 = vpack.c.b16 %v1106, %v1103
  %v1125 = vpack.c.b16 %v1107, %v1104
  %v1126 = vpack.c.b16 %v1111, %v1108
  %v1127 = vpack.c.b16 %v1112, %v1109
  %v1128 = vpack.c.b16 %v1113, %v1110
  %v1129 = vpack.c.b16 %v1117, %v1114
  %v1130 = vpack.c.b16 %v1118, %v1115
  %v1131 = vpack.c.b16 %v1119, %v1116
  %v1192 = vunpack.c.l.b16 %v630
  %v1193 = vunpack.c.l.b16 %v631
  %v1194 = vunpack.c.l.b16 %v632
  %v1195 = vunpack.c.l.b16 %v633
  %v1196 = vunpack.c.l.b16 %v634
  %v1197 = vunpack.c.l.b16 %v635
  %v1198 = vunpack.c.l.b16 %v636
  %v1199 = vunpack.c.l.b16 %v637
  %v1200 = vunpack.c.l.b16 %v638
  %v1201 = vunpack.c.l.b16 %v639
  %v1202 = vunpack.c.l.b16 %v640
  %v1203 = vunpack.c.l.b16 %v641
  %v1204 = vunpack.c.l.b16 %v642
  %v1205 = vunpack.c.l.b16 %v643
  %v1206 = vunpack.c.l.b16 %v644
  %v1207 = vunpack.c.l.b16 %v645
  %v1208 = vunpack.c.l.b16 %v646
  %v1209 = vunpack.c.l.b16 %v647
  %v1210 = vunpack.c.l.b16 %v648
  %v1211 = vunpack.c.l.b16 %v649
  %v1212 = vunpack.c.l.b16 %v650
  %v1213 = vunpack.c.l.b16 %v651
  %v1214 = vunpack.c.l.b16 %v652
  %v1215 = vunpack.c.l.b16 %v653
  %v1216 = vunpack.c.l.b16 %v654
  %v1217 = vunpack.c.l.b16 %v655
  %v1218 = vunpack.c.l.b16 %v656
  %v1219 = vunpack.c.l.b16 %v657
  %v1220 = vunpack.c.l.b16 %v658
  %v1221 = vunpack.c.l.b16 %v659
  %v1222 = vunpack.c.l.b16 %v660
  %v1223 = vunpack.c.l.b16 %v661
  %v1224 = vunpack.c.l.b16 %v662
  %v1225 = vunpack.c.l.b16 %v663
  %v1226 = vunpack.c.l.b16 %v664
  %v1227 = vunpack.c.l.b16 %v665
  %v1228 = vunpack.c.l.b16 %v666
  %v1229 = vunpack.c.l.b16 %v667
  %v1230 = vunpack.c.l.b16 %v668
  %v1231 = vunpack.c.l.b16 %v669
  %v1232 = vunpack.c.l.b16 %v670
  %v1233 = vunpack.c.l.b16 %v671
  %v1234 = vunpack.c.l.b16 %v672
  %v1235 = vunpack.c.l.b16 %v673
  %v1236 = vunpack.c.l.b16 %v674
  %v1237 = vunpack.c.l.b16 %v675
  %v1238 = vunpack.c.l.b16 %v676
  %v1239 = vunpack.c.l.b16 %v677
  %v1240 = vpack.c.b16 %v1193, %v1192
  %v1241 = vpack.c.b16 %v1195, %v1194
  %v1242 = vpack.c.b16 %v1197, %v1196
  %v1243 = vpack.c.b16 %v1199, %v1198
  %v1244 = vpack.c.b16 %v1201, %v1200
  %v1245 = vpack.c.b16 %v1203, %v1202
  %v1246 = vpack.c.b16 %v1205, %v1204
  %v1247 = vpack.c.b16 %v1207, %v1206
  %v1248 = vpack.c.b16 %v1209, %v1208
  %v1249 = vpack.c.b16 %v1211, %v1210
  %v1250 = vpack.c.b16 %v1213, %v1212
  %v1251 = vpack.c.b16 %v1215, %v1214
  %v1252 = vpack.c.b16 %v1217, %v1216
  %v1253 = vpack.c.b16 %v1219, %v1218
  %v1254 = vpack.c.b16 %v1221, %v1220
  %v1255 = vpack.c.b16 %v1223, %v1222
  %v1256 = vpack.c.b16 %v1225, %v1224
  %v1257 = vpack.c.b16 %v1227, %v1226
  %v1258 = vpack.c.b16 %v1229, %v1228
  %v1259 = vpack.c.b16 %v1231, %v1230
  %v1260 = vpack.c.b16 %v1233, %v1232
  %v1261 = vpack.c.b16 %v1235, %v1234
  %v1262 = vpack.c.b16 %v1237, %v1236
  %v1263 = vpack.c.b16 %v1239, %v1238
  %1288 = vmatprep.subr.bf16.mxu0 0
  %1289 = vmatpush1.bf16.msra.mxu0 %v1247
  %1290 = vmatprep.subr.bf16.mxu0 0
  %1291 = vmatpush1.bf16.msra.mxu0 %v1246
  %1292 = vmatprep.subr.bf16.mxu0 0
  %1293 = vmatpush1.bf16.msra.mxu0 %v1245
  %1294 = vmatprep.subr.bf16.mxu0 0
  %1295 = vmatpush1.bf16.msra.mxu0 %v1244
  %1296 = vmatprep.subr.bf16.mxu0 0
  %1297 = vmatpush1.bf16.msra.mxu0 %v1243
  %1298 = vmatprep.subr.bf16.mxu0 0
  %1299 = vmatpush1.bf16.msra.mxu0 %v1242
  %1300 = vmatprep.subr.bf16.mxu0 0
  %1301 = vmatpush1.bf16.msra.mxu0 %v1241
  %1302 = vmatprep.subr.bf16.mxu0 0
  %1303 = vmatpush1.bf16.msra.mxu0 %v1240
  %1304 = vmatprep.subr.bf16.mxu0 0
  %1305 = vmatpush2.bf16.msra.mxu0 %v1255
  %1306 = vmatprep.subr.bf16.mxu0 0
  %1307 = vmatpush2.bf16.msra.mxu0 %v1254
  %1308 = vmatprep.subr.bf16.mxu0 0
  %1309 = vmatpush2.bf16.msra.mxu0 %v1253
  %1310 = vmatprep.subr.bf16.mxu0 0
  %1311 = vmatpush2.bf16.msra.mxu0 %v1252
  %1312 = vmatprep.subr.bf16.mxu0 0
  %1313 = vmatpush2.bf16.msra.mxu0 %v1251
  %1314 = vmatprep.subr.bf16.mxu0 0
  %1315 = vmatpush2.bf16.msra.mxu0 %v1250
  %1316 = vmatprep.subr.bf16.mxu0 0
  %1317 = vmatpush2.bf16.msra.mxu0 %v1249
  %1318 = vmatprep.subr.bf16.mxu0 0
  %1319 = vmatpush2.bf16.msra.mxu0 %v1248
  %1320 = vmatprep.mubr.bf16.mxu0 %v1121
  %1321 = vmatmul.mubr.bf16.gmra.mxu0 %v1120
  %v1322 = vpop.f32.mrf.mxu0
  %v1323 = vadd.f32 %v1050, %v1322
  %v1324 = vpop.f32.mrf.mxu0
  %v1325 = vpop.f32.mrf.mxu0
  %v1326 = vadd.f32 %v1053, %v1325
  %v1327 = vpop.f32.mrf.mxu0
  %1328 = vmatprep.mubr.bf16.mxu0 %v1124
  %1329 = vmatmul.mubr.bf16.gmra.mxu0 %v1123
  %v1330 = vpop.f32.mrf.mxu0
  %v1331 = vadd.f32 %v1058, %v1330
  %v1332 = vpop.f32.mrf.mxu0
  %v1333 = vpop.f32.mrf.mxu0
  %v1334 = vadd.f32 %v1061, %v1333
  %v1335 = vpop.f32.mrf.mxu0
  %1336 = vmatprep.mubr.bf16.mxu0 %v1127
  %1337 = vmatmul.mubr.bf16.gmra.mxu0 %v1126
  %v1338 = vpop.f32.mrf.mxu0
  %v1339 = vadd.f32 %v1066, %v1338
  %v1340 = vpop.f32.mrf.mxu0
  %v1341 = vpop.f32.mrf.mxu0
  %v1342 = vadd.f32 %v1069, %v1341
  %v1343 = vpop.f32.mrf.mxu0
  %1344 = vmatprep.mubr.bf16.mxu0 %v1130
  %1345 = vmatmul.mubr.bf16.gmra.mxu0 %v1129
  %v1346 = vpop.f32.mrf.mxu0
  %v1347 = vadd.f32 %v1074, %v1346
  %v1348 = vpop.f32.mrf.mxu0
  %v1349 = vpop.f32.mrf.mxu0
  %v1350 = vadd.f32 %v1077, %v1349
  %v1351 = vpop.f32.mrf.mxu0
  %1352 = vdwg.mxu0
  %1353 = vmatprep.subr.bf16.mxu0 0
  %1354 = vmatpush1.bf16.msra.mxu0 %v1263
  %1355 = vmatprep.subr.bf16.mxu0 0
  %1356 = vmatpush1.bf16.msra.mxu0 %v1262
  %1357 = vmatprep.subr.bf16.mxu0 0
  %1358 = vmatpush1.bf16.msra.mxu0 %v1261
  %1359 = vmatprep.subr.bf16.mxu0 0
  %1360 = vmatpush1.bf16.msra.mxu0 %v1260
  %1361 = vmatprep.subr.bf16.mxu0 0
  %1362 = vmatpush1.bf16.msra.mxu0 %v1259
  %1363 = vmatprep.subr.bf16.mxu0 0
  %1364 = vmatpush1.bf16.msra.mxu0 %v1258
  %1365 = vmatprep.subr.bf16.mxu0 0
  %1366 = vmatpush1.bf16.msra.mxu0 %v1257
  %1367 = vmatprep.subr.bf16.mxu0 0
  %1368 = vmatpush1.bf16.msra.mxu0 %v1256
  %1369 = vmatprep.subr.bf16.mxu0 0
  %1370 = vmatpush2.bf16.msra.mxu0 0
  %1371 = vmatprep.subr.bf16.mxu0 0
  %1372 = vmatpush2.bf16.msra.mxu0 0
  %1373 = vmatprep.subr.bf16.mxu0 0
  %1374 = vmatpush2.bf16.msra.mxu0 0
  %1375 = vmatprep.subr.bf16.mxu0 0
  %1376 = vmatpush2.bf16.msra.mxu0 0
  %1377 = vmatprep.subr.bf16.mxu0 0
  %1378 = vmatpush2.bf16.msra.mxu0 0
  %1379 = vmatprep.subr.bf16.mxu0 0
  %1380 = vmatpush2.bf16.msra.mxu0 0
  %1381 = vmatprep.subr.bf16.mxu0 0
  %1382 = vmatpush2.bf16.msra.mxu0 0
  %1383 = vmatprep.subr.bf16.mxu0 0
  %1384 = vmatpush2.bf16.msra.mxu0 0
  %1385 = vmatprep.mubr.bf16.mxu0 0
  %1386 = vmatmul.mubr.bf16.gmra.mxu0 %v1122
  %v1387 = vpop.f32.mrf.mxu0
  %v1388 = vadd.f32 %v1323, %v1387
  %v1389 = vpop.f32.mrf.mxu0
  %v1390 = vpop.f32.mrf.mxu0
  %v1391 = vadd.f32 %v1326, %v1390
  %v1392 = vpop.f32.mrf.mxu0
  %1393 = vmatprep.mubr.bf16.mxu0 0
  %1394 = vmatmul.mubr.bf16.gmra.mxu0 %v1125
  %v1395 = vpop.f32.mrf.mxu0
  %v1396 = vadd.f32 %v1331, %v1395
  %v1397 = vpop.f32.mrf.mxu0
  %v1398 = vpop.f32.mrf.mxu0
  %v1399 = vadd.f32 %v1334, %v1398
  %v1400 = vpop.f32.mrf.mxu0
  %1401 = vmatprep.mubr.bf16.mxu0 0
  %1402 = vmatmul.mubr.bf16.gmra.mxu0 %v1128
  %v1403 = vpop.f32.mrf.mxu0
  %v1404 = vadd.f32 %v1339, %v1403
  %v1405 = vpop.f32.mrf.mxu0
  %v1406 = vpop.f32.mrf.mxu0
  %v1407 = vadd.f32 %v1342, %v1406
  %v1408 = vpop.f32.mrf.mxu0
  %1409 = vmatprep.mubr.bf16.mxu0 0
  %1410 = vmatmul.mubr.bf16.gmra.mxu0 %v1131
  %v1411 = vpop.f32.mrf.mxu0
  %v1412 = vadd.f32 %v1347, %v1411
  %v1413 = vpop.f32.mrf.mxu0
  %v1414 = vpop.f32.mrf.mxu0
  %v1415 = vadd.f32 %v1350, %v1414
  %v1416 = vpop.f32.mrf.mxu0
  %1417 = vdwg.mxu0
  %v1418 = vld [vmem:[#allocation3 + $0x18] sm:$0xff]
  %v1419 = vld [vmem:[#allocation3 + $0x20] sm:$0xf]
  %v1420 = vld [vmem:[#allocation3 + $0x3c] sm:$0xff]
  %v1421 = vld [vmem:[#allocation3 + $0x44] sm:$0xf]
  %v1422 = vld [vmem:[#allocation3 + $0x60] sm:$0xff]
  %v1423 = vld [vmem:[#allocation3 + $0x68] sm:$0xf]
  %v1424 = vld [vmem:[#allocation3 + $0x84] sm:$0xff]
  %v1425 = vld [vmem:[#allocation3 + $0x8c] sm:$0xf]
  %v1426 = vld [vmem:[#allocation3 + $0xa8] sm:$0xff]
  %v1427 = vld [vmem:[#allocation3 + $0xb0] sm:$0xf]
  %v1428 = vld [vmem:[#allocation3 + $0xcc] sm:$0xff]
  %v1429 = vld [vmem:[#allocation3 + $0xd4] sm:$0xf]
  %v1430 = vld [vmem:[#allocation3 + $0xf0] sm:$0xff]
  %v1431 = vld [vmem:[#allocation3 + $0xf8] sm:$0xf]
  %v1432 = vld [vmem:[#allocation3 + $0x114] sm:$0xff]
  %v1433 = vld [vmem:[#allocation3 + $0x11c] sm:$0xf]
  %v1434 = vld [vmem:[%s2 + $0x180] sm:$0xf]
  %v1435 = vld [vmem:[%s2 + $0x184] sm:$0xf]
  %v1436 = vld [vmem:[%s2 + $0x188] sm:$0xf]
  %v1437 = vld [vmem:[%s2 + $0x18c] sm:$0xf]
  %v1438 = vld [vmem:[%s2 + $0x190] sm:$0xf]
  %v1439 = vld [vmem:[%s2 + $0x194] sm:$0xf]
  %v1440 = vld [vmem:[%s2 + $0x198] sm:$0xf]
  %v1441 = vld [vmem:[%s2 + $0x19c] sm:$0xf]
  %v1442 = vld [vmem:[%s2 + $0x1a0] sm:$0xf]
  %v1443 = vld [vmem:[%s2 + $0x1a4] sm:$0xf]
  %v1444 = vld [vmem:[%s2 + $0x1a8] sm:$0xf]
  %v1445 = vld [vmem:[%s2 + $0x1ac] sm:$0xf]
  %v1446 = vld [vmem:[%s2 + $0x1b0] sm:$0xf]
  %v1447 = vld [vmem:[%s2 + $0x1b4] sm:$0xf]
  %v1448 = vld [vmem:[%s2 + $0x1b8] sm:$0xf]
  %v1449 = vld [vmem:[%s2 + $0x1bc] sm:$0xf]
  %v1450 = vld [vmem:[%s2 + $0x1c0] sm:$0xf]
  %v1451 = vld [vmem:[%s2 + $0x1c4] sm:$0xf]
  %v1452 = vld [vmem:[%s2 + $0x1c8] sm:$0xf]
  %v1453 = vld [vmem:[%s2 + $0x1cc] sm:$0xf]
  %v1454 = vld [vmem:[%s2 + $0x1d0] sm:$0xf]
  %v1455 = vld [vmem:[%s2 + $0x1d4] sm:$0xf]
  %v1456 = vld [vmem:[%s2 + $0x1d8] sm:$0xf]
  %v1457 = vld [vmem:[%s2 + $0x1dc] sm:$0xf]
  %v1458 = vld [vmem:[%s2 + $0x1e0] sm:$0xf]
  %v1459 = vld [vmem:[%s2 + $0x1e4] sm:$0xf]
  %v1460 = vld [vmem:[%s2 + $0x1e8] sm:$0xf]
  %v1461 = vld [vmem:[%s2 + $0x1ec] sm:$0xf]
  %v1462 = vld [vmem:[%s2 + $0x1f0] sm:$0xf]
  %v1463 = vld [vmem:[%s2 + $0x1f4] sm:$0xf]
  %v1464 = vld [vmem:[%s2 + $0x1f8] sm:$0xf]
  %v1465 = vld [vmem:[%s2 + $0x1fc] sm:$0xf]
  %v1466 = vld [vmem:[%s2 + $0x200] sm:$0xf]
  %v1467 = vld [vmem:[%s2 + $0x204] sm:$0xf]
  %v1468 = vld [vmem:[%s2 + $0x208] sm:$0xf]
  %v1469 = vld [vmem:[%s2 + $0x20c] sm:$0xf]
  %v1470 = vld [vmem:[%s2 + $0x210] sm:$0xf]
  %v1471 = vld [vmem:[%s2 + $0x214] sm:$0xf]
  %v1472 = vld [vmem:[%s2 + $0x218] sm:$0xf]
  %v1473 = vld [vmem:[%s2 + $0x21c] sm:$0xf]
  %v1474 = vld [vmem:[%s2 + $0x220] sm:$0xf]
  %v1475 = vld [vmem:[%s2 + $0x224] sm:$0xf]
  %v1476 = vld [vmem:[%s2 + $0x228] sm:$0xf]
  %v1477 = vld [vmem:[%s2 + $0x22c] sm:$0xf]
  %v1478 = vld [vmem:[%s2 + $0x230] sm:$0xf]
  %v1479 = vld [vmem:[%s2 + $0x234] sm:$0xf]
  %v1480 = vld [vmem:[%s2 + $0x238] sm:$0xf]
  %v1481 = vld [vmem:[%s2 + $0x23c] sm:$0xf]
  %v1498 = vunpack.c.l.b16 %v1418
  %v1499 = vunpack.c.h.b16 %v1418
  %v1500 = vunpack.c.l.b16 %v1419
  %v1501 = vunpack.c.l.b16 %v1420
  %v1502 = vunpack.c.h.b16 %v1420
  %v1503 = vunpack.c.l.b16 %v1421
  %v1504 = vunpack.c.l.b16 %v1422
  %v1505 = vunpack.c.h.b16 %v1422
  %v1506 = vunpack.c.l.b16 %v1423
  %v1507 = vunpack.c.l.b16 %v1424
  %v1508 = vunpack.c.h.b16 %v1424
  %v1509 = vunpack.c.l.b16 %v1425
  %v1510 = vunpack.c.l.b16 %v1426
  %v1511 = vunpack.c.h.b16 %v1426
  %v1512 = vunpack.c.l.b16 %v1427
  %v1513 = vunpack.c.l.b16 %v1428
  %v1514 = vunpack.c.h.b16 %v1428
  %v1515 = vunpack.c.l.b16 %v1429
  %v1516 = vunpack.c.l.b16 %v1430
  %v1517 = vunpack.c.h.b16 %v1430
  %v1518 = vunpack.c.l.b16 %v1431
  %v1519 = vunpack.c.l.b16 %v1432
  %v1520 = vunpack.c.h.b16 %v1432
  %v1521 = vunpack.c.l.b16 %v1433
  %v1522 = vpack.c.b16 %v1501, %v1498
  %v1523 = vpack.c.b16 %v1502, %v1499
  %v1524 = vpack.c.b16 %v1503, %v1500
  %v1525 = vpack.c.b16 %v1507, %v1504
  %v1526 = vpack.c.b16 %v1508, %v1505
  %v1527 = vpack.c.b16 %v1509, %v1506
  %v1528 = vpack.c.b16 %v1513, %v1510
  %v1529 = vpack.c.b16 %v1514, %v1511
  %v1530 = vpack.c.b16 %v1515, %v1512
  %v1531 = vpack.c.b16 %v1519, %v1516
  %v1532 = vpack.c.b16 %v1520, %v1517
  %v1533 = vpack.c.b16 %v1521, %v1518
  %v1594 = vunpack.c.l.b16 %v1434
  %v1595 = vunpack.c.l.b16 %v1435
  %v1596 = vunpack.c.l.b16 %v1436
  %v1597 = vunpack.c.l.b16 %v1437
  %v1598 = vunpack.c.l.b16 %v1438
  %v1599 = vunpack.c.l.b16 %v1439
  %v1600 = vunpack.c.l.b16 %v1440
  %v1601 = vunpack.c.l.b16 %v1441
  %v1602 = vunpack.c.l.b16 %v1442
  %v1603 = vunpack.c.l.b16 %v1443
  %v1604 = vunpack.c.l.b16 %v1444
  %v1605 = vunpack.c.l.b16 %v1445
  %v1606 = vunpack.c.l.b16 %v1446
  %v1607 = vunpack.c.l.b16 %v1447
  %v1608 = vunpack.c.l.b16 %v1448
  %v1609 = vunpack.c.l.b16 %v1449
  %v1610 = vunpack.c.l.b16 %v1450
  %v1611 = vunpack.c.l.b16 %v1451
  %v1612 = vunpack.c.l.b16 %v1452
  %v1613 = vunpack.c.l.b16 %v1453
  %v1614 = vunpack.c.l.b16 %v1454
  %v1615 = vunpack.c.l.b16 %v1455
  %v1616 = vunpack.c.l.b16 %v1456
  %v1617 = vunpack.c.l.b16 %v1457
  %v1618 = vunpack.c.l.b16 %v1458
  %v1619 = vunpack.c.l.b16 %v1459
  %v1620 = vunpack.c.l.b16 %v1460
  %v1621 = vunpack.c.l.b16 %v1461
  %v1622 = vunpack.c.l.b16 %v1462
  %v1623 = vunpack.c.l.b16 %v1463
  %v1624 = vunpack.c.l.b16 %v1464
  %v1625 = vunpack.c.l.b16 %v1465
  %v1626 = vunpack.c.l.b16 %v1466
  %v1627 = vunpack.c.l.b16 %v1467
  %v1628 = vunpack.c.l.b16 %v1468
  %v1629 = vunpack.c.l.b16 %v1469
  %v1630 = vunpack.c.l.b16 %v1470
  %v1631 = vunpack.c.l.b16 %v1471
  %v1632 = vunpack.c.l.b16 %v1472
  %v1633 = vunpack.c.l.b16 %v1473
  %v1634 = vunpack.c.l.b16 %v1474
  %v1635 = vunpack.c.l.b16 %v1475
  %v1636 = vunpack.c.l.b16 %v1476
  %v1637 = vunpack.c.l.b16 %v1477
  %v1638 = vunpack.c.l.b16 %v1478
  %v1639 = vunpack.c.l.b16 %v1479
  %v1640 = vunpack.c.l.b16 %v1480
  %v1641 = vunpack.c.l.b16 %v1481
  %v1642 = vpack.c.b16 %v1595, %v1594
  %v1643 = vpack.c.b16 %v1597, %v1596
  %v1644 = vpack.c.b16 %v1599, %v1598
  %v1645 = vpack.c.b16 %v1601, %v1600
  %v1646 = vpack.c.b16 %v1603, %v1602
  %v1647 = vpack.c.b16 %v1605, %v1604
  %v1648 = vpack.c.b16 %v1607, %v1606
  %v1649 = vpack.c.b16 %v1609, %v1608
  %v1650 = vpack.c.b16 %v1611, %v1610
  %v1651 = vpack.c.b16 %v1613, %v1612
  %v1652 = vpack.c.b16 %v1615, %v1614
  %v1653 = vpack.c.b16 %v1617, %v1616
  %v1654 = vpack.c.b16 %v1619, %v1618
  %v1655 = vpack.c.b16 %v1621, %v1620
  %v1656 = vpack.c.b16 %v1623, %v1622
  %v1657 = vpack.c.b16 %v1625, %v1624
  %v1658 = vpack.c.b16 %v1627, %v1626
  %v1659 = vpack.c.b16 %v1629, %v1628
  %v1660 = vpack.c.b16 %v1631, %v1630
  %v1661 = vpack.c.b16 %v1633, %v1632
  %v1662 = vpack.c.b16 %v1635, %v1634
  %v1663 = vpack.c.b16 %v1637, %v1636
  %v1664 = vpack.c.b16 %v1639, %v1638
  %v1665 = vpack.c.b16 %v1641, %v1640
  %1690 = vmatprep.subr.bf16.mxu0 0
  %1691 = vmatpush1.bf16.msra.mxu0 %v1649
  %1692 = vmatprep.subr.bf16.mxu0 0
  %1693 = vmatpush1.bf16.msra.mxu0 %v1648
  %1694 = vmatprep.subr.bf16.mxu0 0
  %1695 = vmatpush1.bf16.msra.mxu0 %v1647
  %1696 = vmatprep.subr.bf16.mxu0 0
  %1697 = vmatpush1.bf16.msra.mxu0 %v1646
  %1698 = vmatprep.subr.bf16.mxu0 0
  %1699 = vmatpush1.bf16.msra.mxu0 %v1645
  %1700 = vmatprep.subr.bf16.mxu0 0
  %1701 = vmatpush1.bf16.msra.mxu0 %v1644
  %1702 = vmatprep.subr.bf16.mxu0 0
  %1703 = vmatpush1.bf16.msra.mxu0 %v1643
  %1704 = vmatprep.subr.bf16.mxu0 0
  %1705 = vmatpush1.bf16.msra.mxu0 %v1642
  %1706 = vmatprep.subr.bf16.mxu0 0
  %1707 = vmatpush2.bf16.msra.mxu0 %v1657
  %1708 = vmatprep.subr.bf16.mxu0 0
  %1709 = vmatpush2.bf16.msra.mxu0 %v1656
  %1710 = vmatprep.subr.bf16.mxu0 0
  %1711 = vmatpush2.bf16.msra.mxu0 %v1655
  %1712 = vmatprep.subr.bf16.mxu0 0
  %1713 = vmatpush2.bf16.msra.mxu0 %v1654
  %1714 = vmatprep.subr.bf16.mxu0 0
  %1715 = vmatpush2.bf16.msra.mxu0 %v1653
  %1716 = vmatprep.subr.bf16.mxu0 0
  %1717 = vmatpush2.bf16.msra.mxu0 %v1652
  %1718 = vmatprep.subr.bf16.mxu0 0
  %1719 = vmatpush2.bf16.msra.mxu0 %v1651
  %1720 = vmatprep.subr.bf16.mxu0 0
  %1721 = vmatpush2.bf16.msra.mxu0 %v1650
  %1722 = vmatprep.mubr.bf16.mxu0 %v1523
  %1723 = vmatmul.mubr.bf16.gmra.mxu0 %v1522
  %v1724 = vpop.f32.mrf.mxu0
  %v1725 = vadd.f32 0.0, %v1724
  %v1726 = vpop.f32.mrf.mxu0
  %v1727 = vpop.f32.mrf.mxu0
  %v1728 = vadd.f32 0.0, %v1727
  %v1729 = vpop.f32.mrf.mxu0
  %1730 = vmatprep.mubr.bf16.mxu0 %v1526
  %1731 = vmatmul.mubr.bf16.gmra.mxu0 %v1525
  %v1732 = vpop.f32.mrf.mxu0
  %v1733 = vadd.f32 0.0, %v1732
  %v1734 = vpop.f32.mrf.mxu0
  %v1735 = vpop.f32.mrf.mxu0
  %v1736 = vadd.f32 0.0, %v1735
  %v1737 = vpop.f32.mrf.mxu0
  %1738 = vmatprep.mubr.bf16.mxu0 %v1529
  %1739 = vmatmul.mubr.bf16.gmra.mxu0 %v1528
  %v1740 = vpop.f32.mrf.mxu0
  %v1741 = vadd.f32 0.0, %v1740
  %v1742 = vpop.f32.mrf.mxu0
  %v1743 = vpop.f32.mrf.mxu0
  %v1744 = vadd.f32 0.0, %v1743
  %v1745 = vpop.f32.mrf.mxu0
  %1746 = vmatprep.mubr.bf16.mxu0 %v1532
  %1747 = vmatmul.mubr.bf16.gmra.mxu0 %v1531
  %v1748 = vpop.f32.mrf.mxu0
  %v1749 = vadd.f32 0.0, %v1748
  %v1750 = vpop.f32.mrf.mxu0
  %v1751 = vpop.f32.mrf.mxu0
  %v1752 = vadd.f32 0.0, %v1751
  %v1753 = vpop.f32.mrf.mxu0
  %1754 = vdwg.mxu0
  %1755 = vmatprep.subr.bf16.mxu0 0
  %1756 = vmatpush1.bf16.msra.mxu0 %v1665
  %1757 = vmatprep.subr.bf16.mxu0 0
  %1758 = vmatpush1.bf16.msra.mxu0 %v1664
  %1759 = vmatprep.subr.bf16.mxu0 0
  %1760 = vmatpush1.bf16.msra.mxu0 %v1663
  %1761 = vmatprep.subr.bf16.mxu0 0
  %1762 = vmatpush1.bf16.msra.mxu0 %v1662
  %1763 = vmatprep.subr.bf16.mxu0 0
  %1764 = vmatpush1.bf16.msra.mxu0 %v1661
  %1765 = vmatprep.subr.bf16.mxu0 0
  %1766 = vmatpush1.bf16.msra.mxu0 %v1660
  %1767 = vmatprep.subr.bf16.mxu0 0
  %1768 = vmatpush1.bf16.msra.mxu0 %v1659
  %1769 = vmatprep.subr.bf16.mxu0 0
  %1770 = vmatpush1.bf16.msra.mxu0 %v1658
  %1771 = vmatprep.subr.bf16.mxu0 0
  %1772 = vmatpush2.bf16.msra.mxu0 0
  %1773 = vmatprep.subr.bf16.mxu0 0
  %1774 = vmatpush2.bf16.msra.mxu0 0
  %1775 = vmatprep.subr.bf16.mxu0 0
  %1776 = vmatpush2.bf16.msra.mxu0 0
  %1777 = vmatprep.subr.bf16.mxu0 0
  %1778 = vmatpush2.bf16.msra.mxu0 0
  %1779 = vmatprep.subr.bf16.mxu0 0
  %1780 = vmatpush2.bf16.msra.mxu0 0
  %1781 = vmatprep.subr.bf16.mxu0 0
  %1782 = vmatpush2.bf16.msra.mxu0 0
  %1783 = vmatprep.subr.bf16.mxu0 0
  %1784 = vmatpush2.bf16.msra.mxu0 0
  %1785 = vmatprep.subr.bf16.mxu0 0
  %1786 = vmatpush2.bf16.msra.mxu0 0
  %1787 = vmatprep.mubr.bf16.mxu0 0
  %1788 = vmatmul.mubr.bf16.gmra.mxu0 %v1524
  %v1789 = vpop.f32.mrf.mxu0
  %v1790 = vadd.f32 %v1725, %v1789
  %v1791 = vpop.f32.mrf.mxu0
  %v1792 = vpop.f32.mrf.mxu0
  %v1793 = vadd.f32 %v1728, %v1792
  %v1794 = vpop.f32.mrf.mxu0
  %1795 = vmatprep.mubr.bf16.mxu0 0
  %1796 = vmatmul.mubr.bf16.gmra.mxu0 %v1527
  %v1797 = vpop.f32.mrf.mxu0
  %v1798 = vadd.f32 %v1733, %v1797
  %v1799 = vpop.f32.mrf.mxu0
  %v1800 = vpop.f32.mrf.mxu0
  %v1801 = vadd.f32 %v1736, %v1800
  %v1802 = vpop.f32.mrf.mxu0
  %1803 = vmatprep.mubr.bf16.mxu0 0
  %1804 = vmatmul.mubr.bf16.gmra.mxu0 %v1530
  %v1805 = vpop.f32.mrf.mxu0
  %v1806 = vadd.f32 %v1741, %v1805
  %v1807 = vpop.f32.mrf.mxu0
  %v1808 = vpop.f32.mrf.mxu0
  %v1809 = vadd.f32 %v1744, %v1808
  %v1810 = vpop.f32.mrf.mxu0
  %1811 = vmatprep.mubr.bf16.mxu0 0
  %1812 = vmatmul.mubr.bf16.gmra.mxu0 %v1533
  %v1813 = vpop.f32.mrf.mxu0
  %v1814 = vadd.f32 %v1749, %v1813
  %v1815 = vpop.f32.mrf.mxu0
  %v1816 = vpop.f32.mrf.mxu0
  %v1817 = vadd.f32 %v1752, %v1816
  %v1818 = vpop.f32.mrf.mxu0
  %1819 = vdwg.mxu0
  %v1820 = vadd.f32 %v1388, %v1790
  %v1821 = vadd.f32 %v1391, %v1793
  %v1822 = vadd.f32 %v1396, %v1798
  %v1823 = vadd.f32 %v1399, %v1801
  %v1824 = vadd.f32 %v1404, %v1806
  %v1825 = vadd.f32 %v1407, %v1809
  %v1826 = vadd.f32 %v1412, %v1814
  %v1827 = vadd.f32 %v1415, %v1817
  %v1828 = vld [vmem:[%s3] sm:$0xff]
  %v1829 = vld [vmem:[%s3 + $0x8] sm:$0xff]
  %v1830 = vld [vmem:[%s3 + $0x10] sm:$0xff]
  %v1831 = vld [vmem:[%s3 + $0x18] sm:$0xff]
  %v1832 = vld [vmem:[%s3 + $0x20] sm:$0xff]
  %v1833 = vld [vmem:[%s3 + $0x28] sm:$0xff]
  %v1834 = vld [vmem:[%s3 + $0x30] sm:$0xff]
  %v1835 = vld [vmem:[%s3 + $0x38] sm:$0xff]
  %v1836 = vadd.f32 %v1820, %v1828
  %v1837 = vadd.f32 %v1821, %v1829
  %v1838 = vadd.f32 %v1822, %v1830
  %v1839 = vadd.f32 %v1823, %v1831
  %v1840 = vadd.f32 %v1824, %v1832
  %v1841 = vadd.f32 %v1825, %v1833
  %v1842 = vadd.f32 %v1826, %v1834
  %v1843 = vadd.f32 %v1827, %v1835
  %1844 = vst [vmem:[%s5] sm:$0xff] %v1836
  %1845 = vst [vmem:[%s5 + $0x8] sm:$0xff] %v1837
  %1846 = vst [vmem:[%s5 + $0x10] sm:$0xff] %v1838
  %1847 = vst [vmem:[%s5 + $0x18] sm:$0xff] %v1839
  %1848 = vst [vmem:[%s5 + $0x20] sm:$0xff] %v1840
  %1849 = vst [vmem:[%s5 + $0x28] sm:$0xff] %v1841
  %1850 = vst [vmem:[%s5 + $0x30] sm:$0xff] %v1842
  %1851 = vst [vmem:[%s5 + $0x38] sm:$0xff] %v1843
  %s1852 = scalar_lea.vmem [#allocation2], 160
  %v1853 = vld [vmem:[%s1852] sm:$0xff]
  %v1854 = vld [vmem:[%s1852 + $0x10] sm:$0xff]
  %v1855 = vld [vmem:[%s1852 + $0x20] sm:$0xff]
  %v1856 = vld [vmem:[%s1852 + $0x30] sm:$0xff]
  %v1857 = vld [vmem:[%s1852 + $0x40] sm:$0xff]
  %v1858 = vld [vmem:[%s1852 + $0x50] sm:$0xff]
  %v1859 = vld [vmem:[%s1852 + $0x60] sm:$0xff]
  %v1860 = vld [vmem:[%s1852 + $0x70] sm:$0xff]
  %v1861 = vpack.c.bf16 %v1854, %v1853
  %v1862 = vpack.c.bf16 %v1856, %v1855
  %v1863 = vpack.c.bf16 %v1858, %v1857
  %v1864 = vpack.c.bf16 %v1860, %v1859
  %v1869 = vunpack.c.l.b16 %v1861
  %v1870 = vunpack.c.h.b16 %v1861
  %v1871 = vunpack.c.l.b16 %v1862
  %v1872 = vunpack.c.h.b16 %v1862
  %v1873 = vunpack.c.l.b16 %v1863
  %v1874 = vunpack.c.h.b16 %v1863
  %v1875 = vunpack.c.l.b16 %v1864
  %v1876 = vunpack.c.h.b16 %v1864
  %v1877 = vpack.c.b16 %v1869, %v1869
  %v1878 = vpack.c.b16 %v1870, %v1870
  %v1879 = vpack.c.b16 %v1871, %v1871
  %v1880 = vpack.c.b16 %v1872, %v1872
  %v1881 = vpack.c.b16 %v1873, %v1873
  %v1882 = vpack.c.b16 %v1874, %v1874
  %v1883 = vpack.c.b16 %v1875, %v1875
  %v1884 = vpack.c.b16 %v1876, %v1876
  %1893 = vst [vmem:[#allocation3] sm:$0xf] %v1877
  %1894 = vst [vmem:[#allocation3 + $0x24] sm:$0xf] %v1878
  %1895 = vst [vmem:[#allocation3 + $0x48] sm:$0xf] %v1879
  %1896 = vst [vmem:[#allocation3 + $0x6c] sm:$0xf] %v1880
  %1897 = vst [vmem:[#allocation3 + $0x90] sm:$0xf] %v1881
  %1898 = vst [vmem:[#allocation3 + $0xb4] sm:$0xf] %v1882
  %1899 = vst [vmem:[#allocation3 + $0xd8] sm:$0xf] %v1883
  %1900 = vst [vmem:[#allocation3 + $0xfc] sm:$0xf] %v1884
  %v1901 = vld [vmem:[%s1852 + $0x1] sm:$0xff]
  %v1902 = vld [vmem:[%s1852 + $0x11] sm:$0xff]
  %v1903 = vld [vmem:[%s1852 + $0x21] sm:$0xff]
  %v1904 = vld [vmem:[%s1852 + $0x31] sm:$0xff]
  %v1905 = vld [vmem:[%s1852 + $0x41] sm:$0xff]
  %v1906 = vld [vmem:[%s1852 + $0x51] sm:$0xff]
  %v1907 = vld [vmem:[%s1852 + $0x61] sm:$0xff]
  %v1908 = vld [vmem:[%s1852 + $0x71] sm:$0xff]
  %v1909 = vpack.c.bf16 %v1902, %v1901
  %v1910 = vpack.c.bf16 %v1904, %v1903
  %v1911 = vpack.c.bf16 %v1906, %v1905
  %v1912 = vpack.c.bf16 %v1908, %v1907
  %v1917 = vunpack.c.l.b16 %v1909
  %v1918 = vunpack.c.h.b16 %v1909
  %v1919 = vunpack.c.l.b16 %v1910
  %v1920 = vunpack.c.h.b16 %v1910
  %v1921 = vunpack.c.l.b16 %v1911
  %v1922 = vunpack.c.h.b16 %v1911
  %v1923 = vunpack.c.l.b16 %v1912
  %v1924 = vunpack.c.h.b16 %v1912
  %v1925 = vpack.c.b16 %v1917, %v1917
  %v1926 = vpack.c.b16 %v1918, %v1918
  %v1927 = vpack.c.b16 %v1919, %v1919
  %v1928 = vpack.c.b16 %v1920, %v1920
  %v1929 = vpack.c.b16 %v1921, %v1921
  %v1930 = vpack.c.b16 %v1922, %v1922
  %v1931 = vpack.c.b16 %v1923, %v1923
  %v1932 = vpack.c.b16 %v1924, %v1924
  %1941 = vst [vmem:[#allocation3 + $0x4] sm:$0xf] %v1925
  %1942 = vst [vmem:[#allocation3 + $0x28] sm:$0xf] %v1926
  %1943 = vst [vmem:[#allocation3 + $0x4c] sm:$0xf] %v1927
  %1944 = vst [vmem:[#allocation3 + $0x70] sm:$0xf] %v1928
  %1945 = vst [vmem:[#allocation3 + $0x94] sm:$0xf] %v1929
  %1946 = vst [vmem:[#allocation3 + $0xb8] sm:$0xf] %v1930
  %1947 = vst [vmem:[#allocation3 + $0xdc] sm:$0xf] %v1931
  %1948 = vst [vmem:[#allocation3 + $0x100] sm:$0xf] %v1932
  %v1949 = vld [vmem:[%s1852 + $0x2] sm:$0xff]
  %v1950 = vld [vmem:[%s1852 + $0x12] sm:$0xff]
  %v1951 = vld [vmem:[%s1852 + $0x22] sm:$0xff]
  %v1952 = vld [vmem:[%s1852 + $0x32] sm:$0xff]
  %v1953 = vld [vmem:[%s1852 + $0x42] sm:$0xff]
  %v1954 = vld [vmem:[%s1852 + $0x52] sm:$0xff]
  %v1955 = vld [vmem:[%s1852 + $0x62] sm:$0xff]
  %v1956 = vld [vmem:[%s1852 + $0x72] sm:$0xff]
  %v1957 = vpack.c.bf16 %v1950, %v1949
  %v1958 = vpack.c.bf16 %v1952, %v1951
  %v1959 = vpack.c.bf16 %v1954, %v1953
  %v1960 = vpack.c.bf16 %v1956, %v1955
  %v1965 = vunpack.c.l.b16 %v1957
  %v1966 = vunpack.c.h.b16 %v1957
  %v1967 = vunpack.c.l.b16 %v1958
  %v1968 = vunpack.c.h.b16 %v1958
  %v1969 = vunpack.c.l.b16 %v1959
  %v1970 = vunpack.c.h.b16 %v1959
  %v1971 = vunpack.c.l.b16 %v1960
  %v1972 = vunpack.c.h.b16 %v1960
  %v1973 = vpack.c.b16 %v1965, %v1965
  %v1974 = vpack.c.b16 %v1966, %v1966
  %v1975 = vpack.c.b16 %v1967, %v1967
  %v1976 = vpack.c.b16 %v1968, %v1968
  %v1977 = vpack.c.b16 %v1969, %v1969
  %v1978 = vpack.c.b16 %v1970, %v1970
  %v1979 = vpack.c.b16 %v1971, %v1971
  %v1980 = vpack.c.b16 %v1972, %v1972
  %1989 = vst [vmem:[#allocation3 + $0x8] sm:$0xf] %v1973
  %1990 = vst [vmem:[#allocation3 + $0x2c] sm:$0xf] %v1974
  %1991 = vst [vmem:[#allocation3 + $0x50] sm:$0xf] %v1975
  %1992 = vst [vmem:[#allocation3 + $0x74] sm:$0xf] %v1976
  %1993 = vst [vmem:[#allocation3 + $0x98] sm:$0xf] %v1977
  %1994 = vst [vmem:[#allocation3 + $0xbc] sm:$0xf] %v1978
  %1995 = vst [vmem:[#allocation3 + $0xe0] sm:$0xf] %v1979
  %1996 = vst [vmem:[#allocation3 + $0x104] sm:$0xf] %v1980
  %s1997 = scalar_lea.vmem [#allocation2], 176
  %v1998 = vld [vmem:[%s1997] sm:$0xff]
  %v1999 = vld [vmem:[%s1997 + $0x10] sm:$0xff]
  %v2000 = vld [vmem:[%s1997 + $0x20] sm:$0xff]
  %v2001 = vld [vmem:[%s1997 + $0x30] sm:$0xff]
  %v2002 = vld [vmem:[%s1997 + $0x40] sm:$0xff]
  %v2003 = vld [vmem:[%s1997 + $0x50] sm:$0xff]
  %v2004 = vld [vmem:[%s1997 + $0x60] sm:$0xff]
  %v2005 = vld [vmem:[%s1997 + $0x70] sm:$0xff]
  %v2006 = vpack.c.bf16 %v1999, %v1998
  %v2007 = vpack.c.bf16 %v2001, %v2000
  %v2008 = vpack.c.bf16 %v2003, %v2002
  %v2009 = vpack.c.bf16 %v2005, %v2004
  %v2014 = vunpack.c.l.b16 %v2006
  %v2015 = vunpack.c.h.b16 %v2006
  %v2016 = vunpack.c.l.b16 %v2007
  %v2017 = vunpack.c.h.b16 %v2007
  %v2018 = vunpack.c.l.b16 %v2008
  %v2019 = vunpack.c.h.b16 %v2008
  %v2020 = vunpack.c.l.b16 %v2009
  %v2021 = vunpack.c.h.b16 %v2009
  %v2022 = vpack.c.b16 %v2014, %v2014
  %v2023 = vpack.c.b16 %v2015, %v2015
  %v2024 = vpack.c.b16 %v2016, %v2016
  %v2025 = vpack.c.b16 %v2017, %v2017
  %v2026 = vpack.c.b16 %v2018, %v2018
  %v2027 = vpack.c.b16 %v2019, %v2019
  %v2028 = vpack.c.b16 %v2020, %v2020
  %v2029 = vpack.c.b16 %v2021, %v2021
  %2038 = vst [vmem:[#allocation3 + $0xc] sm:$0xf] %v2022
  %2039 = vst [vmem:[#allocation3 + $0x30] sm:$0xf] %v2023
  %2040 = vst [vmem:[#allocation3 + $0x54] sm:$0xf] %v2024
  %2041 = vst [vmem:[#allocation3 + $0x78] sm:$0xf] %v2025
  %2042 = vst [vmem:[#allocation3 + $0x9c] sm:$0xf] %v2026
  %2043 = vst [vmem:[#allocation3 + $0xc0] sm:$0xf] %v2027
  %2044 = vst [vmem:[#allocation3 + $0xe4] sm:$0xf] %v2028
  %2045 = vst [vmem:[#allocation3 + $0x108] sm:$0xf] %v2029
  %v2046 = vld [vmem:[%s1997 + $0x1] sm:$0xff]
  %v2047 = vld [vmem:[%s1997 + $0x11] sm:$0xff]
  %v2048 = vld [vmem:[%s1997 + $0x21] sm:$0xff]
  %v2049 = vld [vmem:[%s1997 + $0x31] sm:$0xff]
  %v2050 = vld [vmem:[%s1997 + $0x41] sm:$0xff]
  %v2051 = vld [vmem:[%s1997 + $0x51] sm:$0xff]
  %v2052 = vld [vmem:[%s1997 + $0x61] sm:$0xff]
  %v2053 = vld [vmem:[%s1997 + $0x71] sm:$0xff]
  %v2054 = vpack.c.bf16 %v2047, %v2046
  %v2055 = vpack.c.bf16 %v2049, %v2048
  %v2056 = vpack.c.bf16 %v2051, %v2050
  %v2057 = vpack.c.bf16 %v2053, %v2052
  %v2062 = vunpack.c.l.b16 %v2054
  %v2063 = vunpack.c.h.b16 %v2054
  %v2064 = vunpack.c.l.b16 %v2055
  %v2065 = vunpack.c.h.b16 %v2055
  %v2066 = vunpack.c.l.b16 %v2056
  %v2067 = vunpack.c.h.b16 %v2056
  %v2068 = vunpack.c.l.b16 %v2057
  %v2069 = vunpack.c.h.b16 %v2057
  %v2070 = vpack.c.b16 %v2062, %v2062
  %v2071 = vpack.c.b16 %v2063, %v2063
  %v2072 = vpack.c.b16 %v2064, %v2064
  %v2073 = vpack.c.b16 %v2065, %v2065
  %v2074 = vpack.c.b16 %v2066, %v2066
  %v2075 = vpack.c.b16 %v2067, %v2067
  %v2076 = vpack.c.b16 %v2068, %v2068
  %v2077 = vpack.c.b16 %v2069, %v2069
  %2086 = vst [vmem:[#allocation3 + $0x10] sm:$0xf] %v2070
  %2087 = vst [vmem:[#allocation3 + $0x34] sm:$0xf] %v2071
  %2088 = vst [vmem:[#allocation3 + $0x58] sm:$0xf] %v2072
  %2089 = vst [vmem:[#allocation3 + $0x7c] sm:$0xf] %v2073
  %2090 = vst [vmem:[#allocation3 + $0xa0] sm:$0xf] %v2074
  %2091 = vst [vmem:[#allocation3 + $0xc4] sm:$0xf] %v2075
  %2092 = vst [vmem:[#allocation3 + $0xe8] sm:$0xf] %v2076
  %2093 = vst [vmem:[#allocation3 + $0x10c] sm:$0xf] %v2077
  %v2094 = vld [vmem:[%s1997 + $0x2] sm:$0xff]
  %v2095 = vld [vmem:[%s1997 + $0x12] sm:$0xff]
  %v2096 = vld [vmem:[%s1997 + $0x22] sm:$0xff]
  %v2097 = vld [vmem:[%s1997 + $0x32] sm:$0xff]
  %v2098 = vld [vmem:[%s1997 + $0x42] sm:$0xff]
  %v2099 = vld [vmem:[%s1997 + $0x52] sm:$0xff]
  %v2100 = vld [vmem:[%s1997 + $0x62] sm:$0xff]
  %v2101 = vld [vmem:[%s1997 + $0x72] sm:$0xff]
  %v2102 = vpack.c.bf16 %v2095, %v2094
  %v2103 = vpack.c.bf16 %v2097, %v2096
  %v2104 = vpack.c.bf16 %v2099, %v2098
  %v2105 = vpack.c.bf16 %v2101, %v2100
  %v2110 = vunpack.c.l.b16 %v2102
  %v2111 = vunpack.c.h.b16 %v2102
  %v2112 = vunpack.c.l.b16 %v2103
  %v2113 = vunpack.c.h.b16 %v2103
  %v2114 = vunpack.c.l.b16 %v2104
  %v2115 = vunpack.c.h.b16 %v2104
  %v2116 = vunpack.c.l.b16 %v2105
  %v2117 = vunpack.c.h.b16 %v2105
  %v2118 = vpack.c.b16 %v2110, %v2110
  %v2119 = vpack.c.b16 %v2111, %v2111
  %v2120 = vpack.c.b16 %v2112, %v2112
  %v2121 = vpack.c.b16 %v2113, %v2113
  %v2122 = vpack.c.b16 %v2114, %v2114
  %v2123 = vpack.c.b16 %v2115, %v2115
  %v2124 = vpack.c.b16 %v2116, %v2116
  %v2125 = vpack.c.b16 %v2117, %v2117
  %2134 = vst [vmem:[#allocation3 + $0x14] sm:$0xf] %v2118
  %2135 = vst [vmem:[#allocation3 + $0x38] sm:$0xf] %v2119
  %2136 = vst [vmem:[#allocation3 + $0x5c] sm:$0xf] %v2120
  %2137 = vst [vmem:[#allocation3 + $0x80] sm:$0xf] %v2121
  %2138 = vst [vmem:[#allocation3 + $0xa4] sm:$0xf] %v2122
  %2139 = vst [vmem:[#allocation3 + $0xc8] sm:$0xf] %v2123
  %2140 = vst [vmem:[#allocation3 + $0xec] sm:$0xf] %v2124
  %2141 = vst [vmem:[#allocation3 + $0x110] sm:$0xf] %v2125
  %s2142 = scalar_lea.vmem [#allocation2], 192
  %v2143 = vld [vmem:[%s2142] sm:$0xff]
  %v2144 = vld [vmem:[%s2142 + $0x10] sm:$0xff]
  %v2145 = vld [vmem:[%s2142 + $0x20] sm:$0xff]
  %v2146 = vld [vmem:[%s2142 + $0x30] sm:$0xff]
  %v2147 = vld [vmem:[%s2142 + $0x40] sm:$0xff]
  %v2148 = vld [vmem:[%s2142 + $0x50] sm:$0xff]
  %v2149 = vld [vmem:[%s2142 + $0x60] sm:$0xff]
  %v2150 = vld [vmem:[%s2142 + $0x70] sm:$0xff]
  %v2151 = vpack.c.bf16 %v2144, %v2143
  %v2152 = vpack.c.bf16 %v2146, %v2145
  %v2153 = vpack.c.bf16 %v2148, %v2147
  %v2154 = vpack.c.bf16 %v2150, %v2149
  %v2159 = vunpack.c.l.b16 %v2151
  %v2160 = vunpack.c.h.b16 %v2151
  %v2161 = vunpack.c.l.b16 %v2152
  %v2162 = vunpack.c.h.b16 %v2152
  %v2163 = vunpack.c.l.b16 %v2153
  %v2164 = vunpack.c.h.b16 %v2153
  %v2165 = vunpack.c.l.b16 %v2154
  %v2166 = vunpack.c.h.b16 %v2154
  %v2167 = vpack.c.b16 %v2159, %v2159
  %v2168 = vpack.c.b16 %v2160, %v2160
  %v2169 = vpack.c.b16 %v2161, %v2161
  %v2170 = vpack.c.b16 %v2162, %v2162
  %v2171 = vpack.c.b16 %v2163, %v2163
  %v2172 = vpack.c.b16 %v2164, %v2164
  %v2173 = vpack.c.b16 %v2165, %v2165
  %v2174 = vpack.c.b16 %v2166, %v2166
  %2183 = vst [vmem:[#allocation3 + $0x18] sm:$0xf] %v2167
  %2184 = vst [vmem:[#allocation3 + $0x3c] sm:$0xf] %v2168
  %2185 = vst [vmem:[#allocation3 + $0x60] sm:$0xf] %v2169
  %2186 = vst [vmem:[#allocation3 + $0x84] sm:$0xf] %v2170
  %2187 = vst [vmem:[#allocation3 + $0xa8] sm:$0xf] %v2171
  %2188 = vst [vmem:[#allocation3 + $0xcc] sm:$0xf] %v2172
  %2189 = vst [vmem:[#allocation3 + $0xf0] sm:$0xf] %v2173
  %2190 = vst [vmem:[#allocation3 + $0x114] sm:$0xf] %v2174
  %v2191 = vld [vmem:[%s2142 + $0x1] sm:$0xff]
  %v2192 = vld [vmem:[%s2142 + $0x11] sm:$0xff]
  %v2193 = vld [vmem:[%s2142 + $0x21] sm:$0xff]
  %v2194 = vld [vmem:[%s2142 + $0x31] sm:$0xff]
  %v2195 = vld [vmem:[%s2142 + $0x41] sm:$0xff]
  %v2196 = vld [vmem:[%s2142 + $0x51] sm:$0xff]
  %v2197 = vld [vmem:[%s2142 + $0x61] sm:$0xff]
  %v2198 = vld [vmem:[%s2142 + $0x71] sm:$0xff]
  %v2199 = vpack.c.bf16 %v2192, %v2191
  %v2200 = vpack.c.bf16 %v2194, %v2193
  %v2201 = vpack.c.bf16 %v2196, %v2195
  %v2202 = vpack.c.bf16 %v2198, %v2197
  %v2207 = vunpack.c.l.b16 %v2199
  %v2208 = vunpack.c.h.b16 %v2199
  %v2209 = vunpack.c.l.b16 %v2200
  %v2210 = vunpack.c.h.b16 %v2200
  %v2211 = vunpack.c.l.b16 %v2201
  %v2212 = vunpack.c.h.b16 %v2201
  %v2213 = vunpack.c.l.b16 %v2202
  %v2214 = vunpack.c.h.b16 %v2202
  %v2215 = vpack.c.b16 %v2207, %v2207
  %v2216 = vpack.c.b16 %v2208, %v2208
  %v2217 = vpack.c.b16 %v2209, %v2209
  %v2218 = vpack.c.b16 %v2210, %v2210
  %v2219 = vpack.c.b16 %v2211, %v2211
  %v2220 = vpack.c.b16 %v2212, %v2212
  %v2221 = vpack.c.b16 %v2213, %v2213
  %v2222 = vpack.c.b16 %v2214, %v2214
  %2231 = vst [vmem:[#allocation3 + $0x1c] sm:$0xf] %v2215
  %2232 = vst [vmem:[#allocation3 + $0x40] sm:$0xf] %v2216
  %2233 = vst [vmem:[#allocation3 + $0x64] sm:$0xf] %v2217
  %2234 = vst [vmem:[#allocation3 + $0x88] sm:$0xf] %v2218
  %2235 = vst [vmem:[#allocation3 + $0xac] sm:$0xf] %v2219
  %2236 = vst [vmem:[#allocation3 + $0xd0] sm:$0xf] %v2220
  %2237 = vst [vmem:[#allocation3 + $0xf4] sm:$0xf] %v2221
  %2238 = vst [vmem:[#allocation3 + $0x118] sm:$0xf] %v2222
  %v2239 = vld [vmem:[%s2142 + $0x2] sm:$0xff]
  %v2240 = vld [vmem:[%s2142 + $0x12] sm:$0xff]
  %v2241 = vld [vmem:[%s2142 + $0x22] sm:$0xff]
  %v2242 = vld [vmem:[%s2142 + $0x32] sm:$0xff]
  %v2243 = vld [vmem:[%s2142 + $0x42] sm:$0xff]
  %v2244 = vld [vmem:[%s2142 + $0x52] sm:$0xff]
  %v2245 = vld [vmem:[%s2142 + $0x62] sm:$0xff]
  %v2246 = vld [vmem:[%s2142 + $0x72] sm:$0xff]
  %v2247 = vpack.c.bf16 %v2240, %v2239
  %v2248 = vpack.c.bf16 %v2242, %v2241
  %v2249 = vpack.c.bf16 %v2244, %v2243
  %v2250 = vpack.c.bf16 %v2246, %v2245
  %v2255 = vunpack.c.l.b16 %v2247
  %v2256 = vunpack.c.h.b16 %v2247
  %v2257 = vunpack.c.l.b16 %v2248
  %v2258 = vunpack.c.h.b16 %v2248
  %v2259 = vunpack.c.l.b16 %v2249
  %v2260 = vunpack.c.h.b16 %v2249
  %v2261 = vunpack.c.l.b16 %v2250
  %v2262 = vunpack.c.h.b16 %v2250
  %v2263 = vpack.c.b16 %v2255, %v2255
  %v2264 = vpack.c.b16 %v2256, %v2256
  %v2265 = vpack.c.b16 %v2257, %v2257
  %v2266 = vpack.c.b16 %v2258, %v2258
  %v2267 = vpack.c.b16 %v2259, %v2259
  %v2268 = vpack.c.b16 %v2260, %v2260
  %v2269 = vpack.c.b16 %v2261, %v2261
  %v2270 = vpack.c.b16 %v2262, %v2262
  %2279 = vst [vmem:[#allocation3 + $0x20] sm:$0xf] %v2263
  %2280 = vst [vmem:[#allocation3 + $0x44] sm:$0xf] %v2264
  %2281 = vst [vmem:[#allocation3 + $0x68] sm:$0xf] %v2265
  %2282 = vst [vmem:[#allocation3 + $0x8c] sm:$0xf] %v2266
  %2283 = vst [vmem:[#allocation3 + $0xb0] sm:$0xf] %v2267
  %2284 = vst [vmem:[#allocation3 + $0xd4] sm:$0xf] %v2268
  %2285 = vst [vmem:[#allocation3 + $0xf8] sm:$0xf] %v2269
  %2286 = vst [vmem:[#allocation3 + $0x11c] sm:$0xf] %v2270
  %v2287 = vld [vmem:[#allocation3] sm:$0xff]
  %v2288 = vld [vmem:[#allocation3 + $0x8] sm:$0xf]
  %v2289 = vld [vmem:[#allocation3 + $0x24] sm:$0xff]
  %v2290 = vld [vmem:[#allocation3 + $0x2c] sm:$0xf]
  %v2291 = vld [vmem:[#allocation3 + $0x48] sm:$0xff]
  %v2292 = vld [vmem:[#allocation3 + $0x50] sm:$0xf]
  %v2293 = vld [vmem:[#allocation3 + $0x6c] sm:$0xff]
  %v2294 = vld [vmem:[#allocation3 + $0x74] sm:$0xf]
  %v2295 = vld [vmem:[#allocation3 + $0x90] sm:$0xff]
  %v2296 = vld [vmem:[#allocation3 + $0x98] sm:$0xf]
  %v2297 = vld [vmem:[#allocation3 + $0xb4] sm:$0xff]
  %v2298 = vld [vmem:[#allocation3 + $0xbc] sm:$0xf]
  %v2299 = vld [vmem:[#allocation3 + $0xd8] sm:$0xff]
  %v2300 = vld [vmem:[#allocation3 + $0xe0] sm:$0xf]
  %v2301 = vld [vmem:[#allocation3 + $0xfc] sm:$0xff]
  %v2302 = vld [vmem:[#allocation3 + $0x104] sm:$0xf]
  %v2303 = vld [vmem:[%s2] sm:$0xf]
  %v2304 = vld [vmem:[%s2 + $0x4] sm:$0xf]
  %v2305 = vld [vmem:[%s2 + $0x8] sm:$0xf]
  %v2306 = vld [vmem:[%s2 + $0xc] sm:$0xf]
  %v2307 = vld [vmem:[%s2 + $0x10] sm:$0xf]
  %v2308 = vld [vmem:[%s2 + $0x14] sm:$0xf]
  %v2309 = vld [vmem:[%s2 + $0x18] sm:$0xf]
  %v2310 = vld [vmem:[%s2 + $0x1c] sm:$0xf]
  %v2311 = vld [vmem:[%s2 + $0x20] sm:$0xf]
  %v2312 = vld [vmem:[%s2 + $0x24] sm:$0xf]
  %v2313 = vld [vmem:[%s2 + $0x28] sm:$0xf]
  %v2314 = vld [vmem:[%s2 + $0x2c] sm:$0xf]
  %v2315 = vld [vmem:[%s2 + $0x30] sm:$0xf]
  %v2316 = vld [vmem:[%s2 + $0x34] sm:$0xf]
  %v2317 = vld [vmem:[%s2 + $0x38] sm:$0xf]
  %v2318 = vld [vmem:[%s2 + $0x3c] sm:$0xf]
  %v2319 = vld [vmem:[%s2 + $0x40] sm:$0xf]
  %v2320 = vld [vmem:[%s2 + $0x44] sm:$0xf]
  %v2321 = vld [vmem:[%s2 + $0x48] sm:$0xf]
  %v2322 = vld [vmem:[%s2 + $0x4c] sm:$0xf]
  %v2323 = vld [vmem:[%s2 + $0x50] sm:$0xf]
  %v2324 = vld [vmem:[%s2 + $0x54] sm:$0xf]
  %v2325 = vld [vmem:[%s2 + $0x58] sm:$0xf]
  %v2326 = vld [vmem:[%s2 + $0x5c] sm:$0xf]
  %v2327 = vld [vmem:[%s2 + $0x60] sm:$0xf]
  %v2328 = vld [vmem:[%s2 + $0x64] sm:$0xf]
  %v2329 = vld [vmem:[%s2 + $0x68] sm:$0xf]
  %v2330 = vld [vmem:[%s2 + $0x6c] sm:$0xf]
  %v2331 = vld [vmem:[%s2 + $0x70] sm:$0xf]
  %v2332 = vld [vmem:[%s2 + $0x74] sm:$0xf]
  %v2333 = vld [vmem:[%s2 + $0x78] sm:$0xf]
  %v2334 = vld [vmem:[%s2 + $0x7c] sm:$0xf]
  %v2335 = vld [vmem:[%s2 + $0x80] sm:$0xf]
  %v2336 = vld [vmem:[%s2 + $0x84] sm:$0xf]
  %v2337 = vld [vmem:[%s2 + $0x88] sm:$0xf]
  %v2338 = vld [vmem:[%s2 + $0x8c] sm:$0xf]
  %v2339 = vld [vmem:[%s2 + $0x90] sm:$0xf]
  %v2340 = vld [vmem:[%s2 + $0x94] sm:$0xf]
  %v2341 = vld [vmem:[%s2 + $0x98] sm:$0xf]
  %v2342 = vld [vmem:[%s2 + $0x9c] sm:$0xf]
  %v2343 = vld [vmem:[%s2 + $0xa0] sm:$0xf]
  %v2344 = vld [vmem:[%s2 + $0xa4] sm:$0xf]
  %v2345 = vld [vmem:[%s2 + $0xa8] sm:$0xf]
  %v2346 = vld [vmem:[%s2 + $0xac] sm:$0xf]
  %v2347 = vld [vmem:[%s2 + $0xb0] sm:$0xf]
  %v2348 = vld [vmem:[%s2 + $0xb4] sm:$0xf]
  %v2349 = vld [vmem:[%s2 + $0xb8] sm:$0xf]
  %v2350 = vld [vmem:[%s2 + $0xbc] sm:$0xf]
  %v2351 = vld [vmem:[#allocation3 + $0xc] sm:$0xff]
  %v2352 = vld [vmem:[#allocation3 + $0x14] sm:$0xf]
  %v2353 = vld [vmem:[#allocation3 + $0x30] sm:$0xff]
  %v2354 = vld [vmem:[#allocation3 + $0x38] sm:$0xf]
  %v2355 = vld [vmem:[#allocation3 + $0x54] sm:$0xff]
  %v2356 = vld [vmem:[#allocation3 + $0x5c] sm:$0xf]
  %v2357 = vld [vmem:[#allocation3 + $0x78] sm:$0xff]
  %v2358 = vld [vmem:[#allocation3 + $0x80] sm:$0xf]
  %v2359 = vld [vmem:[#allocation3 + $0x9c] sm:$0xff]
  %v2360 = vld [vmem:[#allocation3 + $0xa4] sm:$0xf]
  %v2361 = vld [vmem:[#allocation3 + $0xc0] sm:$0xff]
  %v2362 = vld [vmem:[#allocation3 + $0xc8] sm:$0xf]
  %v2363 = vld [vmem:[#allocation3 + $0xe4] sm:$0xff]
  %v2364 = vld [vmem:[#allocation3 + $0xec] sm:$0xf]
  %v2365 = vld [vmem:[#allocation3 + $0x108] sm:$0xff]
  %v2366 = vld [vmem:[#allocation3 + $0x110] sm:$0xf]
  %v2367 = vld [vmem:[%s2 + $0xc0] sm:$0xf]
  %v2368 = vld [vmem:[%s2 + $0xc4] sm:$0xf]
  %v2369 = vld [vmem:[%s2 + $0xc8] sm:$0xf]
  %v2370 = vld [vmem:[%s2 + $0xcc] sm:$0xf]
  %v2371 = vld [vmem:[%s2 + $0xd0] sm:$0xf]
  %v2372 = vld [vmem:[%s2 + $0xd4] sm:$0xf]
  %v2373 = vld [vmem:[%s2 + $0xd8] sm:$0xf]
  %v2374 = vld [vmem:[%s2 + $0xdc] sm:$0xf]
  %v2375 = vld [vmem:[%s2 + $0xe0] sm:$0xf]
  %v2376 = vld [vmem:[%s2 + $0xe4] sm:$0xf]
  %v2377 = vld [vmem:[%s2 + $0xe8] sm:$0xf]
  %v2378 = vld [vmem:[%s2 + $0xec] sm:$0xf]
  %v2379 = vld [vmem:[%s2 + $0xf0] sm:$0xf]
  %v2380 = vld [vmem:[%s2 + $0xf4] sm:$0xf]
  %v2381 = vld [vmem:[%s2 + $0xf8] sm:$0xf]
  %v2382 = vld [vmem:[%s2 + $0xfc] sm:$0xf]
  %v2383 = vld [vmem:[%s2 + $0x100] sm:$0xf]
  %v2384 = vld [vmem:[%s2 + $0x104] sm:$0xf]
  %v2385 = vld [vmem:[%s2 + $0x108] sm:$0xf]
  %v2386 = vld [vmem:[%s2 + $0x10c] sm:$0xf]
  %v2387 = vld [vmem:[%s2 + $0x110] sm:$0xf]
  %v2388 = vld [vmem:[%s2 + $0x114] sm:$0xf]
  %v2389 = vld [vmem:[%s2 + $0x118] sm:$0xf]
  %v2390 = vld [vmem:[%s2 + $0x11c] sm:$0xf]
  %v2391 = vld [vmem:[%s2 + $0x120] sm:$0xf]
  %v2392 = vld [vmem:[%s2 + $0x124] sm:$0xf]
  %v2393 = vld [vmem:[%s2 + $0x128] sm:$0xf]
  %v2394 = vld [vmem:[%s2 + $0x12c] sm:$0xf]
  %v2395 = vld [vmem:[%s2 + $0x130] sm:$0xf]
  %v2396 = vld [vmem:[%s2 + $0x134] sm:$0xf]
  %v2397 = vld [vmem:[%s2 + $0x138] sm:$0xf]
  %v2398 = vld [vmem:[%s2 + $0x13c] sm:$0xf]
  %v2399 = vld [vmem:[%s2 + $0x140] sm:$0xf]
  %v2400 = vld [vmem:[%s2 + $0x144] sm:$0xf]
  %v2401 = vld [vmem:[%s2 + $0x148] sm:$0xf]
  %v2402 = vld [vmem:[%s2 + $0x14c] sm:$0xf]
  %v2403 = vld [vmem:[%s2 + $0x150] sm:$0xf]
  %v2404 = vld [vmem:[%s2 + $0x154] sm:$0xf]
  %v2405 = vld [vmem:[%s2 + $0x158] sm:$0xf]
  %v2406 = vld [vmem:[%s2 + $0x15c] sm:$0xf]
  %v2407 = vld [vmem:[%s2 + $0x160] sm:$0xf]
  %v2408 = vld [vmem:[%s2 + $0x164] sm:$0xf]
  %v2409 = vld [vmem:[%s2 + $0x168] sm:$0xf]
  %v2410 = vld [vmem:[%s2 + $0x16c] sm:$0xf]
  %v2411 = vld [vmem:[%s2 + $0x170] sm:$0xf]
  %v2412 = vld [vmem:[%s2 + $0x174] sm:$0xf]
  %v2413 = vld [vmem:[%s2 + $0x178] sm:$0xf]
  %v2414 = vld [vmem:[%s2 + $0x17c] sm:$0xf]
  %v2431 = vunpack.c.l.b16 %v2351
  %v2432 = vunpack.c.h.b16 %v2351
  %v2433 = vunpack.c.l.b16 %v2352
  %v2434 = vunpack.c.l.b16 %v2353
  %v2435 = vunpack.c.h.b16 %v2353
  %v2436 = vunpack.c.l.b16 %v2354
  %v2437 = vunpack.c.l.b16 %v2355
  %v2438 = vunpack.c.h.b16 %v2355
  %v2439 = vunpack.c.l.b16 %v2356
  %v2440 = vunpack.c.l.b16 %v2357
  %v2441 = vunpack.c.h.b16 %v2357
  %v2442 = vunpack.c.l.b16 %v2358
  %v2443 = vunpack.c.l.b16 %v2359
  %v2444 = vunpack.c.h.b16 %v2359
  %v2445 = vunpack.c.l.b16 %v2360
  %v2446 = vunpack.c.l.b16 %v2361
  %v2447 = vunpack.c.h.b16 %v2361
  %v2448 = vunpack.c.l.b16 %v2362
  %v2449 = vunpack.c.l.b16 %v2363
  %v2450 = vunpack.c.h.b16 %v2363
  %v2451 = vunpack.c.l.b16 %v2364
  %v2452 = vunpack.c.l.b16 %v2365
  %v2453 = vunpack.c.h.b16 %v2365
  %v2454 = vunpack.c.l.b16 %v2366
  %v2455 = vpack.c.b16 %v2434, %v2431
  %v2456 = vpack.c.b16 %v2435, %v2432
  %v2457 = vpack.c.b16 %v2436, %v2433
  %v2458 = vpack.c.b16 %v2440, %v2437
  %v2459 = vpack.c.b16 %v2441, %v2438
  %v2460 = vpack.c.b16 %v2442, %v2439
  %v2461 = vpack.c.b16 %v2446, %v2443
  %v2462 = vpack.c.b16 %v2447, %v2444
  %v2463 = vpack.c.b16 %v2448, %v2445
  %v2464 = vpack.c.b16 %v2452, %v2449
  %v2465 = vpack.c.b16 %v2453, %v2450
  %v2466 = vpack.c.b16 %v2454, %v2451
  %v2527 = vunpack.c.l.b16 %v2367
  %v2528 = vunpack.c.l.b16 %v2368
  %v2529 = vunpack.c.l.b16 %v2369
  %v2530 = vunpack.c.l.b16 %v2370
  %v2531 = vunpack.c.l.b16 %v2371
  %v2532 = vunpack.c.l.b16 %v2372
  %v2533 = vunpack.c.l.b16 %v2373
  %v2534 = vunpack.c.l.b16 %v2374
  %v2535 = vunpack.c.l.b16 %v2375
  %v2536 = vunpack.c.l.b16 %v2376
  %v2537 = vunpack.c.l.b16 %v2377
  %v2538 = vunpack.c.l.b16 %v2378
  %v2539 = vunpack.c.l.b16 %v2379
  %v2540 = vunpack.c.l.b16 %v2380
  %v2541 = vunpack.c.l.b16 %v2381
  %v2542 = vunpack.c.l.b16 %v2382
  %v2543 = vunpack.c.l.b16 %v2383
  %v2544 = vunpack.c.l.b16 %v2384
  %v2545 = vunpack.c.l.b16 %v2385
  %v2546 = vunpack.c.l.b16 %v2386
  %v2547 = vunpack.c.l.b16 %v2387
  %v2548 = vunpack.c.l.b16 %v2388
  %v2549 = vunpack.c.l.b16 %v2389
  %v2550 = vunpack.c.l.b16 %v2390
  %v2551 = vunpack.c.l.b16 %v2391
  %v2552 = vunpack.c.l.b16 %v2392
  %v2553 = vunpack.c.l.b16 %v2393
  %v2554 = vunpack.c.l.b16 %v2394
  %v2555 = vunpack.c.l.b16 %v2395
  %v2556 = vunpack.c.l.b16 %v2396
  %v2557 = vunpack.c.l.b16 %v2397
  %v2558 = vunpack.c.l.b16 %v2398
  %v2559 = vunpack.c.l.b16 %v2399
  %v2560 = vunpack.c.l.b16 %v2400
  %v2561 = vunpack.c.l.b16 %v2401
  %v2562 = vunpack.c.l.b16 %v2402
  %v2563 = vunpack.c.l.b16 %v2403
  %v2564 = vunpack.c.l.b16 %v2404
  %v2565 = vunpack.c.l.b16 %v2405
  %v2566 = vunpack.c.l.b16 %v2406
  %v2567 = vunpack.c.l.b16 %v2407
  %v2568 = vunpack.c.l.b16 %v2408
  %v2569 = vunpack.c.l.b16 %v2409
  %v2570 = vunpack.c.l.b16 %v2410
  %v2571 = vunpack.c.l.b16 %v2411
  %v2572 = vunpack.c.l.b16 %v2412
  %v2573 = vunpack.c.l.b16 %v2413
  %v2574 = vunpack.c.l.b16 %v2414
  %v2575 = vpack.c.b16 %v2528, %v2527
  %v2576 = vpack.c.b16 %v2530, %v2529
  %v2577 = vpack.c.b16 %v2532, %v2531
  %v2578 = vpack.c.b16 %v2534, %v2533
  %v2579 = vpack.c.b16 %v2536, %v2535
  %v2580 = vpack.c.b16 %v2538, %v2537
  %v2581 = vpack.c.b16 %v2540, %v2539
  %v2582 = vpack.c.b16 %v2542, %v2541
  %v2583 = vpack.c.b16 %v2544, %v2543
  %v2584 = vpack.c.b16 %v2546, %v2545
  %v2585 = vpack.c.b16 %v2548, %v2547
  %v2586 = vpack.c.b16 %v2550, %v2549
  %v2587 = vpack.c.b16 %v2552, %v2551
  %v2588 = vpack.c.b16 %v2554, %v2553
  %v2589 = vpack.c.b16 %v2556, %v2555
  %v2590 = vpack.c.b16 %v2558, %v2557
  %v2591 = vpack.c.b16 %v2560, %v2559
  %v2592 = vpack.c.b16 %v2562, %v2561
  %v2593 = vpack.c.b16 %v2564, %v2563
  %v2594 = vpack.c.b16 %v2566, %v2565
  %v2595 = vpack.c.b16 %v2568, %v2567
  %v2596 = vpack.c.b16 %v2570, %v2569
  %v2597 = vpack.c.b16 %v2572, %v2571
  %v2598 = vpack.c.b16 %v2574, %v2573
  %2623 = vmatprep.subr.bf16.mxu0 0
  %2624 = vmatpush1.bf16.msra.mxu0 %v2582
  %2625 = vmatprep.subr.bf16.mxu0 0
  %2626 = vmatpush1.bf16.msra.mxu0 %v2581
  %2627 = vmatprep.subr.bf16.mxu0 0
  %2628 = vmatpush1.bf16.msra.mxu0 %v2580
  %2629 = vmatprep.subr.bf16.mxu0 0
  %2630 = vmatpush1.bf16.msra.mxu0 %v2579
  %2631 = vmatprep.subr.bf16.mxu0 0
  %2632 = vmatpush1.bf16.msra.mxu0 %v2578
  %2633 = vmatprep.subr.bf16.mxu0 0
  %2634 = vmatpush1.bf16.msra.mxu0 %v2577
  %2635 = vmatprep.subr.bf16.mxu0 0
  %2636 = vmatpush1.bf16.msra.mxu0 %v2576
  %2637 = vmatprep.subr.bf16.mxu0 0
  %2638 = vmatpush1.bf16.msra.mxu0 %v2575
  %2639 = vmatprep.subr.bf16.mxu0 0
  %2640 = vmatpush2.bf16.msra.mxu0 %v2590
  %2641 = vmatprep.subr.bf16.mxu0 0
  %2642 = vmatpush2.bf16.msra.mxu0 %v2589
  %2643 = vmatprep.subr.bf16.mxu0 0
  %2644 = vmatpush2.bf16.msra.mxu0 %v2588
  %2645 = vmatprep.subr.bf16.mxu0 0
  %2646 = vmatpush2.bf16.msra.mxu0 %v2587
  %2647 = vmatprep.subr.bf16.mxu0 0
  %2648 = vmatpush2.bf16.msra.mxu0 %v2586
  %2649 = vmatprep.subr.bf16.mxu0 0
  %2650 = vmatpush2.bf16.msra.mxu0 %v2585
  %2651 = vmatprep.subr.bf16.mxu0 0
  %2652 = vmatpush2.bf16.msra.mxu0 %v2584
  %2653 = vmatprep.subr.bf16.mxu0 0
  %2654 = vmatpush2.bf16.msra.mxu0 %v2583
  %2655 = vmatprep.mubr.bf16.mxu0 %v2456
  %2656 = vmatmul.mubr.bf16.gmra.mxu0 %v2455
  %v2657 = vpop.f32.mrf.mxu0
  %v2658 = vadd.f32 0.0, %v2657
  %v2659 = vpop.f32.mrf.mxu0
  %v2660 = vpop.f32.mrf.mxu0
  %v2661 = vadd.f32 0.0, %v2660
  %v2662 = vpop.f32.mrf.mxu0
  %2663 = vmatprep.mubr.bf16.mxu0 %v2459
  %2664 = vmatmul.mubr.bf16.gmra.mxu0 %v2458
  %v2665 = vpop.f32.mrf.mxu0
  %v2666 = vadd.f32 0.0, %v2665
  %v2667 = vpop.f32.mrf.mxu0
  %v2668 = vpop.f32.mrf.mxu0
  %v2669 = vadd.f32 0.0, %v2668
  %v2670 = vpop.f32.mrf.mxu0
  %2671 = vmatprep.mubr.bf16.mxu0 %v2462
  %2672 = vmatmul.mubr.bf16.gmra.mxu0 %v2461
  %v2673 = vpop.f32.mrf.mxu0
  %v2674 = vadd.f32 0.0, %v2673
  %v2675 = vpop.f32.mrf.mxu0
  %v2676 = vpop.f32.mrf.mxu0
  %v2677 = vadd.f32 0.0, %v2676
  %v2678 = vpop.f32.mrf.mxu0
  %2679 = vmatprep.mubr.bf16.mxu0 %v2465
  %2680 = vmatmul.mubr.bf16.gmra.mxu0 %v2464
  %v2681 = vpop.f32.mrf.mxu0
  %v2682 = vadd.f32 0.0, %v2681
  %v2683 = vpop.f32.mrf.mxu0
  %v2684 = vpop.f32.mrf.mxu0
  %v2685 = vadd.f32 0.0, %v2684
  %v2686 = vpop.f32.mrf.mxu0
  %2687 = vdwg.mxu0
  %2688 = vmatprep.subr.bf16.mxu0 0
  %2689 = vmatpush1.bf16.msra.mxu0 %v2598
  %2690 = vmatprep.subr.bf16.mxu0 0
  %2691 = vmatpush1.bf16.msra.mxu0 %v2597
  %2692 = vmatprep.subr.bf16.mxu0 0
  %2693 = vmatpush1.bf16.msra.mxu0 %v2596
  %2694 = vmatprep.subr.bf16.mxu0 0
  %2695 = vmatpush1.bf16.msra.mxu0 %v2595
  %2696 = vmatprep.subr.bf16.mxu0 0
  %2697 = vmatpush1.bf16.msra.mxu0 %v2594
  %2698 = vmatprep.subr.bf16.mxu0 0
  %2699 = vmatpush1.bf16.msra.mxu0 %v2593
  %2700 = vmatprep.subr.bf16.mxu0 0
  %2701 = vmatpush1.bf16.msra.mxu0 %v2592
  %2702 = vmatprep.subr.bf16.mxu0 0
  %2703 = vmatpush1.bf16.msra.mxu0 %v2591
  %2704 = vmatprep.subr.bf16.mxu0 0
  %2705 = vmatpush2.bf16.msra.mxu0 0
  %2706 = vmatprep.subr.bf16.mxu0 0
  %2707 = vmatpush2.bf16.msra.mxu0 0
  %2708 = vmatprep.subr.bf16.mxu0 0
  %2709 = vmatpush2.bf16.msra.mxu0 0
  %2710 = vmatprep.subr.bf16.mxu0 0
  %2711 = vmatpush2.bf16.msra.mxu0 0
  %2712 = vmatprep.subr.bf16.mxu0 0
  %2713 = vmatpush2.bf16.msra.mxu0 0
  %2714 = vmatprep.subr.bf16.mxu0 0
  %2715 = vmatpush2.bf16.msra.mxu0 0
  %2716 = vmatprep.subr.bf16.mxu0 0
  %2717 = vmatpush2.bf16.msra.mxu0 0
  %2718 = vmatprep.subr.bf16.mxu0 0
  %2719 = vmatpush2.bf16.msra.mxu0 0
  %2720 = vmatprep.mubr.bf16.mxu0 0
  %2721 = vmatmul.mubr.bf16.gmra.mxu0 %v2457
  %v2722 = vpop.f32.mrf.mxu0
  %v2723 = vadd.f32 %v2658, %v2722
  %v2724 = vpop.f32.mrf.mxu0
  %v2725 = vpop.f32.mrf.mxu0
  %v2726 = vadd.f32 %v2661, %v2725
  %v2727 = vpop.f32.mrf.mxu0
  %2728 = vmatprep.mubr.bf16.mxu0 0
  %2729 = vmatmul.mubr.bf16.gmra.mxu0 %v2460
  %v2730 = vpop.f32.mrf.mxu0
  %v2731 = vadd.f32 %v2666, %v2730
  %v2732 = vpop.f32.mrf.mxu0
  %v2733 = vpop.f32.mrf.mxu0
  %v2734 = vadd.f32 %v2669, %v2733
  %v2735 = vpop.f32.mrf.mxu0
  %2736 = vmatprep.mubr.bf16.mxu0 0
  %2737 = vmatmul.mubr.bf16.gmra.mxu0 %v2463
  %v2738 = vpop.f32.mrf.mxu0
  %v2739 = vadd.f32 %v2674, %v2738
  %v2740 = vpop.f32.mrf.mxu0
  %v2741 = vpop.f32.mrf.mxu0
  %v2742 = vadd.f32 %v2677, %v2741
  %v2743 = vpop.f32.mrf.mxu0
  %2744 = vmatprep.mubr.bf16.mxu0 0
  %2745 = vmatmul.mubr.bf16.gmra.mxu0 %v2466
  %v2746 = vpop.f32.mrf.mxu0
  %v2747 = vadd.f32 %v2682, %v2746
  %v2748 = vpop.f32.mrf.mxu0
  %v2749 = vpop.f32.mrf.mxu0
  %v2750 = vadd.f32 %v2685, %v2749
  %v2751 = vpop.f32.mrf.mxu0
  %2752 = vdwg.mxu0
  %v2769 = vunpack.c.l.b16 %v2287
  %v2770 = vunpack.c.h.b16 %v2287
  %v2771 = vunpack.c.l.b16 %v2288
  %v2772 = vunpack.c.l.b16 %v2289
  %v2773 = vunpack.c.h.b16 %v2289
  %v2774 = vunpack.c.l.b16 %v2290
  %v2775 = vunpack.c.l.b16 %v2291
  %v2776 = vunpack.c.h.b16 %v2291
  %v2777 = vunpack.c.l.b16 %v2292
  %v2778 = vunpack.c.l.b16 %v2293
  %v2779 = vunpack.c.h.b16 %v2293
  %v2780 = vunpack.c.l.b16 %v2294
  %v2781 = vunpack.c.l.b16 %v2295
  %v2782 = vunpack.c.h.b16 %v2295
  %v2783 = vunpack.c.l.b16 %v2296
  %v2784 = vunpack.c.l.b16 %v2297
  %v2785 = vunpack.c.h.b16 %v2297
  %v2786 = vunpack.c.l.b16 %v2298
  %v2787 = vunpack.c.l.b16 %v2299
  %v2788 = vunpack.c.h.b16 %v2299
  %v2789 = vunpack.c.l.b16 %v2300
  %v2790 = vunpack.c.l.b16 %v2301
  %v2791 = vunpack.c.h.b16 %v2301
  %v2792 = vunpack.c.l.b16 %v2302
  %v2793 = vpack.c.b16 %v2772, %v2769
  %v2794 = vpack.c.b16 %v2773, %v2770
  %v2795 = vpack.c.b16 %v2774, %v2771
  %v2796 = vpack.c.b16 %v2778, %v2775
  %v2797 = vpack.c.b16 %v2779, %v2776
  %v2798 = vpack.c.b16 %v2780, %v2777
  %v2799 = vpack.c.b16 %v2784, %v2781
  %v2800 = vpack.c.b16 %v2785, %v2782
  %v2801 = vpack.c.b16 %v2786, %v2783
  %v2802 = vpack.c.b16 %v2790, %v2787
  %v2803 = vpack.c.b16 %v2791, %v2788
  %v2804 = vpack.c.b16 %v2792, %v2789
  %v2865 = vunpack.c.l.b16 %v2303
  %v2866 = vunpack.c.l.b16 %v2304
  %v2867 = vunpack.c.l.b16 %v2305
  %v2868 = vunpack.c.l.b16 %v2306
  %v2869 = vunpack.c.l.b16 %v2307
  %v2870 = vunpack.c.l.b16 %v2308
  %v2871 = vunpack.c.l.b16 %v2309
  %v2872 = vunpack.c.l.b16 %v2310
  %v2873 = vunpack.c.l.b16 %v2311
  %v2874 = vunpack.c.l.b16 %v2312
  %v2875 = vunpack.c.l.b16 %v2313
  %v2876 = vunpack.c.l.b16 %v2314
  %v2877 = vunpack.c.l.b16 %v2315
  %v2878 = vunpack.c.l.b16 %v2316
  %v2879 = vunpack.c.l.b16 %v2317
  %v2880 = vunpack.c.l.b16 %v2318
  %v2881 = vunpack.c.l.b16 %v2319
  %v2882 = vunpack.c.l.b16 %v2320
  %v2883 = vunpack.c.l.b16 %v2321
  %v2884 = vunpack.c.l.b16 %v2322
  %v2885 = vunpack.c.l.b16 %v2323
  %v2886 = vunpack.c.l.b16 %v2324
  %v2887 = vunpack.c.l.b16 %v2325
  %v2888 = vunpack.c.l.b16 %v2326
  %v2889 = vunpack.c.l.b16 %v2327
  %v2890 = vunpack.c.l.b16 %v2328
  %v2891 = vunpack.c.l.b16 %v2329
  %v2892 = vunpack.c.l.b16 %v2330
  %v2893 = vunpack.c.l.b16 %v2331
  %v2894 = vunpack.c.l.b16 %v2332
  %v2895 = vunpack.c.l.b16 %v2333
  %v2896 = vunpack.c.l.b16 %v2334
  %v2897 = vunpack.c.l.b16 %v2335
  %v2898 = vunpack.c.l.b16 %v2336
  %v2899 = vunpack.c.l.b16 %v2337
  %v2900 = vunpack.c.l.b16 %v2338
  %v2901 = vunpack.c.l.b16 %v2339
  %v2902 = vunpack.c.l.b16 %v2340
  %v2903 = vunpack.c.l.b16 %v2341
  %v2904 = vunpack.c.l.b16 %v2342
  %v2905 = vunpack.c.l.b16 %v2343
  %v2906 = vunpack.c.l.b16 %v2344
  %v2907 = vunpack.c.l.b16 %v2345
  %v2908 = vunpack.c.l.b16 %v2346
  %v2909 = vunpack.c.l.b16 %v2347
  %v2910 = vunpack.c.l.b16 %v2348
  %v2911 = vunpack.c.l.b16 %v2349
  %v2912 = vunpack.c.l.b16 %v2350
  %v2913 = vpack.c.b16 %v2866, %v2865
  %v2914 = vpack.c.b16 %v2868, %v2867
  %v2915 = vpack.c.b16 %v2870, %v2869
  %v2916 = vpack.c.b16 %v2872, %v2871
  %v2917 = vpack.c.b16 %v2874, %v2873
  %v2918 = vpack.c.b16 %v2876, %v2875
  %v2919 = vpack.c.b16 %v2878, %v2877
  %v2920 = vpack.c.b16 %v2880, %v2879
  %v2921 = vpack.c.b16 %v2882, %v2881
  %v2922 = vpack.c.b16 %v2884, %v2883
  %v2923 = vpack.c.b16 %v2886, %v2885
  %v2924 = vpack.c.b16 %v2888, %v2887
  %v2925 = vpack.c.b16 %v2890, %v2889
  %v2926 = vpack.c.b16 %v2892, %v2891
  %v2927 = vpack.c.b16 %v2894, %v2893
  %v2928 = vpack.c.b16 %v2896, %v2895
  %v2929 = vpack.c.b16 %v2898, %v2897
  %v2930 = vpack.c.b16 %v2900, %v2899
  %v2931 = vpack.c.b16 %v2902, %v2901
  %v2932 = vpack.c.b16 %v2904, %v2903
  %v2933 = vpack.c.b16 %v2906, %v2905
  %v2934 = vpack.c.b16 %v2908, %v2907
  %v2935 = vpack.c.b16 %v2910, %v2909
  %v2936 = vpack.c.b16 %v2912, %v2911
  %2961 = vmatprep.subr.bf16.mxu0 0
  %2962 = vmatpush1.bf16.msra.mxu0 %v2920
  %2963 = vmatprep.subr.bf16.mxu0 0
  %2964 = vmatpush1.bf16.msra.mxu0 %v2919
  %2965 = vmatprep.subr.bf16.mxu0 0
  %2966 = vmatpush1.bf16.msra.mxu0 %v2918
  %2967 = vmatprep.subr.bf16.mxu0 0
  %2968 = vmatpush1.bf16.msra.mxu0 %v2917
  %2969 = vmatprep.subr.bf16.mxu0 0
  %2970 = vmatpush1.bf16.msra.mxu0 %v2916
  %2971 = vmatprep.subr.bf16.mxu0 0
  %2972 = vmatpush1.bf16.msra.mxu0 %v2915
  %2973 = vmatprep.subr.bf16.mxu0 0
  %2974 = vmatpush1.bf16.msra.mxu0 %v2914
  %2975 = vmatprep.subr.bf16.mxu0 0
  %2976 = vmatpush1.bf16.msra.mxu0 %v2913
  %2977 = vmatprep.subr.bf16.mxu0 0
  %2978 = vmatpush2.bf16.msra.mxu0 %v2928
  %2979 = vmatprep.subr.bf16.mxu0 0
  %2980 = vmatpush2.bf16.msra.mxu0 %v2927
  %2981 = vmatprep.subr.bf16.mxu0 0
  %2982 = vmatpush2.bf16.msra.mxu0 %v2926
  %2983 = vmatprep.subr.bf16.mxu0 0
  %2984 = vmatpush2.bf16.msra.mxu0 %v2925
  %2985 = vmatprep.subr.bf16.mxu0 0
  %2986 = vmatpush2.bf16.msra.mxu0 %v2924
  %2987 = vmatprep.subr.bf16.mxu0 0
  %2988 = vmatpush2.bf16.msra.mxu0 %v2923
  %2989 = vmatprep.subr.bf16.mxu0 0
  %2990 = vmatpush2.bf16.msra.mxu0 %v2922
  %2991 = vmatprep.subr.bf16.mxu0 0
  %2992 = vmatpush2.bf16.msra.mxu0 %v2921
  %2993 = vmatprep.mubr.bf16.mxu0 %v2794
  %2994 = vmatmul.mubr.bf16.gmra.mxu0 %v2793
  %v2995 = vpop.f32.mrf.mxu0
  %v2996 = vadd.f32 %v2723, %v2995
  %v2997 = vpop.f32.mrf.mxu0
  %v2998 = vpop.f32.mrf.mxu0
  %v2999 = vadd.f32 %v2726, %v2998
  %v3000 = vpop.f32.mrf.mxu0
  %3001 = vmatprep.mubr.bf16.mxu0 %v2797
  %3002 = vmatmul.mubr.bf16.gmra.mxu0 %v2796
  %v3003 = vpop.f32.mrf.mxu0
  %v3004 = vadd.f32 %v2731, %v3003
  %v3005 = vpop.f32.mrf.mxu0
  %v3006 = vpop.f32.mrf.mxu0
  %v3007 = vadd.f32 %v2734, %v3006
  %v3008 = vpop.f32.mrf.mxu0
  %3009 = vmatprep.mubr.bf16.mxu0 %v2800
  %3010 = vmatmul.mubr.bf16.gmra.mxu0 %v2799
  %v3011 = vpop.f32.mrf.mxu0
  %v3012 = vadd.f32 %v2739, %v3011
  %v3013 = vpop.f32.mrf.mxu0
  %v3014 = vpop.f32.mrf.mxu0
  %v3015 = vadd.f32 %v2742, %v3014
  %v3016 = vpop.f32.mrf.mxu0
  %3017 = vmatprep.mubr.bf16.mxu0 %v2803
  %3018 = vmatmul.mubr.bf16.gmra.mxu0 %v2802
  %v3019 = vpop.f32.mrf.mxu0
  %v3020 = vadd.f32 %v2747, %v3019
  %v3021 = vpop.f32.mrf.mxu0
  %v3022 = vpop.f32.mrf.mxu0
  %v3023 = vadd.f32 %v2750, %v3022
  %v3024 = vpop.f32.mrf.mxu0
  %3025 = vdwg.mxu0
  %3026 = vmatprep.subr.bf16.mxu0 0
  %3027 = vmatpush1.bf16.msra.mxu0 %v2936
  %3028 = vmatprep.subr.bf16.mxu0 0
  %3029 = vmatpush1.bf16.msra.mxu0 %v2935
  %3030 = vmatprep.subr.bf16.mxu0 0
  %3031 = vmatpush1.bf16.msra.mxu0 %v2934
  %3032 = vmatprep.subr.bf16.mxu0 0
  %3033 = vmatpush1.bf16.msra.mxu0 %v2933
  %3034 = vmatprep.subr.bf16.mxu0 0
  %3035 = vmatpush1.bf16.msra.mxu0 %v2932
  %3036 = vmatprep.subr.bf16.mxu0 0
  %3037 = vmatpush1.bf16.msra.mxu0 %v2931
  %3038 = vmatprep.subr.bf16.mxu0 0
  %3039 = vmatpush1.bf16.msra.mxu0 %v2930
  %3040 = vmatprep.subr.bf16.mxu0 0
  %3041 = vmatpush1.bf16.msra.mxu0 %v2929
  %3042 = vmatprep.subr.bf16.mxu0 0
  %3043 = vmatpush2.bf16.msra.mxu0 0
  %3044 = vmatprep.subr.bf16.mxu0 0
  %3045 = vmatpush2.bf16.msra.mxu0 0
  %3046 = vmatprep.subr.bf16.mxu0 0
  %3047 = vmatpush2.bf16.msra.mxu0 0
  %3048 = vmatprep.subr.bf16.mxu0 0
  %3049 = vmatpush2.bf16.msra.mxu0 0
  %3050 = vmatprep.subr.bf16.mxu0 0
  %3051 = vmatpush2.bf16.msra.mxu0 0
  %3052 = vmatprep.subr.bf16.mxu0 0
  %3053 = vmatpush2.bf16.msra.mxu0 0
  %3054 = vmatprep.subr.bf16.mxu0 0
  %3055 = vmatpush2.bf16.msra.mxu0 0
  %3056 = vmatprep.subr.bf16.mxu0 0
  %3057 = vmatpush2.bf16.msra.mxu0 0
  %3058 = vmatprep.mubr.bf16.mxu0 0
  %3059 = vmatmul.mubr.bf16.gmra.mxu0 %v2795
  %v3060 = vpop.f32.mrf.mxu0
  %v3061 = vadd.f32 %v2996, %v3060
  %v3062 = vpop.f32.mrf.mxu0
  %v3063 = vpop.f32.mrf.mxu0
  %v3064 = vadd.f32 %v2999, %v3063
  %v3065 = vpop.f32.mrf.mxu0
  %3066 = vmatprep.mubr.bf16.mxu0 0
  %3067 = vmatmul.mubr.bf16.gmra.mxu0 %v2798
  %v3068 = vpop.f32.mrf.mxu0
  %v3069 = vadd.f32 %v3004, %v3068
  %v3070 = vpop.f32.mrf.mxu0
  %v3071 = vpop.f32.mrf.mxu0
  %v3072 = vadd.f32 %v3007, %v3071
  %v3073 = vpop.f32.mrf.mxu0
  %3074 = vmatprep.mubr.bf16.mxu0 0
  %3075 = vmatmul.mubr.bf16.gmra.mxu0 %v2801
  %v3076 = vpop.f32.mrf.mxu0
  %v3077 = vadd.f32 %v3012, %v3076
  %v3078 = vpop.f32.mrf.mxu0
  %v3079 = vpop.f32.mrf.mxu0
  %v3080 = vadd.f32 %v3015, %v3079
  %v3081 = vpop.f32.mrf.mxu0
  %3082 = vmatprep.mubr.bf16.mxu0 0
  %3083 = vmatmul.mubr.bf16.gmra.mxu0 %v2804
  %v3084 = vpop.f32.mrf.mxu0
  %v3085 = vadd.f32 %v3020, %v3084
  %v3086 = vpop.f32.mrf.mxu0
  %v3087 = vpop.f32.mrf.mxu0
  %v3088 = vadd.f32 %v3023, %v3087
  %v3089 = vpop.f32.mrf.mxu0
  %3090 = vdwg.mxu0
  %v3091 = vld [vmem:[#allocation3 + $0x18] sm:$0xff]
  %v3092 = vld [vmem:[#allocation3 + $0x20] sm:$0xf]
  %v3093 = vld [vmem:[#allocation3 + $0x3c] sm:$0xff]
  %v3094 = vld [vmem:[#allocation3 + $0x44] sm:$0xf]
  %v3095 = vld [vmem:[#allocation3 + $0x60] sm:$0xff]
  %v3096 = vld [vmem:[#allocation3 + $0x68] sm:$0xf]
  %v3097 = vld [vmem:[#allocation3 + $0x84] sm:$0xff]
  %v3098 = vld [vmem:[#allocation3 + $0x8c] sm:$0xf]
  %v3099 = vld [vmem:[#allocation3 + $0xa8] sm:$0xff]
  %v3100 = vld [vmem:[#allocation3 + $0xb0] sm:$0xf]
  %v3101 = vld [vmem:[#allocation3 + $0xcc] sm:$0xff]
  %v3102 = vld [vmem:[#allocation3 + $0xd4] sm:$0xf]
  %v3103 = vld [vmem:[#allocation3 + $0xf0] sm:$0xff]
  %v3104 = vld [vmem:[#allocation3 + $0xf8] sm:$0xf]
  %v3105 = vld [vmem:[#allocation3 + $0x114] sm:$0xff]
  %v3106 = vld [vmem:[#allocation3 + $0x11c] sm:$0xf]
  %v3107 = vld [vmem:[%s2 + $0x180] sm:$0xf]
  %v3108 = vld [vmem:[%s2 + $0x184] sm:$0xf]
  %v3109 = vld [vmem:[%s2 + $0x188] sm:$0xf]
  %v3110 = vld [vmem:[%s2 + $0x18c] sm:$0xf]
  %v3111 = vld [vmem:[%s2 + $0x190] sm:$0xf]
  %v3112 = vld [vmem:[%s2 + $0x194] sm:$0xf]
  %v3113 = vld [vmem:[%s2 + $0x198] sm:$0xf]
  %v3114 = vld [vmem:[%s2 + $0x19c] sm:$0xf]
  %v3115 = vld [vmem:[%s2 + $0x1a0] sm:$0xf]
  %v3116 = vld [vmem:[%s2 + $0x1a4] sm:$0xf]
  %v3117 = vld [vmem:[%s2 + $0x1a8] sm:$0xf]
  %v3118 = vld [vmem:[%s2 + $0x1ac] sm:$0xf]
  %v3119 = vld [vmem:[%s2 + $0x1b0] sm:$0xf]
  %v3120 = vld [vmem:[%s2 + $0x1b4] sm:$0xf]
  %v3121 = vld [vmem:[%s2 + $0x1b8] sm:$0xf]
  %v3122 = vld [vmem:[%s2 + $0x1bc] sm:$0xf]
  %v3123 = vld [vmem:[%s2 + $0x1c0] sm:$0xf]
  %v3124 = vld [vmem:[%s2 + $0x1c4] sm:$0xf]
  %v3125 = vld [vmem:[%s2 + $0x1c8] sm:$0xf]
  %v3126 = vld [vmem:[%s2 + $0x1cc] sm:$0xf]
  %v3127 = vld [vmem:[%s2 + $0x1d0] sm:$0xf]
  %v3128 = vld [vmem:[%s2 + $0x1d4] sm:$0xf]
  %v3129 = vld [vmem:[%s2 + $0x1d8] sm:$0xf]
  %v3130 = vld [vmem:[%s2 + $0x1dc] sm:$0xf]
  %v3131 = vld [vmem:[%s2 + $0x1e0] sm:$0xf]
  %v3132 = vld [vmem:[%s2 + $0x1e4] sm:$0xf]
  %v3133 = vld [vmem:[%s2 + $0x1e8] sm:$0xf]
  %v3134 = vld [vmem:[%s2 + $0x1ec] sm:$0xf]
  %v3135 = vld [vmem:[%s2 + $0x1f0] sm:$0xf]
  %v3136 = vld [vmem:[%s2 + $0x1f4] sm:$0xf]
  %v3137 = vld [vmem:[%s2 + $0x1f8] sm:$0xf]
  %v3138 = vld [vmem:[%s2 + $0x1fc] sm:$0xf]
  %v3139 = vld [vmem:[%s2 + $0x200] sm:$0xf]
  %v3140 = vld [vmem:[%s2 + $0x204] sm:$0xf]
  %v3141 = vld [vmem:[%s2 + $0x208] sm:$0xf]
  %v3142 = vld [vmem:[%s2 + $0x20c] sm:$0xf]
  %v3143 = vld [vmem:[%s2 + $0x210] sm:$0xf]
  %v3144 = vld [vmem:[%s2 + $0x214] sm:$0xf]
  %v3145 = vld [vmem:[%s2 + $0x218] sm:$0xf]
  %v3146 = vld [vmem:[%s2 + $0x21c] sm:$0xf]
  %v3147 = vld [vmem:[%s2 + $0x220] sm:$0xf]
  %v3148 = vld [vmem:[%s2 + $0x224] sm:$0xf]
  %v3149 = vld [vmem:[%s2 + $0x228] sm:$0xf]
  %v3150 = vld [vmem:[%s2 + $0x22c] sm:$0xf]
  %v3151 = vld [vmem:[%s2 + $0x230] sm:$0xf]
  %v3152 = vld [vmem:[%s2 + $0x234] sm:$0xf]
  %v3153 = vld [vmem:[%s2 + $0x238] sm:$0xf]
  %v3154 = vld [vmem:[%s2 + $0x23c] sm:$0xf]
  %v3171 = vunpack.c.l.b16 %v3091
  %v3172 = vunpack.c.h.b16 %v3091
  %v3173 = vunpack.c.l.b16 %v3092
  %v3174 = vunpack.c.l.b16 %v3093
  %v3175 = vunpack.c.h.b16 %v3093
  %v3176 = vunpack.c.l.b16 %v3094
  %v3177 = vunpack.c.l.b16 %v3095
  %v3178 = vunpack.c.h.b16 %v3095
  %v3179 = vunpack.c.l.b16 %v3096
  %v3180 = vunpack.c.l.b16 %v3097
  %v3181 = vunpack.c.h.b16 %v3097
  %v3182 = vunpack.c.l.b16 %v3098
  %v3183 = vunpack.c.l.b16 %v3099
  %v3184 = vunpack.c.h.b16 %v3099
  %v3185 = vunpack.c.l.b16 %v3100
  %v3186 = vunpack.c.l.b16 %v3101
  %v3187 = vunpack.c.h.b16 %v3101
  %v3188 = vunpack.c.l.b16 %v3102
  %v3189 = vunpack.c.l.b16 %v3103
  %v3190 = vunpack.c.h.b16 %v3103
  %v3191 = vunpack.c.l.b16 %v3104
  %v3192 = vunpack.c.l.b16 %v3105
  %v3193 = vunpack.c.h.b16 %v3105
  %v3194 = vunpack.c.l.b16 %v3106
  %v3195 = vpack.c.b16 %v3174, %v3171
  %v3196 = vpack.c.b16 %v3175, %v3172
  %v3197 = vpack.c.b16 %v3176, %v3173
  %v3198 = vpack.c.b16 %v3180, %v3177
  %v3199 = vpack.c.b16 %v3181, %v3178
  %v3200 = vpack.c.b16 %v3182, %v3179
  %v3201 = vpack.c.b16 %v3186, %v3183
  %v3202 = vpack.c.b16 %v3187, %v3184
  %v3203 = vpack.c.b16 %v3188, %v3185
  %v3204 = vpack.c.b16 %v3192, %v3189
  %v3205 = vpack.c.b16 %v3193, %v3190
  %v3206 = vpack.c.b16 %v3194, %v3191
  %v3267 = vunpack.c.l.b16 %v3107
  %v3268 = vunpack.c.l.b16 %v3108
  %v3269 = vunpack.c.l.b16 %v3109
  %v3270 = vunpack.c.l.b16 %v3110
  %v3271 = vunpack.c.l.b16 %v3111
  %v3272 = vunpack.c.l.b16 %v3112
  %v3273 = vunpack.c.l.b16 %v3113
  %v3274 = vunpack.c.l.b16 %v3114
  %v3275 = vunpack.c.l.b16 %v3115
  %v3276 = vunpack.c.l.b16 %v3116
  %v3277 = vunpack.c.l.b16 %v3117
  %v3278 = vunpack.c.l.b16 %v3118
  %v3279 = vunpack.c.l.b16 %v3119
  %v3280 = vunpack.c.l.b16 %v3120
  %v3281 = vunpack.c.l.b16 %v3121
  %v3282 = vunpack.c.l.b16 %v3122
  %v3283 = vunpack.c.l.b16 %v3123
  %v3284 = vunpack.c.l.b16 %v3124
  %v3285 = vunpack.c.l.b16 %v3125
  %v3286 = vunpack.c.l.b16 %v3126
  %v3287 = vunpack.c.l.b16 %v3127
  %v3288 = vunpack.c.l.b16 %v3128
  %v3289 = vunpack.c.l.b16 %v3129
  %v3290 = vunpack.c.l.b16 %v3130
  %v3291 = vunpack.c.l.b16 %v3131
  %v3292 = vunpack.c.l.b16 %v3132
  %v3293 = vunpack.c.l.b16 %v3133
  %v3294 = vunpack.c.l.b16 %v3134
  %v3295 = vunpack.c.l.b16 %v3135
  %v3296 = vunpack.c.l.b16 %v3136
  %v3297 = vunpack.c.l.b16 %v3137
  %v3298 = vunpack.c.l.b16 %v3138
  %v3299 = vunpack.c.l.b16 %v3139
  %v3300 = vunpack.c.l.b16 %v3140
  %v3301 = vunpack.c.l.b16 %v3141
  %v3302 = vunpack.c.l.b16 %v3142
  %v3303 = vunpack.c.l.b16 %v3143
  %v3304 = vunpack.c.l.b16 %v3144
  %v3305 = vunpack.c.l.b16 %v3145
  %v3306 = vunpack.c.l.b16 %v3146
  %v3307 = vunpack.c.l.b16 %v3147
  %v3308 = vunpack.c.l.b16 %v3148
  %v3309 = vunpack.c.l.b16 %v3149
  %v3310 = vunpack.c.l.b16 %v3150
  %v3311 = vunpack.c.l.b16 %v3151
  %v3312 = vunpack.c.l.b16 %v3152
  %v3313 = vunpack.c.l.b16 %v3153
  %v3314 = vunpack.c.l.b16 %v3154
  %v3315 = vpack.c.b16 %v3268, %v3267
  %v3316 = vpack.c.b16 %v3270, %v3269
  %v3317 = vpack.c.b16 %v3272, %v3271
  %v3318 = vpack.c.b16 %v3274, %v3273
  %v3319 = vpack.c.b16 %v3276, %v3275
  %v3320 = vpack.c.b16 %v3278, %v3277
  %v3321 = vpack.c.b16 %v3280, %v3279
  %v3322 = vpack.c.b16 %v3282, %v3281
  %v3323 = vpack.c.b16 %v3284, %v3283
  %v3324 = vpack.c.b16 %v3286, %v3285
  %v3325 = vpack.c.b16 %v3288, %v3287
  %v3326 = vpack.c.b16 %v3290, %v3289
  %v3327 = vpack.c.b16 %v3292, %v3291
  %v3328 = vpack.c.b16 %v3294, %v3293
  %v3329 = vpack.c.b16 %v3296, %v3295
  %v3330 = vpack.c.b16 %v3298, %v3297
  %v3331 = vpack.c.b16 %v3300, %v3299
  %v3332 = vpack.c.b16 %v3302, %v3301
  %v3333 = vpack.c.b16 %v3304, %v3303
  %v3334 = vpack.c.b16 %v3306, %v3305
  %v3335 = vpack.c.b16 %v3308, %v3307
  %v3336 = vpack.c.b16 %v3310, %v3309
  %v3337 = vpack.c.b16 %v3312, %v3311
  %v3338 = vpack.c.b16 %v3314, %v3313
  %3363 = vmatprep.subr.bf16.mxu0 0
  %3364 = vmatpush1.bf16.msra.mxu0 %v3322
  %3365 = vmatprep.subr.bf16.mxu0 0
  %3366 = vmatpush1.bf16.msra.mxu0 %v3321
  %3367 = vmatprep.subr.bf16.mxu0 0
  %3368 = vmatpush1.bf16.msra.mxu0 %v3320
  %3369 = vmatprep.subr.bf16.mxu0 0
  %3370 = vmatpush1.bf16.msra.mxu0 %v3319
  %3371 = vmatprep.subr.bf16.mxu0 0
  %3372 = vmatpush1.bf16.msra.mxu0 %v3318
  %3373 = vmatprep.subr.bf16.mxu0 0
  %3374 = vmatpush1.bf16.msra.mxu0 %v3317
  %3375 = vmatprep.subr.bf16.mxu0 0
  %3376 = vmatpush1.bf16.msra.mxu0 %v3316
  %3377 = vmatprep.subr.bf16.mxu0 0
  %3378 = vmatpush1.bf16.msra.mxu0 %v3315
  %3379 = vmatprep.subr.bf16.mxu0 0
  %3380 = vmatpush2.bf16.msra.mxu0 %v3330
  %3381 = vmatprep.subr.bf16.mxu0 0
  %3382 = vmatpush2.bf16.msra.mxu0 %v3329
  %3383 = vmatprep.subr.bf16.mxu0 0
  %3384 = vmatpush2.bf16.msra.mxu0 %v3328
  %3385 = vmatprep.subr.bf16.mxu0 0
  %3386 = vmatpush2.bf16.msra.mxu0 %v3327
  %3387 = vmatprep.subr.bf16.mxu0 0
  %3388 = vmatpush2.bf16.msra.mxu0 %v3326
  %3389 = vmatprep.subr.bf16.mxu0 0
  %3390 = vmatpush2.bf16.msra.mxu0 %v3325
  %3391 = vmatprep.subr.bf16.mxu0 0
  %3392 = vmatpush2.bf16.msra.mxu0 %v3324
  %3393 = vmatprep.subr.bf16.mxu0 0
  %3394 = vmatpush2.bf16.msra.mxu0 %v3323
  %3395 = vmatprep.mubr.bf16.mxu0 %v3196
  %3396 = vmatmul.mubr.bf16.gmra.mxu0 %v3195
  %v3397 = vpop.f32.mrf.mxu0
  %v3398 = vadd.f32 0.0, %v3397
  %v3399 = vpop.f32.mrf.mxu0
  %v3400 = vpop.f32.mrf.mxu0
  %v3401 = vadd.f32 0.0, %v3400
  %v3402 = vpop.f32.mrf.mxu0
  %3403 = vmatprep.mubr.bf16.mxu0 %v3199
  %3404 = vmatmul.mubr.bf16.gmra.mxu0 %v3198
  %v3405 = vpop.f32.mrf.mxu0
  %v3406 = vadd.f32 0.0, %v3405
  %v3407 = vpop.f32.mrf.mxu0
  %v3408 = vpop.f32.mrf.mxu0
  %v3409 = vadd.f32 0.0, %v3408
  %v3410 = vpop.f32.mrf.mxu0
  %3411 = vmatprep.mubr.bf16.mxu0 %v3202
  %3412 = vmatmul.mubr.bf16.gmra.mxu0 %v3201
  %v3413 = vpop.f32.mrf.mxu0
  %v3414 = vadd.f32 0.0, %v3413
  %v3415 = vpop.f32.mrf.mxu0
  %v3416 = vpop.f32.mrf.mxu0
  %v3417 = vadd.f32 0.0, %v3416
  %v3418 = vpop.f32.mrf.mxu0
  %3419 = vmatprep.mubr.bf16.mxu0 %v3205
  %3420 = vmatmul.mubr.bf16.gmra.mxu0 %v3204
  %v3421 = vpop.f32.mrf.mxu0
  %v3422 = vadd.f32 0.0, %v3421
  %v3423 = vpop.f32.mrf.mxu0
  %v3424 = vpop.f32.mrf.mxu0
  %v3425 = vadd.f32 0.0, %v3424
  %v3426 = vpop.f32.mrf.mxu0
  %3427 = vdwg.mxu0
  %3428 = vmatprep.subr.bf16.mxu0 0
  %3429 = vmatpush1.bf16.msra.mxu0 %v3338
  %3430 = vmatprep.subr.bf16.mxu0 0
  %3431 = vmatpush1.bf16.msra.mxu0 %v3337
  %3432 = vmatprep.subr.bf16.mxu0 0
  %3433 = vmatpush1.bf16.msra.mxu0 %v3336
  %3434 = vmatprep.subr.bf16.mxu0 0
  %3435 = vmatpush1.bf16.msra.mxu0 %v3335
  %3436 = vmatprep.subr.bf16.mxu0 0
  %3437 = vmatpush1.bf16.msra.mxu0 %v3334
  %3438 = vmatprep.subr.bf16.mxu0 0
  %3439 = vmatpush1.bf16.msra.mxu0 %v3333
  %3440 = vmatprep.subr.bf16.mxu0 0
  %3441 = vmatpush1.bf16.msra.mxu0 %v3332
  %3442 = vmatprep.subr.bf16.mxu0 0
  %3443 = vmatpush1.bf16.msra.mxu0 %v3331
  %3444 = vmatprep.subr.bf16.mxu0 0
  %3445 = vmatpush2.bf16.msra.mxu0 0
  %3446 = vmatprep.subr.bf16.mxu0 0
  %3447 = vmatpush2.bf16.msra.mxu0 0
  %3448 = vmatprep.subr.bf16.mxu0 0
  %3449 = vmatpush2.bf16.msra.mxu0 0
  %3450 = vmatprep.subr.bf16.mxu0 0
  %3451 = vmatpush2.bf16.msra.mxu0 0
  %3452 = vmatprep.subr.bf16.mxu0 0
  %3453 = vmatpush2.bf16.msra.mxu0 0
  %3454 = vmatprep.subr.bf16.mxu0 0
  %3455 = vmatpush2.bf16.msra.mxu0 0
  %3456 = vmatprep.subr.bf16.mxu0 0
  %3457 = vmatpush2.bf16.msra.mxu0 0
  %3458 = vmatprep.subr.bf16.mxu0 0
  %3459 = vmatpush2.bf16.msra.mxu0 0
  %3460 = vmatprep.mubr.bf16.mxu0 0
  %3461 = vmatmul.mubr.bf16.gmra.mxu0 %v3197
  %v3462 = vpop.f32.mrf.mxu0
  %v3463 = vadd.f32 %v3398, %v3462
  %v3464 = vpop.f32.mrf.mxu0
  %v3465 = vpop.f32.mrf.mxu0
  %v3466 = vadd.f32 %v3401, %v3465
  %v3467 = vpop.f32.mrf.mxu0
  %3468 = vmatprep.mubr.bf16.mxu0 0
  %3469 = vmatmul.mubr.bf16.gmra.mxu0 %v3200
  %v3470 = vpop.f32.mrf.mxu0
  %v3471 = vadd.f32 %v3406, %v3470
  %v3472 = vpop.f32.mrf.mxu0
  %v3473 = vpop.f32.mrf.mxu0
  %v3474 = vadd.f32 %v3409, %v3473
  %v3475 = vpop.f32.mrf.mxu0
  %3476 = vmatprep.mubr.bf16.mxu0 0
  %3477 = vmatmul.mubr.bf16.gmra.mxu0 %v3203
  %v3478 = vpop.f32.mrf.mxu0
  %v3479 = vadd.f32 %v3414, %v3478
  %v3480 = vpop.f32.mrf.mxu0
  %v3481 = vpop.f32.mrf.mxu0
  %v3482 = vadd.f32 %v3417, %v3481
  %v3483 = vpop.f32.mrf.mxu0
  %3484 = vmatprep.mubr.bf16.mxu0 0
  %3485 = vmatmul.mubr.bf16.gmra.mxu0 %v3206
  %v3486 = vpop.f32.mrf.mxu0
  %v3487 = vadd.f32 %v3422, %v3486
  %v3488 = vpop.f32.mrf.mxu0
  %v3489 = vpop.f32.mrf.mxu0
  %v3490 = vadd.f32 %v3425, %v3489
  %v3491 = vpop.f32.mrf.mxu0
  %3492 = vdwg.mxu0
  %v3493 = vadd.f32 %v3061, %v3463
  %v3494 = vadd.f32 %v3064, %v3466
  %v3495 = vadd.f32 %v3069, %v3471
  %v3496 = vadd.f32 %v3072, %v3474
  %v3497 = vadd.f32 %v3077, %v3479
  %v3498 = vadd.f32 %v3080, %v3482
  %v3499 = vadd.f32 %v3085, %v3487
  %v3500 = vadd.f32 %v3088, %v3490
  %s3501 = scalar_lea.vmem %s3, 64
  %v3502 = vld [vmem:[%s3501] sm:$0xff]
  %v3503 = vld [vmem:[%s3501 + $0x8] sm:$0xff]
  %v3504 = vld [vmem:[%s3501 + $0x10] sm:$0xff]
  %v3505 = vld [vmem:[%s3501 + $0x18] sm:$0xff]
  %v3506 = vld [vmem:[%s3501 + $0x20] sm:$0xff]
  %v3507 = vld [vmem:[%s3501 + $0x28] sm:$0xff]
  %v3508 = vld [vmem:[%s3501 + $0x30] sm:$0xff]
  %v3509 = vld [vmem:[%s3501 + $0x38] sm:$0xff]
  %v3510 = vadd.f32 %v3493, %v3502
  %v3511 = vadd.f32 %v3494, %v3503
  %v3512 = vadd.f32 %v3495, %v3504
  %v3513 = vadd.f32 %v3496, %v3505
  %v3514 = vadd.f32 %v3497, %v3506
  %v3515 = vadd.f32 %v3498, %v3507
  %v3516 = vadd.f32 %v3499, %v3508
  %v3517 = vadd.f32 %v3500, %v3509
  %s3518 = scalar_lea.vmem %s5, 64
  %3519 = vst [vmem:[%s3518] sm:$0xff] %v3510
  %3520 = vst [vmem:[%s3518 + $0x8] sm:$0xff] %v3511
  %3521 = vst [vmem:[%s3518 + $0x10] sm:$0xff] %v3512
  %3522 = vst [vmem:[%s3518 + $0x18] sm:$0xff] %v3513
  %3523 = vst [vmem:[%s3518 + $0x20] sm:$0xff] %v3514
  %3524 = vst [vmem:[%s3518 + $0x28] sm:$0xff] %v3515
  %3525 = vst [vmem:[%s3518 + $0x30] sm:$0xff] %v3516
  %3526 = vst [vmem:[%s3518 + $0x38] sm:$0xff] %v3517
  // Predicated region
  $region22: #{basic_block_forward.5} parent=0 // pred_check
    _
  $region23: #{basic_block_forward.5} parent=0 // pred_check_branch
    %3528 = sbr.rel (0) target = $region25
  $region24: #{basic_block_forward.5} parent=0 // pred_region
    _
  $region25: #{basic_block_forward.5} parent=0 // pred_fallthru
    _
  // Predicated region
  $region26: #{basic_block_forward.5} parent=0 // pred_check
    _
  $region27: #{basic_block_forward.5} parent=0 // pred_check_branch
    %3530 = sbr.rel (0) target = $region29
  $region28: #{basic_block_forward.5} parent=0 // pred_region
    _
  $region29: #{basic_block_forward.5} parent=0 // pred_fallthru
    _

</llo_original>
